<compile_context>
chip_gen: v7x
topology: tpu7x:2x2x1
jax: 0.10.0
libtpu: 0.0.40
codegen_flags: <defaults>
</compile_context>

<pallas_src>
import math

import jax
import jax.numpy as jnp
from jax.experimental import pallas as pl
from jax.experimental.pallas import tpu as pltpu

# Keep jnp matmuls (reference + offline weight folding) in true f32 so they
# agree with the in-kernel MXU f32 dots.
jax.config.update("jax_default_matmul_precision", "highest")

_NEG = -1e30  # fill for padded logit lanes: never wins argmax, sliced away.


def _round_up(x, m):
    return ((x + m - 1) // m) * m


def _uniform(key, shape, bound):
    return jax.random.uniform(key, shape, jnp.float32, -bound, bound)


# ---------------------------------------------------------------------------
# Fused kernel: one batch tile per grid step ("parallel"); all S hierarchical
# stages are unrolled inside the kernel with the GRU state carried in vregs.
# ---------------------------------------------------------------------------
def _make_kernel(layout_a, layout_b, dims, num_stages, teacher_forcing):
    X_PAD, EH, H, HP = dims["X_PAD"], dims["EH"], dims["H"], dims["HP"]
    G3P, CH, C_PAD = dims["G3P"], dims["CH"], dims["C_PAD"]
    we1_r, be1_r = layout_a["we1"], layout_a["be1"]
    wi_r, bi_r = layout_a["wi"], layout_a["bi"]
    v1_r, c1_r = layout_a["v1"], layout_a["c1"]
    v2_r, c2_r = layout_b["v2"], layout_b["c2"]
    f32 = jnp.float32

    def kernel(doc_ref, slab_a_ref, slab_b_ref, shared_ref, *rest):
        if teacher_forcing:
            tf_ref, out_ref = rest
        else:
            (out_ref,) = rest

        x = doc_ref[...]                       # (BT, X_PAD) stage-0 input
        bt = x.shape[0]
        h = jnp.zeros((bt, H), f32)            # GRU h0 = zeros (torch default)

        # Shared GRU hidden->gate weights: constant index_map -> fetched once.
        wh = shared_ref[0:H, 0:G3P]
        bh = shared_ref[H:H + 1, 0:G3P]

        # Statically unrolled stage loop; all slab slices are static & aligned.
        for i in range(num_stages):
            we1 = slab_a_ref[i, we1_r:we1_r + X_PAD, 0:EH]
            be1 = slab_a_ref[i, be1_r:be1_r + 1, 0:EH]
            wi = slab_a_ref[i, wi_r:wi_r + EH, 0:G3P]    # we2 folded in offline
            bi = slab_a_ref[i, bi_r:bi_r + 1, 0:G3P]
            v1 = slab_a_ref[i, v1_r:v1_r + H, 0:CH]
            c1 = slab_a_ref[i, c1_r:c1_r + 1, 0:CH]
            v2 = slab_b_ref[i, v2_r:v2_r + CH, 0:C_PAD]
            c2 = slab_b_ref[i, c2_r:c2_r + 1, 0:C_PAD]

            # Embedding MLP hidden layer (2nd Linear pre-folded into `wi`).
            e_h = jnp.maximum(
                jnp.dot(x, we1, preferred_element_type=f32) + be1, 0.0)

            # GRU cell: two fused gate matmuls; gate stride HP is lane-aligned
            # so the r/z/n slices need no cross-lane realignment.
            gi = jnp.dot(e_h, wi, preferred_element_type=f32) + bi   # (BT,3HP)
            gh = jnp.dot(h, wh, preferred_element_type=f32) + bh     # (BT,3HP)
            r = jax.nn.sigmoid(gi[:, 0:H] + gh[:, 0:H])
            z = jax.nn.sigmoid(gi[:, HP:HP + H] + gh[:, HP:HP + H])
            n = jnp.tanh(gi[:, 2 * HP:2 * HP + H]
                         + r * gh[:, 2 * HP:2 * HP + H])
            h = (1.0 - z) * n + z * h

            # Classifier MLP (padded logit lanes carry -1e30 via c2 padding).
            c_h = jnp.maximum(
                jnp.dot(h, v1, preferred_element_type=f32) + c1, 0.0)
            logits = jnp.dot(c_h, v2, preferred_element_type=f32) + c2
            out_ref[i] = logits                # lane-dense (BT, C_PAD) store

            # Feedback one-hot for the next stage (skipped on the last stage).
            if i < num_stages - 1:
                if teacher_forcing:
                    x = tf_ref[i]              # true-label one-hot, no argmax
                else:
                    col = jax.lax.broadcasted_iota(jnp.int32, (bt, C_PAD), 1)
                    mx = jnp.max(logits, axis=1, keepdims=True)
                    idx = jnp.min(jnp.where(logits == mx, col, C_PAD),
                                  axis=1, keepdims=True)   # first-max (torch)
                    colx = jax.lax.broadcasted_iota(jnp.int32, (bt, X_PAD), 1)
                    x = (colx == idx).astype(f32)

    return kernel


def _build_fused_call(layout_a, layout_b, dims, num_stages, b_pad, bt,
                      rows_a, rows_b, rows_s, w_a, w_b, teacher_forcing):
    kernel = _make_kernel(layout_a, layout_b, dims, num_stages, teacher_forcing)
    X_PAD, C_PAD, H = dims["X_PAD"], dims["C_PAD"], dims["H"]
    EH, G3P, CH = dims["EH"], dims["G3P"], dims["CH"]
    S = num_stages
    nbt = b_pad // bt

    weight_bytes = 4 * (S * rows_a * w_a + S * rows_b * w_b + rows_s * w_a)
    # TODO(synk): if resident weights ever approach the VMEM budget (huge
    # output_sizes), fall back to a per-stage-grid variant that streams slabs.
    assert weight_bytes < (40 << 20), "stage weights too large to keep resident"

    per_tile_bytes = 4 * (bt * X_PAD + S * bt * C_PAD
                          + (S * bt * X_PAD if teacher_forcing else 0))
    need = 2 * weight_bytes + 4 * per_tile_bytes + (4 << 20)
    vmem_limit = int(min(max(need, 32 << 20), 64 << 20))   # v7x budget cap

    in_specs = [
        # document embedding: one batch tile per grid step
        pl.BlockSpec((bt, X_PAD), lambda b: (b, 0)),
        # narrow per-stage weight slab: constant index -> VMEM-resident
        pl.BlockSpec((S, rows_a, w_a), lambda b: (0, 0, 0)),
        # wide classifier slab (v2/c2): constant index -> VMEM-resident
        pl.BlockSpec((S, rows_b, w_b), lambda b: (0, 0, 0)),
        # shared GRU weights: constant index -> fetched once
        pl.BlockSpec((rows_s, w_a), lambda b: (0, 0)),
    ]
    if teacher_forcing:
        # true-label one-hots, per batch tile (absent entirely when free-running)
        in_specs.append(pl.BlockSpec((S, bt, X_PAD), lambda b: (0, b, 0)))
    out_specs = pl.BlockSpec((S, bt, C_PAD), lambda b: (0, b, 0))

    flops = 2 * b_pad * S * (X_PAD * EH + EH * G3P + H * G3P
                             + H * CH + CH * C_PAD)
    io_bytes = 4 * (b_pad * X_PAD + S * b_pad * C_PAD
                    + (S * b_pad * X_PAD if teacher_forcing else 0))

    call = pl.pallas_call(
        kernel,
        out_shape=jax.ShapeDtypeStruct((S, b_pad, C_PAD), jnp.float32),
        grid=(nbt,),
        in_specs=in_specs,
        out_specs=out_specs,
        compiler_params=pltpu.CompilerParams(
            dimension_semantics=("parallel",),     # batch tiles independent
            vmem_limit_bytes=vmem_limit),
        cost_estimate=pl.CostEstimate(
            flops=int(flops),
            transcendentals=int(3 * b_pad * H * S),
            bytes_accessed=int(weight_bytes + io_bytes)),
    )
    return jax.jit(call)


# ---------------------------------------------------------------------------
# Module wrapper: parameter construction (PyTorch-style uniform init),
# weight packing/folding, and the jitted fused forward.
# ---------------------------------------------------------------------------
class HierarchicalRNNPallas:
    def __init__(self, key, input_size, emb_size, output_sizes,
                 emb_size_mults=(1,), clf_size_mults=(1,),
                 rnn_size_mult=1, rnn_n_hidden=1):
        # TODO(synk): only single-hidden-layer MLPs and a 1-layer GRU are
        # implemented (the module defaults); deeper variants not supported.
        assert len(emb_size_mults) == 1 and len(clf_size_mults) == 1
        assert rnn_n_hidden == 1
        self.output_sizes = tuple(output_sizes)
        self.S = len(self.output_sizes)

        E = emb_size
        H = E * rnn_size_mult
        EH = E * emb_size_mults[0]                      # embedding-MLP hidden
        CH = max(c * clf_size_mults[0] for c in self.output_sizes)
        C_PAD = _round_up(max(self.output_sizes), 128)  # lane-dense logits
        X_PAD = _round_up(max((input_size,) + self.output_sizes[:-1]), 8)
        HP = _round_up(H, 128)                          # lane-aligned gate stride
        G3P = 3 * HP
        W_A = _round_up(max(EH, G3P, CH), 128)          # narrow slab width
        W_B = C_PAD                                     # classifier slab width
        self.dims = dict(E=E, H=H, HP=HP, EH=EH, CH=CH,
                         C_PAD=C_PAD, X_PAD=X_PAD, G3P=G3P)
        self.W_A, self.W_B = W_A, W_B

        # Row layouts (8-row-aligned sub-blocks) of the two per-stage slabs.
        layout_a, r = {}, 0
        for name, rows in (("we1", X_PAD), ("be1", 1), ("wi", EH), ("bi", 1),
                           ("v1", H), ("c1", 1)):
            layout_a[name] = r
            r = _round_up(r + rows, 8)
        self.layout_a, self.rows_a = layout_a, _round_up(r, 8)

        layout_b, r = {}, 0
        for name, rows in (("v2", CH), ("c2", 1)):
            layout_b[name] = r
            r = _round_up(r + rows, 8)
        self.layout_b, self.rows_b = layout_b, _round_up(r, 8)

        self.rows_s = _round_up(H + 1, 8)

        keys = iter(jax.random.split(key, 10 + 8 * self.S))

        # Shared GRU params, gates in torch (r, z, n) order.
        bH = 1.0 / math.sqrt(H)
        wi_raw = _uniform(next(keys), (E, 3 * H), bH)
        wh_raw = _uniform(next(keys), (H, 3 * H), bH)
        bi_raw = _uniform(next(keys), (1, 3 * H), bH)
        bh_raw = _uniform(next(keys), (1, 3 * H), bH)
        self._gru_raw = dict(wi=wi_raw, wh=wh_raw, bi=bi_raw, bh=bh_raw)

        def pack_gates(m):  # (..., 3H) -> (..., 3*HP); gate k at lane k*HP
            out = jnp.zeros(m.shape[:-1] + (G3P,), jnp.float32)
            for k in range(3):
                out = out.at[..., k * HP:k * HP + H].set(
                    m[..., k * H:(k + 1) * H])
            return out

        # Per-stage params: raw copies (pure-JAX reference) + packed slabs.
        self._stage_raw = []
        slabs_a, slabs_b = [], []
        emb_in_sizes = (input_size,) + self.output_sizes[:-1]
        for d_in, d_out in zip(emb_in_sizes, self.output_sizes):
            ch = d_out * clf_size_mults[0]
            b_e1, b_e2 = 1.0 / math.sqrt(d_in), 1.0 / math.sqrt(EH)
            b_c1, b_c2 = 1.0 / math.sqrt(H), 1.0 / math.sqrt(ch)
            raw = dict(
                we1=_uniform(next(keys), (d_in, EH), b_e1),
                be1=_uniform(next(keys), (1, EH), b_e1),
                we2=_uniform(next(keys), (EH, E), b_e2),
                be2=_uniform(next(keys), (1, E), b_e2),
                v1=_uniform(next(keys), (H, ch), b_c1),
                c1=_uniform(next(keys), (1, ch), b_c1),
                v2=_uniform(next(keys), (ch, d_out), b_c2),
                c2=_uniform(next(keys), (1, d_out), b_c2),
            )
            self._stage_raw.append(raw)

            # Fold the 2nd embedding Linear into the GRU input-gate weights,
            # then re-stride the gates to the lane-aligned HP layout.
            wi_fold = pack_gates(raw["we2"] @ wi_raw)            # (EH, 3*HP)
            bi_fold = pack_gates(raw["be2"] @ wi_raw + bi_raw)   # (1, 3*HP)

            La = layout_a
            sa = jnp.zeros((self.rows_a, W_A), jnp.float32)
            sa = sa.at[La["we1"]:La["we1"] + d_in, 0:EH].set(raw["we1"])
            sa = sa.at[La["be1"], 0:EH].set(raw["be1"][0])
            sa = sa.at[La["wi"]:La["wi"] + EH, 0:G3P].set(wi_fold)
            sa = sa.at[La["bi"], 0:G3P].set(bi_fold[0])
            sa = sa.at[La["v1"]:La["v1"] + H, 0:ch].set(raw["v1"])
            sa = sa.at[La["c1"], 0:ch].set(raw["c1"][0])
            slabs_a.append(sa)

            Lb = layout_b
            sb = jnp.zeros((self.rows_b, W_B), jnp.float32)
            sb = sb.at[Lb["v2"]:Lb["v2"] + ch, 0:d_out].set(raw["v2"])
            c2_row = jnp.full((C_PAD,), _NEG, jnp.float32)
            c2_row = c2_row.at[0:d_out].set(raw["c2"][0])
            sb = sb.at[Lb["c2"], 0:C_PAD].set(c2_row)
            slabs_b.append(sb)

        self.slab_a = jnp.stack(slabs_a, axis=0)   # (S, rows_a, W_A)
        self.slab_b = jnp.stack(slabs_b, axis=0)   # (S, rows_b, W_B)

        shared = jnp.zeros((self.rows_s, W_A), jnp.float32)
        shared = shared.at[0:H, 0:G3P].set(pack_gates(wh_raw))
        shared = shared.at[H, 0:G3P].set(pack_gates(bh_raw)[0])
        self.shared_slab = shared

        self._fused_cache = {}

    def _get_fused(self, b_pad, bt, teacher_forcing):
        key_ = (b_pad, bt, teacher_forcing)
        fn = self._fused_cache.get(key_)
        if fn is None:
            fn = _build_fused_call(self.layout_a, self.layout_b, self.dims,
                                   self.S, b_pad, bt, self.rows_a, self.rows_b,
                                   self.rows_s, self.W_A, self.W_B,
                                   teacher_forcing)
            self._fused_cache[key_] = fn
        return fn

    def forward(self, doc_emb, true_labs=None):
        """doc_emb: (batch, input_size) f32. Returns list of (batch, C_i) logits."""
        B, d_in0 = doc_emb.shape
        X_PAD, S = self.dims["X_PAD"], self.S
        b8 = _round_up(max(B, 8), 8)           # sublane-align batch
        bt = min(b8, 256)                      # MXU-filling batch tile
        b_pad = _round_up(b8, bt)              # >1 tile -> parallel axis (2 TCs)

        doc_pad = jnp.zeros((b_pad, X_PAD), jnp.float32)
        doc_pad = doc_pad.at[:B, :d_in0].set(doc_emb.astype(jnp.float32))

        if true_labs is None:
            fn = self._get_fused(b_pad, bt, False)
            logits_all = fn(doc_pad, self.slab_a, self.slab_b, self.shared_slab)
        else:
            assert true_labs.shape[1] == S
            rows = []
            for i, C in enumerate(self.output_sizes):
                if i == S - 1:                 # last stage feedback never used
                    rows.append(jnp.zeros((b_pad, X_PAD), jnp.float32))
                    continue
                oh = jax.nn.one_hot(true_labs[:, i], C, dtype=jnp.float32)
                rows.append(jnp.zeros((b_pad, X_PAD), jnp.float32)
                            .at[:B, :C].set(oh))
            tf = jnp.stack(rows, axis=0)
            fn = self._get_fused(b_pad, bt, True)
            logits_all = fn(doc_pad, self.slab_a, self.slab_b,
                            self.shared_slab, tf)

        return [logits_all[i, :B, :C] for i, C in enumerate(self.output_sizes)]

    # Pure-JAX, unfused, unpadded reference (mirrors the PyTorch module).
    def reference_forward(self, doc_emb, true_labs=None):
        H = self.dims["H"]
        g = self._gru_raw
        B = doc_emb.shape[0]
        h = jnp.zeros((B, H), jnp.float32)
        x = doc_emb.astype(jnp.float32)
        preds = []
        for i, C in enumerate(self.output_sizes):
            p = self._stage_raw[i]
            e = jnp.maximum(x @ p["we1"] + p["be1"], 0.0)
            e = e @ p["we2"] + p["be2"]
            gi = e @ g["wi"] + g["bi"]
            gh = h @ g["wh"] + g["bh"]
            r = jax.nn.sigmoid(gi[:, :H] + gh[:, :H])
            z = jax.nn.sigmoid(gi[:, H:2 * H] + gh[:, H:2 * H])
            n = jnp.tanh(gi[:, 2 * H:] + r * gh[:, 2 * H:])
            h = (1.0 - z) * n + z * h
            c = jnp.maximum(h @ p["v1"] + p["c1"], 0.0)
            logits = c @ p["v2"] + p["c2"]
            preds.append(logits)
            idx = jnp.argmax(logits, axis=1) if true_labs is None else true_labs[:, i]
            x = jax.nn.one_hot(idx, C, dtype=jnp.float32)
        return preds


if __name__ == "__main__":
    key = jax.random.PRNGKey(0)
    k_params, k_x, k_lab = jax.random.split(key, 3)

    batch = 2
    input_size = 16
    emb_size = 32
    output_sizes = (8, 12, 6)

    model = HierarchicalRNNPallas(k_params, input_size, emb_size, output_sizes)
    doc_emb = jax.random.normal(k_x, (batch, input_size), jnp.float32)

    # Free-running path (argmax feedback).
    preds = jax.block_until_ready(model.forward(doc_emb))
    assert len(preds) == len(output_sizes)
    for p, c in zip(preds, output_sizes):
        assert p.shape == (batch, c) and p.dtype == jnp.float32
    refs = model.reference_forward(doc_emb)
    for p, r in zip(preds, refs):
        assert jnp.allclose(p, r, atol=1e-3, rtol=1e-3), \
            float(jnp.max(jnp.abs(p - r)))

    # Teacher-forcing path.
    true_labs = jnp.stack(
        [jax.random.randint(jax.random.fold_in(k_lab, i), (batch,), 0, c)
         for i, c in enumerate(output_sizes)], axis=1)
    preds_tf = jax.block_until_ready(model.forward(doc_emb, true_labs))
    refs_tf = model.reference_forward(doc_emb, true_labs)
    for p, r in zip(preds_tf, refs_tf):
        assert jnp.allclose(p, r, atol=1e-3, rtol=1e-3), \
            float(jnp.max(jnp.abs(p - r)))

    print("KERNEL_OK")
</pallas_src>

<mosaic_0001>
module attributes {stable_mosaic.version = 11 : i64} {
  func.func @kernel(%arg0: i32, %arg1: memref<8x16xf32, #tpu.memory_space<vmem>>, %arg2: memref<3x104x384xf32, #tpu.memory_space<vmem>>, %arg3: memref<3x24x128xf32, #tpu.memory_space<vmem>>, %arg4: memref<40x384xf32, #tpu.memory_space<vmem>>, %arg5: memref<3x8x128xf32, #tpu.memory_space<vmem>>) attributes {dimension_semantics = [#tpu.dimension_semantics<parallel>], iteration_bounds = array<i64: 1>, scalar_prefetch = 0 : i64, scratch_operands = 0 : i64, tpu.core_type = #tpu.core_type<tc>, window_params = [{transform_indices = @transform_0, window_bounds = array<i64: 8, 16>}, {pipeline_mode = #tpu.pipeline_mode<synchronous>, transform_indices = @transform_1, window_bounds = array<i64: 3, 104, 384>}, {pipeline_mode = #tpu.pipeline_mode<synchronous>, transform_indices = @transform_2, window_bounds = array<i64: 3, 24, 128>}, {pipeline_mode = #tpu.pipeline_mode<synchronous>, transform_indices = @transform_3, window_bounds = array<i64: 40, 384>}, {transform_indices = @transform_4, window_bounds = array<i64: 3, 8, 128>}]} {
    %c0 = arith.constant 0 : index
    %c0_0 = arith.constant 0 : index
    %0 = vector.load %arg1[%c0, %c0_0] : memref<8x16xf32, #tpu.memory_space<vmem>>, vector<8x16xf32>
    %cst = arith.constant 0.000000e+00 : f32
    %1 = vector.broadcast %cst : f32 to vector<8x32xf32>
    %c0_1 = arith.constant 0 : index
    %c0_2 = arith.constant 0 : index
    %2 = vector.load %arg4[%c0_1, %c0_2] : memref<40x384xf32, #tpu.memory_space<vmem>>, vector<32x384xf32>
    %c32 = arith.constant 32 : index
    %c0_3 = arith.constant 0 : index
    %3 = vector.load %arg4[%c32, %c0_3] : memref<40x384xf32, #tpu.memory_space<vmem>>, vector<1x384xf32>
    %c0_4 = arith.constant 0 : index
    %c0_5 = arith.constant 0 : index
    %c0_6 = arith.constant 0 : index
    %4 = vector.load %arg2[%c0_4, %c0_5, %c0_6] : memref<3x104x384xf32, #tpu.memory_space<vmem>>, vector<1x16x32xf32>
    %5 = vector.shape_cast %4 : vector<1x16x32xf32> to vector<16x32xf32>
    %c0_7 = arith.constant 0 : index
    %c16 = arith.constant 16 : index
    %c0_8 = arith.constant 0 : index
    %6 = vector.load %arg2[%c0_7, %c16, %c0_8] : memref<3x104x384xf32, #tpu.memory_space<vmem>>, vector<1x1x32xf32>
    %7 = vector.shape_cast %6 : vector<1x1x32xf32> to vector<1x32xf32>
    %c0_9 = arith.constant 0 : index
    %c24 = arith.constant 24 : index
    %c0_10 = arith.constant 0 : index
    %8 = vector.load %arg2[%c0_9, %c24, %c0_10] : memref<3x104x384xf32, #tpu.memory_space<vmem>>, vector<1x32x384xf32>
    %9 = vector.shape_cast %8 : vector<1x32x384xf32> to vector<32x384xf32>
    %c0_11 = arith.constant 0 : index
    %c56 = arith.constant 56 : index
    %c0_12 = arith.constant 0 : index
    %10 = vector.load %arg2[%c0_11, %c56, %c0_12] : memref<3x104x384xf32, #tpu.memory_space<vmem>>, vector<1x1x384xf32>
    %11 = vector.shape_cast %10 : vector<1x1x384xf32> to vector<1x384xf32>
    %c0_13 = arith.constant 0 : index
    %c64 = arith.constant 64 : index
    %c0_14 = arith.constant 0 : index
    %12 = vector.load %arg2[%c0_13, %c64, %c0_14] : memref<3x104x384xf32, #tpu.memory_space<vmem>>, vector<1x32x12xf32>
    %13 = vector.shape_cast %12 : vector<1x32x12xf32> to vector<32x12xf32>
    %c0_15 = arith.constant 0 : index
    %c96 = arith.constant 96 : index
    %c0_16 = arith.constant 0 : index
    %14 = vector.load %arg2[%c0_15, %c96, %c0_16] : memref<3x104x384xf32, #tpu.memory_space<vmem>>, vector<1x1x12xf32>
    %15 = vector.shape_cast %14 : vector<1x1x12xf32> to vector<1x12xf32>
    %c0_17 = arith.constant 0 : index
    %c0_18 = arith.constant 0 : index
    %c0_19 = arith.constant 0 : index
    %16 = vector.load %arg3[%c0_17, %c0_18, %c0_19] : memref<3x24x128xf32, #tpu.memory_space<vmem>>, vector<1x12x128xf32>
    %17 = vector.shape_cast %16 : vector<1x12x128xf32> to vector<12x128xf32>
    %c0_20 = arith.constant 0 : index
    %c16_21 = arith.constant 16 : index
    %c0_22 = arith.constant 0 : index
    %18 = vector.load %arg3[%c0_20, %c16_21, %c0_22] : memref<3x24x128xf32, #tpu.memory_space<vmem>>, vector<1x1x128xf32>
    %19 = vector.shape_cast %18 : vector<1x1x128xf32> to vector<1x128xf32>
    %cst_23 = arith.constant dense<0.000000e+00> : vector<8x32xf32>
    %20 = tpu.matmul %0, %5, %cst_23 {dimension_numbers = #tpu.dot_dimension_numbers<[1], [0], [0], [1], [0, 0, 1, 1], [], []>, precision = #tpu.contract_precision<fp32>} : vector<8x16xf32>, vector<16x32xf32>, vector<8x32xf32> -> vector<8x32xf32>
    %21 = vector.broadcast %7 : vector<1x32xf32> to vector<8x32xf32>
    %22 = arith.addf %20, %21 : vector<8x32xf32>
    %cst_24 = arith.constant 0.000000e+00 : f32
    %23 = vector.broadcast %cst_24 : f32 to vector<8x32xf32>
    %24 = arith.maximumf %22, %23 : vector<8x32xf32>
    %cst_25 = arith.constant dense<0.000000e+00> : vector<8x384xf32>
    %25 = tpu.matmul %24, %9, %cst_25 {dimension_numbers = #tpu.dot_dimension_numbers<[1], [0], [0], [1], [0, 0, 1, 1], [], []>, precision = #tpu.contract_precision<fp32>} : vector<8x32xf32>, vector<32x384xf32>, vector<8x384xf32> -> vector<8x384xf32>
    %26 = vector.broadcast %11 : vector<1x384xf32> to vector<8x384xf32>
    %27 = arith.addf %25, %26 : vector<8x384xf32>
    %cst_26 = arith.constant dense<0.000000e+00> : vector<8x384xf32>
    %28 = tpu.matmul %1, %2, %cst_26 {dimension_numbers = #tpu.dot_dimension_numbers<[1], [0], [0], [1], [0, 0, 1, 1], [], []>, precision = #tpu.contract_precision<fp32>} : vector<8x32xf32>, vector<32x384xf32>, vector<8x384xf32> -> vector<8x384xf32>
    %29 = vector.broadcast %3 : vector<1x384xf32> to vector<8x384xf32>
    %30 = arith.addf %28, %29 : vector<8x384xf32>
    %31 = vector.extract_strided_slice %27 {offsets = [0, 0], sizes = [8, 32], strides = [1, 1]} : vector<8x384xf32> to vector<8x32xf32>
    %32 = vector.extract_strided_slice %30 {offsets = [0, 0], sizes = [8, 32], strides = [1, 1]} : vector<8x384xf32> to vector<8x32xf32>
    %33 = arith.addf %31, %32 : vector<8x32xf32>
    %34 = arith.negf %33 : vector<8x32xf32>
    %35 = math.exp %34 : vector<8x32xf32>
    %cst_27 = arith.constant 1.000000e+00 : f32
    %36 = vector.broadcast %cst_27 : f32 to vector<8x32xf32>
    %37 = arith.addf %36, %35 : vector<8x32xf32>
    %38 = arith.divf %36, %37 : vector<8x32xf32>
    %39 = vector.extract_strided_slice %27 {offsets = [0, 128], sizes = [8, 32], strides = [1, 1]} : vector<8x384xf32> to vector<8x32xf32>
    %40 = vector.extract_strided_slice %30 {offsets = [0, 128], sizes = [8, 32], strides = [1, 1]} : vector<8x384xf32> to vector<8x32xf32>
    %41 = arith.addf %39, %40 : vector<8x32xf32>
    %42 = arith.negf %41 : vector<8x32xf32>
    %43 = math.exp %42 : vector<8x32xf32>
    %cst_28 = arith.constant 1.000000e+00 : f32
    %44 = vector.broadcast %cst_28 : f32 to vector<8x32xf32>
    %45 = arith.addf %44, %43 : vector<8x32xf32>
    %46 = arith.divf %44, %45 : vector<8x32xf32>
    %47 = vector.extract_strided_slice %27 {offsets = [0, 256], sizes = [8, 32], strides = [1, 1]} : vector<8x384xf32> to vector<8x32xf32>
    %48 = vector.extract_strided_slice %30 {offsets = [0, 256], sizes = [8, 32], strides = [1, 1]} : vector<8x384xf32> to vector<8x32xf32>
    %49 = arith.mulf %38, %48 : vector<8x32xf32>
    %50 = arith.addf %47, %49 : vector<8x32xf32>
    %51 = math.tanh %50 : vector<8x32xf32>
    %cst_29 = arith.constant 1.000000e+00 : f32
    %52 = vector.broadcast %cst_29 : f32 to vector<8x32xf32>
    %53 = arith.subf %52, %46 : vector<8x32xf32>
    %54 = arith.mulf %53, %51 : vector<8x32xf32>
    %55 = arith.mulf %46, %1 : vector<8x32xf32>
    %56 = arith.addf %54, %55 : vector<8x32xf32>
    %cst_30 = arith.constant dense<0.000000e+00> : vector<8x12xf32>
    %57 = tpu.matmul %56, %13, %cst_30 {dimension_numbers = #tpu.dot_dimension_numbers<[1], [0], [0], [1], [0, 0, 1, 1], [], []>, precision = #tpu.contract_precision<fp32>} : vector<8x32xf32>, vector<32x12xf32>, vector<8x12xf32> -> vector<8x12xf32>
    %58 = vector.broadcast %15 : vector<1x12xf32> to vector<8x12xf32>
    %59 = arith.addf %57, %58 : vector<8x12xf32>
    %cst_31 = arith.constant 0.000000e+00 : f32
    %60 = vector.broadcast %cst_31 : f32 to vector<8x12xf32>
    %61 = arith.maximumf %59, %60 : vector<8x12xf32>
    %cst_32 = arith.constant dense<0.000000e+00> : vector<8x128xf32>
    %62 = tpu.matmul %61, %17, %cst_32 {dimension_numbers = #tpu.dot_dimension_numbers<[1], [0], [0], [1], [0, 0, 1, 1], [], []>, precision = #tpu.contract_precision<fp32>} : vector<8x12xf32>, vector<12x128xf32>, vector<8x128xf32> -> vector<8x128xf32>
    %63 = vector.broadcast %19 : vector<1x128xf32> to vector<8x128xf32>
    %64 = arith.addf %62, %63 : vector<8x128xf32>
    %c0_33 = arith.constant 0 : index
    %c0_34 = arith.constant 0 : index
    %c0_35 = arith.constant 0 : index
    %65 = vector.load %arg5[%c0_33, %c0_34, %c0_35] : memref<3x8x128xf32, #tpu.memory_space<vmem>>, vector<1x8x128xf32>
    %66 = vector.shape_cast %65 : vector<1x8x128xf32> to vector<8x128xf32>
    %67 = vector.shape_cast %64 : vector<8x128xf32> to vector<1x8x128xf32>
    tpu.vector_store %arg5[%c0_33, %c0_34, %c0_35], %67 {strides = array<i32>} : memref<3x8x128xf32, #tpu.memory_space<vmem>>, vector<1x8x128xf32>,
    %68 = tpu.iota {dimensions = array<i32: 1>} : vector<8x128xi32>
    %cst_36 = arith.constant dense<0xFF800000> : vector<8xf32>
    %69 = vector.multi_reduction <maximumf>, %64, %cst_36 [1] : vector<8x128xf32> to vector<8xf32>
    %70 = vector.shape_cast %69 : vector<8xf32> to vector<8x1xf32>
    %71 = vector.broadcast %70 : vector<8x1xf32> to vector<8x128xf32>
    %72 = arith.cmpf oeq, %64, %71 : vector<8x128xf32>
    %c128_i32 = arith.constant 128 : i32
    %73 = vector.broadcast %c128_i32 : i32 to vector<8x128xi32>
    %74 = arith.select %72, %68, %73 : vector<8x128xi1>, vector<8x128xi32>
    %cst_37 = arith.constant dense<2147483647> : vector<8xi32>
    %75 = vector.multi_reduction <minsi>, %74, %cst_37 [1] : vector<8x128xi32> to vector<8xi32>
    %76 = vector.shape_cast %75 : vector<8xi32> to vector<8x1xi32>
    %77 = tpu.iota {dimensions = array<i32: 1>} : vector<8x16xi32>
    %78 = vector.broadcast %76 : vector<8x1xi32> to vector<8x16xi32>
    %79 = arith.cmpi eq, %77, %78 : vector<8x16xi32>
    %80 = arith.extui %79 : vector<8x16xi1> to vector<8x16xi32>
    %81 = arith.sitofp %80 : vector<8x16xi32> to vector<8x16xf32>
    %c1 = arith.constant 1 : index
    %c0_38 = arith.constant 0 : index
    %c0_39 = arith.constant 0 : index
    %82 = vector.load %arg2[%c1, %c0_38, %c0_39] : memref<3x104x384xf32, #tpu.memory_space<vmem>>, vector<1x16x32xf32>
    %83 = vector.shape_cast %82 : vector<1x16x32xf32> to vector<16x32xf32>
    %c1_40 = arith.constant 1 : index
    %c16_41 = arith.constant 16 : index
    %c0_42 = arith.constant 0 : index
    %84 = vector.load %arg2[%c1_40, %c16_41, %c0_42] : memref<3x104x384xf32, #tpu.memory_space<vmem>>, vector<1x1x32xf32>
    %85 = vector.shape_cast %84 : vector<1x1x32xf32> to vector<1x32xf32>
    %c1_43 = arith.constant 1 : index
    %c24_44 = arith.constant 24 : index
    %c0_45 = arith.constant 0 : index
    %86 = vector.load %arg2[%c1_43, %c24_44, %c0_45] : memref<3x104x384xf32, #tpu.memory_space<vmem>>, vector<1x32x384xf32>
    %87 = vector.shape_cast %86 : vector<1x32x384xf32> to vector<32x384xf32>
    %c1_46 = arith.constant 1 : index
    %c56_47 = arith.constant 56 : index
    %c0_48 = arith.constant 0 : index
    %88 = vector.load %arg2[%c1_46, %c56_47, %c0_48] : memref<3x104x384xf32, #tpu.memory_space<vmem>>, vector<1x1x384xf32>
    %89 = vector.shape_cast %88 : vector<1x1x384xf32> to vector<1x384xf32>
    %c1_49 = arith.constant 1 : index
    %c64_50 = arith.constant 64 : index
    %c0_51 = arith.constant 0 : index
    %90 = vector.load %arg2[%c1_49, %c64_50, %c0_51] : memref<3x104x384xf32, #tpu.memory_space<vmem>>, vector<1x32x12xf32>
    %91 = vector.shape_cast %90 : vector<1x32x12xf32> to vector<32x12xf32>
    %c1_52 = arith.constant 1 : index
    %c96_53 = arith.constant 96 : index
    %c0_54 = arith.constant 0 : index
    %92 = vector.load %arg2[%c1_52, %c96_53, %c0_54] : memref<3x104x384xf32, #tpu.memory_space<vmem>>, vector<1x1x12xf32>
    %93 = vector.shape_cast %92 : vector<1x1x12xf32> to vector<1x12xf32>
    %c1_55 = arith.constant 1 : index
    %c0_56 = arith.constant 0 : index
    %c0_57 = arith.constant 0 : index
    %94 = vector.load %arg3[%c1_55, %c0_56, %c0_57] : memref<3x24x128xf32, #tpu.memory_space<vmem>>, vector<1x12x128xf32>
    %95 = vector.shape_cast %94 : vector<1x12x128xf32> to vector<12x128xf32>
    %c1_58 = arith.constant 1 : index
    %c16_59 = arith.constant 16 : index
    %c0_60 = arith.constant 0 : index
    %96 = vector.load %arg3[%c1_58, %c16_59, %c0_60] : memref<3x24x128xf32, #tpu.memory_space<vmem>>, vector<1x1x128xf32>
    %97 = vector.shape_cast %96 : vector<1x1x128xf32> to vector<1x128xf32>
    %cst_61 = arith.constant dense<0.000000e+00> : vector<8x32xf32>
    %98 = tpu.matmul %81, %83, %cst_61 {dimension_numbers = #tpu.dot_dimension_numbers<[1], [0], [0], [1], [0, 0, 1, 1], [], []>, precision = #tpu.contract_precision<fp32>} : vector<8x16xf32>, vector<16x32xf32>, vector<8x32xf32> -> vector<8x32xf32>
    %99 = vector.broadcast %85 : vector<1x32xf32> to vector<8x32xf32>
    %100 = arith.addf %98, %99 : vector<8x32xf32>
    %cst_62 = arith.constant 0.000000e+00 : f32
    %101 = vector.broadcast %cst_62 : f32 to vector<8x32xf32>
    %102 = arith.maximumf %100, %101 : vector<8x32xf32>
    %cst_63 = arith.constant dense<0.000000e+00> : vector<8x384xf32>
    %103 = tpu.matmul %102, %87, %cst_63 {dimension_numbers = #tpu.dot_dimension_numbers<[1], [0], [0], [1], [0, 0, 1, 1], [], []>, precision = #tpu.contract_precision<fp32>} : vector<8x32xf32>, vector<32x384xf32>, vector<8x384xf32> -> vector<8x384xf32>
    %104 = vector.broadcast %89 : vector<1x384xf32> to vector<8x384xf32>
    %105 = arith.addf %103, %104 : vector<8x384xf32>
    %cst_64 = arith.constant dense<0.000000e+00> : vector<8x384xf32>
    %106 = tpu.matmul %56, %2, %cst_64 {dimension_numbers = #tpu.dot_dimension_numbers<[1], [0], [0], [1], [0, 0, 1, 1], [], []>, precision = #tpu.contract_precision<fp32>} : vector<8x32xf32>, vector<32x384xf32>, vector<8x384xf32> -> vector<8x384xf32>
    %107 = vector.broadcast %3 : vector<1x384xf32> to vector<8x384xf32>
    %108 = arith.addf %106, %107 : vector<8x384xf32>
    %109 = vector.extract_strided_slice %105 {offsets = [0, 0], sizes = [8, 32], strides = [1, 1]} : vector<8x384xf32> to vector<8x32xf32>
    %110 = vector.extract_strided_slice %108 {offsets = [0, 0], sizes = [8, 32], strides = [1, 1]} : vector<8x384xf32> to vector<8x32xf32>
    %111 = arith.addf %109, %110 : vector<8x32xf32>
    %112 = arith.negf %111 : vector<8x32xf32>
    %113 = math.exp %112 : vector<8x32xf32>
    %cst_65 = arith.constant 1.000000e+00 : f32
    %114 = vector.broadcast %cst_65 : f32 to vector<8x32xf32>
    %115 = arith.addf %114, %113 : vector<8x32xf32>
    %116 = arith.divf %114, %115 : vector<8x32xf32>
    %117 = vector.extract_strided_slice %105 {offsets = [0, 128], sizes = [8, 32], strides = [1, 1]} : vector<8x384xf32> to vector<8x32xf32>
    %118 = vector.extract_strided_slice %108 {offsets = [0, 128], sizes = [8, 32], strides = [1, 1]} : vector<8x384xf32> to vector<8x32xf32>
    %119 = arith.addf %117, %118 : vector<8x32xf32>
    %120 = arith.negf %119 : vector<8x32xf32>
    %121 = math.exp %120 : vector<8x32xf32>
    %cst_66 = arith.constant 1.000000e+00 : f32
    %122 = vector.broadcast %cst_66 : f32 to vector<8x32xf32>
    %123 = arith.addf %122, %121 : vector<8x32xf32>
    %124 = arith.divf %122, %123 : vector<8x32xf32>
    %125 = vector.extract_strided_slice %105 {offsets = [0, 256], sizes = [8, 32], strides = [1, 1]} : vector<8x384xf32> to vector<8x32xf32>
    %126 = vector.extract_strided_slice %108 {offsets = [0, 256], sizes = [8, 32], strides = [1, 1]} : vector<8x384xf32> to vector<8x32xf32>
    %127 = arith.mulf %116, %126 : vector<8x32xf32>
    %128 = arith.addf %125, %127 : vector<8x32xf32>
    %129 = math.tanh %128 : vector<8x32xf32>
    %cst_67 = arith.constant 1.000000e+00 : f32
    %130 = vector.broadcast %cst_67 : f32 to vector<8x32xf32>
    %131 = arith.subf %130, %124 : vector<8x32xf32>
    %132 = arith.mulf %131, %129 : vector<8x32xf32>
    %133 = arith.mulf %124, %56 : vector<8x32xf32>
    %134 = arith.addf %132, %133 : vector<8x32xf32>
    %cst_68 = arith.constant dense<0.000000e+00> : vector<8x12xf32>
    %135 = tpu.matmul %134, %91, %cst_68 {dimension_numbers = #tpu.dot_dimension_numbers<[1], [0], [0], [1], [0, 0, 1, 1], [], []>, precision = #tpu.contract_precision<fp32>} : vector<8x32xf32>, vector<32x12xf32>, vector<8x12xf32> -> vector<8x12xf32>
    %136 = vector.broadcast %93 : vector<1x12xf32> to vector<8x12xf32>
    %137 = arith.addf %135, %136 : vector<8x12xf32>
    %cst_69 = arith.constant 0.000000e+00 : f32
    %138 = vector.broadcast %cst_69 : f32 to vector<8x12xf32>
    %139 = arith.maximumf %137, %138 : vector<8x12xf32>
    %cst_70 = arith.constant dense<0.000000e+00> : vector<8x128xf32>
    %140 = tpu.matmul %139, %95, %cst_70 {dimension_numbers = #tpu.dot_dimension_numbers<[1], [0], [0], [1], [0, 0, 1, 1], [], []>, precision = #tpu.contract_precision<fp32>} : vector<8x12xf32>, vector<12x128xf32>, vector<8x128xf32> -> vector<8x128xf32>
    %141 = vector.broadcast %97 : vector<1x128xf32> to vector<8x128xf32>
    %142 = arith.addf %140, %141 : vector<8x128xf32>
    %c1_71 = arith.constant 1 : index
    %c0_72 = arith.constant 0 : index
    %c0_73 = arith.constant 0 : index
    %143 = vector.load %arg5[%c1_71, %c0_72, %c0_73] : memref<3x8x128xf32, #tpu.memory_space<vmem>>, vector<1x8x128xf32>
    %144 = vector.shape_cast %143 : vector<1x8x128xf32> to vector<8x128xf32>
    %145 = vector.shape_cast %142 : vector<8x128xf32> to vector<1x8x128xf32>
    tpu.vector_store %arg5[%c1_71, %c0_72, %c0_73], %145 {strides = array<i32>} : memref<3x8x128xf32, #tpu.memory_space<vmem>>, vector<1x8x128xf32>,
    %146 = tpu.iota {dimensions = array<i32: 1>} : vector<8x128xi32>
    %cst_74 = arith.constant dense<0xFF800000> : vector<8xf32>
    %147 = vector.multi_reduction <maximumf>, %142, %cst_74 [1] : vector<8x128xf32> to vector<8xf32>
    %148 = vector.shape_cast %147 : vector<8xf32> to vector<8x1xf32>
    %149 = vector.broadcast %148 : vector<8x1xf32> to vector<8x128xf32>
    %150 = arith.cmpf oeq, %142, %149 : vector<8x128xf32>
    %c128_i32_75 = arith.constant 128 : i32
    %151 = vector.broadcast %c128_i32_75 : i32 to vector<8x128xi32>
    %152 = arith.select %150, %146, %151 : vector<8x128xi1>, vector<8x128xi32>
    %cst_76 = arith.constant dense<2147483647> : vector<8xi32>
    %153 = vector.multi_reduction <minsi>, %152, %cst_76 [1] : vector<8x128xi32> to vector<8xi32>
    %154 = vector.shape_cast %153 : vector<8xi32> to vector<8x1xi32>
    %155 = tpu.iota {dimensions = array<i32: 1>} : vector<8x16xi32>
    %156 = vector.broadcast %154 : vector<8x1xi32> to vector<8x16xi32>
    %157 = arith.cmpi eq, %155, %156 : vector<8x16xi32>
    %158 = arith.extui %157 : vector<8x16xi1> to vector<8x16xi32>
    %159 = arith.sitofp %158 : vector<8x16xi32> to vector<8x16xf32>
    %c2 = arith.constant 2 : index
    %c0_77 = arith.constant 0 : index
    %c0_78 = arith.constant 0 : index
    %160 = vector.load %arg2[%c2, %c0_77, %c0_78] : memref<3x104x384xf32, #tpu.memory_space<vmem>>, vector<1x16x32xf32>
    %161 = vector.shape_cast %160 : vector<1x16x32xf32> to vector<16x32xf32>
    %c2_79 = arith.constant 2 : index
    %c16_80 = arith.constant 16 : index
    %c0_81 = arith.constant 0 : index
    %162 = vector.load %arg2[%c2_79, %c16_80, %c0_81] : memref<3x104x384xf32, #tpu.memory_space<vmem>>, vector<1x1x32xf32>
    %163 = vector.shape_cast %162 : vector<1x1x32xf32> to vector<1x32xf32>
    %c2_82 = arith.constant 2 : index
    %c24_83 = arith.constant 24 : index
    %c0_84 = arith.constant 0 : index
    %164 = vector.load %arg2[%c2_82, %c24_83, %c0_84] : memref<3x104x384xf32, #tpu.memory_space<vmem>>, vector<1x32x384xf32>
    %165 = vector.shape_cast %164 : vector<1x32x384xf32> to vector<32x384xf32>
    %c2_85 = arith.constant 2 : index
    %c56_86 = arith.constant 56 : index
    %c0_87 = arith.constant 0 : index
    %166 = vector.load %arg2[%c2_85, %c56_86, %c0_87] : memref<3x104x384xf32, #tpu.memory_space<vmem>>, vector<1x1x384xf32>
    %167 = vector.shape_cast %166 : vector<1x1x384xf32> to vector<1x384xf32>
    %c2_88 = arith.constant 2 : index
    %c64_89 = arith.constant 64 : index
    %c0_90 = arith.constant 0 : index
    %168 = vector.load %arg2[%c2_88, %c64_89, %c0_90] : memref<3x104x384xf32, #tpu.memory_space<vmem>>, vector<1x32x12xf32>
    %169 = vector.shape_cast %168 : vector<1x32x12xf32> to vector<32x12xf32>
    %c2_91 = arith.constant 2 : index
    %c96_92 = arith.constant 96 : index
    %c0_93 = arith.constant 0 : index
    %170 = vector.load %arg2[%c2_91, %c96_92, %c0_93] : memref<3x104x384xf32, #tpu.memory_space<vmem>>, vector<1x1x12xf32>
    %171 = vector.shape_cast %170 : vector<1x1x12xf32> to vector<1x12xf32>
    %c2_94 = arith.constant 2 : index
    %c0_95 = arith.constant 0 : index
    %c0_96 = arith.constant 0 : index
    %172 = vector.load %arg3[%c2_94, %c0_95, %c0_96] : memref<3x24x128xf32, #tpu.memory_space<vmem>>, vector<1x12x128xf32>
    %173 = vector.shape_cast %172 : vector<1x12x128xf32> to vector<12x128xf32>
    %c2_97 = arith.constant 2 : index
    %c16_98 = arith.constant 16 : index
    %c0_99 = arith.constant 0 : index
    %174 = vector.load %arg3[%c2_97, %c16_98, %c0_99] : memref<3x24x128xf32, #tpu.memory_space<vmem>>, vector<1x1x128xf32>
    %175 = vector.shape_cast %174 : vector<1x1x128xf32> to vector<1x128xf32>
    %cst_100 = arith.constant dense<0.000000e+00> : vector<8x32xf32>
    %176 = tpu.matmul %159, %161, %cst_100 {dimension_numbers = #tpu.dot_dimension_numbers<[1], [0], [0], [1], [0, 0, 1, 1], [], []>, precision = #tpu.contract_precision<fp32>} : vector<8x16xf32>, vector<16x32xf32>, vector<8x32xf32> -> vector<8x32xf32>
    %177 = vector.broadcast %163 : vector<1x32xf32> to vector<8x32xf32>
    %178 = arith.addf %176, %177 : vector<8x32xf32>
    %cst_101 = arith.constant 0.000000e+00 : f32
    %179 = vector.broadcast %cst_101 : f32 to vector<8x32xf32>
    %180 = arith.maximumf %178, %179 : vector<8x32xf32>
    %cst_102 = arith.constant dense<0.000000e+00> : vector<8x384xf32>
    %181 = tpu.matmul %180, %165, %cst_102 {dimension_numbers = #tpu.dot_dimension_numbers<[1], [0], [0], [1], [0, 0, 1, 1], [], []>, precision = #tpu.contract_precision<fp32>} : vector<8x32xf32>, vector<32x384xf32>, vector<8x384xf32> -> vector<8x384xf32>
    %182 = vector.broadcast %167 : vector<1x384xf32> to vector<8x384xf32>
    %183 = arith.addf %181, %182 : vector<8x384xf32>
    %cst_103 = arith.constant dense<0.000000e+00> : vector<8x384xf32>
    %184 = tpu.matmul %134, %2, %cst_103 {dimension_numbers = #tpu.dot_dimension_numbers<[1], [0], [0], [1], [0, 0, 1, 1], [], []>, precision = #tpu.contract_precision<fp32>} : vector<8x32xf32>, vector<32x384xf32>, vector<8x384xf32> -> vector<8x384xf32>
    %185 = vector.broadcast %3 : vector<1x384xf32> to vector<8x384xf32>
    %186 = arith.addf %184, %185 : vector<8x384xf32>
    %187 = vector.extract_strided_slice %183 {offsets = [0, 0], sizes = [8, 32], strides = [1, 1]} : vector<8x384xf32> to vector<8x32xf32>
    %188 = vector.extract_strided_slice %186 {offsets = [0, 0], sizes = [8, 32], strides = [1, 1]} : vector<8x384xf32> to vector<8x32xf32>
    %189 = arith.addf %187, %188 : vector<8x32xf32>
    %190 = arith.negf %189 : vector<8x32xf32>
    %191 = math.exp %190 : vector<8x32xf32>
    %cst_104 = arith.constant 1.000000e+00 : f32
    %192 = vector.broadcast %cst_104 : f32 to vector<8x32xf32>
    %193 = arith.addf %192, %191 : vector<8x32xf32>
    %194 = arith.divf %192, %193 : vector<8x32xf32>
    %195 = vector.extract_strided_slice %183 {offsets = [0, 128], sizes = [8, 32], strides = [1, 1]} : vector<8x384xf32> to vector<8x32xf32>
    %196 = vector.extract_strided_slice %186 {offsets = [0, 128], sizes = [8, 32], strides = [1, 1]} : vector<8x384xf32> to vector<8x32xf32>
    %197 = arith.addf %195, %196 : vector<8x32xf32>
    %198 = arith.negf %197 : vector<8x32xf32>
    %199 = math.exp %198 : vector<8x32xf32>
    %cst_105 = arith.constant 1.000000e+00 : f32
    %200 = vector.broadcast %cst_105 : f32 to vector<8x32xf32>
    %201 = arith.addf %200, %199 : vector<8x32xf32>
    %202 = arith.divf %200, %201 : vector<8x32xf32>
    %203 = vector.extract_strided_slice %183 {offsets = [0, 256], sizes = [8, 32], strides = [1, 1]} : vector<8x384xf32> to vector<8x32xf32>
    %204 = vector.extract_strided_slice %186 {offsets = [0, 256], sizes = [8, 32], strides = [1, 1]} : vector<8x384xf32> to vector<8x32xf32>
    %205 = arith.mulf %194, %204 : vector<8x32xf32>
    %206 = arith.addf %203, %205 : vector<8x32xf32>
    %207 = math.tanh %206 : vector<8x32xf32>
    %cst_106 = arith.constant 1.000000e+00 : f32
    %208 = vector.broadcast %cst_106 : f32 to vector<8x32xf32>
    %209 = arith.subf %208, %202 : vector<8x32xf32>
    %210 = arith.mulf %209, %207 : vector<8x32xf32>
    %211 = arith.mulf %202, %134 : vector<8x32xf32>
    %212 = arith.addf %210, %211 : vector<8x32xf32>
    %cst_107 = arith.constant dense<0.000000e+00> : vector<8x12xf32>
    %213 = tpu.matmul %212, %169, %cst_107 {dimension_numbers = #tpu.dot_dimension_numbers<[1], [0], [0], [1], [0, 0, 1, 1], [], []>, precision = #tpu.contract_precision<fp32>} : vector<8x32xf32>, vector<32x12xf32>, vector<8x12xf32> -> vector<8x12xf32>
    %214 = vector.broadcast %171 : vector<1x12xf32> to vector<8x12xf32>
    %215 = arith.addf %213, %214 : vector<8x12xf32>
    %cst_108 = arith.constant 0.000000e+00 : f32
    %216 = vector.broadcast %cst_108 : f32 to vector<8x12xf32>
    %217 = arith.maximumf %215, %216 : vector<8x12xf32>
    %cst_109 = arith.constant dense<0.000000e+00> : vector<8x128xf32>
    %218 = tpu.matmul %217, %173, %cst_109 {dimension_numbers = #tpu.dot_dimension_numbers<[1], [0], [0], [1], [0, 0, 1, 1], [], []>, precision = #tpu.contract_precision<fp32>} : vector<8x12xf32>, vector<12x128xf32>, vector<8x128xf32> -> vector<8x128xf32>
    %219 = vector.broadcast %175 : vector<1x128xf32> to vector<8x128xf32>
    %220 = arith.addf %218, %219 : vector<8x128xf32>
    %c2_110 = arith.constant 2 : index
    %c0_111 = arith.constant 0 : index
    %c0_112 = arith.constant 0 : index
    %221 = vector.load %arg5[%c2_110, %c0_111, %c0_112] : memref<3x8x128xf32, #tpu.memory_space<vmem>>, vector<1x8x128xf32>
    %222 = vector.shape_cast %221 : vector<1x8x128xf32> to vector<8x128xf32>
    %223 = vector.shape_cast %220 : vector<8x128xf32> to vector<1x8x128xf32>
    tpu.vector_store %arg5[%c2_110, %c0_111, %c0_112], %223 {strides = array<i32>} : memref<3x8x128xf32, #tpu.memory_space<vmem>>, vector<1x8x128xf32>,
    return
  }
  func.func @transform_0(%arg0: i32) -> (i32, i32) {
    %c0_i32 = arith.constant 0 : i32
    %c0_i32_0 = arith.constant 0 : i32
    return %arg0, %c0_i32 : i32, i32
  }
  func.func @transform_1(%arg0: i32) -> (i32, i32, i32) {
    %c0_i32 = arith.constant 0 : i32
    %c0_i32_0 = arith.constant 0 : i32
    %c0_i32_1 = arith.constant 0 : i32
    %c0_i32_2 = arith.constant 0 : i32
    return %c0_i32, %c0_i32_0, %c0_i32_1 : i32, i32, i32
  }
  func.func @transform_2(%arg0: i32) -> (i32, i32, i32) {
    %c0_i32 = arith.constant 0 : i32
    %c0_i32_0 = arith.constant 0 : i32
    %c0_i32_1 = arith.constant 0 : i32
    %c0_i32_2 = arith.constant 0 : i32
    return %c0_i32, %c0_i32_0, %c0_i32_1 : i32, i32, i32
  }
  func.func @transform_3(%arg0: i32) -> (i32, i32) {
    %c0_i32 = arith.constant 0 : i32
    %c0_i32_0 = arith.constant 0 : i32
    %c0_i32_1 = arith.constant 0 : i32
    return %c0_i32, %c0_i32_0 : i32, i32
  }
  func.func @transform_4(%arg0: i32) -> (i32, i32, i32) {
    %c0_i32 = arith.constant 0 : i32
    %c0_i32_0 = arith.constant 0 : i32
    %c0_i32_1 = arith.constant 0 : i32
    return %c0_i32, %arg0, %c0_i32_0 : i32, i32, i32
  }
}

</mosaic_0001>

<llo_original>
// kernel: tpu_custom_call.1
$region0: #{tpu_custom_call.1}
  #allocation0 [shape = 'u32[]', space=smem, size = 0x4, offset = 0x4, fixed_abs, tag = 'smem constant byte address 0x4 - core index']
  #allocation1 [shape = 'u32[144,128]{1,0:T(1,128)}', space=vmem, size = 0x12000, scoped, tag = 'internal scratch']
  %s0 = inlined_call_operand.hbm [shape: f32[8,16], index: 0, kind: input, shape index: {}]
  %s1 = inlined_call_operand.hbm [shape: f32[3,104,384], index: 1, kind: input, shape index: {}]
  %s2 = inlined_call_operand.hbm [shape: f32[3,24,128], index: 2, kind: input, shape index: {}]
  %s3 = inlined_call_operand.hbm [shape: f32[40,384], index: 3, kind: input, shape index: {}]
  %s4 = inlined_call_operand.hbm [shape: f32[3,8,128], index: 4, kind: output, shape index: {}]
  %s5 = sld [smem:[#allocation0]]
  $region42: #{tpu_custom_call.1} parent=0
    _
  %s7 = ssub.s32 1, %s5
  %s8 = scalar_select 0, %s7, %s5
  $region1: #{tpu_custom_call.1} parent=0
    #allocation2 [shape = 'u8[4096]{0}', space=vmem, size = 0x1000, scoped, tag = 'input window, operand 0, single buffered']
    #allocation3 [shape = 's32[1]{0}', space=sflag, size = 0x4, scoped, tag = 'scoped memory for tpu_custom_call.1']
    #allocation4 [shape = 's32[1]{0}', space=sflag, size = 0x4, scoped, tag = 'scoped memory for tpu_custom_call.1']
    #allocation5 [shape = 'u8[479232]{0}', space=vmem, size = 0x75000, scoped, tag = 'input window, operand 1, single buffered']
    #allocation6 [shape = 's32[1]{0}', space=sflag, size = 0x4, scoped, tag = 'scoped memory for tpu_custom_call.1']
    #allocation7 [shape = 'u8[36864]{0}', space=vmem, size = 0x9000, scoped, tag = 'input window, operand 2, single buffered']
    #allocation8 [shape = 'u8[61440]{0}', space=vmem, size = 0xf000, scoped, tag = 'input window, operand 3, single buffered']
    #allocation9 [shape = 's32[1]{0}', space=sflag, size = 0x4, scoped, tag = 'scoped memory for tpu_custom_call.1']
    #allocation10 [shape = 'u8[12288]{0}', space=vmem, size = 0x3000, scoped, tag = 'output window, operand 0, single buffered']
    %9 = vsyncpa [#allocation3], 0
    %10 = vsyncpa [#allocation6], 0
    %11 = vsyncpa [#allocation9], 0
    %12 = vsyncpa [#allocation4], 0
    // Predicated region
    $region2: #{tpu_custom_call.1} parent=1 // pred_check
      _
    $region3: #{tpu_custom_call.1} parent=1 // pred_check_branch
      %14 = sbr.rel (0) target = $region5
    $region4: #{tpu_custom_call.1} parent=1 // pred_region
      %s16 = ssub.s32 128, 128
      %17 = vsyncadd [#allocation3], %s16
      %s19 = sshll.u32 [#allocation2], 4
      %s20 = int_to_ptr.vmem [resolvable:$true] %s19
      %22 = dma.hbm_to_vmem [thread:$0]  %s0, 128, %s20, [#allocation3]
    $region5: #{tpu_custom_call.1} parent=1 // pred_fallthru
      _
    // Predicated region
    $region6: #{tpu_custom_call.1} parent=1 // pred_check
      _
    $region7: #{tpu_custom_call.1} parent=1 // pred_check_branch
      %24 = sbr.rel (0) target = $region9
    $region8: #{tpu_custom_call.1} parent=1 // pred_region
      %s26 = ssub.s32 14976, 14976
      %27 = vsyncadd [#allocation6], %s26
      %s28 = sshll.u32 [#allocation5], 4
      %s29 = int_to_ptr.vmem [resolvable:$true] %s28
      %34 = dma.hbm_to_vmem [thread:$0]  %s1, 14976, %s29, [#allocation6], 384, 384, 24
    $region9: #{tpu_custom_call.1} parent=1 // pred_fallthru
      _
    // Predicated region
    $region10: #{tpu_custom_call.1} parent=1 // pred_check
      _
    $region11: #{tpu_custom_call.1} parent=1 // pred_check_branch
      %36 = sbr.rel (0) target = $region13
    $region12: #{tpu_custom_call.1} parent=1 // pred_region
      %s38 = ssub.s32 1152, 1152
      %39 = vsyncadd [#allocation6], %s38
      %s40 = sshll.u32 [#allocation7], 4
      %s41 = int_to_ptr.vmem [resolvable:$true] %s40
      %46 = dma.hbm_to_vmem [thread:$0]  %s2, 1152, %s41, [#allocation6], 128, 128, 8
    $region13: #{tpu_custom_call.1} parent=1 // pred_fallthru
      _
    // Predicated region
    $region14: #{tpu_custom_call.1} parent=1 // pred_check
      _
    $region15: #{tpu_custom_call.1} parent=1 // pred_check_branch
      %48 = sbr.rel (0) target = $region17
    $region16: #{tpu_custom_call.1} parent=1 // pred_region
      %s50 = ssub.s32 1920, 1920
      %51 = vsyncadd [#allocation9], %s50
      %s52 = sshll.u32 [#allocation8], 4
      %s53 = int_to_ptr.vmem [resolvable:$true] %s52
      %58 = dma.hbm_to_vmem [thread:$0]  %s3, 1920, %s53, [#allocation9], 384, 384, 24
    $region17: #{tpu_custom_call.1} parent=1 // pred_fallthru
      _
    // Predicated region
    $region18: #{tpu_custom_call.1} parent=1 // pred_check
      _
    $region19: #{tpu_custom_call.1} parent=1 // pred_check_branch
      %60 = sbr.rel (0) target = $region21
    $region20: #{tpu_custom_call.1} parent=1 // pred_region
      %61 = dma.done [#allocation3], 128
    $region21: #{tpu_custom_call.1} parent=1 // pred_fallthru
      _
    // Predicated region
    $region22: #{tpu_custom_call.1} parent=1 // pred_check
      _
    $region23: #{tpu_custom_call.1} parent=1 // pred_check_branch
      %63 = sbr.rel (0) target = $region25
    $region24: #{tpu_custom_call.1} parent=1 // pred_region
      %64 = dma.done [#allocation6], 14976
    $region25: #{tpu_custom_call.1} parent=1 // pred_fallthru
      _
    // Predicated region
    $region26: #{tpu_custom_call.1} parent=1 // pred_check
      _
    $region27: #{tpu_custom_call.1} parent=1 // pred_check_branch
      %66 = sbr.rel (0) target = $region29
    $region28: #{tpu_custom_call.1} parent=1 // pred_region
      %67 = dma.done [#allocation6], 1152
    $region29: #{tpu_custom_call.1} parent=1 // pred_fallthru
      _
    // Predicated region
    $region30: #{tpu_custom_call.1} parent=1 // pred_check
      _
    $region31: #{tpu_custom_call.1} parent=1 // pred_check_branch
      %69 = sbr.rel (0) target = $region33
    $region32: #{tpu_custom_call.1} parent=1 // pred_region
      %70 = dma.done [#allocation9], 1920
    $region33: #{tpu_custom_call.1} parent=1 // pred_fallthru
      _
    %v71 = vld [vmem:[#allocation2] sm:$0xff]
    %v72 = vld [vmem:[#allocation8] sm:$0xff]
    %v73 = vld [vmem:[#allocation8 + $0x8] sm:$0xff]
    %v74 = vld [vmem:[#allocation8 + $0x10] sm:$0xff]
    %v75 = vld [vmem:[#allocation8 + $0x18] sm:$0xff]
    %v76 = vld [vmem:[#allocation8 + $0x20] sm:$0xff]
    %v77 = vld [vmem:[#allocation8 + $0x28] sm:$0xff]
    %v78 = vld [vmem:[#allocation8 + $0x30] sm:$0xff]
    %v79 = vld [vmem:[#allocation8 + $0x38] sm:$0xff]
    %v80 = vld [vmem:[#allocation8 + $0x40] sm:$0xff]
    %v81 = vld [vmem:[#allocation8 + $0x48] sm:$0xff]
    %v82 = vld [vmem:[#allocation8 + $0x50] sm:$0xff]
    %v83 = vld [vmem:[#allocation8 + $0x58] sm:$0xff]
    %s84 = scalar_lea.vmem [#allocation8], 96
    %v85 = vld [vmem:[%s84] ss:$8 sm:$0x7]
    %v86 = vld [vmem:[#allocation5] sm:$0xff]
    %v87 = vld [vmem:[#allocation5 + $0x18] sm:$0xff]
    %v88 = vld [vmem:[#allocation5 + $0x30] ss:$0 sm:$0xff]
    %v89 = vld [vmem:[#allocation5 + $0x48] sm:$0xff]
    %v90 = vld [vmem:[#allocation5 + $0x50] sm:$0xff]
    %v91 = vld [vmem:[#allocation5 + $0x58] sm:$0xff]
    %v92 = vld [vmem:[#allocation5 + $0x60] sm:$0xff]
    %v93 = vld [vmem:[#allocation5 + $0x68] sm:$0xff]
    %v94 = vld [vmem:[#allocation5 + $0x70] sm:$0xff]
    %v95 = vld [vmem:[#allocation5 + $0x78] sm:$0xff]
    %v96 = vld [vmem:[#allocation5 + $0x80] sm:$0xff]
    %v97 = vld [vmem:[#allocation5 + $0x88] sm:$0xff]
    %v98 = vld [vmem:[#allocation5 + $0x90] sm:$0xff]
    %v99 = vld [vmem:[#allocation5 + $0x98] sm:$0xff]
    %v100 = vld [vmem:[#allocation5 + $0xa0] sm:$0xff]
    %s101 = scalar_lea.vmem [#allocation5], 168
    %v102 = vld [vmem:[%s101] ss:$8 sm:$0x7]
    %v103 = vld [vmem:[#allocation5 + $0xc0] sm:$0xff]
    %v104 = vld [vmem:[#allocation5 + $0xd8] sm:$0xff]
    %v105 = vld [vmem:[#allocation5 + $0xf0] sm:$0xff]
    %v106 = vld [vmem:[#allocation5 + $0x108] sm:$0xff]
    %v107 = vld [vmem:[#allocation5 + $0x120] ss:$0 sm:$0xff]
    %v108 = vld [vmem:[#allocation7] sm:$0xff]
    %v109 = vld [vmem:[#allocation7 + $0x8] sm:$0xf]
    %v110 = vld [vmem:[#allocation7 + $0x10] sm:$0x1]
    %vm111 = vcmask 130048
    %v113 = vsel %vm111, %v71, 0
    %115 = vmatprep.subr.mxu0 0.0
    %v116 = vand.u32 %v86, 4294901760
    %117 = vmatpush1.msra.mxu0 %v116
    %118 = vmatprep.subr.mxu0 0.0
    %v119 = vand.u32 %v87, 4294901760
    %120 = vmatpush1.msra.mxu0 %v119
    %121 = vmatprep.subr.mxu0 0.0
    %122 = vmatpush1.msra.mxu0 0.0
    %123 = vmatprep.subr.mxu0 0.0
    %124 = vmatpush1.msra.mxu0 0.0
    %125 = vmatprep.subr.mxu0 0.0
    %126 = vmatpush1.msra.mxu0 0.0
    %127 = vmatprep.subr.mxu0 0.0
    %128 = vmatpush1.msra.mxu0 0.0
    %129 = vmatprep.subr.mxu0 0.0
    %130 = vmatpush1.msra.mxu0 0.0
    %131 = vmatprep.subr.mxu0 0.0
    %132 = vmatpush1.msra.mxu0 0.0
    %133 = vmatprep.subr.mxu0 0.0
    %134 = vmatpush1.msra.mxu0 0.0
    %135 = vmatprep.subr.mxu0 0.0
    %136 = vmatpush1.msra.mxu0 0.0
    %137 = vmatprep.subr.mxu0 0.0
    %138 = vmatpush1.msra.mxu0 0.0
    %139 = vmatprep.subr.mxu0 0.0
    %140 = vmatpush1.msra.mxu0 0.0
    %141 = vmatprep.subr.mxu0 0.0
    %142 = vmatpush1.msra.mxu0 0.0
    %143 = vmatprep.subr.mxu0 0.0
    %144 = vmatpush1.msra.mxu0 0.0
    %145 = vmatprep.subr.mxu0 0.0
    %146 = vmatpush1.msra.mxu0 0.0
    %147 = vmatprep.subr.mxu0 0.0
    %148 = vmatpush1.msra.mxu0 0.0
    %149 = vmatprep.subr.mxu0 0.0
    %150 = vmatpush1.msra.mxu0 0.0
    %151 = vmatprep.subr.mxu0 0.0
    %152 = vmatpush1.msra.mxu0 0.0
    %153 = vmatprep.subr.mxu0 0.0
    %154 = vmatpush1.msra.mxu0 0.0
    %155 = vmatprep.subr.mxu0 0.0
    %156 = vmatpush1.msra.mxu0 0.0
    %157 = vmatprep.subr.mxu0 0.0
    %158 = vmatpush1.msra.mxu0 0.0
    %159 = vmatprep.subr.mxu0 0.0
    %160 = vmatpush1.msra.mxu0 0.0
    %161 = vmatprep.subr.mxu0 0.0
    %162 = vmatpush1.msra.mxu0 0.0
    %163 = vmatprep.subr.mxu0 0.0
    %164 = vmatpush1.msra.mxu0 0.0
    %165 = vmatprep.subr.mxu0 0.0
    %166 = vmatpush1.msra.mxu0 0.0
    %167 = vmatprep.subr.mxu0 0.0
    %168 = vmatpush1.msra.mxu0 0.0
    %169 = vmatprep.subr.mxu0 0.0
    %170 = vmatpush1.msra.mxu0 0.0
    %171 = vmatprep.subr.mxu0 0.0
    %172 = vmatpush1.msra.mxu0 0.0
    %173 = vmatprep.subr.mxu0 0.0
    %174 = vmatpush1.msra.mxu0 0.0
    %175 = vmatprep.subr.mxu0 0.0
    %176 = vmatpush1.msra.mxu0 0.0
    %177 = vmatprep.subr.mxu0 0.0
    %178 = vmatpush1.msra.mxu0 0.0
    %179 = vmatprep.subr.mxu0 0.0
    %180 = vmatpush1.msra.mxu0 0.0
    %181 = vmatprep.mubr.f32.mxu0 0.0
    %v182 = vand.u32 %v113, 4294901760
    %v183 = vsub.f32 %v113, %v182
    %v184 = vand.u32 %v183, 4294901760
    %v185 = vsub.f32 %v183, %v184
    %v186 = vand.u32 %v185, 4294901760
    %187 = vmatmul.mubr.f32.gmra.mrb[0].mxu0 %v186
    %v188 = vpop.f32.mrb[0].mxu0
    %v189 = vadd.f32 %v88, %v188
    %v190 = vpop.f32.mrb[0].mxu0
    %191 = vdwg.mxu0
    %192 = vmatprep.subr.mxu0 0.0
    %v193 = vand.u32 %v86, 4294901760
    %v194 = vsub.f32 %v86, %v193
    %v195 = vand.u32 %v194, 4294901760
    %v196 = vsub.f32 %v194, %v195
    %v197 = vand.u32 %v196, 4294901760
    %198 = vmatpush1.msra.mxu0 %v197
    %199 = vmatprep.subr.mxu0 0.0
    %v200 = vand.u32 %v87, 4294901760
    %v201 = vsub.f32 %v87, %v200
    %v202 = vand.u32 %v201, 4294901760
    %v203 = vsub.f32 %v201, %v202
    %v204 = vand.u32 %v203, 4294901760
    %205 = vmatpush1.msra.mxu0 %v204
    %206 = vmatprep.subr.mxu0 0.0
    %207 = vmatpush1.msra.mxu0 0.0
    %208 = vmatprep.subr.mxu0 0.0
    %209 = vmatpush1.msra.mxu0 0.0
    %210 = vmatprep.subr.mxu0 0.0
    %211 = vmatpush1.msra.mxu0 0.0
    %212 = vmatprep.subr.mxu0 0.0
    %213 = vmatpush1.msra.mxu0 0.0
    %214 = vmatprep.subr.mxu0 0.0
    %215 = vmatpush1.msra.mxu0 0.0
    %216 = vmatprep.subr.mxu0 0.0
    %217 = vmatpush1.msra.mxu0 0.0
    %218 = vmatprep.subr.mxu0 0.0
    %219 = vmatpush1.msra.mxu0 0.0
    %220 = vmatprep.subr.mxu0 0.0
    %221 = vmatpush1.msra.mxu0 0.0
    %222 = vmatprep.subr.mxu0 0.0
    %223 = vmatpush1.msra.mxu0 0.0
    %224 = vmatprep.subr.mxu0 0.0
    %225 = vmatpush1.msra.mxu0 0.0
    %226 = vmatprep.subr.mxu0 0.0
    %227 = vmatpush1.msra.mxu0 0.0
    %228 = vmatprep.subr.mxu0 0.0
    %229 = vmatpush1.msra.mxu0 0.0
    %230 = vmatprep.subr.mxu0 0.0
    %231 = vmatpush1.msra.mxu0 0.0
    %232 = vmatprep.subr.mxu0 0.0
    %233 = vmatpush1.msra.mxu0 0.0
    %234 = vmatprep.subr.mxu0 0.0
    %235 = vmatpush1.msra.mxu0 0.0
    %236 = vmatprep.subr.mxu0 0.0
    %237 = vmatpush1.msra.mxu0 0.0
    %238 = vmatprep.subr.mxu0 0.0
    %239 = vmatpush1.msra.mxu0 0.0
    %240 = vmatprep.subr.mxu0 0.0
    %241 = vmatpush1.msra.mxu0 0.0
    %242 = vmatprep.subr.mxu0 0.0
    %243 = vmatpush1.msra.mxu0 0.0
    %244 = vmatprep.subr.mxu0 0.0
    %245 = vmatpush1.msra.mxu0 0.0
    %246 = vmatprep.subr.mxu0 0.0
    %247 = vmatpush1.msra.mxu0 0.0
    %248 = vmatprep.subr.mxu0 0.0
    %249 = vmatpush1.msra.mxu0 0.0
    %250 = vmatprep.subr.mxu0 0.0
    %251 = vmatpush1.msra.mxu0 0.0
    %252 = vmatprep.subr.mxu0 0.0
    %253 = vmatpush1.msra.mxu0 0.0
    %254 = vmatprep.subr.mxu0 0.0
    %255 = vmatpush1.msra.mxu0 0.0
    %256 = vmatprep.subr.mxu0 0.0
    %257 = vmatpush1.msra.mxu0 0.0
    %258 = vmatprep.subr.mxu0 0.0
    %259 = vmatpush1.msra.mxu0 0.0
    %260 = vmatprep.subr.mxu0 0.0
    %261 = vmatpush1.msra.mxu0 0.0
    %262 = vmatprep.subr.mxu0 0.0
    %263 = vmatpush1.msra.mxu0 0.0
    %264 = vmatprep.subr.mxu0 0.0
    %265 = vmatpush1.msra.mxu0 0.0
    %266 = vmatprep.mubr.f32.mxu0 0.0
    %v267 = vand.u32 %v113, 4294901760
    %268 = vmatmul.mubr.f32.gmra.mrb[0].mxu0 %v267
    %v269 = vpop.f32.mrb[0].mxu0
    %v270 = vadd.f32 %v189, %v269
    %v271 = vpop.f32.mrb[0].mxu0
    %272 = vdwg.mxu0
    %273 = vmatprep.subr.mxu0 0.0
    %v274 = vand.u32 %v86, 4294901760
    %v275 = vsub.f32 %v86, %v274
    %276 = vmatpush1.msra.mxu0 %v275
    %277 = vmatprep.subr.mxu0 0.0
    %v278 = vand.u32 %v87, 4294901760
    %v279 = vsub.f32 %v87, %v278
    %280 = vmatpush1.msra.mxu0 %v279
    %281 = vmatprep.subr.mxu0 0.0
    %282 = vmatpush1.msra.mxu0 0.0
    %283 = vmatprep.subr.mxu0 0.0
    %284 = vmatpush1.msra.mxu0 0.0
    %285 = vmatprep.subr.mxu0 0.0
    %286 = vmatpush1.msra.mxu0 0.0
    %287 = vmatprep.subr.mxu0 0.0
    %288 = vmatpush1.msra.mxu0 0.0
    %289 = vmatprep.subr.mxu0 0.0
    %290 = vmatpush1.msra.mxu0 0.0
    %291 = vmatprep.subr.mxu0 0.0
    %292 = vmatpush1.msra.mxu0 0.0
    %293 = vmatprep.subr.mxu0 0.0
    %294 = vmatpush1.msra.mxu0 0.0
    %295 = vmatprep.subr.mxu0 0.0
    %296 = vmatpush1.msra.mxu0 0.0
    %297 = vmatprep.subr.mxu0 0.0
    %298 = vmatpush1.msra.mxu0 0.0
    %299 = vmatprep.subr.mxu0 0.0
    %300 = vmatpush1.msra.mxu0 0.0
    %301 = vmatprep.subr.mxu0 0.0
    %302 = vmatpush1.msra.mxu0 0.0
    %303 = vmatprep.subr.mxu0 0.0
    %304 = vmatpush1.msra.mxu0 0.0
    %305 = vmatprep.subr.mxu0 0.0
    %306 = vmatpush1.msra.mxu0 0.0
    %307 = vmatprep.subr.mxu0 0.0
    %308 = vmatpush1.msra.mxu0 0.0
    %309 = vmatprep.subr.mxu0 0.0
    %310 = vmatpush1.msra.mxu0 0.0
    %311 = vmatprep.subr.mxu0 0.0
    %312 = vmatpush1.msra.mxu0 0.0
    %313 = vmatprep.subr.mxu0 0.0
    %314 = vmatpush1.msra.mxu0 0.0
    %315 = vmatprep.subr.mxu0 0.0
    %316 = vmatpush1.msra.mxu0 0.0
    %317 = vmatprep.subr.mxu0 0.0
    %318 = vmatpush1.msra.mxu0 0.0
    %319 = vmatprep.subr.mxu0 0.0
    %320 = vmatpush1.msra.mxu0 0.0
    %321 = vmatprep.subr.mxu0 0.0
    %322 = vmatpush1.msra.mxu0 0.0
    %323 = vmatprep.subr.mxu0 0.0
    %324 = vmatpush1.msra.mxu0 0.0
    %325 = vmatprep.subr.mxu0 0.0
    %326 = vmatpush1.msra.mxu0 0.0
    %327 = vmatprep.subr.mxu0 0.0
    %328 = vmatpush1.msra.mxu0 0.0
    %329 = vmatprep.subr.mxu0 0.0
    %330 = vmatpush1.msra.mxu0 0.0
    %331 = vmatprep.subr.mxu0 0.0
    %332 = vmatpush1.msra.mxu0 0.0
    %333 = vmatprep.subr.mxu0 0.0
    %334 = vmatpush1.msra.mxu0 0.0
    %335 = vmatprep.subr.mxu0 0.0
    %336 = vmatpush1.msra.mxu0 0.0
    %337 = vmatprep.subr.mxu0 0.0
    %338 = vmatpush1.msra.mxu0 0.0
    %339 = vmatprep.subr.mxu0 0.0
    %340 = vmatpush1.msra.mxu0 0.0
    %341 = vmatprep.mubr.f32.mxu0 0.0
    %v342 = vand.u32 %v113, 4294901760
    %v343 = vsub.f32 %v113, %v342
    %344 = vmatmul.mubr.f32.gmra.mrb[0].mxu0 %v343
    %v345 = vpop.f32.mrb[0].mxu0
    %v346 = vadd.f32 %v270, %v345
    %v347 = vpop.f32.mrb[0].mxu0
    %348 = vdwg.mxu0
    %349 = vmatprep.subr.mxu0 0.0
    %v350 = vand.u32 %v86, 4294901760
    %351 = vmatpush1.msra.mxu0 %v350
    %352 = vmatprep.subr.mxu0 0.0
    %v353 = vand.u32 %v87, 4294901760
    %354 = vmatpush1.msra.mxu0 %v353
    %355 = vmatprep.subr.mxu0 0.0
    %356 = vmatpush1.msra.mxu0 0.0
    %357 = vmatprep.subr.mxu0 0.0
    %358 = vmatpush1.msra.mxu0 0.0
    %359 = vmatprep.subr.mxu0 0.0
    %360 = vmatpush1.msra.mxu0 0.0
    %361 = vmatprep.subr.mxu0 0.0
    %362 = vmatpush1.msra.mxu0 0.0
    %363 = vmatprep.subr.mxu0 0.0
    %364 = vmatpush1.msra.mxu0 0.0
    %365 = vmatprep.subr.mxu0 0.0
    %366 = vmatpush1.msra.mxu0 0.0
    %367 = vmatprep.subr.mxu0 0.0
    %368 = vmatpush1.msra.mxu0 0.0
    %369 = vmatprep.subr.mxu0 0.0
    %370 = vmatpush1.msra.mxu0 0.0
    %371 = vmatprep.subr.mxu0 0.0
    %372 = vmatpush1.msra.mxu0 0.0
    %373 = vmatprep.subr.mxu0 0.0
    %374 = vmatpush1.msra.mxu0 0.0
    %375 = vmatprep.subr.mxu0 0.0
    %376 = vmatpush1.msra.mxu0 0.0
    %377 = vmatprep.subr.mxu0 0.0
    %378 = vmatpush1.msra.mxu0 0.0
    %379 = vmatprep.subr.mxu0 0.0
    %380 = vmatpush1.msra.mxu0 0.0
    %381 = vmatprep.subr.mxu0 0.0
    %382 = vmatpush1.msra.mxu0 0.0
    %383 = vmatprep.subr.mxu0 0.0
    %384 = vmatpush1.msra.mxu0 0.0
    %385 = vmatprep.subr.mxu0 0.0
    %386 = vmatpush1.msra.mxu0 0.0
    %387 = vmatprep.subr.mxu0 0.0
    %388 = vmatpush1.msra.mxu0 0.0
    %389 = vmatprep.subr.mxu0 0.0
    %390 = vmatpush1.msra.mxu0 0.0
    %391 = vmatprep.subr.mxu0 0.0
    %392 = vmatpush1.msra.mxu0 0.0
    %393 = vmatprep.subr.mxu0 0.0
    %394 = vmatpush1.msra.mxu0 0.0
    %395 = vmatprep.subr.mxu0 0.0
    %396 = vmatpush1.msra.mxu0 0.0
    %397 = vmatprep.subr.mxu0 0.0
    %398 = vmatpush1.msra.mxu0 0.0
    %399 = vmatprep.subr.mxu0 0.0
    %400 = vmatpush1.msra.mxu0 0.0
    %401 = vmatprep.subr.mxu0 0.0
    %402 = vmatpush1.msra.mxu0 0.0
    %403 = vmatprep.subr.mxu0 0.0
    %404 = vmatpush1.msra.mxu0 0.0
    %405 = vmatprep.subr.mxu0 0.0
    %406 = vmatpush1.msra.mxu0 0.0
    %407 = vmatprep.subr.mxu0 0.0
    %408 = vmatpush1.msra.mxu0 0.0
    %409 = vmatprep.subr.mxu0 0.0
    %410 = vmatpush1.msra.mxu0 0.0
    %411 = vmatprep.subr.mxu0 0.0
    %412 = vmatpush1.msra.mxu0 0.0
    %413 = vmatprep.subr.mxu0 0.0
    %414 = vmatpush1.msra.mxu0 0.0
    %415 = vmatprep.mubr.f32.mxu0 0.0
    %v416 = vand.u32 %v113, 4294901760
    %v417 = vsub.f32 %v113, %v416
    %v418 = vand.u32 %v417, 4294901760
    %419 = vmatmul.mubr.f32.gmra.mrb[0].mxu0 %v418
    %v420 = vpop.f32.mrb[0].mxu0
    %v421 = vadd.f32 %v346, %v420
    %v422 = vpop.f32.mrb[0].mxu0
    %423 = vdwg.mxu0
    %424 = vmatprep.subr.mxu0 0.0
    %v425 = vand.u32 %v86, 4294901760
    %v426 = vsub.f32 %v86, %v425
    %v427 = vand.u32 %v426, 4294901760
    %428 = vmatpush1.msra.mxu0 %v427
    %429 = vmatprep.subr.mxu0 0.0
    %v430 = vand.u32 %v87, 4294901760
    %v431 = vsub.f32 %v87, %v430
    %v432 = vand.u32 %v431, 4294901760
    %433 = vmatpush1.msra.mxu0 %v432
    %434 = vmatprep.subr.mxu0 0.0
    %435 = vmatpush1.msra.mxu0 0.0
    %436 = vmatprep.subr.mxu0 0.0
    %437 = vmatpush1.msra.mxu0 0.0
    %438 = vmatprep.subr.mxu0 0.0
    %439 = vmatpush1.msra.mxu0 0.0
    %440 = vmatprep.subr.mxu0 0.0
    %441 = vmatpush1.msra.mxu0 0.0
    %442 = vmatprep.subr.mxu0 0.0
    %443 = vmatpush1.msra.mxu0 0.0
    %444 = vmatprep.subr.mxu0 0.0
    %445 = vmatpush1.msra.mxu0 0.0
    %446 = vmatprep.subr.mxu0 0.0
    %447 = vmatpush1.msra.mxu0 0.0
    %448 = vmatprep.subr.mxu0 0.0
    %449 = vmatpush1.msra.mxu0 0.0
    %450 = vmatprep.subr.mxu0 0.0
    %451 = vmatpush1.msra.mxu0 0.0
    %452 = vmatprep.subr.mxu0 0.0
    %453 = vmatpush1.msra.mxu0 0.0
    %454 = vmatprep.subr.mxu0 0.0
    %455 = vmatpush1.msra.mxu0 0.0
    %456 = vmatprep.subr.mxu0 0.0
    %457 = vmatpush1.msra.mxu0 0.0
    %458 = vmatprep.subr.mxu0 0.0
    %459 = vmatpush1.msra.mxu0 0.0
    %460 = vmatprep.subr.mxu0 0.0
    %461 = vmatpush1.msra.mxu0 0.0
    %462 = vmatprep.subr.mxu0 0.0
    %463 = vmatpush1.msra.mxu0 0.0
    %464 = vmatprep.subr.mxu0 0.0
    %465 = vmatpush1.msra.mxu0 0.0
    %466 = vmatprep.subr.mxu0 0.0
    %467 = vmatpush1.msra.mxu0 0.0
    %468 = vmatprep.subr.mxu0 0.0
    %469 = vmatpush1.msra.mxu0 0.0
    %470 = vmatprep.subr.mxu0 0.0
    %471 = vmatpush1.msra.mxu0 0.0
    %472 = vmatprep.subr.mxu0 0.0
    %473 = vmatpush1.msra.mxu0 0.0
    %474 = vmatprep.subr.mxu0 0.0
    %475 = vmatpush1.msra.mxu0 0.0
    %476 = vmatprep.subr.mxu0 0.0
    %477 = vmatpush1.msra.mxu0 0.0
    %478 = vmatprep.subr.mxu0 0.0
    %479 = vmatpush1.msra.mxu0 0.0
    %480 = vmatprep.subr.mxu0 0.0
    %481 = vmatpush1.msra.mxu0 0.0
    %482 = vmatprep.subr.mxu0 0.0
    %483 = vmatpush1.msra.mxu0 0.0
    %484 = vmatprep.subr.mxu0 0.0
    %485 = vmatpush1.msra.mxu0 0.0
    %486 = vmatprep.subr.mxu0 0.0
    %487 = vmatpush1.msra.mxu0 0.0
    %488 = vmatprep.subr.mxu0 0.0
    %489 = vmatpush1.msra.mxu0 0.0
    %490 = vmatprep.subr.mxu0 0.0
    %491 = vmatpush1.msra.mxu0 0.0
    %492 = vmatprep.subr.mxu0 0.0
    %493 = vmatpush1.msra.mxu0 0.0
    %494 = vmatprep.mubr.f32.mxu0 0.0
    %v495 = vand.u32 %v113, 4294901760
    %496 = vmatmul.mubr.f32.gmra.mrb[0].mxu0 %v495
    %v497 = vpop.f32.mrb[0].mxu0
    %v498 = vadd.f32 %v421, %v497
    %v499 = vpop.f32.mrb[0].mxu0
    %500 = vdwg.mxu0
    %501 = vmatprep.subr.mxu0 0.0
    %v502 = vand.u32 %v86, 4294901760
    %503 = vmatpush1.msra.mxu0 %v502
    %504 = vmatprep.subr.mxu0 0.0
    %v505 = vand.u32 %v87, 4294901760
    %506 = vmatpush1.msra.mxu0 %v505
    %507 = vmatprep.subr.mxu0 0.0
    %508 = vmatpush1.msra.mxu0 0.0
    %509 = vmatprep.subr.mxu0 0.0
    %510 = vmatpush1.msra.mxu0 0.0
    %511 = vmatprep.subr.mxu0 0.0
    %512 = vmatpush1.msra.mxu0 0.0
    %513 = vmatprep.subr.mxu0 0.0
    %514 = vmatpush1.msra.mxu0 0.0
    %515 = vmatprep.subr.mxu0 0.0
    %516 = vmatpush1.msra.mxu0 0.0
    %517 = vmatprep.subr.mxu0 0.0
    %518 = vmatpush1.msra.mxu0 0.0
    %519 = vmatprep.subr.mxu0 0.0
    %520 = vmatpush1.msra.mxu0 0.0
    %521 = vmatprep.subr.mxu0 0.0
    %522 = vmatpush1.msra.mxu0 0.0
    %523 = vmatprep.subr.mxu0 0.0
    %524 = vmatpush1.msra.mxu0 0.0
    %525 = vmatprep.subr.mxu0 0.0
    %526 = vmatpush1.msra.mxu0 0.0
    %527 = vmatprep.subr.mxu0 0.0
    %528 = vmatpush1.msra.mxu0 0.0
    %529 = vmatprep.subr.mxu0 0.0
    %530 = vmatpush1.msra.mxu0 0.0
    %531 = vmatprep.subr.mxu0 0.0
    %532 = vmatpush1.msra.mxu0 0.0
    %533 = vmatprep.subr.mxu0 0.0
    %534 = vmatpush1.msra.mxu0 0.0
    %535 = vmatprep.subr.mxu0 0.0
    %536 = vmatpush1.msra.mxu0 0.0
    %537 = vmatprep.subr.mxu0 0.0
    %538 = vmatpush1.msra.mxu0 0.0
    %539 = vmatprep.subr.mxu0 0.0
    %540 = vmatpush1.msra.mxu0 0.0
    %541 = vmatprep.subr.mxu0 0.0
    %542 = vmatpush1.msra.mxu0 0.0
    %543 = vmatprep.subr.mxu0 0.0
    %544 = vmatpush1.msra.mxu0 0.0
    %545 = vmatprep.subr.mxu0 0.0
    %546 = vmatpush1.msra.mxu0 0.0
    %547 = vmatprep.subr.mxu0 0.0
    %548 = vmatpush1.msra.mxu0 0.0
    %549 = vmatprep.subr.mxu0 0.0
    %550 = vmatpush1.msra.mxu0 0.0
    %551 = vmatprep.subr.mxu0 0.0
    %552 = vmatpush1.msra.mxu0 0.0
    %553 = vmatprep.subr.mxu0 0.0
    %554 = vmatpush1.msra.mxu0 0.0
    %555 = vmatprep.subr.mxu0 0.0
    %556 = vmatpush1.msra.mxu0 0.0
    %557 = vmatprep.subr.mxu0 0.0
    %558 = vmatpush1.msra.mxu0 0.0
    %559 = vmatprep.subr.mxu0 0.0
    %560 = vmatpush1.msra.mxu0 0.0
    %561 = vmatprep.subr.mxu0 0.0
    %562 = vmatpush1.msra.mxu0 0.0
    %563 = vmatprep.subr.mxu0 0.0
    %564 = vmatpush1.msra.mxu0 0.0
    %565 = vmatprep.subr.mxu0 0.0
    %566 = vmatpush1.msra.mxu0 0.0
    %567 = vmatprep.mubr.f32.mxu0 0.0
    %v568 = vand.u32 %v113, 4294901760
    %569 = vmatmul.mubr.f32.gmra.mrb[0].mxu0 %v568
    %v570 = vpop.f32.mrb[0].mxu0
    %v571 = vadd.f32 %v498, %v570
    %v572 = vpop.f32.mrb[0].mxu0
    %573 = vdwg.mxu0
    %v574 = vmax.f32 %v571, 0.0
    %v576 = vlaneseq
    %v577 = vshrl.u32 %v576, 7
    %v578 = vsub.s32 0, %v577
    %v579 = vrot.slane %v102, %v578
    %v580 = vlaneseq
    %v581 = vshrl.u32 %v580, 7
    %v582 = vsub.s32 1, %v581
    %v583 = vrot.slane %v102, %v582
    %v584 = vlaneseq
    %v585 = vshrl.u32 %v584, 7
    %v586 = vsub.s32 2, %v585
    %v587 = vrot.slane %v102, %v586
    %vm591 = vcmask 261120
    %v593 = vsel %vm591, %v574, 0
    %v595 = vand.u32 %v90, 4294901760
    %596 = vmatprep.subr.mxu0 %v595
    %v597 = vand.u32 %v89, 4294901760
    %598 = vmatpush1.msra.mxu0 %v597
    %v599 = vand.u32 %v93, 4294901760
    %600 = vmatprep.subr.mxu0 %v599
    %v601 = vand.u32 %v92, 4294901760
    %602 = vmatpush1.msra.mxu0 %v601
    %v603 = vand.u32 %v96, 4294901760
    %604 = vmatprep.subr.mxu0 %v603
    %v605 = vand.u32 %v95, 4294901760
    %606 = vmatpush1.msra.mxu0 %v605
    %v607 = vand.u32 %v99, 4294901760
    %608 = vmatprep.subr.mxu0 %v607
    %v609 = vand.u32 %v98, 4294901760
    %610 = vmatpush1.msra.mxu0 %v609
    %611 = vmatprep.subr.mxu0 0.0
    %612 = vmatpush1.msra.mxu0 0.0
    %613 = vmatprep.subr.mxu0 0.0
    %614 = vmatpush1.msra.mxu0 0.0
    %615 = vmatprep.subr.mxu0 0.0
    %616 = vmatpush1.msra.mxu0 0.0
    %617 = vmatprep.subr.mxu0 0.0
    %618 = vmatpush1.msra.mxu0 0.0
    %619 = vmatprep.subr.mxu0 0.0
    %620 = vmatpush1.msra.mxu0 0.0
    %621 = vmatprep.subr.mxu0 0.0
    %622 = vmatpush1.msra.mxu0 0.0
    %623 = vmatprep.subr.mxu0 0.0
    %624 = vmatpush1.msra.mxu0 0.0
    %625 = vmatprep.subr.mxu0 0.0
    %626 = vmatpush1.msra.mxu0 0.0
    %627 = vmatprep.subr.mxu0 0.0
    %628 = vmatpush1.msra.mxu0 0.0
    %629 = vmatprep.subr.mxu0 0.0
    %630 = vmatpush1.msra.mxu0 0.0
    %631 = vmatprep.subr.mxu0 0.0
    %632 = vmatpush1.msra.mxu0 0.0
    %633 = vmatprep.subr.mxu0 0.0
    %634 = vmatpush1.msra.mxu0 0.0
    %635 = vmatprep.subr.mxu0 0.0
    %636 = vmatpush1.msra.mxu0 0.0
    %637 = vmatprep.subr.mxu0 0.0
    %638 = vmatpush1.msra.mxu0 0.0
    %639 = vmatprep.subr.mxu0 0.0
    %640 = vmatpush1.msra.mxu0 0.0
    %641 = vmatprep.subr.mxu0 0.0
    %642 = vmatpush1.msra.mxu0 0.0
    %643 = vmatprep.subr.mxu0 0.0
    %644 = vmatpush1.msra.mxu0 0.0
    %645 = vmatprep.subr.mxu0 0.0
    %646 = vmatpush1.msra.mxu0 0.0
    %647 = vmatprep.subr.mxu0 0.0
    %648 = vmatpush1.msra.mxu0 0.0
    %649 = vmatprep.subr.mxu0 0.0
    %650 = vmatpush1.msra.mxu0 0.0
    %651 = vmatprep.subr.mxu0 0.0
    %652 = vmatpush1.msra.mxu0 0.0
    %653 = vmatprep.subr.mxu0 0.0
    %654 = vmatpush1.msra.mxu0 0.0
    %655 = vmatprep.subr.mxu0 0.0
    %656 = vmatpush1.msra.mxu0 0.0
    %657 = vmatprep.subr.mxu0 0.0
    %658 = vmatpush1.msra.mxu0 0.0
    %659 = vmatprep.subr.mxu0 0.0
    %660 = vmatpush1.msra.mxu0 0.0
    %661 = vmatprep.subr.mxu0 0.0
    %662 = vmatpush1.msra.mxu0 0.0
    %663 = vmatprep.subr.mxu0 0.0
    %664 = vmatpush1.msra.mxu0 0.0
    %665 = vmatprep.subr.mxu0 0.0
    %666 = vmatpush1.msra.mxu0 0.0
    %667 = vmatprep.mubr.f32.mxu0 0.0
    %v668 = vand.u32 %v593, 4294901760
    %v669 = vsub.f32 %v593, %v668
    %v670 = vand.u32 %v669, 4294901760
    %v671 = vsub.f32 %v669, %v670
    %v672 = vand.u32 %v671, 4294901760
    %673 = vmatmul.mubr.f32.gmra.mrb[0].mxu0 %v672
    %v674 = vpop.f32.mrb[0].mxu0
    %v675 = vadd.f32 %v579, %v674
    %v676 = vpop.f32.mrb[0].mxu0
    %v677 = vadd.f32 %v583, %v676
    %678 = vdwg.mxu0
    %v679 = vand.u32 %v90, 4294901760
    %v680 = vsub.f32 %v90, %v679
    %v681 = vand.u32 %v680, 4294901760
    %v682 = vsub.f32 %v680, %v681
    %v683 = vand.u32 %v682, 4294901760
    %684 = vmatprep.subr.mxu0 %v683
    %v685 = vand.u32 %v89, 4294901760
    %v686 = vsub.f32 %v89, %v685
    %v687 = vand.u32 %v686, 4294901760
    %v688 = vsub.f32 %v686, %v687
    %v689 = vand.u32 %v688, 4294901760
    %690 = vmatpush1.msra.mxu0 %v689
    %v691 = vand.u32 %v93, 4294901760
    %v692 = vsub.f32 %v93, %v691
    %v693 = vand.u32 %v692, 4294901760
    %v694 = vsub.f32 %v692, %v693
    %v695 = vand.u32 %v694, 4294901760
    %696 = vmatprep.subr.mxu0 %v695
    %v697 = vand.u32 %v92, 4294901760
    %v698 = vsub.f32 %v92, %v697
    %v699 = vand.u32 %v698, 4294901760
    %v700 = vsub.f32 %v698, %v699
    %v701 = vand.u32 %v700, 4294901760
    %702 = vmatpush1.msra.mxu0 %v701
    %v703 = vand.u32 %v96, 4294901760
    %v704 = vsub.f32 %v96, %v703
    %v705 = vand.u32 %v704, 4294901760
    %v706 = vsub.f32 %v704, %v705
    %v707 = vand.u32 %v706, 4294901760
    %708 = vmatprep.subr.mxu0 %v707
    %v709 = vand.u32 %v95, 4294901760
    %v710 = vsub.f32 %v95, %v709
    %v711 = vand.u32 %v710, 4294901760
    %v712 = vsub.f32 %v710, %v711
    %v713 = vand.u32 %v712, 4294901760
    %714 = vmatpush1.msra.mxu0 %v713
    %v715 = vand.u32 %v99, 4294901760
    %v716 = vsub.f32 %v99, %v715
    %v717 = vand.u32 %v716, 4294901760
    %v718 = vsub.f32 %v716, %v717
    %v719 = vand.u32 %v718, 4294901760
    %720 = vmatprep.subr.mxu0 %v719
    %v721 = vand.u32 %v98, 4294901760
    %v722 = vsub.f32 %v98, %v721
    %v723 = vand.u32 %v722, 4294901760
    %v724 = vsub.f32 %v722, %v723
    %v725 = vand.u32 %v724, 4294901760
    %726 = vmatpush1.msra.mxu0 %v725
    %727 = vmatprep.subr.mxu0 0.0
    %728 = vmatpush1.msra.mxu0 0.0
    %729 = vmatprep.subr.mxu0 0.0
    %730 = vmatpush1.msra.mxu0 0.0
    %731 = vmatprep.subr.mxu0 0.0
    %732 = vmatpush1.msra.mxu0 0.0
    %733 = vmatprep.subr.mxu0 0.0
    %734 = vmatpush1.msra.mxu0 0.0
    %735 = vmatprep.subr.mxu0 0.0
    %736 = vmatpush1.msra.mxu0 0.0
    %737 = vmatprep.subr.mxu0 0.0
    %738 = vmatpush1.msra.mxu0 0.0
    %739 = vmatprep.subr.mxu0 0.0
    %740 = vmatpush1.msra.mxu0 0.0
    %741 = vmatprep.subr.mxu0 0.0
    %742 = vmatpush1.msra.mxu0 0.0
    %743 = vmatprep.subr.mxu0 0.0
    %744 = vmatpush1.msra.mxu0 0.0
    %745 = vmatprep.subr.mxu0 0.0
    %746 = vmatpush1.msra.mxu0 0.0
    %747 = vmatprep.subr.mxu0 0.0
    %748 = vmatpush1.msra.mxu0 0.0
    %749 = vmatprep.subr.mxu0 0.0
    %750 = vmatpush1.msra.mxu0 0.0
    %751 = vmatprep.subr.mxu0 0.0
    %752 = vmatpush1.msra.mxu0 0.0
    %753 = vmatprep.subr.mxu0 0.0
    %754 = vmatpush1.msra.mxu0 0.0
    %755 = vmatprep.subr.mxu0 0.0
    %756 = vmatpush1.msra.mxu0 0.0
    %757 = vmatprep.subr.mxu0 0.0
    %758 = vmatpush1.msra.mxu0 0.0
    %759 = vmatprep.subr.mxu0 0.0
    %760 = vmatpush1.msra.mxu0 0.0
    %761 = vmatprep.subr.mxu0 0.0
    %762 = vmatpush1.msra.mxu0 0.0
    %763 = vmatprep.subr.mxu0 0.0
    %764 = vmatpush1.msra.mxu0 0.0
    %765 = vmatprep.subr.mxu0 0.0
    %766 = vmatpush1.msra.mxu0 0.0
    %767 = vmatprep.subr.mxu0 0.0
    %768 = vmatpush1.msra.mxu0 0.0
    %769 = vmatprep.subr.mxu0 0.0
    %770 = vmatpush1.msra.mxu0 0.0
    %771 = vmatprep.subr.mxu0 0.0
    %772 = vmatpush1.msra.mxu0 0.0
    %773 = vmatprep.subr.mxu0 0.0
    %774 = vmatpush1.msra.mxu0 0.0
    %775 = vmatprep.subr.mxu0 0.0
    %776 = vmatpush1.msra.mxu0 0.0
    %777 = vmatprep.subr.mxu0 0.0
    %778 = vmatpush1.msra.mxu0 0.0
    %779 = vmatprep.subr.mxu0 0.0
    %780 = vmatpush1.msra.mxu0 0.0
    %781 = vmatprep.subr.mxu0 0.0
    %782 = vmatpush1.msra.mxu0 0.0
    %783 = vmatprep.mubr.f32.mxu0 0.0
    %v784 = vand.u32 %v593, 4294901760
    %785 = vmatmul.mubr.f32.gmra.mrb[0].mxu0 %v784
    %v786 = vpop.f32.mrb[0].mxu0
    %v787 = vadd.f32 %v675, %v786
    %v788 = vpop.f32.mrb[0].mxu0
    %v789 = vadd.f32 %v677, %v788
    %790 = vdwg.mxu0
    %v791 = vand.u32 %v90, 4294901760
    %v792 = vsub.f32 %v90, %v791
    %793 = vmatprep.subr.mxu0 %v792
    %v794 = vand.u32 %v89, 4294901760
    %v795 = vsub.f32 %v89, %v794
    %796 = vmatpush1.msra.mxu0 %v795
    %v797 = vand.u32 %v93, 4294901760
    %v798 = vsub.f32 %v93, %v797
    %799 = vmatprep.subr.mxu0 %v798
    %v800 = vand.u32 %v92, 4294901760
    %v801 = vsub.f32 %v92, %v800
    %802 = vmatpush1.msra.mxu0 %v801
    %v803 = vand.u32 %v96, 4294901760
    %v804 = vsub.f32 %v96, %v803
    %805 = vmatprep.subr.mxu0 %v804
    %v806 = vand.u32 %v95, 4294901760
    %v807 = vsub.f32 %v95, %v806
    %808 = vmatpush1.msra.mxu0 %v807
    %v809 = vand.u32 %v99, 4294901760
    %v810 = vsub.f32 %v99, %v809
    %811 = vmatprep.subr.mxu0 %v810
    %v812 = vand.u32 %v98, 4294901760
    %v813 = vsub.f32 %v98, %v812
    %814 = vmatpush1.msra.mxu0 %v813
    %815 = vmatprep.subr.mxu0 0.0
    %816 = vmatpush1.msra.mxu0 0.0
    %817 = vmatprep.subr.mxu0 0.0
    %818 = vmatpush1.msra.mxu0 0.0
    %819 = vmatprep.subr.mxu0 0.0
    %820 = vmatpush1.msra.mxu0 0.0
    %821 = vmatprep.subr.mxu0 0.0
    %822 = vmatpush1.msra.mxu0 0.0
    %823 = vmatprep.subr.mxu0 0.0
    %824 = vmatpush1.msra.mxu0 0.0
    %825 = vmatprep.subr.mxu0 0.0
    %826 = vmatpush1.msra.mxu0 0.0
    %827 = vmatprep.subr.mxu0 0.0
    %828 = vmatpush1.msra.mxu0 0.0
    %829 = vmatprep.subr.mxu0 0.0
    %830 = vmatpush1.msra.mxu0 0.0
    %831 = vmatprep.subr.mxu0 0.0
    %832 = vmatpush1.msra.mxu0 0.0
    %833 = vmatprep.subr.mxu0 0.0
    %834 = vmatpush1.msra.mxu0 0.0
    %835 = vmatprep.subr.mxu0 0.0
    %836 = vmatpush1.msra.mxu0 0.0
    %837 = vmatprep.subr.mxu0 0.0
    %838 = vmatpush1.msra.mxu0 0.0
    %839 = vmatprep.subr.mxu0 0.0
    %840 = vmatpush1.msra.mxu0 0.0
    %841 = vmatprep.subr.mxu0 0.0
    %842 = vmatpush1.msra.mxu0 0.0
    %843 = vmatprep.subr.mxu0 0.0
    %844 = vmatpush1.msra.mxu0 0.0
    %845 = vmatprep.subr.mxu0 0.0
    %846 = vmatpush1.msra.mxu0 0.0
    %847 = vmatprep.subr.mxu0 0.0
    %848 = vmatpush1.msra.mxu0 0.0
    %849 = vmatprep.subr.mxu0 0.0
    %850 = vmatpush1.msra.mxu0 0.0
    %851 = vmatprep.subr.mxu0 0.0
    %852 = vmatpush1.msra.mxu0 0.0
    %853 = vmatprep.subr.mxu0 0.0
    %854 = vmatpush1.msra.mxu0 0.0
    %855 = vmatprep.subr.mxu0 0.0
    %856 = vmatpush1.msra.mxu0 0.0
    %857 = vmatprep.subr.mxu0 0.0
    %858 = vmatpush1.msra.mxu0 0.0
    %859 = vmatprep.subr.mxu0 0.0
    %860 = vmatpush1.msra.mxu0 0.0
    %861 = vmatprep.subr.mxu0 0.0
    %862 = vmatpush1.msra.mxu0 0.0
    %863 = vmatprep.subr.mxu0 0.0
    %864 = vmatpush1.msra.mxu0 0.0
    %865 = vmatprep.subr.mxu0 0.0
    %866 = vmatpush1.msra.mxu0 0.0
    %867 = vmatprep.subr.mxu0 0.0
    %868 = vmatpush1.msra.mxu0 0.0
    %869 = vmatprep.subr.mxu0 0.0
    %870 = vmatpush1.msra.mxu0 0.0
    %871 = vmatprep.mubr.f32.mxu0 0.0
    %v872 = vand.u32 %v593, 4294901760
    %v873 = vsub.f32 %v593, %v872
    %874 = vmatmul.mubr.f32.gmra.mrb[0].mxu0 %v873
    %v875 = vpop.f32.mrb[0].mxu0
    %v876 = vadd.f32 %v787, %v875
    %v877 = vpop.f32.mrb[0].mxu0
    %v878 = vadd.f32 %v789, %v877
    %879 = vdwg.mxu0
    %v880 = vand.u32 %v90, 4294901760
    %881 = vmatprep.subr.mxu0 %v880
    %v882 = vand.u32 %v89, 4294901760
    %883 = vmatpush1.msra.mxu0 %v882
    %v884 = vand.u32 %v93, 4294901760
    %885 = vmatprep.subr.mxu0 %v884
    %v886 = vand.u32 %v92, 4294901760
    %887 = vmatpush1.msra.mxu0 %v886
    %v888 = vand.u32 %v96, 4294901760
    %889 = vmatprep.subr.mxu0 %v888
    %v890 = vand.u32 %v95, 4294901760
    %891 = vmatpush1.msra.mxu0 %v890
    %v892 = vand.u32 %v99, 4294901760
    %893 = vmatprep.subr.mxu0 %v892
    %v894 = vand.u32 %v98, 4294901760
    %895 = vmatpush1.msra.mxu0 %v894
    %896 = vmatprep.subr.mxu0 0.0
    %897 = vmatpush1.msra.mxu0 0.0
    %898 = vmatprep.subr.mxu0 0.0
    %899 = vmatpush1.msra.mxu0 0.0
    %900 = vmatprep.subr.mxu0 0.0
    %901 = vmatpush1.msra.mxu0 0.0
    %902 = vmatprep.subr.mxu0 0.0
    %903 = vmatpush1.msra.mxu0 0.0
    %904 = vmatprep.subr.mxu0 0.0
    %905 = vmatpush1.msra.mxu0 0.0
    %906 = vmatprep.subr.mxu0 0.0
    %907 = vmatpush1.msra.mxu0 0.0
    %908 = vmatprep.subr.mxu0 0.0
    %909 = vmatpush1.msra.mxu0 0.0
    %910 = vmatprep.subr.mxu0 0.0
    %911 = vmatpush1.msra.mxu0 0.0
    %912 = vmatprep.subr.mxu0 0.0
    %913 = vmatpush1.msra.mxu0 0.0
    %914 = vmatprep.subr.mxu0 0.0
    %915 = vmatpush1.msra.mxu0 0.0
    %916 = vmatprep.subr.mxu0 0.0
    %917 = vmatpush1.msra.mxu0 0.0
    %918 = vmatprep.subr.mxu0 0.0
    %919 = vmatpush1.msra.mxu0 0.0
    %920 = vmatprep.subr.mxu0 0.0
    %921 = vmatpush1.msra.mxu0 0.0
    %922 = vmatprep.subr.mxu0 0.0
    %923 = vmatpush1.msra.mxu0 0.0
    %924 = vmatprep.subr.mxu0 0.0
    %925 = vmatpush1.msra.mxu0 0.0
    %926 = vmatprep.subr.mxu0 0.0
    %927 = vmatpush1.msra.mxu0 0.0
    %928 = vmatprep.subr.mxu0 0.0
    %929 = vmatpush1.msra.mxu0 0.0
    %930 = vmatprep.subr.mxu0 0.0
    %931 = vmatpush1.msra.mxu0 0.0
    %932 = vmatprep.subr.mxu0 0.0
    %933 = vmatpush1.msra.mxu0 0.0
    %934 = vmatprep.subr.mxu0 0.0
    %935 = vmatpush1.msra.mxu0 0.0
    %936 = vmatprep.subr.mxu0 0.0
    %937 = vmatpush1.msra.mxu0 0.0
    %938 = vmatprep.subr.mxu0 0.0
    %939 = vmatpush1.msra.mxu0 0.0
    %940 = vmatprep.subr.mxu0 0.0
    %941 = vmatpush1.msra.mxu0 0.0
    %942 = vmatprep.subr.mxu0 0.0
    %943 = vmatpush1.msra.mxu0 0.0
    %944 = vmatprep.subr.mxu0 0.0
    %945 = vmatpush1.msra.mxu0 0.0
    %946 = vmatprep.subr.mxu0 0.0
    %947 = vmatpush1.msra.mxu0 0.0
    %948 = vmatprep.subr.mxu0 0.0
    %949 = vmatpush1.msra.mxu0 0.0
    %950 = vmatprep.subr.mxu0 0.0
    %951 = vmatpush1.msra.mxu0 0.0
    %952 = vmatprep.mubr.f32.mxu0 0.0
    %v953 = vand.u32 %v593, 4294901760
    %v954 = vsub.f32 %v593, %v953
    %v955 = vand.u32 %v954, 4294901760
    %956 = vmatmul.mubr.f32.gmra.mrb[0].mxu0 %v955
    %v957 = vpop.f32.mrb[0].mxu0
    %v958 = vadd.f32 %v876, %v957
    %v959 = vpop.f32.mrb[0].mxu0
    %v960 = vadd.f32 %v878, %v959
    %961 = vdwg.mxu0
    %v962 = vand.u32 %v90, 4294901760
    %v963 = vsub.f32 %v90, %v962
    %v964 = vand.u32 %v963, 4294901760
    %965 = vmatprep.subr.mxu0 %v964
    %v966 = vand.u32 %v89, 4294901760
    %v967 = vsub.f32 %v89, %v966
    %v968 = vand.u32 %v967, 4294901760
    %969 = vmatpush1.msra.mxu0 %v968
    %v970 = vand.u32 %v93, 4294901760
    %v971 = vsub.f32 %v93, %v970
    %v972 = vand.u32 %v971, 4294901760
    %973 = vmatprep.subr.mxu0 %v972
    %v974 = vand.u32 %v92, 4294901760
    %v975 = vsub.f32 %v92, %v974
    %v976 = vand.u32 %v975, 4294901760
    %977 = vmatpush1.msra.mxu0 %v976
    %v978 = vand.u32 %v96, 4294901760
    %v979 = vsub.f32 %v96, %v978
    %v980 = vand.u32 %v979, 4294901760
    %981 = vmatprep.subr.mxu0 %v980
    %v982 = vand.u32 %v95, 4294901760
    %v983 = vsub.f32 %v95, %v982
    %v984 = vand.u32 %v983, 4294901760
    %985 = vmatpush1.msra.mxu0 %v984
    %v986 = vand.u32 %v99, 4294901760
    %v987 = vsub.f32 %v99, %v986
    %v988 = vand.u32 %v987, 4294901760
    %989 = vmatprep.subr.mxu0 %v988
    %v990 = vand.u32 %v98, 4294901760
    %v991 = vsub.f32 %v98, %v990
    %v992 = vand.u32 %v991, 4294901760
    %993 = vmatpush1.msra.mxu0 %v992
    %994 = vmatprep.subr.mxu0 0.0
    %995 = vmatpush1.msra.mxu0 0.0
    %996 = vmatprep.subr.mxu0 0.0
    %997 = vmatpush1.msra.mxu0 0.0
    %998 = vmatprep.subr.mxu0 0.0
    %999 = vmatpush1.msra.mxu0 0.0
    %1000 = vmatprep.subr.mxu0 0.0
    %1001 = vmatpush1.msra.mxu0 0.0
    %1002 = vmatprep.subr.mxu0 0.0
    %1003 = vmatpush1.msra.mxu0 0.0
    %1004 = vmatprep.subr.mxu0 0.0
    %1005 = vmatpush1.msra.mxu0 0.0
    %1006 = vmatprep.subr.mxu0 0.0
    %1007 = vmatpush1.msra.mxu0 0.0
    %1008 = vmatprep.subr.mxu0 0.0
    %1009 = vmatpush1.msra.mxu0 0.0
    %1010 = vmatprep.subr.mxu0 0.0
    %1011 = vmatpush1.msra.mxu0 0.0
    %1012 = vmatprep.subr.mxu0 0.0
    %1013 = vmatpush1.msra.mxu0 0.0
    %1014 = vmatprep.subr.mxu0 0.0
    %1015 = vmatpush1.msra.mxu0 0.0
    %1016 = vmatprep.subr.mxu0 0.0
    %1017 = vmatpush1.msra.mxu0 0.0
    %1018 = vmatprep.subr.mxu0 0.0
    %1019 = vmatpush1.msra.mxu0 0.0
    %1020 = vmatprep.subr.mxu0 0.0
    %1021 = vmatpush1.msra.mxu0 0.0
    %1022 = vmatprep.subr.mxu0 0.0
    %1023 = vmatpush1.msra.mxu0 0.0
    %1024 = vmatprep.subr.mxu0 0.0
    %1025 = vmatpush1.msra.mxu0 0.0
    %1026 = vmatprep.subr.mxu0 0.0
    %1027 = vmatpush1.msra.mxu0 0.0
    %1028 = vmatprep.subr.mxu0 0.0
    %1029 = vmatpush1.msra.mxu0 0.0
    %1030 = vmatprep.subr.mxu0 0.0
    %1031 = vmatpush1.msra.mxu0 0.0
    %1032 = vmatprep.subr.mxu0 0.0
    %1033 = vmatpush1.msra.mxu0 0.0
    %1034 = vmatprep.subr.mxu0 0.0
    %1035 = vmatpush1.msra.mxu0 0.0
    %1036 = vmatprep.subr.mxu0 0.0
    %1037 = vmatpush1.msra.mxu0 0.0
    %1038 = vmatprep.subr.mxu0 0.0
    %1039 = vmatpush1.msra.mxu0 0.0
    %1040 = vmatprep.subr.mxu0 0.0
    %1041 = vmatpush1.msra.mxu0 0.0
    %1042 = vmatprep.subr.mxu0 0.0
    %1043 = vmatpush1.msra.mxu0 0.0
    %1044 = vmatprep.subr.mxu0 0.0
    %1045 = vmatpush1.msra.mxu0 0.0
    %1046 = vmatprep.subr.mxu0 0.0
    %1047 = vmatpush1.msra.mxu0 0.0
    %1048 = vmatprep.subr.mxu0 0.0
    %1049 = vmatpush1.msra.mxu0 0.0
    %1050 = vmatprep.mubr.f32.mxu0 0.0
    %v1051 = vand.u32 %v593, 4294901760
    %1052 = vmatmul.mubr.f32.gmra.mrb[0].mxu0 %v1051
    %v1053 = vpop.f32.mrb[0].mxu0
    %v1054 = vadd.f32 %v958, %v1053
    %v1055 = vpop.f32.mrb[0].mxu0
    %v1056 = vadd.f32 %v960, %v1055
    %1057 = vdwg.mxu0
    %v1058 = vand.u32 %v90, 4294901760
    %1059 = vmatprep.subr.mxu0 %v1058
    %v1060 = vand.u32 %v89, 4294901760
    %1061 = vmatpush1.msra.mxu0 %v1060
    %v1062 = vand.u32 %v93, 4294901760
    %1063 = vmatprep.subr.mxu0 %v1062
    %v1064 = vand.u32 %v92, 4294901760
    %1065 = vmatpush1.msra.mxu0 %v1064
    %v1066 = vand.u32 %v96, 4294901760
    %1067 = vmatprep.subr.mxu0 %v1066
    %v1068 = vand.u32 %v95, 4294901760
    %1069 = vmatpush1.msra.mxu0 %v1068
    %v1070 = vand.u32 %v99, 4294901760
    %1071 = vmatprep.subr.mxu0 %v1070
    %v1072 = vand.u32 %v98, 4294901760
    %1073 = vmatpush1.msra.mxu0 %v1072
    %1074 = vmatprep.subr.mxu0 0.0
    %1075 = vmatpush1.msra.mxu0 0.0
    %1076 = vmatprep.subr.mxu0 0.0
    %1077 = vmatpush1.msra.mxu0 0.0
    %1078 = vmatprep.subr.mxu0 0.0
    %1079 = vmatpush1.msra.mxu0 0.0
    %1080 = vmatprep.subr.mxu0 0.0
    %1081 = vmatpush1.msra.mxu0 0.0
    %1082 = vmatprep.subr.mxu0 0.0
    %1083 = vmatpush1.msra.mxu0 0.0
    %1084 = vmatprep.subr.mxu0 0.0
    %1085 = vmatpush1.msra.mxu0 0.0
    %1086 = vmatprep.subr.mxu0 0.0
    %1087 = vmatpush1.msra.mxu0 0.0
    %1088 = vmatprep.subr.mxu0 0.0
    %1089 = vmatpush1.msra.mxu0 0.0
    %1090 = vmatprep.subr.mxu0 0.0
    %1091 = vmatpush1.msra.mxu0 0.0
    %1092 = vmatprep.subr.mxu0 0.0
    %1093 = vmatpush1.msra.mxu0 0.0
    %1094 = vmatprep.subr.mxu0 0.0
    %1095 = vmatpush1.msra.mxu0 0.0
    %1096 = vmatprep.subr.mxu0 0.0
    %1097 = vmatpush1.msra.mxu0 0.0
    %1098 = vmatprep.subr.mxu0 0.0
    %1099 = vmatpush1.msra.mxu0 0.0
    %1100 = vmatprep.subr.mxu0 0.0
    %1101 = vmatpush1.msra.mxu0 0.0
    %1102 = vmatprep.subr.mxu0 0.0
    %1103 = vmatpush1.msra.mxu0 0.0
    %1104 = vmatprep.subr.mxu0 0.0
    %1105 = vmatpush1.msra.mxu0 0.0
    %1106 = vmatprep.subr.mxu0 0.0
    %1107 = vmatpush1.msra.mxu0 0.0
    %1108 = vmatprep.subr.mxu0 0.0
    %1109 = vmatpush1.msra.mxu0 0.0
    %1110 = vmatprep.subr.mxu0 0.0
    %1111 = vmatpush1.msra.mxu0 0.0
    %1112 = vmatprep.subr.mxu0 0.0
    %1113 = vmatpush1.msra.mxu0 0.0
    %1114 = vmatprep.subr.mxu0 0.0
    %1115 = vmatpush1.msra.mxu0 0.0
    %1116 = vmatprep.subr.mxu0 0.0
    %1117 = vmatpush1.msra.mxu0 0.0
    %1118 = vmatprep.subr.mxu0 0.0
    %1119 = vmatpush1.msra.mxu0 0.0
    %1120 = vmatprep.subr.mxu0 0.0
    %1121 = vmatpush1.msra.mxu0 0.0
    %1122 = vmatprep.subr.mxu0 0.0
    %1123 = vmatpush1.msra.mxu0 0.0
    %1124 = vmatprep.subr.mxu0 0.0
    %1125 = vmatpush1.msra.mxu0 0.0
    %1126 = vmatprep.subr.mxu0 0.0
    %1127 = vmatpush1.msra.mxu0 0.0
    %1128 = vmatprep.subr.mxu0 0.0
    %1129 = vmatpush1.msra.mxu0 0.0
    %1130 = vmatprep.mubr.f32.mxu0 0.0
    %v1131 = vand.u32 %v593, 4294901760
    %1132 = vmatmul.mubr.f32.gmra.mrb[0].mxu0 %v1131
    %v1133 = vpop.f32.mrb[0].mxu0
    %v1134 = vadd.f32 %v1054, %v1133
    %v1135 = vpop.f32.mrb[0].mxu0
    %v1136 = vadd.f32 %v1056, %v1135
    %1137 = vdwg.mxu0
    %1138 = vmatprep.subr.mxu0 0.0
    %v1139 = vand.u32 %v91, 4294901760
    %1140 = vmatpush1.msra.mxu0 %v1139
    %1141 = vmatprep.subr.mxu0 0.0
    %v1142 = vand.u32 %v94, 4294901760
    %1143 = vmatpush1.msra.mxu0 %v1142
    %1144 = vmatprep.subr.mxu0 0.0
    %v1145 = vand.u32 %v97, 4294901760
    %1146 = vmatpush1.msra.mxu0 %v1145
    %1147 = vmatprep.subr.mxu0 0.0
    %v1148 = vand.u32 %v100, 4294901760
    %1149 = vmatpush1.msra.mxu0 %v1148
    %1150 = vmatprep.subr.mxu0 0.0
    %1151 = vmatpush1.msra.mxu0 0.0
    %1152 = vmatprep.subr.mxu0 0.0
    %1153 = vmatpush1.msra.mxu0 0.0
    %1154 = vmatprep.subr.mxu0 0.0
    %1155 = vmatpush1.msra.mxu0 0.0
    %1156 = vmatprep.subr.mxu0 0.0
    %1157 = vmatpush1.msra.mxu0 0.0
    %1158 = vmatprep.subr.mxu0 0.0
    %1159 = vmatpush1.msra.mxu0 0.0
    %1160 = vmatprep.subr.mxu0 0.0
    %1161 = vmatpush1.msra.mxu0 0.0
    %1162 = vmatprep.subr.mxu0 0.0
    %1163 = vmatpush1.msra.mxu0 0.0
    %1164 = vmatprep.subr.mxu0 0.0
    %1165 = vmatpush1.msra.mxu0 0.0
    %1166 = vmatprep.subr.mxu0 0.0
    %1167 = vmatpush1.msra.mxu0 0.0
    %1168 = vmatprep.subr.mxu0 0.0
    %1169 = vmatpush1.msra.mxu0 0.0
    %1170 = vmatprep.subr.mxu0 0.0
    %1171 = vmatpush1.msra.mxu0 0.0
    %1172 = vmatprep.subr.mxu0 0.0
    %1173 = vmatpush1.msra.mxu0 0.0
    %1174 = vmatprep.subr.mxu0 0.0
    %1175 = vmatpush1.msra.mxu0 0.0
    %1176 = vmatprep.subr.mxu0 0.0
    %1177 = vmatpush1.msra.mxu0 0.0
    %1178 = vmatprep.subr.mxu0 0.0
    %1179 = vmatpush1.msra.mxu0 0.0
    %1180 = vmatprep.subr.mxu0 0.0
    %1181 = vmatpush1.msra.mxu0 0.0
    %1182 = vmatprep.subr.mxu0 0.0
    %1183 = vmatpush1.msra.mxu0 0.0
    %1184 = vmatprep.subr.mxu0 0.0
    %1185 = vmatpush1.msra.mxu0 0.0
    %1186 = vmatprep.subr.mxu0 0.0
    %1187 = vmatpush1.msra.mxu0 0.0
    %1188 = vmatprep.subr.mxu0 0.0
    %1189 = vmatpush1.msra.mxu0 0.0
    %1190 = vmatprep.subr.mxu0 0.0
    %1191 = vmatpush1.msra.mxu0 0.0
    %1192 = vmatprep.subr.mxu0 0.0
    %1193 = vmatpush1.msra.mxu0 0.0
    %1194 = vmatprep.subr.mxu0 0.0
    %1195 = vmatpush1.msra.mxu0 0.0
    %1196 = vmatprep.subr.mxu0 0.0
    %1197 = vmatpush1.msra.mxu0 0.0
    %1198 = vmatprep.subr.mxu0 0.0
    %1199 = vmatpush1.msra.mxu0 0.0
    %1200 = vmatprep.subr.mxu0 0.0
    %1201 = vmatpush1.msra.mxu0 0.0
    %1202 = vmatprep.subr.mxu0 0.0
    %1203 = vmatpush1.msra.mxu0 0.0
    %1204 = vmatprep.subr.mxu0 0.0
    %1205 = vmatpush1.msra.mxu0 0.0
    %1206 = vmatprep.mubr.f32.mxu0 0.0
    %v1207 = vand.u32 %v593, 4294901760
    %v1208 = vsub.f32 %v593, %v1207
    %v1209 = vand.u32 %v1208, 4294901760
    %v1210 = vsub.f32 %v1208, %v1209
    %v1211 = vand.u32 %v1210, 4294901760
    %1212 = vmatmul.mubr.f32.gmra.mrb[0].mxu0 %v1211
    %v1213 = vpop.f32.mrb[0].mxu0
    %v1214 = vadd.f32 %v587, %v1213
    %v1215 = vpop.f32.mrb[0].mxu0
    %1216 = vdwg.mxu0
    %1217 = vmatprep.subr.mxu0 0.0
    %v1218 = vand.u32 %v91, 4294901760
    %v1219 = vsub.f32 %v91, %v1218
    %v1220 = vand.u32 %v1219, 4294901760
    %v1221 = vsub.f32 %v1219, %v1220
    %v1222 = vand.u32 %v1221, 4294901760
    %1223 = vmatpush1.msra.mxu0 %v1222
    %1224 = vmatprep.subr.mxu0 0.0
    %v1225 = vand.u32 %v94, 4294901760
    %v1226 = vsub.f32 %v94, %v1225
    %v1227 = vand.u32 %v1226, 4294901760
    %v1228 = vsub.f32 %v1226, %v1227
    %v1229 = vand.u32 %v1228, 4294901760
    %1230 = vmatpush1.msra.mxu0 %v1229
    %1231 = vmatprep.subr.mxu0 0.0
    %v1232 = vand.u32 %v97, 4294901760
    %v1233 = vsub.f32 %v97, %v1232
    %v1234 = vand.u32 %v1233, 4294901760
    %v1235 = vsub.f32 %v1233, %v1234
    %v1236 = vand.u32 %v1235, 4294901760
    %1237 = vmatpush1.msra.mxu0 %v1236
    %1238 = vmatprep.subr.mxu0 0.0
    %v1239 = vand.u32 %v100, 4294901760
    %v1240 = vsub.f32 %v100, %v1239
    %v1241 = vand.u32 %v1240, 4294901760
    %v1242 = vsub.f32 %v1240, %v1241
    %v1243 = vand.u32 %v1242, 4294901760
    %1244 = vmatpush1.msra.mxu0 %v1243
    %1245 = vmatprep.subr.mxu0 0.0
    %1246 = vmatpush1.msra.mxu0 0.0
    %1247 = vmatprep.subr.mxu0 0.0
    %1248 = vmatpush1.msra.mxu0 0.0
    %1249 = vmatprep.subr.mxu0 0.0
    %1250 = vmatpush1.msra.mxu0 0.0
    %1251 = vmatprep.subr.mxu0 0.0
    %1252 = vmatpush1.msra.mxu0 0.0
    %1253 = vmatprep.subr.mxu0 0.0
    %1254 = vmatpush1.msra.mxu0 0.0
    %1255 = vmatprep.subr.mxu0 0.0
    %1256 = vmatpush1.msra.mxu0 0.0
    %1257 = vmatprep.subr.mxu0 0.0
    %1258 = vmatpush1.msra.mxu0 0.0
    %1259 = vmatprep.subr.mxu0 0.0
    %1260 = vmatpush1.msra.mxu0 0.0
    %1261 = vmatprep.subr.mxu0 0.0
    %1262 = vmatpush1.msra.mxu0 0.0
    %1263 = vmatprep.subr.mxu0 0.0
    %1264 = vmatpush1.msra.mxu0 0.0
    %1265 = vmatprep.subr.mxu0 0.0
    %1266 = vmatpush1.msra.mxu0 0.0
    %1267 = vmatprep.subr.mxu0 0.0
    %1268 = vmatpush1.msra.mxu0 0.0
    %1269 = vmatprep.subr.mxu0 0.0
    %1270 = vmatpush1.msra.mxu0 0.0
    %1271 = vmatprep.subr.mxu0 0.0
    %1272 = vmatpush1.msra.mxu0 0.0
    %1273 = vmatprep.subr.mxu0 0.0
    %1274 = vmatpush1.msra.mxu0 0.0
    %1275 = vmatprep.subr.mxu0 0.0
    %1276 = vmatpush1.msra.mxu0 0.0
    %1277 = vmatprep.subr.mxu0 0.0
    %1278 = vmatpush1.msra.mxu0 0.0
    %1279 = vmatprep.subr.mxu0 0.0
    %1280 = vmatpush1.msra.mxu0 0.0
    %1281 = vmatprep.subr.mxu0 0.0
    %1282 = vmatpush1.msra.mxu0 0.0
    %1283 = vmatprep.subr.mxu0 0.0
    %1284 = vmatpush1.msra.mxu0 0.0
    %1285 = vmatprep.subr.mxu0 0.0
    %1286 = vmatpush1.msra.mxu0 0.0
    %1287 = vmatprep.subr.mxu0 0.0
    %1288 = vmatpush1.msra.mxu0 0.0
    %1289 = vmatprep.subr.mxu0 0.0
    %1290 = vmatpush1.msra.mxu0 0.0
    %1291 = vmatprep.subr.mxu0 0.0
    %1292 = vmatpush1.msra.mxu0 0.0
    %1293 = vmatprep.subr.mxu0 0.0
    %1294 = vmatpush1.msra.mxu0 0.0
    %1295 = vmatprep.subr.mxu0 0.0
    %1296 = vmatpush1.msra.mxu0 0.0
    %1297 = vmatprep.subr.mxu0 0.0
    %1298 = vmatpush1.msra.mxu0 0.0
    %1299 = vmatprep.subr.mxu0 0.0
    %1300 = vmatpush1.msra.mxu0 0.0
    %1301 = vmatprep.mubr.f32.mxu0 0.0
    %v1302 = vand.u32 %v593, 4294901760
    %1303 = vmatmul.mubr.f32.gmra.mrb[0].mxu0 %v1302
    %v1304 = vpop.f32.mrb[0].mxu0
    %v1305 = vadd.f32 %v1214, %v1304
    %v1306 = vpop.f32.mrb[0].mxu0
    %1307 = vdwg.mxu0
    %1308 = vmatprep.subr.mxu0 0.0
    %v1309 = vand.u32 %v91, 4294901760
    %v1310 = vsub.f32 %v91, %v1309
    %1311 = vmatpush1.msra.mxu0 %v1310
    %1312 = vmatprep.subr.mxu0 0.0
    %v1313 = vand.u32 %v94, 4294901760
    %v1314 = vsub.f32 %v94, %v1313
    %1315 = vmatpush1.msra.mxu0 %v1314
    %1316 = vmatprep.subr.mxu0 0.0
    %v1317 = vand.u32 %v97, 4294901760
    %v1318 = vsub.f32 %v97, %v1317
    %1319 = vmatpush1.msra.mxu0 %v1318
    %1320 = vmatprep.subr.mxu0 0.0
    %v1321 = vand.u32 %v100, 4294901760
    %v1322 = vsub.f32 %v100, %v1321
    %1323 = vmatpush1.msra.mxu0 %v1322
    %1324 = vmatprep.subr.mxu0 0.0
    %1325 = vmatpush1.msra.mxu0 0.0
    %1326 = vmatprep.subr.mxu0 0.0
    %1327 = vmatpush1.msra.mxu0 0.0
    %1328 = vmatprep.subr.mxu0 0.0
    %1329 = vmatpush1.msra.mxu0 0.0
    %1330 = vmatprep.subr.mxu0 0.0
    %1331 = vmatpush1.msra.mxu0 0.0
    %1332 = vmatprep.subr.mxu0 0.0
    %1333 = vmatpush1.msra.mxu0 0.0
    %1334 = vmatprep.subr.mxu0 0.0
    %1335 = vmatpush1.msra.mxu0 0.0
    %1336 = vmatprep.subr.mxu0 0.0
    %1337 = vmatpush1.msra.mxu0 0.0
    %1338 = vmatprep.subr.mxu0 0.0
    %1339 = vmatpush1.msra.mxu0 0.0
    %1340 = vmatprep.subr.mxu0 0.0
    %1341 = vmatpush1.msra.mxu0 0.0
    %1342 = vmatprep.subr.mxu0 0.0
    %1343 = vmatpush1.msra.mxu0 0.0
    %1344 = vmatprep.subr.mxu0 0.0
    %1345 = vmatpush1.msra.mxu0 0.0
    %1346 = vmatprep.subr.mxu0 0.0
    %1347 = vmatpush1.msra.mxu0 0.0
    %1348 = vmatprep.subr.mxu0 0.0
    %1349 = vmatpush1.msra.mxu0 0.0
    %1350 = vmatprep.subr.mxu0 0.0
    %1351 = vmatpush1.msra.mxu0 0.0
    %1352 = vmatprep.subr.mxu0 0.0
    %1353 = vmatpush1.msra.mxu0 0.0
    %1354 = vmatprep.subr.mxu0 0.0
    %1355 = vmatpush1.msra.mxu0 0.0
    %1356 = vmatprep.subr.mxu0 0.0
    %1357 = vmatpush1.msra.mxu0 0.0
    %1358 = vmatprep.subr.mxu0 0.0
    %1359 = vmatpush1.msra.mxu0 0.0
    %1360 = vmatprep.subr.mxu0 0.0
    %1361 = vmatpush1.msra.mxu0 0.0
    %1362 = vmatprep.subr.mxu0 0.0
    %1363 = vmatpush1.msra.mxu0 0.0
    %1364 = vmatprep.subr.mxu0 0.0
    %1365 = vmatpush1.msra.mxu0 0.0
    %1366 = vmatprep.subr.mxu0 0.0
    %1367 = vmatpush1.msra.mxu0 0.0
    %1368 = vmatprep.subr.mxu0 0.0
    %1369 = vmatpush1.msra.mxu0 0.0
    %1370 = vmatprep.subr.mxu0 0.0
    %1371 = vmatpush1.msra.mxu0 0.0
    %1372 = vmatprep.subr.mxu0 0.0
    %1373 = vmatpush1.msra.mxu0 0.0
    %1374 = vmatprep.subr.mxu0 0.0
    %1375 = vmatpush1.msra.mxu0 0.0
    %1376 = vmatprep.subr.mxu0 0.0
    %1377 = vmatpush1.msra.mxu0 0.0
    %1378 = vmatprep.subr.mxu0 0.0
    %1379 = vmatpush1.msra.mxu0 0.0
    %1380 = vmatprep.mubr.f32.mxu0 0.0
    %v1381 = vand.u32 %v593, 4294901760
    %v1382 = vsub.f32 %v593, %v1381
    %1383 = vmatmul.mubr.f32.gmra.mrb[0].mxu0 %v1382
    %v1384 = vpop.f32.mrb[0].mxu0
    %v1385 = vadd.f32 %v1305, %v1384
    %v1386 = vpop.f32.mrb[0].mxu0
    %1387 = vdwg.mxu0
    %1388 = vmatprep.subr.mxu0 0.0
    %v1389 = vand.u32 %v91, 4294901760
    %1390 = vmatpush1.msra.mxu0 %v1389
    %1391 = vmatprep.subr.mxu0 0.0
    %v1392 = vand.u32 %v94, 4294901760
    %1393 = vmatpush1.msra.mxu0 %v1392
    %1394 = vmatprep.subr.mxu0 0.0
    %v1395 = vand.u32 %v97, 4294901760
    %1396 = vmatpush1.msra.mxu0 %v1395
    %1397 = vmatprep.subr.mxu0 0.0
    %v1398 = vand.u32 %v100, 4294901760
    %1399 = vmatpush1.msra.mxu0 %v1398
    %1400 = vmatprep.subr.mxu0 0.0
    %1401 = vmatpush1.msra.mxu0 0.0
    %1402 = vmatprep.subr.mxu0 0.0
    %1403 = vmatpush1.msra.mxu0 0.0
    %1404 = vmatprep.subr.mxu0 0.0
    %1405 = vmatpush1.msra.mxu0 0.0
    %1406 = vmatprep.subr.mxu0 0.0
    %1407 = vmatpush1.msra.mxu0 0.0
    %1408 = vmatprep.subr.mxu0 0.0
    %1409 = vmatpush1.msra.mxu0 0.0
    %1410 = vmatprep.subr.mxu0 0.0
    %1411 = vmatpush1.msra.mxu0 0.0
    %1412 = vmatprep.subr.mxu0 0.0
    %1413 = vmatpush1.msra.mxu0 0.0
    %1414 = vmatprep.subr.mxu0 0.0
    %1415 = vmatpush1.msra.mxu0 0.0
    %1416 = vmatprep.subr.mxu0 0.0
    %1417 = vmatpush1.msra.mxu0 0.0
    %1418 = vmatprep.subr.mxu0 0.0
    %1419 = vmatpush1.msra.mxu0 0.0
    %1420 = vmatprep.subr.mxu0 0.0
    %1421 = vmatpush1.msra.mxu0 0.0
    %1422 = vmatprep.subr.mxu0 0.0
    %1423 = vmatpush1.msra.mxu0 0.0
    %1424 = vmatprep.subr.mxu0 0.0
    %1425 = vmatpush1.msra.mxu0 0.0
    %1426 = vmatprep.subr.mxu0 0.0
    %1427 = vmatpush1.msra.mxu0 0.0
    %1428 = vmatprep.subr.mxu0 0.0
    %1429 = vmatpush1.msra.mxu0 0.0
    %1430 = vmatprep.subr.mxu0 0.0
    %1431 = vmatpush1.msra.mxu0 0.0
    %1432 = vmatprep.subr.mxu0 0.0
    %1433 = vmatpush1.msra.mxu0 0.0
    %1434 = vmatprep.subr.mxu0 0.0
    %1435 = vmatpush1.msra.mxu0 0.0
    %1436 = vmatprep.subr.mxu0 0.0
    %1437 = vmatpush1.msra.mxu0 0.0
    %1438 = vmatprep.subr.mxu0 0.0
    %1439 = vmatpush1.msra.mxu0 0.0
    %1440 = vmatprep.subr.mxu0 0.0
    %1441 = vmatpush1.msra.mxu0 0.0
    %1442 = vmatprep.subr.mxu0 0.0
    %1443 = vmatpush1.msra.mxu0 0.0
    %1444 = vmatprep.subr.mxu0 0.0
    %1445 = vmatpush1.msra.mxu0 0.0
    %1446 = vmatprep.subr.mxu0 0.0
    %1447 = vmatpush1.msra.mxu0 0.0
    %1448 = vmatprep.subr.mxu0 0.0
    %1449 = vmatpush1.msra.mxu0 0.0
    %1450 = vmatprep.subr.mxu0 0.0
    %1451 = vmatpush1.msra.mxu0 0.0
    %1452 = vmatprep.subr.mxu0 0.0
    %1453 = vmatpush1.msra.mxu0 0.0
    %1454 = vmatprep.subr.mxu0 0.0
    %1455 = vmatpush1.msra.mxu0 0.0
    %1456 = vmatprep.mubr.f32.mxu0 0.0
    %v1457 = vand.u32 %v593, 4294901760
    %v1458 = vsub.f32 %v593, %v1457
    %v1459 = vand.u32 %v1458, 4294901760
    %1460 = vmatmul.mubr.f32.gmra.mrb[0].mxu0 %v1459
    %v1461 = vpop.f32.mrb[0].mxu0
    %v1462 = vadd.f32 %v1385, %v1461
    %v1463 = vpop.f32.mrb[0].mxu0
    %1464 = vdwg.mxu0
    %1465 = vmatprep.subr.mxu0 0.0
    %v1466 = vand.u32 %v91, 4294901760
    %v1467 = vsub.f32 %v91, %v1466
    %v1468 = vand.u32 %v1467, 4294901760
    %1469 = vmatpush1.msra.mxu0 %v1468
    %1470 = vmatprep.subr.mxu0 0.0
    %v1471 = vand.u32 %v94, 4294901760
    %v1472 = vsub.f32 %v94, %v1471
    %v1473 = vand.u32 %v1472, 4294901760
    %1474 = vmatpush1.msra.mxu0 %v1473
    %1475 = vmatprep.subr.mxu0 0.0
    %v1476 = vand.u32 %v97, 4294901760
    %v1477 = vsub.f32 %v97, %v1476
    %v1478 = vand.u32 %v1477, 4294901760
    %1479 = vmatpush1.msra.mxu0 %v1478
    %1480 = vmatprep.subr.mxu0 0.0
    %v1481 = vand.u32 %v100, 4294901760
    %v1482 = vsub.f32 %v100, %v1481
    %v1483 = vand.u32 %v1482, 4294901760
    %1484 = vmatpush1.msra.mxu0 %v1483
    %1485 = vmatprep.subr.mxu0 0.0
    %1486 = vmatpush1.msra.mxu0 0.0
    %1487 = vmatprep.subr.mxu0 0.0
    %1488 = vmatpush1.msra.mxu0 0.0
    %1489 = vmatprep.subr.mxu0 0.0
    %1490 = vmatpush1.msra.mxu0 0.0
    %1491 = vmatprep.subr.mxu0 0.0
    %1492 = vmatpush1.msra.mxu0 0.0
    %1493 = vmatprep.subr.mxu0 0.0
    %1494 = vmatpush1.msra.mxu0 0.0
    %1495 = vmatprep.subr.mxu0 0.0
    %1496 = vmatpush1.msra.mxu0 0.0
    %1497 = vmatprep.subr.mxu0 0.0
    %1498 = vmatpush1.msra.mxu0 0.0
    %1499 = vmatprep.subr.mxu0 0.0
    %1500 = vmatpush1.msra.mxu0 0.0
    %1501 = vmatprep.subr.mxu0 0.0
    %1502 = vmatpush1.msra.mxu0 0.0
    %1503 = vmatprep.subr.mxu0 0.0
    %1504 = vmatpush1.msra.mxu0 0.0
    %1505 = vmatprep.subr.mxu0 0.0
    %1506 = vmatpush1.msra.mxu0 0.0
    %1507 = vmatprep.subr.mxu0 0.0
    %1508 = vmatpush1.msra.mxu0 0.0
    %1509 = vmatprep.subr.mxu0 0.0
    %1510 = vmatpush1.msra.mxu0 0.0
    %1511 = vmatprep.subr.mxu0 0.0
    %1512 = vmatpush1.msra.mxu0 0.0
    %1513 = vmatprep.subr.mxu0 0.0
    %1514 = vmatpush1.msra.mxu0 0.0
    %1515 = vmatprep.subr.mxu0 0.0
    %1516 = vmatpush1.msra.mxu0 0.0
    %1517 = vmatprep.subr.mxu0 0.0
    %1518 = vmatpush1.msra.mxu0 0.0
    %1519 = vmatprep.subr.mxu0 0.0
    %1520 = vmatpush1.msra.mxu0 0.0
    %1521 = vmatprep.subr.mxu0 0.0
    %1522 = vmatpush1.msra.mxu0 0.0
    %1523 = vmatprep.subr.mxu0 0.0
    %1524 = vmatpush1.msra.mxu0 0.0
    %1525 = vmatprep.subr.mxu0 0.0
    %1526 = vmatpush1.msra.mxu0 0.0
    %1527 = vmatprep.subr.mxu0 0.0
    %1528 = vmatpush1.msra.mxu0 0.0
    %1529 = vmatprep.subr.mxu0 0.0
    %1530 = vmatpush1.msra.mxu0 0.0
    %1531 = vmatprep.subr.mxu0 0.0
    %1532 = vmatpush1.msra.mxu0 0.0
    %1533 = vmatprep.subr.mxu0 0.0
    %1534 = vmatpush1.msra.mxu0 0.0
    %1535 = vmatprep.subr.mxu0 0.0
    %1536 = vmatpush1.msra.mxu0 0.0
    %1537 = vmatprep.subr.mxu0 0.0
    %1538 = vmatpush1.msra.mxu0 0.0
    %1539 = vmatprep.subr.mxu0 0.0
    %1540 = vmatpush1.msra.mxu0 0.0
    %1541 = vmatprep.mubr.f32.mxu0 0.0
    %v1542 = vand.u32 %v593, 4294901760
    %1543 = vmatmul.mubr.f32.gmra.mrb[0].mxu0 %v1542
    %v1544 = vpop.f32.mrb[0].mxu0
    %v1545 = vadd.f32 %v1462, %v1544
    %v1546 = vpop.f32.mrb[0].mxu0
    %1547 = vdwg.mxu0
    %1548 = vmatprep.subr.mxu0 0.0
    %v1549 = vand.u32 %v91, 4294901760
    %1550 = vmatpush1.msra.mxu0 %v1549
    %1551 = vmatprep.subr.mxu0 0.0
    %v1552 = vand.u32 %v94, 4294901760
    %1553 = vmatpush1.msra.mxu0 %v1552
    %1554 = vmatprep.subr.mxu0 0.0
    %v1555 = vand.u32 %v97, 4294901760
    %1556 = vmatpush1.msra.mxu0 %v1555
    %1557 = vmatprep.subr.mxu0 0.0
    %v1558 = vand.u32 %v100, 4294901760
    %1559 = vmatpush1.msra.mxu0 %v1558
    %1560 = vmatprep.subr.mxu0 0.0
    %1561 = vmatpush1.msra.mxu0 0.0
    %1562 = vmatprep.subr.mxu0 0.0
    %1563 = vmatpush1.msra.mxu0 0.0
    %1564 = vmatprep.subr.mxu0 0.0
    %1565 = vmatpush1.msra.mxu0 0.0
    %1566 = vmatprep.subr.mxu0 0.0
    %1567 = vmatpush1.msra.mxu0 0.0
    %1568 = vmatprep.subr.mxu0 0.0
    %1569 = vmatpush1.msra.mxu0 0.0
    %1570 = vmatprep.subr.mxu0 0.0
    %1571 = vmatpush1.msra.mxu0 0.0
    %1572 = vmatprep.subr.mxu0 0.0
    %1573 = vmatpush1.msra.mxu0 0.0
    %1574 = vmatprep.subr.mxu0 0.0
    %1575 = vmatpush1.msra.mxu0 0.0
    %1576 = vmatprep.subr.mxu0 0.0
    %1577 = vmatpush1.msra.mxu0 0.0
    %1578 = vmatprep.subr.mxu0 0.0
    %1579 = vmatpush1.msra.mxu0 0.0
    %1580 = vmatprep.subr.mxu0 0.0
    %1581 = vmatpush1.msra.mxu0 0.0
    %1582 = vmatprep.subr.mxu0 0.0
    %1583 = vmatpush1.msra.mxu0 0.0
    %1584 = vmatprep.subr.mxu0 0.0
    %1585 = vmatpush1.msra.mxu0 0.0
    %1586 = vmatprep.subr.mxu0 0.0
    %1587 = vmatpush1.msra.mxu0 0.0
    %1588 = vmatprep.subr.mxu0 0.0
    %1589 = vmatpush1.msra.mxu0 0.0
    %1590 = vmatprep.subr.mxu0 0.0
    %1591 = vmatpush1.msra.mxu0 0.0
    %1592 = vmatprep.subr.mxu0 0.0
    %1593 = vmatpush1.msra.mxu0 0.0
    %1594 = vmatprep.subr.mxu0 0.0
    %1595 = vmatpush1.msra.mxu0 0.0
    %1596 = vmatprep.subr.mxu0 0.0
    %1597 = vmatpush1.msra.mxu0 0.0
    %1598 = vmatprep.subr.mxu0 0.0
    %1599 = vmatpush1.msra.mxu0 0.0
    %1600 = vmatprep.subr.mxu0 0.0
    %1601 = vmatpush1.msra.mxu0 0.0
    %1602 = vmatprep.subr.mxu0 0.0
    %1603 = vmatpush1.msra.mxu0 0.0
    %1604 = vmatprep.subr.mxu0 0.0
    %1605 = vmatpush1.msra.mxu0 0.0
    %1606 = vmatprep.subr.mxu0 0.0
    %1607 = vmatpush1.msra.mxu0 0.0
    %1608 = vmatprep.subr.mxu0 0.0
    %1609 = vmatpush1.msra.mxu0 0.0
    %1610 = vmatprep.subr.mxu0 0.0
    %1611 = vmatpush1.msra.mxu0 0.0
    %1612 = vmatprep.subr.mxu0 0.0
    %1613 = vmatpush1.msra.mxu0 0.0
    %1614 = vmatprep.subr.mxu0 0.0
    %1615 = vmatpush1.msra.mxu0 0.0
    %1616 = vmatprep.mubr.f32.mxu0 0.0
    %v1617 = vand.u32 %v593, 4294901760
    %1618 = vmatmul.mubr.f32.gmra.mrb[0].mxu0 %v1617
    %v1619 = vpop.f32.mrb[0].mxu0
    %v1620 = vadd.f32 %v1545, %v1619
    %v1621 = vpop.f32.mrb[0].mxu0
    %1622 = vdwg.mxu0
    %v1624 = vlaneseq
    %v1625 = vshrl.u32 %v1624, 7
    %v1626 = vsub.s32 0, %v1625
    %v1627 = vrot.slane %v85, %v1626
    %v1628 = vlaneseq
    %v1629 = vshrl.u32 %v1628, 7
    %v1630 = vsub.s32 1, %v1629
    %v1631 = vrot.slane %v85, %v1630
    %v1632 = vlaneseq
    %v1633 = vshrl.u32 %v1632, 7
    %v1634 = vsub.s32 2, %v1633
    %v1635 = vrot.slane %v85, %v1634
    %v1640 = vsel %vm591, 0.0, 0
    %v1642 = vand.u32 %v73, 4294901760
    %1643 = vmatprep.subr.mxu0 %v1642
    %v1644 = vand.u32 %v72, 4294901760
    %1645 = vmatpush1.msra.mxu0 %v1644
    %v1646 = vand.u32 %v76, 4294901760
    %1647 = vmatprep.subr.mxu0 %v1646
    %v1648 = vand.u32 %v75, 4294901760
    %1649 = vmatpush1.msra.mxu0 %v1648
    %v1650 = vand.u32 %v79, 4294901760
    %1651 = vmatprep.subr.mxu0 %v1650
    %v1652 = vand.u32 %v78, 4294901760
    %1653 = vmatpush1.msra.mxu0 %v1652
    %v1654 = vand.u32 %v82, 4294901760
    %1655 = vmatprep.subr.mxu0 %v1654
    %v1656 = vand.u32 %v81, 4294901760
    %1657 = vmatpush1.msra.mxu0 %v1656
    %1658 = vmatprep.subr.mxu0 0.0
    %1659 = vmatpush1.msra.mxu0 0.0
    %1660 = vmatprep.subr.mxu0 0.0
    %1661 = vmatpush1.msra.mxu0 0.0
    %1662 = vmatprep.subr.mxu0 0.0
    %1663 = vmatpush1.msra.mxu0 0.0
    %1664 = vmatprep.subr.mxu0 0.0
    %1665 = vmatpush1.msra.mxu0 0.0
    %1666 = vmatprep.subr.mxu0 0.0
    %1667 = vmatpush1.msra.mxu0 0.0
    %1668 = vmatprep.subr.mxu0 0.0
    %1669 = vmatpush1.msra.mxu0 0.0
    %1670 = vmatprep.subr.mxu0 0.0
    %1671 = vmatpush1.msra.mxu0 0.0
    %1672 = vmatprep.subr.mxu0 0.0
    %1673 = vmatpush1.msra.mxu0 0.0
    %1674 = vmatprep.subr.mxu0 0.0
    %1675 = vmatpush1.msra.mxu0 0.0
    %1676 = vmatprep.subr.mxu0 0.0
    %1677 = vmatpush1.msra.mxu0 0.0
    %1678 = vmatprep.subr.mxu0 0.0
    %1679 = vmatpush1.msra.mxu0 0.0
    %1680 = vmatprep.subr.mxu0 0.0
    %1681 = vmatpush1.msra.mxu0 0.0
    %1682 = vmatprep.subr.mxu0 0.0
    %1683 = vmatpush1.msra.mxu0 0.0
    %1684 = vmatprep.subr.mxu0 0.0
    %1685 = vmatpush1.msra.mxu0 0.0
    %1686 = vmatprep.subr.mxu0 0.0
    %1687 = vmatpush1.msra.mxu0 0.0
    %1688 = vmatprep.subr.mxu0 0.0
    %1689 = vmatpush1.msra.mxu0 0.0
    %1690 = vmatprep.subr.mxu0 0.0
    %1691 = vmatpush1.msra.mxu0 0.0
    %1692 = vmatprep.subr.mxu0 0.0
    %1693 = vmatpush1.msra.mxu0 0.0
    %1694 = vmatprep.subr.mxu0 0.0
    %1695 = vmatpush1.msra.mxu0 0.0
    %1696 = vmatprep.subr.mxu0 0.0
    %1697 = vmatpush1.msra.mxu0 0.0
    %1698 = vmatprep.subr.mxu0 0.0
    %1699 = vmatpush1.msra.mxu0 0.0
    %1700 = vmatprep.subr.mxu0 0.0
    %1701 = vmatpush1.msra.mxu0 0.0
    %1702 = vmatprep.subr.mxu0 0.0
    %1703 = vmatpush1.msra.mxu0 0.0
    %1704 = vmatprep.subr.mxu0 0.0
    %1705 = vmatpush1.msra.mxu0 0.0
    %1706 = vmatprep.subr.mxu0 0.0
    %1707 = vmatpush1.msra.mxu0 0.0
    %1708 = vmatprep.subr.mxu0 0.0
    %1709 = vmatpush1.msra.mxu0 0.0
    %1710 = vmatprep.subr.mxu0 0.0
    %1711 = vmatpush1.msra.mxu0 0.0
    %1712 = vmatprep.subr.mxu0 0.0
    %1713 = vmatpush1.msra.mxu0 0.0
    %1714 = vmatprep.mubr.f32.mxu0 0.0
    %v1715 = vand.u32 %v1640, 4294901760
    %v1716 = vsub.f32 %v1640, %v1715
    %v1717 = vand.u32 %v1716, 4294901760
    %v1718 = vsub.f32 %v1716, %v1717
    %v1719 = vand.u32 %v1718, 4294901760
    %1720 = vmatmul.mubr.f32.gmra.mrb[0].mxu0 %v1719
    %v1721 = vpop.f32.mrb[0].mxu0
    %v1722 = vadd.f32 %v1627, %v1721
    %v1723 = vpop.f32.mrb[0].mxu0
    %v1724 = vadd.f32 %v1631, %v1723
    %1725 = vdwg.mxu0
    %v1726 = vand.u32 %v73, 4294901760
    %v1727 = vsub.f32 %v73, %v1726
    %v1728 = vand.u32 %v1727, 4294901760
    %v1729 = vsub.f32 %v1727, %v1728
    %v1730 = vand.u32 %v1729, 4294901760
    %1731 = vmatprep.subr.mxu0 %v1730
    %v1732 = vand.u32 %v72, 4294901760
    %v1733 = vsub.f32 %v72, %v1732
    %v1734 = vand.u32 %v1733, 4294901760
    %v1735 = vsub.f32 %v1733, %v1734
    %v1736 = vand.u32 %v1735, 4294901760
    %1737 = vmatpush1.msra.mxu0 %v1736
    %v1738 = vand.u32 %v76, 4294901760
    %v1739 = vsub.f32 %v76, %v1738
    %v1740 = vand.u32 %v1739, 4294901760
    %v1741 = vsub.f32 %v1739, %v1740
    %v1742 = vand.u32 %v1741, 4294901760
    %1743 = vmatprep.subr.mxu0 %v1742
    %v1744 = vand.u32 %v75, 4294901760
    %v1745 = vsub.f32 %v75, %v1744
    %v1746 = vand.u32 %v1745, 4294901760
    %v1747 = vsub.f32 %v1745, %v1746
    %v1748 = vand.u32 %v1747, 4294901760
    %1749 = vmatpush1.msra.mxu0 %v1748
    %v1750 = vand.u32 %v79, 4294901760
    %v1751 = vsub.f32 %v79, %v1750
    %v1752 = vand.u32 %v1751, 4294901760
    %v1753 = vsub.f32 %v1751, %v1752
    %v1754 = vand.u32 %v1753, 4294901760
    %1755 = vmatprep.subr.mxu0 %v1754
    %v1756 = vand.u32 %v78, 4294901760
    %v1757 = vsub.f32 %v78, %v1756
    %v1758 = vand.u32 %v1757, 4294901760
    %v1759 = vsub.f32 %v1757, %v1758
    %v1760 = vand.u32 %v1759, 4294901760
    %1761 = vmatpush1.msra.mxu0 %v1760
    %v1762 = vand.u32 %v82, 4294901760
    %v1763 = vsub.f32 %v82, %v1762
    %v1764 = vand.u32 %v1763, 4294901760
    %v1765 = vsub.f32 %v1763, %v1764
    %v1766 = vand.u32 %v1765, 4294901760
    %1767 = vmatprep.subr.mxu0 %v1766
    %v1768 = vand.u32 %v81, 4294901760
    %v1769 = vsub.f32 %v81, %v1768
    %v1770 = vand.u32 %v1769, 4294901760
    %v1771 = vsub.f32 %v1769, %v1770
    %v1772 = vand.u32 %v1771, 4294901760
    %1773 = vmatpush1.msra.mxu0 %v1772
    %1774 = vmatprep.subr.mxu0 0.0
    %1775 = vmatpush1.msra.mxu0 0.0
    %1776 = vmatprep.subr.mxu0 0.0
    %1777 = vmatpush1.msra.mxu0 0.0
    %1778 = vmatprep.subr.mxu0 0.0
    %1779 = vmatpush1.msra.mxu0 0.0
    %1780 = vmatprep.subr.mxu0 0.0
    %1781 = vmatpush1.msra.mxu0 0.0
    %1782 = vmatprep.subr.mxu0 0.0
    %1783 = vmatpush1.msra.mxu0 0.0
    %1784 = vmatprep.subr.mxu0 0.0
    %1785 = vmatpush1.msra.mxu0 0.0
    %1786 = vmatprep.subr.mxu0 0.0
    %1787 = vmatpush1.msra.mxu0 0.0
    %1788 = vmatprep.subr.mxu0 0.0
    %1789 = vmatpush1.msra.mxu0 0.0
    %1790 = vmatprep.subr.mxu0 0.0
    %1791 = vmatpush1.msra.mxu0 0.0
    %1792 = vmatprep.subr.mxu0 0.0
    %1793 = vmatpush1.msra.mxu0 0.0
    %1794 = vmatprep.subr.mxu0 0.0
    %1795 = vmatpush1.msra.mxu0 0.0
    %1796 = vmatprep.subr.mxu0 0.0
    %1797 = vmatpush1.msra.mxu0 0.0
    %1798 = vmatprep.subr.mxu0 0.0
    %1799 = vmatpush1.msra.mxu0 0.0
    %1800 = vmatprep.subr.mxu0 0.0
    %1801 = vmatpush1.msra.mxu0 0.0
    %1802 = vmatprep.subr.mxu0 0.0
    %1803 = vmatpush1.msra.mxu0 0.0
    %1804 = vmatprep.subr.mxu0 0.0
    %1805 = vmatpush1.msra.mxu0 0.0
    %1806 = vmatprep.subr.mxu0 0.0
    %1807 = vmatpush1.msra.mxu0 0.0
    %1808 = vmatprep.subr.mxu0 0.0
    %1809 = vmatpush1.msra.mxu0 0.0
    %1810 = vmatprep.subr.mxu0 0.0
    %1811 = vmatpush1.msra.mxu0 0.0
    %1812 = vmatprep.subr.mxu0 0.0
    %1813 = vmatpush1.msra.mxu0 0.0
    %1814 = vmatprep.subr.mxu0 0.0
    %1815 = vmatpush1.msra.mxu0 0.0
    %1816 = vmatprep.subr.mxu0 0.0
    %1817 = vmatpush1.msra.mxu0 0.0
    %1818 = vmatprep.subr.mxu0 0.0
    %1819 = vmatpush1.msra.mxu0 0.0
    %1820 = vmatprep.subr.mxu0 0.0
    %1821 = vmatpush1.msra.mxu0 0.0
    %1822 = vmatprep.subr.mxu0 0.0
    %1823 = vmatpush1.msra.mxu0 0.0
    %1824 = vmatprep.subr.mxu0 0.0
    %1825 = vmatpush1.msra.mxu0 0.0
    %1826 = vmatprep.subr.mxu0 0.0
    %1827 = vmatpush1.msra.mxu0 0.0
    %1828 = vmatprep.subr.mxu0 0.0
    %1829 = vmatpush1.msra.mxu0 0.0
    %1830 = vmatprep.mubr.f32.mxu0 0.0
    %v1831 = vand.u32 %v1640, 4294901760
    %1832 = vmatmul.mubr.f32.gmra.mrb[0].mxu0 %v1831
    %v1833 = vpop.f32.mrb[0].mxu0
    %v1834 = vadd.f32 %v1722, %v1833
    %v1835 = vpop.f32.mrb[0].mxu0
    %v1836 = vadd.f32 %v1724, %v1835
    %1837 = vdwg.mxu0
    %v1838 = vand.u32 %v73, 4294901760
    %v1839 = vsub.f32 %v73, %v1838
    %1840 = vmatprep.subr.mxu0 %v1839
    %v1841 = vand.u32 %v72, 4294901760
    %v1842 = vsub.f32 %v72, %v1841
    %1843 = vmatpush1.msra.mxu0 %v1842
    %v1844 = vand.u32 %v76, 4294901760
    %v1845 = vsub.f32 %v76, %v1844
    %1846 = vmatprep.subr.mxu0 %v1845
    %v1847 = vand.u32 %v75, 4294901760
    %v1848 = vsub.f32 %v75, %v1847
    %1849 = vmatpush1.msra.mxu0 %v1848
    %v1850 = vand.u32 %v79, 4294901760
    %v1851 = vsub.f32 %v79, %v1850
    %1852 = vmatprep.subr.mxu0 %v1851
    %v1853 = vand.u32 %v78, 4294901760
    %v1854 = vsub.f32 %v78, %v1853
    %1855 = vmatpush1.msra.mxu0 %v1854
    %v1856 = vand.u32 %v82, 4294901760
    %v1857 = vsub.f32 %v82, %v1856
    %1858 = vmatprep.subr.mxu0 %v1857
    %v1859 = vand.u32 %v81, 4294901760
    %v1860 = vsub.f32 %v81, %v1859
    %1861 = vmatpush1.msra.mxu0 %v1860
    %1862 = vmatprep.subr.mxu0 0.0
    %1863 = vmatpush1.msra.mxu0 0.0
    %1864 = vmatprep.subr.mxu0 0.0
    %1865 = vmatpush1.msra.mxu0 0.0
    %1866 = vmatprep.subr.mxu0 0.0
    %1867 = vmatpush1.msra.mxu0 0.0
    %1868 = vmatprep.subr.mxu0 0.0
    %1869 = vmatpush1.msra.mxu0 0.0
    %1870 = vmatprep.subr.mxu0 0.0
    %1871 = vmatpush1.msra.mxu0 0.0
    %1872 = vmatprep.subr.mxu0 0.0
    %1873 = vmatpush1.msra.mxu0 0.0
    %1874 = vmatprep.subr.mxu0 0.0
    %1875 = vmatpush1.msra.mxu0 0.0
    %1876 = vmatprep.subr.mxu0 0.0
    %1877 = vmatpush1.msra.mxu0 0.0
    %1878 = vmatprep.subr.mxu0 0.0
    %1879 = vmatpush1.msra.mxu0 0.0
    %1880 = vmatprep.subr.mxu0 0.0
    %1881 = vmatpush1.msra.mxu0 0.0
    %1882 = vmatprep.subr.mxu0 0.0
    %1883 = vmatpush1.msra.mxu0 0.0
    %1884 = vmatprep.subr.mxu0 0.0
    %1885 = vmatpush1.msra.mxu0 0.0
    %1886 = vmatprep.subr.mxu0 0.0
    %1887 = vmatpush1.msra.mxu0 0.0
    %1888 = vmatprep.subr.mxu0 0.0
    %1889 = vmatpush1.msra.mxu0 0.0
    %1890 = vmatprep.subr.mxu0 0.0
    %1891 = vmatpush1.msra.mxu0 0.0
    %1892 = vmatprep.subr.mxu0 0.0
    %1893 = vmatpush1.msra.mxu0 0.0
    %1894 = vmatprep.subr.mxu0 0.0
    %1895 = vmatpush1.msra.mxu0 0.0
    %1896 = vmatprep.subr.mxu0 0.0
    %1897 = vmatpush1.msra.mxu0 0.0
    %1898 = vmatprep.subr.mxu0 0.0
    %1899 = vmatpush1.msra.mxu0 0.0
    %1900 = vmatprep.subr.mxu0 0.0
    %1901 = vmatpush1.msra.mxu0 0.0
    %1902 = vmatprep.subr.mxu0 0.0
    %1903 = vmatpush1.msra.mxu0 0.0
    %1904 = vmatprep.subr.mxu0 0.0
    %1905 = vmatpush1.msra.mxu0 0.0
    %1906 = vmatprep.subr.mxu0 0.0
    %1907 = vmatpush1.msra.mxu0 0.0
    %1908 = vmatprep.subr.mxu0 0.0
    %1909 = vmatpush1.msra.mxu0 0.0
    %1910 = vmatprep.subr.mxu0 0.0
    %1911 = vmatpush1.msra.mxu0 0.0
    %1912 = vmatprep.subr.mxu0 0.0
    %1913 = vmatpush1.msra.mxu0 0.0
    %1914 = vmatprep.subr.mxu0 0.0
    %1915 = vmatpush1.msra.mxu0 0.0
    %1916 = vmatprep.subr.mxu0 0.0
    %1917 = vmatpush1.msra.mxu0 0.0
    %1918 = vmatprep.mubr.f32.mxu0 0.0
    %v1919 = vand.u32 %v1640, 4294901760
    %v1920 = vsub.f32 %v1640, %v1919
    %1921 = vmatmul.mubr.f32.gmra.mrb[0].mxu0 %v1920
    %v1922 = vpop.f32.mrb[0].mxu0
    %v1923 = vadd.f32 %v1834, %v1922
    %v1924 = vpop.f32.mrb[0].mxu0
    %v1925 = vadd.f32 %v1836, %v1924
    %1926 = vdwg.mxu0
    %v1927 = vand.u32 %v73, 4294901760
    %1928 = vmatprep.subr.mxu0 %v1927
    %v1929 = vand.u32 %v72, 4294901760
    %1930 = vmatpush1.msra.mxu0 %v1929
    %v1931 = vand.u32 %v76, 4294901760
    %1932 = vmatprep.subr.mxu0 %v1931
    %v1933 = vand.u32 %v75, 4294901760
    %1934 = vmatpush1.msra.mxu0 %v1933
    %v1935 = vand.u32 %v79, 4294901760
    %1936 = vmatprep.subr.mxu0 %v1935
    %v1937 = vand.u32 %v78, 4294901760
    %1938 = vmatpush1.msra.mxu0 %v1937
    %v1939 = vand.u32 %v82, 4294901760
    %1940 = vmatprep.subr.mxu0 %v1939
    %v1941 = vand.u32 %v81, 4294901760
    %1942 = vmatpush1.msra.mxu0 %v1941
    %1943 = vmatprep.subr.mxu0 0.0
    %1944 = vmatpush1.msra.mxu0 0.0
    %1945 = vmatprep.subr.mxu0 0.0
    %1946 = vmatpush1.msra.mxu0 0.0
    %1947 = vmatprep.subr.mxu0 0.0
    %1948 = vmatpush1.msra.mxu0 0.0
    %1949 = vmatprep.subr.mxu0 0.0
    %1950 = vmatpush1.msra.mxu0 0.0
    %1951 = vmatprep.subr.mxu0 0.0
    %1952 = vmatpush1.msra.mxu0 0.0
    %1953 = vmatprep.subr.mxu0 0.0
    %1954 = vmatpush1.msra.mxu0 0.0
    %1955 = vmatprep.subr.mxu0 0.0
    %1956 = vmatpush1.msra.mxu0 0.0
    %1957 = vmatprep.subr.mxu0 0.0
    %1958 = vmatpush1.msra.mxu0 0.0
    %1959 = vmatprep.subr.mxu0 0.0
    %1960 = vmatpush1.msra.mxu0 0.0
    %1961 = vmatprep.subr.mxu0 0.0
    %1962 = vmatpush1.msra.mxu0 0.0
    %1963 = vmatprep.subr.mxu0 0.0
    %1964 = vmatpush1.msra.mxu0 0.0
    %1965 = vmatprep.subr.mxu0 0.0
    %1966 = vmatpush1.msra.mxu0 0.0
    %1967 = vmatprep.subr.mxu0 0.0
    %1968 = vmatpush1.msra.mxu0 0.0
    %1969 = vmatprep.subr.mxu0 0.0
    %1970 = vmatpush1.msra.mxu0 0.0
    %1971 = vmatprep.subr.mxu0 0.0
    %1972 = vmatpush1.msra.mxu0 0.0
    %1973 = vmatprep.subr.mxu0 0.0
    %1974 = vmatpush1.msra.mxu0 0.0
    %1975 = vmatprep.subr.mxu0 0.0
    %1976 = vmatpush1.msra.mxu0 0.0
    %1977 = vmatprep.subr.mxu0 0.0
    %1978 = vmatpush1.msra.mxu0 0.0
    %1979 = vmatprep.subr.mxu0 0.0
    %1980 = vmatpush1.msra.mxu0 0.0
    %1981 = vmatprep.subr.mxu0 0.0
    %1982 = vmatpush1.msra.mxu0 0.0
    %1983 = vmatprep.subr.mxu0 0.0
    %1984 = vmatpush1.msra.mxu0 0.0
    %1985 = vmatprep.subr.mxu0 0.0
    %1986 = vmatpush1.msra.mxu0 0.0
    %1987 = vmatprep.subr.mxu0 0.0
    %1988 = vmatpush1.msra.mxu0 0.0
    %1989 = vmatprep.subr.mxu0 0.0
    %1990 = vmatpush1.msra.mxu0 0.0
    %1991 = vmatprep.subr.mxu0 0.0
    %1992 = vmatpush1.msra.mxu0 0.0
    %1993 = vmatprep.subr.mxu0 0.0
    %1994 = vmatpush1.msra.mxu0 0.0
    %1995 = vmatprep.subr.mxu0 0.0
    %1996 = vmatpush1.msra.mxu0 0.0
    %1997 = vmatprep.subr.mxu0 0.0
    %1998 = vmatpush1.msra.mxu0 0.0
    %1999 = vmatprep.mubr.f32.mxu0 0.0
    %v2000 = vand.u32 %v1640, 4294901760
    %v2001 = vsub.f32 %v1640, %v2000
    %v2002 = vand.u32 %v2001, 4294901760
    %2003 = vmatmul.mubr.f32.gmra.mrb[0].mxu0 %v2002
    %v2004 = vpop.f32.mrb[0].mxu0
    %v2005 = vadd.f32 %v1923, %v2004
    %v2006 = vpop.f32.mrb[0].mxu0
    %v2007 = vadd.f32 %v1925, %v2006
    %2008 = vdwg.mxu0
    %v2009 = vand.u32 %v73, 4294901760
    %v2010 = vsub.f32 %v73, %v2009
    %v2011 = vand.u32 %v2010, 4294901760
    %2012 = vmatprep.subr.mxu0 %v2011
    %v2013 = vand.u32 %v72, 4294901760
    %v2014 = vsub.f32 %v72, %v2013
    %v2015 = vand.u32 %v2014, 4294901760
    %2016 = vmatpush1.msra.mxu0 %v2015
    %v2017 = vand.u32 %v76, 4294901760
    %v2018 = vsub.f32 %v76, %v2017
    %v2019 = vand.u32 %v2018, 4294901760
    %2020 = vmatprep.subr.mxu0 %v2019
    %v2021 = vand.u32 %v75, 4294901760
    %v2022 = vsub.f32 %v75, %v2021
    %v2023 = vand.u32 %v2022, 4294901760
    %2024 = vmatpush1.msra.mxu0 %v2023
    %v2025 = vand.u32 %v79, 4294901760
    %v2026 = vsub.f32 %v79, %v2025
    %v2027 = vand.u32 %v2026, 4294901760
    %2028 = vmatprep.subr.mxu0 %v2027
    %v2029 = vand.u32 %v78, 4294901760
    %v2030 = vsub.f32 %v78, %v2029
    %v2031 = vand.u32 %v2030, 4294901760
    %2032 = vmatpush1.msra.mxu0 %v2031
    %v2033 = vand.u32 %v82, 4294901760
    %v2034 = vsub.f32 %v82, %v2033
    %v2035 = vand.u32 %v2034, 4294901760
    %2036 = vmatprep.subr.mxu0 %v2035
    %v2037 = vand.u32 %v81, 4294901760
    %v2038 = vsub.f32 %v81, %v2037
    %v2039 = vand.u32 %v2038, 4294901760
    %2040 = vmatpush1.msra.mxu0 %v2039
    %2041 = vmatprep.subr.mxu0 0.0
    %2042 = vmatpush1.msra.mxu0 0.0
    %2043 = vmatprep.subr.mxu0 0.0
    %2044 = vmatpush1.msra.mxu0 0.0
    %2045 = vmatprep.subr.mxu0 0.0
    %2046 = vmatpush1.msra.mxu0 0.0
    %2047 = vmatprep.subr.mxu0 0.0
    %2048 = vmatpush1.msra.mxu0 0.0
    %2049 = vmatprep.subr.mxu0 0.0
    %2050 = vmatpush1.msra.mxu0 0.0
    %2051 = vmatprep.subr.mxu0 0.0
    %2052 = vmatpush1.msra.mxu0 0.0
    %2053 = vmatprep.subr.mxu0 0.0
    %2054 = vmatpush1.msra.mxu0 0.0
    %2055 = vmatprep.subr.mxu0 0.0
    %2056 = vmatpush1.msra.mxu0 0.0
    %2057 = vmatprep.subr.mxu0 0.0
    %2058 = vmatpush1.msra.mxu0 0.0
    %2059 = vmatprep.subr.mxu0 0.0
    %2060 = vmatpush1.msra.mxu0 0.0
    %2061 = vmatprep.subr.mxu0 0.0
    %2062 = vmatpush1.msra.mxu0 0.0
    %2063 = vmatprep.subr.mxu0 0.0
    %2064 = vmatpush1.msra.mxu0 0.0
    %2065 = vmatprep.subr.mxu0 0.0
    %2066 = vmatpush1.msra.mxu0 0.0
    %2067 = vmatprep.subr.mxu0 0.0
    %2068 = vmatpush1.msra.mxu0 0.0
    %2069 = vmatprep.subr.mxu0 0.0
    %2070 = vmatpush1.msra.mxu0 0.0
    %2071 = vmatprep.subr.mxu0 0.0
    %2072 = vmatpush1.msra.mxu0 0.0
    %2073 = vmatprep.subr.mxu0 0.0
    %2074 = vmatpush1.msra.mxu0 0.0
    %2075 = vmatprep.subr.mxu0 0.0
    %2076 = vmatpush1.msra.mxu0 0.0
    %2077 = vmatprep.subr.mxu0 0.0
    %2078 = vmatpush1.msra.mxu0 0.0
    %2079 = vmatprep.subr.mxu0 0.0
    %2080 = vmatpush1.msra.mxu0 0.0
    %2081 = vmatprep.subr.mxu0 0.0
    %2082 = vmatpush1.msra.mxu0 0.0
    %2083 = vmatprep.subr.mxu0 0.0
    %2084 = vmatpush1.msra.mxu0 0.0
    %2085 = vmatprep.subr.mxu0 0.0
    %2086 = vmatpush1.msra.mxu0 0.0
    %2087 = vmatprep.subr.mxu0 0.0
    %2088 = vmatpush1.msra.mxu0 0.0
    %2089 = vmatprep.subr.mxu0 0.0
    %2090 = vmatpush1.msra.mxu0 0.0
    %2091 = vmatprep.subr.mxu0 0.0
    %2092 = vmatpush1.msra.mxu0 0.0
    %2093 = vmatprep.subr.mxu0 0.0
    %2094 = vmatpush1.msra.mxu0 0.0
    %2095 = vmatprep.subr.mxu0 0.0
    %2096 = vmatpush1.msra.mxu0 0.0
    %2097 = vmatprep.mubr.f32.mxu0 0.0
    %v2098 = vand.u32 %v1640, 4294901760
    %2099 = vmatmul.mubr.f32.gmra.mrb[0].mxu0 %v2098
    %v2100 = vpop.f32.mrb[0].mxu0
    %v2101 = vadd.f32 %v2005, %v2100
    %v2102 = vpop.f32.mrb[0].mxu0
    %v2103 = vadd.f32 %v2007, %v2102
    %2104 = vdwg.mxu0
    %v2105 = vand.u32 %v73, 4294901760
    %2106 = vmatprep.subr.mxu0 %v2105
    %v2107 = vand.u32 %v72, 4294901760
    %2108 = vmatpush1.msra.mxu0 %v2107
    %v2109 = vand.u32 %v76, 4294901760
    %2110 = vmatprep.subr.mxu0 %v2109
    %v2111 = vand.u32 %v75, 4294901760
    %2112 = vmatpush1.msra.mxu0 %v2111
    %v2113 = vand.u32 %v79, 4294901760
    %2114 = vmatprep.subr.mxu0 %v2113
    %v2115 = vand.u32 %v78, 4294901760
    %2116 = vmatpush1.msra.mxu0 %v2115
    %v2117 = vand.u32 %v82, 4294901760
    %2118 = vmatprep.subr.mxu0 %v2117
    %v2119 = vand.u32 %v81, 4294901760
    %2120 = vmatpush1.msra.mxu0 %v2119
    %2121 = vmatprep.subr.mxu0 0.0
    %2122 = vmatpush1.msra.mxu0 0.0
    %2123 = vmatprep.subr.mxu0 0.0
    %2124 = vmatpush1.msra.mxu0 0.0
    %2125 = vmatprep.subr.mxu0 0.0
    %2126 = vmatpush1.msra.mxu0 0.0
    %2127 = vmatprep.subr.mxu0 0.0
    %2128 = vmatpush1.msra.mxu0 0.0
    %2129 = vmatprep.subr.mxu0 0.0
    %2130 = vmatpush1.msra.mxu0 0.0
    %2131 = vmatprep.subr.mxu0 0.0
    %2132 = vmatpush1.msra.mxu0 0.0
    %2133 = vmatprep.subr.mxu0 0.0
    %2134 = vmatpush1.msra.mxu0 0.0
    %2135 = vmatprep.subr.mxu0 0.0
    %2136 = vmatpush1.msra.mxu0 0.0
    %2137 = vmatprep.subr.mxu0 0.0
    %2138 = vmatpush1.msra.mxu0 0.0
    %2139 = vmatprep.subr.mxu0 0.0
    %2140 = vmatpush1.msra.mxu0 0.0
    %2141 = vmatprep.subr.mxu0 0.0
    %2142 = vmatpush1.msra.mxu0 0.0
    %2143 = vmatprep.subr.mxu0 0.0
    %2144 = vmatpush1.msra.mxu0 0.0
    %2145 = vmatprep.subr.mxu0 0.0
    %2146 = vmatpush1.msra.mxu0 0.0
    %2147 = vmatprep.subr.mxu0 0.0
    %2148 = vmatpush1.msra.mxu0 0.0
    %2149 = vmatprep.subr.mxu0 0.0
    %2150 = vmatpush1.msra.mxu0 0.0
    %2151 = vmatprep.subr.mxu0 0.0
    %2152 = vmatpush1.msra.mxu0 0.0
    %2153 = vmatprep.subr.mxu0 0.0
    %2154 = vmatpush1.msra.mxu0 0.0
    %2155 = vmatprep.subr.mxu0 0.0
    %2156 = vmatpush1.msra.mxu0 0.0
    %2157 = vmatprep.subr.mxu0 0.0
    %2158 = vmatpush1.msra.mxu0 0.0
    %2159 = vmatprep.subr.mxu0 0.0
    %2160 = vmatpush1.msra.mxu0 0.0
    %2161 = vmatprep.subr.mxu0 0.0
    %2162 = vmatpush1.msra.mxu0 0.0
    %2163 = vmatprep.subr.mxu0 0.0
    %2164 = vmatpush1.msra.mxu0 0.0
    %2165 = vmatprep.subr.mxu0 0.0
    %2166 = vmatpush1.msra.mxu0 0.0
    %2167 = vmatprep.subr.mxu0 0.0
    %2168 = vmatpush1.msra.mxu0 0.0
    %2169 = vmatprep.subr.mxu0 0.0
    %2170 = vmatpush1.msra.mxu0 0.0
    %2171 = vmatprep.subr.mxu0 0.0
    %2172 = vmatpush1.msra.mxu0 0.0
    %2173 = vmatprep.subr.mxu0 0.0
    %2174 = vmatpush1.msra.mxu0 0.0
    %2175 = vmatprep.subr.mxu0 0.0
    %2176 = vmatpush1.msra.mxu0 0.0
    %2177 = vmatprep.mubr.f32.mxu0 0.0
    %v2178 = vand.u32 %v1640, 4294901760
    %2179 = vmatmul.mubr.f32.gmra.mrb[0].mxu0 %v2178
    %v2180 = vpop.f32.mrb[0].mxu0
    %v2181 = vadd.f32 %v2101, %v2180
    %v2182 = vpop.f32.mrb[0].mxu0
    %v2183 = vadd.f32 %v2103, %v2182
    %2184 = vdwg.mxu0
    %2185 = vmatprep.subr.mxu0 0.0
    %v2186 = vand.u32 %v74, 4294901760
    %2187 = vmatpush1.msra.mxu0 %v2186
    %2188 = vmatprep.subr.mxu0 0.0
    %v2189 = vand.u32 %v77, 4294901760
    %2190 = vmatpush1.msra.mxu0 %v2189
    %2191 = vmatprep.subr.mxu0 0.0
    %v2192 = vand.u32 %v80, 4294901760
    %2193 = vmatpush1.msra.mxu0 %v2192
    %2194 = vmatprep.subr.mxu0 0.0
    %v2195 = vand.u32 %v83, 4294901760
    %2196 = vmatpush1.msra.mxu0 %v2195
    %2197 = vmatprep.subr.mxu0 0.0
    %2198 = vmatpush1.msra.mxu0 0.0
    %2199 = vmatprep.subr.mxu0 0.0
    %2200 = vmatpush1.msra.mxu0 0.0
    %2201 = vmatprep.subr.mxu0 0.0
    %2202 = vmatpush1.msra.mxu0 0.0
    %2203 = vmatprep.subr.mxu0 0.0
    %2204 = vmatpush1.msra.mxu0 0.0
    %2205 = vmatprep.subr.mxu0 0.0
    %2206 = vmatpush1.msra.mxu0 0.0
    %2207 = vmatprep.subr.mxu0 0.0
    %2208 = vmatpush1.msra.mxu0 0.0
    %2209 = vmatprep.subr.mxu0 0.0
    %2210 = vmatpush1.msra.mxu0 0.0
    %2211 = vmatprep.subr.mxu0 0.0
    %2212 = vmatpush1.msra.mxu0 0.0
    %2213 = vmatprep.subr.mxu0 0.0
    %2214 = vmatpush1.msra.mxu0 0.0
    %2215 = vmatprep.subr.mxu0 0.0
    %2216 = vmatpush1.msra.mxu0 0.0
    %2217 = vmatprep.subr.mxu0 0.0
    %2218 = vmatpush1.msra.mxu0 0.0
    %2219 = vmatprep.subr.mxu0 0.0
    %2220 = vmatpush1.msra.mxu0 0.0
    %2221 = vmatprep.subr.mxu0 0.0
    %2222 = vmatpush1.msra.mxu0 0.0
    %2223 = vmatprep.subr.mxu0 0.0
    %2224 = vmatpush1.msra.mxu0 0.0
    %2225 = vmatprep.subr.mxu0 0.0
    %2226 = vmatpush1.msra.mxu0 0.0
    %2227 = vmatprep.subr.mxu0 0.0
    %2228 = vmatpush1.msra.mxu0 0.0
    %2229 = vmatprep.subr.mxu0 0.0
    %2230 = vmatpush1.msra.mxu0 0.0
    %2231 = vmatprep.subr.mxu0 0.0
    %2232 = vmatpush1.msra.mxu0 0.0
    %2233 = vmatprep.subr.mxu0 0.0
    %2234 = vmatpush1.msra.mxu0 0.0
    %2235 = vmatprep.subr.mxu0 0.0
    %2236 = vmatpush1.msra.mxu0 0.0
    %2237 = vmatprep.subr.mxu0 0.0
    %2238 = vmatpush1.msra.mxu0 0.0
    %2239 = vmatprep.subr.mxu0 0.0
    %2240 = vmatpush1.msra.mxu0 0.0
    %2241 = vmatprep.subr.mxu0 0.0
    %2242 = vmatpush1.msra.mxu0 0.0
    %2243 = vmatprep.subr.mxu0 0.0
    %2244 = vmatpush1.msra.mxu0 0.0
    %2245 = vmatprep.subr.mxu0 0.0
    %2246 = vmatpush1.msra.mxu0 0.0
    %2247 = vmatprep.subr.mxu0 0.0
    %2248 = vmatpush1.msra.mxu0 0.0
    %2249 = vmatprep.subr.mxu0 0.0
    %2250 = vmatpush1.msra.mxu0 0.0
    %2251 = vmatprep.subr.mxu0 0.0
    %2252 = vmatpush1.msra.mxu0 0.0
    %2253 = vmatprep.mubr.f32.mxu0 0.0
    %v2254 = vand.u32 %v1640, 4294901760
    %v2255 = vsub.f32 %v1640, %v2254
    %v2256 = vand.u32 %v2255, 4294901760
    %v2257 = vsub.f32 %v2255, %v2256
    %v2258 = vand.u32 %v2257, 4294901760
    %2259 = vmatmul.mubr.f32.gmra.mrb[0].mxu0 %v2258
    %v2260 = vpop.f32.mrb[0].mxu0
    %v2261 = vadd.f32 %v1635, %v2260
    %v2262 = vpop.f32.mrb[0].mxu0
    %2263 = vdwg.mxu0
    %2264 = vmatprep.subr.mxu0 0.0
    %v2265 = vand.u32 %v74, 4294901760
    %v2266 = vsub.f32 %v74, %v2265
    %v2267 = vand.u32 %v2266, 4294901760
    %v2268 = vsub.f32 %v2266, %v2267
    %v2269 = vand.u32 %v2268, 4294901760
    %2270 = vmatpush1.msra.mxu0 %v2269
    %2271 = vmatprep.subr.mxu0 0.0
    %v2272 = vand.u32 %v77, 4294901760
    %v2273 = vsub.f32 %v77, %v2272
    %v2274 = vand.u32 %v2273, 4294901760
    %v2275 = vsub.f32 %v2273, %v2274
    %v2276 = vand.u32 %v2275, 4294901760
    %2277 = vmatpush1.msra.mxu0 %v2276
    %2278 = vmatprep.subr.mxu0 0.0
    %v2279 = vand.u32 %v80, 4294901760
    %v2280 = vsub.f32 %v80, %v2279
    %v2281 = vand.u32 %v2280, 4294901760
    %v2282 = vsub.f32 %v2280, %v2281
    %v2283 = vand.u32 %v2282, 4294901760
    %2284 = vmatpush1.msra.mxu0 %v2283
    %2285 = vmatprep.subr.mxu0 0.0
    %v2286 = vand.u32 %v83, 4294901760
    %v2287 = vsub.f32 %v83, %v2286
    %v2288 = vand.u32 %v2287, 4294901760
    %v2289 = vsub.f32 %v2287, %v2288
    %v2290 = vand.u32 %v2289, 4294901760
    %2291 = vmatpush1.msra.mxu0 %v2290
    %2292 = vmatprep.subr.mxu0 0.0
    %2293 = vmatpush1.msra.mxu0 0.0
    %2294 = vmatprep.subr.mxu0 0.0
    %2295 = vmatpush1.msra.mxu0 0.0
    %2296 = vmatprep.subr.mxu0 0.0
    %2297 = vmatpush1.msra.mxu0 0.0
    %2298 = vmatprep.subr.mxu0 0.0
    %2299 = vmatpush1.msra.mxu0 0.0
    %2300 = vmatprep.subr.mxu0 0.0
    %2301 = vmatpush1.msra.mxu0 0.0
    %2302 = vmatprep.subr.mxu0 0.0
    %2303 = vmatpush1.msra.mxu0 0.0
    %2304 = vmatprep.subr.mxu0 0.0
    %2305 = vmatpush1.msra.mxu0 0.0
    %2306 = vmatprep.subr.mxu0 0.0
    %2307 = vmatpush1.msra.mxu0 0.0
    %2308 = vmatprep.subr.mxu0 0.0
    %2309 = vmatpush1.msra.mxu0 0.0
    %2310 = vmatprep.subr.mxu0 0.0
    %2311 = vmatpush1.msra.mxu0 0.0
    %2312 = vmatprep.subr.mxu0 0.0
    %2313 = vmatpush1.msra.mxu0 0.0
    %2314 = vmatprep.subr.mxu0 0.0
    %2315 = vmatpush1.msra.mxu0 0.0
    %2316 = vmatprep.subr.mxu0 0.0
    %2317 = vmatpush1.msra.mxu0 0.0
    %2318 = vmatprep.subr.mxu0 0.0
    %2319 = vmatpush1.msra.mxu0 0.0
    %2320 = vmatprep.subr.mxu0 0.0
    %2321 = vmatpush1.msra.mxu0 0.0
    %2322 = vmatprep.subr.mxu0 0.0
    %2323 = vmatpush1.msra.mxu0 0.0
    %2324 = vmatprep.subr.mxu0 0.0
    %2325 = vmatpush1.msra.mxu0 0.0
    %2326 = vmatprep.subr.mxu0 0.0
    %2327 = vmatpush1.msra.mxu0 0.0
    %2328 = vmatprep.subr.mxu0 0.0
    %2329 = vmatpush1.msra.mxu0 0.0
    %2330 = vmatprep.subr.mxu0 0.0
    %2331 = vmatpush1.msra.mxu0 0.0
    %2332 = vmatprep.subr.mxu0 0.0
    %2333 = vmatpush1.msra.mxu0 0.0
    %2334 = vmatprep.subr.mxu0 0.0
    %2335 = vmatpush1.msra.mxu0 0.0
    %2336 = vmatprep.subr.mxu0 0.0
    %2337 = vmatpush1.msra.mxu0 0.0
    %2338 = vmatprep.subr.mxu0 0.0
    %2339 = vmatpush1.msra.mxu0 0.0
    %2340 = vmatprep.subr.mxu0 0.0
    %2341 = vmatpush1.msra.mxu0 0.0
    %2342 = vmatprep.subr.mxu0 0.0
    %2343 = vmatpush1.msra.mxu0 0.0
    %2344 = vmatprep.subr.mxu0 0.0
    %2345 = vmatpush1.msra.mxu0 0.0
    %2346 = vmatprep.subr.mxu0 0.0
    %2347 = vmatpush1.msra.mxu0 0.0
    %2348 = vmatprep.mubr.f32.mxu0 0.0
    %v2349 = vand.u32 %v1640, 4294901760
    %2350 = vmatmul.mubr.f32.gmra.mrb[0].mxu0 %v2349
    %v2351 = vpop.f32.mrb[0].mxu0
    %v2352 = vadd.f32 %v2261, %v2351
    %v2353 = vpop.f32.mrb[0].mxu0
    %2354 = vdwg.mxu0
    %2355 = vmatprep.subr.mxu0 0.0
    %v2356 = vand.u32 %v74, 4294901760
    %v2357 = vsub.f32 %v74, %v2356
    %2358 = vmatpush1.msra.mxu0 %v2357
    %2359 = vmatprep.subr.mxu0 0.0
    %v2360 = vand.u32 %v77, 4294901760
    %v2361 = vsub.f32 %v77, %v2360
    %2362 = vmatpush1.msra.mxu0 %v2361
    %2363 = vmatprep.subr.mxu0 0.0
    %v2364 = vand.u32 %v80, 4294901760
    %v2365 = vsub.f32 %v80, %v2364
    %2366 = vmatpush1.msra.mxu0 %v2365
    %2367 = vmatprep.subr.mxu0 0.0
    %v2368 = vand.u32 %v83, 4294901760
    %v2369 = vsub.f32 %v83, %v2368
    %2370 = vmatpush1.msra.mxu0 %v2369
    %2371 = vmatprep.subr.mxu0 0.0
    %2372 = vmatpush1.msra.mxu0 0.0
    %2373 = vmatprep.subr.mxu0 0.0
    %2374 = vmatpush1.msra.mxu0 0.0
    %2375 = vmatprep.subr.mxu0 0.0
    %2376 = vmatpush1.msra.mxu0 0.0
    %2377 = vmatprep.subr.mxu0 0.0
    %2378 = vmatpush1.msra.mxu0 0.0
    %2379 = vmatprep.subr.mxu0 0.0
    %2380 = vmatpush1.msra.mxu0 0.0
    %2381 = vmatprep.subr.mxu0 0.0
    %2382 = vmatpush1.msra.mxu0 0.0
    %2383 = vmatprep.subr.mxu0 0.0
    %2384 = vmatpush1.msra.mxu0 0.0
    %2385 = vmatprep.subr.mxu0 0.0
    %2386 = vmatpush1.msra.mxu0 0.0
    %2387 = vmatprep.subr.mxu0 0.0
    %2388 = vmatpush1.msra.mxu0 0.0
    %2389 = vmatprep.subr.mxu0 0.0
    %2390 = vmatpush1.msra.mxu0 0.0
    %2391 = vmatprep.subr.mxu0 0.0
    %2392 = vmatpush1.msra.mxu0 0.0
    %2393 = vmatprep.subr.mxu0 0.0
    %2394 = vmatpush1.msra.mxu0 0.0
    %2395 = vmatprep.subr.mxu0 0.0
    %2396 = vmatpush1.msra.mxu0 0.0
    %2397 = vmatprep.subr.mxu0 0.0
    %2398 = vmatpush1.msra.mxu0 0.0
    %2399 = vmatprep.subr.mxu0 0.0
    %2400 = vmatpush1.msra.mxu0 0.0
    %2401 = vmatprep.subr.mxu0 0.0
    %2402 = vmatpush1.msra.mxu0 0.0
    %2403 = vmatprep.subr.mxu0 0.0
    %2404 = vmatpush1.msra.mxu0 0.0
    %2405 = vmatprep.subr.mxu0 0.0
    %2406 = vmatpush1.msra.mxu0 0.0
    %2407 = vmatprep.subr.mxu0 0.0
    %2408 = vmatpush1.msra.mxu0 0.0
    %2409 = vmatprep.subr.mxu0 0.0
    %2410 = vmatpush1.msra.mxu0 0.0
    %2411 = vmatprep.subr.mxu0 0.0
    %2412 = vmatpush1.msra.mxu0 0.0
    %2413 = vmatprep.subr.mxu0 0.0
    %2414 = vmatpush1.msra.mxu0 0.0
    %2415 = vmatprep.subr.mxu0 0.0
    %2416 = vmatpush1.msra.mxu0 0.0
    %2417 = vmatprep.subr.mxu0 0.0
    %2418 = vmatpush1.msra.mxu0 0.0
    %2419 = vmatprep.subr.mxu0 0.0
    %2420 = vmatpush1.msra.mxu0 0.0
    %2421 = vmatprep.subr.mxu0 0.0
    %2422 = vmatpush1.msra.mxu0 0.0
    %2423 = vmatprep.subr.mxu0 0.0
    %2424 = vmatpush1.msra.mxu0 0.0
    %2425 = vmatprep.subr.mxu0 0.0
    %2426 = vmatpush1.msra.mxu0 0.0
    %2427 = vmatprep.mubr.f32.mxu0 0.0
    %v2428 = vand.u32 %v1640, 4294901760
    %v2429 = vsub.f32 %v1640, %v2428
    %2430 = vmatmul.mubr.f32.gmra.mrb[0].mxu0 %v2429
    %v2431 = vpop.f32.mrb[0].mxu0
    %v2432 = vadd.f32 %v2352, %v2431
    %v2433 = vpop.f32.mrb[0].mxu0
    %2434 = vdwg.mxu0
    %2435 = vmatprep.subr.mxu0 0.0
    %v2436 = vand.u32 %v74, 4294901760
    %2437 = vmatpush1.msra.mxu0 %v2436
    %2438 = vmatprep.subr.mxu0 0.0
    %v2439 = vand.u32 %v77, 4294901760
    %2440 = vmatpush1.msra.mxu0 %v2439
    %2441 = vmatprep.subr.mxu0 0.0
    %v2442 = vand.u32 %v80, 4294901760
    %2443 = vmatpush1.msra.mxu0 %v2442
    %2444 = vmatprep.subr.mxu0 0.0
    %v2445 = vand.u32 %v83, 4294901760
    %2446 = vmatpush1.msra.mxu0 %v2445
    %2447 = vmatprep.subr.mxu0 0.0
    %2448 = vmatpush1.msra.mxu0 0.0
    %2449 = vmatprep.subr.mxu0 0.0
    %2450 = vmatpush1.msra.mxu0 0.0
    %2451 = vmatprep.subr.mxu0 0.0
    %2452 = vmatpush1.msra.mxu0 0.0
    %2453 = vmatprep.subr.mxu0 0.0
    %2454 = vmatpush1.msra.mxu0 0.0
    %2455 = vmatprep.subr.mxu0 0.0
    %2456 = vmatpush1.msra.mxu0 0.0
    %2457 = vmatprep.subr.mxu0 0.0
    %2458 = vmatpush1.msra.mxu0 0.0
    %2459 = vmatprep.subr.mxu0 0.0
    %2460 = vmatpush1.msra.mxu0 0.0
    %2461 = vmatprep.subr.mxu0 0.0
    %2462 = vmatpush1.msra.mxu0 0.0
    %2463 = vmatprep.subr.mxu0 0.0
    %2464 = vmatpush1.msra.mxu0 0.0
    %2465 = vmatprep.subr.mxu0 0.0
    %2466 = vmatpush1.msra.mxu0 0.0
    %2467 = vmatprep.subr.mxu0 0.0
    %2468 = vmatpush1.msra.mxu0 0.0
    %2469 = vmatprep.subr.mxu0 0.0
    %2470 = vmatpush1.msra.mxu0 0.0
    %2471 = vmatprep.subr.mxu0 0.0
    %2472 = vmatpush1.msra.mxu0 0.0
    %2473 = vmatprep.subr.mxu0 0.0
    %2474 = vmatpush1.msra.mxu0 0.0
    %2475 = vmatprep.subr.mxu0 0.0
    %2476 = vmatpush1.msra.mxu0 0.0
    %2477 = vmatprep.subr.mxu0 0.0
    %2478 = vmatpush1.msra.mxu0 0.0
    %2479 = vmatprep.subr.mxu0 0.0
    %2480 = vmatpush1.msra.mxu0 0.0
    %2481 = vmatprep.subr.mxu0 0.0
    %2482 = vmatpush1.msra.mxu0 0.0
    %2483 = vmatprep.subr.mxu0 0.0
    %2484 = vmatpush1.msra.mxu0 0.0
    %2485 = vmatprep.subr.mxu0 0.0
    %2486 = vmatpush1.msra.mxu0 0.0
    %2487 = vmatprep.subr.mxu0 0.0
    %2488 = vmatpush1.msra.mxu0 0.0
    %2489 = vmatprep.subr.mxu0 0.0
    %2490 = vmatpush1.msra.mxu0 0.0
    %2491 = vmatprep.subr.mxu0 0.0
    %2492 = vmatpush1.msra.mxu0 0.0
    %2493 = vmatprep.subr.mxu0 0.0
    %2494 = vmatpush1.msra.mxu0 0.0
    %2495 = vmatprep.subr.mxu0 0.0
    %2496 = vmatpush1.msra.mxu0 0.0
    %2497 = vmatprep.subr.mxu0 0.0
    %2498 = vmatpush1.msra.mxu0 0.0
    %2499 = vmatprep.subr.mxu0 0.0
    %2500 = vmatpush1.msra.mxu0 0.0
    %2501 = vmatprep.subr.mxu0 0.0
    %2502 = vmatpush1.msra.mxu0 0.0
    %2503 = vmatprep.mubr.f32.mxu0 0.0
    %v2504 = vand.u32 %v1640, 4294901760
    %v2505 = vsub.f32 %v1640, %v2504
    %v2506 = vand.u32 %v2505, 4294901760
    %2507 = vmatmul.mubr.f32.gmra.mrb[0].mxu0 %v2506
    %v2508 = vpop.f32.mrb[0].mxu0
    %v2509 = vadd.f32 %v2432, %v2508
    %v2510 = vpop.f32.mrb[0].mxu0
    %2511 = vdwg.mxu0
    %2512 = vmatprep.subr.mxu0 0.0
    %v2513 = vand.u32 %v74, 4294901760
    %v2514 = vsub.f32 %v74, %v2513
    %v2515 = vand.u32 %v2514, 4294901760
    %2516 = vmatpush1.msra.mxu0 %v2515
    %2517 = vmatprep.subr.mxu0 0.0
    %v2518 = vand.u32 %v77, 4294901760
    %v2519 = vsub.f32 %v77, %v2518
    %v2520 = vand.u32 %v2519, 4294901760
    %2521 = vmatpush1.msra.mxu0 %v2520
    %2522 = vmatprep.subr.mxu0 0.0
    %v2523 = vand.u32 %v80, 4294901760
    %v2524 = vsub.f32 %v80, %v2523
    %v2525 = vand.u32 %v2524, 4294901760
    %2526 = vmatpush1.msra.mxu0 %v2525
    %2527 = vmatprep.subr.mxu0 0.0
    %v2528 = vand.u32 %v83, 4294901760
    %v2529 = vsub.f32 %v83, %v2528
    %v2530 = vand.u32 %v2529, 4294901760
    %2531 = vmatpush1.msra.mxu0 %v2530
    %2532 = vmatprep.subr.mxu0 0.0
    %2533 = vmatpush1.msra.mxu0 0.0
    %2534 = vmatprep.subr.mxu0 0.0
    %2535 = vmatpush1.msra.mxu0 0.0
    %2536 = vmatprep.subr.mxu0 0.0
    %2537 = vmatpush1.msra.mxu0 0.0
    %2538 = vmatprep.subr.mxu0 0.0
    %2539 = vmatpush1.msra.mxu0 0.0
    %2540 = vmatprep.subr.mxu0 0.0
    %2541 = vmatpush1.msra.mxu0 0.0
    %2542 = vmatprep.subr.mxu0 0.0
    %2543 = vmatpush1.msra.mxu0 0.0
    %2544 = vmatprep.subr.mxu0 0.0
    %2545 = vmatpush1.msra.mxu0 0.0
    %2546 = vmatprep.subr.mxu0 0.0
    %2547 = vmatpush1.msra.mxu0 0.0
    %2548 = vmatprep.subr.mxu0 0.0
    %2549 = vmatpush1.msra.mxu0 0.0
    %2550 = vmatprep.subr.mxu0 0.0
    %2551 = vmatpush1.msra.mxu0 0.0
    %2552 = vmatprep.subr.mxu0 0.0
    %2553 = vmatpush1.msra.mxu0 0.0
    %2554 = vmatprep.subr.mxu0 0.0
    %2555 = vmatpush1.msra.mxu0 0.0
    %2556 = vmatprep.subr.mxu0 0.0
    %2557 = vmatpush1.msra.mxu0 0.0
    %2558 = vmatprep.subr.mxu0 0.0
    %2559 = vmatpush1.msra.mxu0 0.0
    %2560 = vmatprep.subr.mxu0 0.0
    %2561 = vmatpush1.msra.mxu0 0.0
    %2562 = vmatprep.subr.mxu0 0.0
    %2563 = vmatpush1.msra.mxu0 0.0
    %2564 = vmatprep.subr.mxu0 0.0
    %2565 = vmatpush1.msra.mxu0 0.0
    %2566 = vmatprep.subr.mxu0 0.0
    %2567 = vmatpush1.msra.mxu0 0.0
    %2568 = vmatprep.subr.mxu0 0.0
    %2569 = vmatpush1.msra.mxu0 0.0
    %2570 = vmatprep.subr.mxu0 0.0
    %2571 = vmatpush1.msra.mxu0 0.0
    %2572 = vmatprep.subr.mxu0 0.0
    %2573 = vmatpush1.msra.mxu0 0.0
    %2574 = vmatprep.subr.mxu0 0.0
    %2575 = vmatpush1.msra.mxu0 0.0
    %2576 = vmatprep.subr.mxu0 0.0
    %2577 = vmatpush1.msra.mxu0 0.0
    %2578 = vmatprep.subr.mxu0 0.0
    %2579 = vmatpush1.msra.mxu0 0.0
    %2580 = vmatprep.subr.mxu0 0.0
    %2581 = vmatpush1.msra.mxu0 0.0
    %2582 = vmatprep.subr.mxu0 0.0
    %2583 = vmatpush1.msra.mxu0 0.0
    %2584 = vmatprep.subr.mxu0 0.0
    %2585 = vmatpush1.msra.mxu0 0.0
    %2586 = vmatprep.subr.mxu0 0.0
    %2587 = vmatpush1.msra.mxu0 0.0
    %2588 = vmatprep.mubr.f32.mxu0 0.0
    %v2589 = vand.u32 %v1640, 4294901760
    %2590 = vmatmul.mubr.f32.gmra.mrb[0].mxu0 %v2589
    %v2591 = vpop.f32.mrb[0].mxu0
    %v2592 = vadd.f32 %v2509, %v2591
    %v2593 = vpop.f32.mrb[0].mxu0
    %2594 = vdwg.mxu0
    %2595 = vmatprep.subr.mxu0 0.0
    %v2596 = vand.u32 %v74, 4294901760
    %2597 = vmatpush1.msra.mxu0 %v2596
    %2598 = vmatprep.subr.mxu0 0.0
    %v2599 = vand.u32 %v77, 4294901760
    %2600 = vmatpush1.msra.mxu0 %v2599
    %2601 = vmatprep.subr.mxu0 0.0
    %v2602 = vand.u32 %v80, 4294901760
    %2603 = vmatpush1.msra.mxu0 %v2602
    %2604 = vmatprep.subr.mxu0 0.0
    %v2605 = vand.u32 %v83, 4294901760
    %2606 = vmatpush1.msra.mxu0 %v2605
    %2607 = vmatprep.subr.mxu0 0.0
    %2608 = vmatpush1.msra.mxu0 0.0
    %2609 = vmatprep.subr.mxu0 0.0
    %2610 = vmatpush1.msra.mxu0 0.0
    %2611 = vmatprep.subr.mxu0 0.0
    %2612 = vmatpush1.msra.mxu0 0.0
    %2613 = vmatprep.subr.mxu0 0.0
    %2614 = vmatpush1.msra.mxu0 0.0
    %2615 = vmatprep.subr.mxu0 0.0
    %2616 = vmatpush1.msra.mxu0 0.0
    %2617 = vmatprep.subr.mxu0 0.0
    %2618 = vmatpush1.msra.mxu0 0.0
    %2619 = vmatprep.subr.mxu0 0.0
    %2620 = vmatpush1.msra.mxu0 0.0
    %2621 = vmatprep.subr.mxu0 0.0
    %2622 = vmatpush1.msra.mxu0 0.0
    %2623 = vmatprep.subr.mxu0 0.0
    %2624 = vmatpush1.msra.mxu0 0.0
    %2625 = vmatprep.subr.mxu0 0.0
    %2626 = vmatpush1.msra.mxu0 0.0
    %2627 = vmatprep.subr.mxu0 0.0
    %2628 = vmatpush1.msra.mxu0 0.0
    %2629 = vmatprep.subr.mxu0 0.0
    %2630 = vmatpush1.msra.mxu0 0.0
    %2631 = vmatprep.subr.mxu0 0.0
    %2632 = vmatpush1.msra.mxu0 0.0
    %2633 = vmatprep.subr.mxu0 0.0
    %2634 = vmatpush1.msra.mxu0 0.0
    %2635 = vmatprep.subr.mxu0 0.0
    %2636 = vmatpush1.msra.mxu0 0.0
    %2637 = vmatprep.subr.mxu0 0.0
    %2638 = vmatpush1.msra.mxu0 0.0
    %2639 = vmatprep.subr.mxu0 0.0
    %2640 = vmatpush1.msra.mxu0 0.0
    %2641 = vmatprep.subr.mxu0 0.0
    %2642 = vmatpush1.msra.mxu0 0.0
    %2643 = vmatprep.subr.mxu0 0.0
    %2644 = vmatpush1.msra.mxu0 0.0
    %2645 = vmatprep.subr.mxu0 0.0
    %2646 = vmatpush1.msra.mxu0 0.0
    %2647 = vmatprep.subr.mxu0 0.0
    %2648 = vmatpush1.msra.mxu0 0.0
    %2649 = vmatprep.subr.mxu0 0.0
    %2650 = vmatpush1.msra.mxu0 0.0
    %2651 = vmatprep.subr.mxu0 0.0
    %2652 = vmatpush1.msra.mxu0 0.0
    %2653 = vmatprep.subr.mxu0 0.0
    %2654 = vmatpush1.msra.mxu0 0.0
    %2655 = vmatprep.subr.mxu0 0.0
    %2656 = vmatpush1.msra.mxu0 0.0
    %2657 = vmatprep.subr.mxu0 0.0
    %2658 = vmatpush1.msra.mxu0 0.0
    %2659 = vmatprep.subr.mxu0 0.0
    %2660 = vmatpush1.msra.mxu0 0.0
    %2661 = vmatprep.subr.mxu0 0.0
    %2662 = vmatpush1.msra.mxu0 0.0
    %2663 = vmatprep.mubr.f32.mxu0 0.0
    %v2664 = vand.u32 %v1640, 4294901760
    %2665 = vmatmul.mubr.f32.gmra.mrb[0].mxu0 %v2664
    %v2666 = vpop.f32.mrb[0].mxu0
    %v2667 = vadd.f32 %v2592, %v2666
    %v2668 = vpop.f32.mrb[0].mxu0
    %2669 = vdwg.mxu0
    %v2670 = vadd.f32 %v1134, %v2181
    %v2671 = vxor.u32 %v2670, 2147483648
    %v2672 = vmul.f32 %v2671, 1.442695
    %v2673 = vpow.pop %v2672
    %v2674 = vadd.f32 %v2673, 1.0
    %v2675 = vrcp.pop %v2674
    %v2676 = vmul.f32 1.0, %v2675
    %v2677 = vadd.f32 %v1136, %v2183
    %v2678 = vxor.u32 %v2677, 2147483648
    %v2679 = vmul.f32 %v2678, 1.442695
    %v2680 = vpow.pop %v2679
    %v2681 = vadd.f32 %v2680, 1.0
    %v2682 = vrcp.pop %v2681
    %v2683 = vmul.f32 1.0, %v2682
    %v2684 = vmul.f32 %v2676, %v2667
    %v2685 = vadd.f32 %v1620, %v2684
    %v2686 = vtanh.pop %v2685
    %v2687 = vsub.f32 1.0, %v2683
    %v2688 = vmul.f32 %v2687, %v2686
    %v2689 = vmul.f32 %v2683, 0.0
    %v2690 = vadd.f32 %v2688, %v2689
    %v2692 = vsel %vm591, %v2690, 0
    %2694 = vmatprep.subr.mxu0 0.0
    %v2695 = vand.u32 %v103, 4294901760
    %2696 = vmatpush1.msra.mxu0 %v2695
    %2697 = vmatprep.subr.mxu0 0.0
    %v2698 = vand.u32 %v104, 4294901760
    %2699 = vmatpush1.msra.mxu0 %v2698
    %2700 = vmatprep.subr.mxu0 0.0
    %v2701 = vand.u32 %v105, 4294901760
    %2702 = vmatpush1.msra.mxu0 %v2701
    %2703 = vmatprep.subr.mxu0 0.0
    %v2704 = vand.u32 %v106, 4294901760
    %2705 = vmatpush1.msra.mxu0 %v2704
    %2706 = vmatprep.subr.mxu0 0.0
    %2707 = vmatpush1.msra.mxu0 0.0
    %2708 = vmatprep.subr.mxu0 0.0
    %2709 = vmatpush1.msra.mxu0 0.0
    %2710 = vmatprep.subr.mxu0 0.0
    %2711 = vmatpush1.msra.mxu0 0.0
    %2712 = vmatprep.subr.mxu0 0.0
    %2713 = vmatpush1.msra.mxu0 0.0
    %2714 = vmatprep.subr.mxu0 0.0
    %2715 = vmatpush1.msra.mxu0 0.0
    %2716 = vmatprep.subr.mxu0 0.0
    %2717 = vmatpush1.msra.mxu0 0.0
    %2718 = vmatprep.subr.mxu0 0.0
    %2719 = vmatpush1.msra.mxu0 0.0
    %2720 = vmatprep.subr.mxu0 0.0
    %2721 = vmatpush1.msra.mxu0 0.0
    %2722 = vmatprep.subr.mxu0 0.0
    %2723 = vmatpush1.msra.mxu0 0.0
    %2724 = vmatprep.subr.mxu0 0.0
    %2725 = vmatpush1.msra.mxu0 0.0
    %2726 = vmatprep.subr.mxu0 0.0
    %2727 = vmatpush1.msra.mxu0 0.0
    %2728 = vmatprep.subr.mxu0 0.0
    %2729 = vmatpush1.msra.mxu0 0.0
    %2730 = vmatprep.subr.mxu0 0.0
    %2731 = vmatpush1.msra.mxu0 0.0
    %2732 = vmatprep.subr.mxu0 0.0
    %2733 = vmatpush1.msra.mxu0 0.0
    %2734 = vmatprep.subr.mxu0 0.0
    %2735 = vmatpush1.msra.mxu0 0.0
    %2736 = vmatprep.subr.mxu0 0.0
    %2737 = vmatpush1.msra.mxu0 0.0
    %2738 = vmatprep.subr.mxu0 0.0
    %2739 = vmatpush1.msra.mxu0 0.0
    %2740 = vmatprep.subr.mxu0 0.0
    %2741 = vmatpush1.msra.mxu0 0.0
    %2742 = vmatprep.subr.mxu0 0.0
    %2743 = vmatpush1.msra.mxu0 0.0
    %2744 = vmatprep.subr.mxu0 0.0
    %2745 = vmatpush1.msra.mxu0 0.0
    %2746 = vmatprep.subr.mxu0 0.0
    %2747 = vmatpush1.msra.mxu0 0.0
    %2748 = vmatprep.subr.mxu0 0.0
    %2749 = vmatpush1.msra.mxu0 0.0
    %2750 = vmatprep.subr.mxu0 0.0
    %2751 = vmatpush1.msra.mxu0 0.0
    %2752 = vmatprep.subr.mxu0 0.0
    %2753 = vmatpush1.msra.mxu0 0.0
    %2754 = vmatprep.subr.mxu0 0.0
    %2755 = vmatpush1.msra.mxu0 0.0
    %2756 = vmatprep.subr.mxu0 0.0
    %2757 = vmatpush1.msra.mxu0 0.0
    %2758 = vmatprep.subr.mxu0 0.0
    %2759 = vmatpush1.msra.mxu0 0.0
    %2760 = vmatprep.subr.mxu0 0.0
    %2761 = vmatpush1.msra.mxu0 0.0
    %2762 = vmatprep.mubr.f32.mxu0 0.0
    %v2763 = vand.u32 %v2692, 4294901760
    %v2764 = vsub.f32 %v2692, %v2763
    %v2765 = vand.u32 %v2764, 4294901760
    %v2766 = vsub.f32 %v2764, %v2765
    %v2767 = vand.u32 %v2766, 4294901760
    %2768 = vmatmul.mubr.f32.gmra.mrb[0].mxu0 %v2767
    %v2769 = vpop.f32.mrb[0].mxu0
    %v2770 = vadd.f32 %v107, %v2769
    %v2771 = vpop.f32.mrb[0].mxu0
    %2772 = vdwg.mxu0
    %2773 = vmatprep.subr.mxu0 0.0
    %v2774 = vand.u32 %v103, 4294901760
    %v2775 = vsub.f32 %v103, %v2774
    %v2776 = vand.u32 %v2775, 4294901760
    %v2777 = vsub.f32 %v2775, %v2776
    %v2778 = vand.u32 %v2777, 4294901760
    %2779 = vmatpush1.msra.mxu0 %v2778
    %2780 = vmatprep.subr.mxu0 0.0
    %v2781 = vand.u32 %v104, 4294901760
    %v2782 = vsub.f32 %v104, %v2781
    %v2783 = vand.u32 %v2782, 4294901760
    %v2784 = vsub.f32 %v2782, %v2783
    %v2785 = vand.u32 %v2784, 4294901760
    %2786 = vmatpush1.msra.mxu0 %v2785
    %2787 = vmatprep.subr.mxu0 0.0
    %v2788 = vand.u32 %v105, 4294901760
    %v2789 = vsub.f32 %v105, %v2788
    %v2790 = vand.u32 %v2789, 4294901760
    %v2791 = vsub.f32 %v2789, %v2790
    %v2792 = vand.u32 %v2791, 4294901760
    %2793 = vmatpush1.msra.mxu0 %v2792
    %2794 = vmatprep.subr.mxu0 0.0
    %v2795 = vand.u32 %v106, 4294901760
    %v2796 = vsub.f32 %v106, %v2795
    %v2797 = vand.u32 %v2796, 4294901760
    %v2798 = vsub.f32 %v2796, %v2797
    %v2799 = vand.u32 %v2798, 4294901760
    %2800 = vmatpush1.msra.mxu0 %v2799
    %2801 = vmatprep.subr.mxu0 0.0
    %2802 = vmatpush1.msra.mxu0 0.0
    %2803 = vmatprep.subr.mxu0 0.0
    %2804 = vmatpush1.msra.mxu0 0.0
    %2805 = vmatprep.subr.mxu0 0.0
    %2806 = vmatpush1.msra.mxu0 0.0
    %2807 = vmatprep.subr.mxu0 0.0
    %2808 = vmatpush1.msra.mxu0 0.0
    %2809 = vmatprep.subr.mxu0 0.0
    %2810 = vmatpush1.msra.mxu0 0.0
    %2811 = vmatprep.subr.mxu0 0.0
    %2812 = vmatpush1.msra.mxu0 0.0
    %2813 = vmatprep.subr.mxu0 0.0
    %2814 = vmatpush1.msra.mxu0 0.0
    %2815 = vmatprep.subr.mxu0 0.0
    %2816 = vmatpush1.msra.mxu0 0.0
    %2817 = vmatprep.subr.mxu0 0.0
    %2818 = vmatpush1.msra.mxu0 0.0
    %2819 = vmatprep.subr.mxu0 0.0
    %2820 = vmatpush1.msra.mxu0 0.0
    %2821 = vmatprep.subr.mxu0 0.0
    %2822 = vmatpush1.msra.mxu0 0.0
    %2823 = vmatprep.subr.mxu0 0.0
    %2824 = vmatpush1.msra.mxu0 0.0
    %2825 = vmatprep.subr.mxu0 0.0
    %2826 = vmatpush1.msra.mxu0 0.0
    %2827 = vmatprep.subr.mxu0 0.0
    %2828 = vmatpush1.msra.mxu0 0.0
    %2829 = vmatprep.subr.mxu0 0.0
    %2830 = vmatpush1.msra.mxu0 0.0
    %2831 = vmatprep.subr.mxu0 0.0
    %2832 = vmatpush1.msra.mxu0 0.0
    %2833 = vmatprep.subr.mxu0 0.0
    %2834 = vmatpush1.msra.mxu0 0.0
    %2835 = vmatprep.subr.mxu0 0.0
    %2836 = vmatpush1.msra.mxu0 0.0
    %2837 = vmatprep.subr.mxu0 0.0
    %2838 = vmatpush1.msra.mxu0 0.0
    %2839 = vmatprep.subr.mxu0 0.0
    %2840 = vmatpush1.msra.mxu0 0.0
    %2841 = vmatprep.subr.mxu0 0.0
    %2842 = vmatpush1.msra.mxu0 0.0
    %2843 = vmatprep.subr.mxu0 0.0
    %2844 = vmatpush1.msra.mxu0 0.0
    %2845 = vmatprep.subr.mxu0 0.0
    %2846 = vmatpush1.msra.mxu0 0.0
    %2847 = vmatprep.subr.mxu0 0.0
    %2848 = vmatpush1.msra.mxu0 0.0
    %2849 = vmatprep.subr.mxu0 0.0
    %2850 = vmatpush1.msra.mxu0 0.0
    %2851 = vmatprep.subr.mxu0 0.0
    %2852 = vmatpush1.msra.mxu0 0.0
    %2853 = vmatprep.subr.mxu0 0.0
    %2854 = vmatpush1.msra.mxu0 0.0
    %2855 = vmatprep.subr.mxu0 0.0
    %2856 = vmatpush1.msra.mxu0 0.0
    %2857 = vmatprep.mubr.f32.mxu0 0.0
    %v2858 = vand.u32 %v2692, 4294901760
    %2859 = vmatmul.mubr.f32.gmra.mrb[0].mxu0 %v2858
    %v2860 = vpop.f32.mrb[0].mxu0
    %v2861 = vadd.f32 %v2770, %v2860
    %v2862 = vpop.f32.mrb[0].mxu0
    %2863 = vdwg.mxu0
    %2864 = vmatprep.subr.mxu0 0.0
    %v2865 = vand.u32 %v103, 4294901760
    %v2866 = vsub.f32 %v103, %v2865
    %2867 = vmatpush1.msra.mxu0 %v2866
    %2868 = vmatprep.subr.mxu0 0.0
    %v2869 = vand.u32 %v104, 4294901760
    %v2870 = vsub.f32 %v104, %v2869
    %2871 = vmatpush1.msra.mxu0 %v2870
    %2872 = vmatprep.subr.mxu0 0.0
    %v2873 = vand.u32 %v105, 4294901760
    %v2874 = vsub.f32 %v105, %v2873
    %2875 = vmatpush1.msra.mxu0 %v2874
    %2876 = vmatprep.subr.mxu0 0.0
    %v2877 = vand.u32 %v106, 4294901760
    %v2878 = vsub.f32 %v106, %v2877
    %2879 = vmatpush1.msra.mxu0 %v2878
    %2880 = vmatprep.subr.mxu0 0.0
    %2881 = vmatpush1.msra.mxu0 0.0
    %2882 = vmatprep.subr.mxu0 0.0
    %2883 = vmatpush1.msra.mxu0 0.0
    %2884 = vmatprep.subr.mxu0 0.0
    %2885 = vmatpush1.msra.mxu0 0.0
    %2886 = vmatprep.subr.mxu0 0.0
    %2887 = vmatpush1.msra.mxu0 0.0
    %2888 = vmatprep.subr.mxu0 0.0
    %2889 = vmatpush1.msra.mxu0 0.0
    %2890 = vmatprep.subr.mxu0 0.0
    %2891 = vmatpush1.msra.mxu0 0.0
    %2892 = vmatprep.subr.mxu0 0.0
    %2893 = vmatpush1.msra.mxu0 0.0
    %2894 = vmatprep.subr.mxu0 0.0
    %2895 = vmatpush1.msra.mxu0 0.0
    %2896 = vmatprep.subr.mxu0 0.0
    %2897 = vmatpush1.msra.mxu0 0.0
    %2898 = vmatprep.subr.mxu0 0.0
    %2899 = vmatpush1.msra.mxu0 0.0
    %2900 = vmatprep.subr.mxu0 0.0
    %2901 = vmatpush1.msra.mxu0 0.0
    %2902 = vmatprep.subr.mxu0 0.0
    %2903 = vmatpush1.msra.mxu0 0.0
    %2904 = vmatprep.subr.mxu0 0.0
    %2905 = vmatpush1.msra.mxu0 0.0
    %2906 = vmatprep.subr.mxu0 0.0
    %2907 = vmatpush1.msra.mxu0 0.0
    %2908 = vmatprep.subr.mxu0 0.0
    %2909 = vmatpush1.msra.mxu0 0.0
    %2910 = vmatprep.subr.mxu0 0.0
    %2911 = vmatpush1.msra.mxu0 0.0
    %2912 = vmatprep.subr.mxu0 0.0
    %2913 = vmatpush1.msra.mxu0 0.0
    %2914 = vmatprep.subr.mxu0 0.0
    %2915 = vmatpush1.msra.mxu0 0.0
    %2916 = vmatprep.subr.mxu0 0.0
    %2917 = vmatpush1.msra.mxu0 0.0
    %2918 = vmatprep.subr.mxu0 0.0
    %2919 = vmatpush1.msra.mxu0 0.0
    %2920 = vmatprep.subr.mxu0 0.0
    %2921 = vmatpush1.msra.mxu0 0.0
    %2922 = vmatprep.subr.mxu0 0.0
    %2923 = vmatpush1.msra.mxu0 0.0
    %2924 = vmatprep.subr.mxu0 0.0
    %2925 = vmatpush1.msra.mxu0 0.0
    %2926 = vmatprep.subr.mxu0 0.0
    %2927 = vmatpush1.msra.mxu0 0.0
    %2928 = vmatprep.subr.mxu0 0.0
    %2929 = vmatpush1.msra.mxu0 0.0
    %2930 = vmatprep.subr.mxu0 0.0
    %2931 = vmatpush1.msra.mxu0 0.0
    %2932 = vmatprep.subr.mxu0 0.0
    %2933 = vmatpush1.msra.mxu0 0.0
    %2934 = vmatprep.subr.mxu0 0.0
    %2935 = vmatpush1.msra.mxu0 0.0
    %2936 = vmatprep.mubr.f32.mxu0 0.0
    %v2937 = vand.u32 %v2692, 4294901760
    %v2938 = vsub.f32 %v2692, %v2937
    %2939 = vmatmul.mubr.f32.gmra.mrb[0].mxu0 %v2938
    %v2940 = vpop.f32.mrb[0].mxu0
    %v2941 = vadd.f32 %v2861, %v2940
    %v2942 = vpop.f32.mrb[0].mxu0
    %2943 = vdwg.mxu0
    %2944 = vmatprep.subr.mxu0 0.0
    %v2945 = vand.u32 %v103, 4294901760
    %2946 = vmatpush1.msra.mxu0 %v2945
    %2947 = vmatprep.subr.mxu0 0.0
    %v2948 = vand.u32 %v104, 4294901760
    %2949 = vmatpush1.msra.mxu0 %v2948
    %2950 = vmatprep.subr.mxu0 0.0
    %v2951 = vand.u32 %v105, 4294901760
    %2952 = vmatpush1.msra.mxu0 %v2951
    %2953 = vmatprep.subr.mxu0 0.0
    %v2954 = vand.u32 %v106, 4294901760
    %2955 = vmatpush1.msra.mxu0 %v2954
    %2956 = vmatprep.subr.mxu0 0.0
    %2957 = vmatpush1.msra.mxu0 0.0
    %2958 = vmatprep.subr.mxu0 0.0
    %2959 = vmatpush1.msra.mxu0 0.0
    %2960 = vmatprep.subr.mxu0 0.0
    %2961 = vmatpush1.msra.mxu0 0.0
    %2962 = vmatprep.subr.mxu0 0.0
    %2963 = vmatpush1.msra.mxu0 0.0
    %2964 = vmatprep.subr.mxu0 0.0
    %2965 = vmatpush1.msra.mxu0 0.0
    %2966 = vmatprep.subr.mxu0 0.0
    %2967 = vmatpush1.msra.mxu0 0.0
    %2968 = vmatprep.subr.mxu0 0.0
    %2969 = vmatpush1.msra.mxu0 0.0
    %2970 = vmatprep.subr.mxu0 0.0
    %2971 = vmatpush1.msra.mxu0 0.0
    %2972 = vmatprep.subr.mxu0 0.0
    %2973 = vmatpush1.msra.mxu0 0.0
    %2974 = vmatprep.subr.mxu0 0.0
    %2975 = vmatpush1.msra.mxu0 0.0
    %2976 = vmatprep.subr.mxu0 0.0
    %2977 = vmatpush1.msra.mxu0 0.0
    %2978 = vmatprep.subr.mxu0 0.0
    %2979 = vmatpush1.msra.mxu0 0.0
    %2980 = vmatprep.subr.mxu0 0.0
    %2981 = vmatpush1.msra.mxu0 0.0
    %2982 = vmatprep.subr.mxu0 0.0
    %2983 = vmatpush1.msra.mxu0 0.0
    %2984 = vmatprep.subr.mxu0 0.0
    %2985 = vmatpush1.msra.mxu0 0.0
    %2986 = vmatprep.subr.mxu0 0.0
    %2987 = vmatpush1.msra.mxu0 0.0
    %2988 = vmatprep.subr.mxu0 0.0
    %2989 = vmatpush1.msra.mxu0 0.0
    %2990 = vmatprep.subr.mxu0 0.0
    %2991 = vmatpush1.msra.mxu0 0.0
    %2992 = vmatprep.subr.mxu0 0.0
    %2993 = vmatpush1.msra.mxu0 0.0
    %2994 = vmatprep.subr.mxu0 0.0
    %2995 = vmatpush1.msra.mxu0 0.0
    %2996 = vmatprep.subr.mxu0 0.0
    %2997 = vmatpush1.msra.mxu0 0.0
    %2998 = vmatprep.subr.mxu0 0.0
    %2999 = vmatpush1.msra.mxu0 0.0
    %3000 = vmatprep.subr.mxu0 0.0
    %3001 = vmatpush1.msra.mxu0 0.0
    %3002 = vmatprep.subr.mxu0 0.0
    %3003 = vmatpush1.msra.mxu0 0.0
    %3004 = vmatprep.subr.mxu0 0.0
    %3005 = vmatpush1.msra.mxu0 0.0
    %3006 = vmatprep.subr.mxu0 0.0
    %3007 = vmatpush1.msra.mxu0 0.0
    %3008 = vmatprep.subr.mxu0 0.0
    %3009 = vmatpush1.msra.mxu0 0.0
    %3010 = vmatprep.subr.mxu0 0.0
    %3011 = vmatpush1.msra.mxu0 0.0
    %3012 = vmatprep.mubr.f32.mxu0 0.0
    %v3013 = vand.u32 %v2692, 4294901760
    %v3014 = vsub.f32 %v2692, %v3013
    %v3015 = vand.u32 %v3014, 4294901760
    %3016 = vmatmul.mubr.f32.gmra.mrb[0].mxu0 %v3015
    %v3017 = vpop.f32.mrb[0].mxu0
    %v3018 = vadd.f32 %v2941, %v3017
    %v3019 = vpop.f32.mrb[0].mxu0
    %3020 = vdwg.mxu0
    %3021 = vmatprep.subr.mxu0 0.0
    %v3022 = vand.u32 %v103, 4294901760
    %v3023 = vsub.f32 %v103, %v3022
    %v3024 = vand.u32 %v3023, 4294901760
    %3025 = vmatpush1.msra.mxu0 %v3024
    %3026 = vmatprep.subr.mxu0 0.0
    %v3027 = vand.u32 %v104, 4294901760
    %v3028 = vsub.f32 %v104, %v3027
    %v3029 = vand.u32 %v3028, 4294901760
    %3030 = vmatpush1.msra.mxu0 %v3029
    %3031 = vmatprep.subr.mxu0 0.0
    %v3032 = vand.u32 %v105, 4294901760
    %v3033 = vsub.f32 %v105, %v3032
    %v3034 = vand.u32 %v3033, 4294901760
    %3035 = vmatpush1.msra.mxu0 %v3034
    %3036 = vmatprep.subr.mxu0 0.0
    %v3037 = vand.u32 %v106, 4294901760
    %v3038 = vsub.f32 %v106, %v3037
    %v3039 = vand.u32 %v3038, 4294901760
    %3040 = vmatpush1.msra.mxu0 %v3039
    %3041 = vmatprep.subr.mxu0 0.0
    %3042 = vmatpush1.msra.mxu0 0.0
    %3043 = vmatprep.subr.mxu0 0.0
    %3044 = vmatpush1.msra.mxu0 0.0
    %3045 = vmatprep.subr.mxu0 0.0
    %3046 = vmatpush1.msra.mxu0 0.0
    %3047 = vmatprep.subr.mxu0 0.0
    %3048 = vmatpush1.msra.mxu0 0.0
    %3049 = vmatprep.subr.mxu0 0.0
    %3050 = vmatpush1.msra.mxu0 0.0
    %3051 = vmatprep.subr.mxu0 0.0
    %3052 = vmatpush1.msra.mxu0 0.0
    %3053 = vmatprep.subr.mxu0 0.0
    %3054 = vmatpush1.msra.mxu0 0.0
    %3055 = vmatprep.subr.mxu0 0.0
    %3056 = vmatpush1.msra.mxu0 0.0
    %3057 = vmatprep.subr.mxu0 0.0
    %3058 = vmatpush1.msra.mxu0 0.0
    %3059 = vmatprep.subr.mxu0 0.0
    %3060 = vmatpush1.msra.mxu0 0.0
    %3061 = vmatprep.subr.mxu0 0.0
    %3062 = vmatpush1.msra.mxu0 0.0
    %3063 = vmatprep.subr.mxu0 0.0
    %3064 = vmatpush1.msra.mxu0 0.0
    %3065 = vmatprep.subr.mxu0 0.0
    %3066 = vmatpush1.msra.mxu0 0.0
    %3067 = vmatprep.subr.mxu0 0.0
    %3068 = vmatpush1.msra.mxu0 0.0
    %3069 = vmatprep.subr.mxu0 0.0
    %3070 = vmatpush1.msra.mxu0 0.0
    %3071 = vmatprep.subr.mxu0 0.0
    %3072 = vmatpush1.msra.mxu0 0.0
    %3073 = vmatprep.subr.mxu0 0.0
    %3074 = vmatpush1.msra.mxu0 0.0
    %3075 = vmatprep.subr.mxu0 0.0
    %3076 = vmatpush1.msra.mxu0 0.0
    %3077 = vmatprep.subr.mxu0 0.0
    %3078 = vmatpush1.msra.mxu0 0.0
    %3079 = vmatprep.subr.mxu0 0.0
    %3080 = vmatpush1.msra.mxu0 0.0
    %3081 = vmatprep.subr.mxu0 0.0
    %3082 = vmatpush1.msra.mxu0 0.0
    %3083 = vmatprep.subr.mxu0 0.0
    %3084 = vmatpush1.msra.mxu0 0.0
    %3085 = vmatprep.subr.mxu0 0.0
    %3086 = vmatpush1.msra.mxu0 0.0
    %3087 = vmatprep.subr.mxu0 0.0
    %3088 = vmatpush1.msra.mxu0 0.0
    %3089 = vmatprep.subr.mxu0 0.0
    %3090 = vmatpush1.msra.mxu0 0.0
    %3091 = vmatprep.subr.mxu0 0.0
    %3092 = vmatpush1.msra.mxu0 0.0
    %3093 = vmatprep.subr.mxu0 0.0
    %3094 = vmatpush1.msra.mxu0 0.0
    %3095 = vmatprep.subr.mxu0 0.0
    %3096 = vmatpush1.msra.mxu0 0.0
    %3097 = vmatprep.mubr.f32.mxu0 0.0
    %v3098 = vand.u32 %v2692, 4294901760
    %3099 = vmatmul.mubr.f32.gmra.mrb[0].mxu0 %v3098
    %v3100 = vpop.f32.mrb[0].mxu0
    %v3101 = vadd.f32 %v3018, %v3100
    %v3102 = vpop.f32.mrb[0].mxu0
    %3103 = vdwg.mxu0
    %3104 = vmatprep.subr.mxu0 0.0
    %v3105 = vand.u32 %v103, 4294901760
    %3106 = vmatpush1.msra.mxu0 %v3105
    %3107 = vmatprep.subr.mxu0 0.0
    %v3108 = vand.u32 %v104, 4294901760
    %3109 = vmatpush1.msra.mxu0 %v3108
    %3110 = vmatprep.subr.mxu0 0.0
    %v3111 = vand.u32 %v105, 4294901760
    %3112 = vmatpush1.msra.mxu0 %v3111
    %3113 = vmatprep.subr.mxu0 0.0
    %v3114 = vand.u32 %v106, 4294901760
    %3115 = vmatpush1.msra.mxu0 %v3114
    %3116 = vmatprep.subr.mxu0 0.0
    %3117 = vmatpush1.msra.mxu0 0.0
    %3118 = vmatprep.subr.mxu0 0.0
    %3119 = vmatpush1.msra.mxu0 0.0
    %3120 = vmatprep.subr.mxu0 0.0
    %3121 = vmatpush1.msra.mxu0 0.0
    %3122 = vmatprep.subr.mxu0 0.0
    %3123 = vmatpush1.msra.mxu0 0.0
    %3124 = vmatprep.subr.mxu0 0.0
    %3125 = vmatpush1.msra.mxu0 0.0
    %3126 = vmatprep.subr.mxu0 0.0
    %3127 = vmatpush1.msra.mxu0 0.0
    %3128 = vmatprep.subr.mxu0 0.0
    %3129 = vmatpush1.msra.mxu0 0.0
    %3130 = vmatprep.subr.mxu0 0.0
    %3131 = vmatpush1.msra.mxu0 0.0
    %3132 = vmatprep.subr.mxu0 0.0
    %3133 = vmatpush1.msra.mxu0 0.0
    %3134 = vmatprep.subr.mxu0 0.0
    %3135 = vmatpush1.msra.mxu0 0.0
    %3136 = vmatprep.subr.mxu0 0.0
    %3137 = vmatpush1.msra.mxu0 0.0
    %3138 = vmatprep.subr.mxu0 0.0
    %3139 = vmatpush1.msra.mxu0 0.0
    %3140 = vmatprep.subr.mxu0 0.0
    %3141 = vmatpush1.msra.mxu0 0.0
    %3142 = vmatprep.subr.mxu0 0.0
    %3143 = vmatpush1.msra.mxu0 0.0
    %3144 = vmatprep.subr.mxu0 0.0
    %3145 = vmatpush1.msra.mxu0 0.0
    %3146 = vmatprep.subr.mxu0 0.0
    %3147 = vmatpush1.msra.mxu0 0.0
    %3148 = vmatprep.subr.mxu0 0.0
    %3149 = vmatpush1.msra.mxu0 0.0
    %3150 = vmatprep.subr.mxu0 0.0
    %3151 = vmatpush1.msra.mxu0 0.0
    %3152 = vmatprep.subr.mxu0 0.0
    %3153 = vmatpush1.msra.mxu0 0.0
    %3154 = vmatprep.subr.mxu0 0.0
    %3155 = vmatpush1.msra.mxu0 0.0
    %3156 = vmatprep.subr.mxu0 0.0
    %3157 = vmatpush1.msra.mxu0 0.0
    %3158 = vmatprep.subr.mxu0 0.0
    %3159 = vmatpush1.msra.mxu0 0.0
    %3160 = vmatprep.subr.mxu0 0.0
    %3161 = vmatpush1.msra.mxu0 0.0
    %3162 = vmatprep.subr.mxu0 0.0
    %3163 = vmatpush1.msra.mxu0 0.0
    %3164 = vmatprep.subr.mxu0 0.0
    %3165 = vmatpush1.msra.mxu0 0.0
    %3166 = vmatprep.subr.mxu0 0.0
    %3167 = vmatpush1.msra.mxu0 0.0
    %3168 = vmatprep.subr.mxu0 0.0
    %3169 = vmatpush1.msra.mxu0 0.0
    %3170 = vmatprep.subr.mxu0 0.0
    %3171 = vmatpush1.msra.mxu0 0.0
    %3172 = vmatprep.mubr.f32.mxu0 0.0
    %v3173 = vand.u32 %v2692, 4294901760
    %3174 = vmatmul.mubr.f32.gmra.mrb[0].mxu0 %v3173
    %v3175 = vpop.f32.mrb[0].mxu0
    %v3176 = vadd.f32 %v3101, %v3175
    %v3177 = vpop.f32.mrb[0].mxu0
    %3178 = vdwg.mxu0
    %v3179 = vmax.f32 %v3176, 0.0
    %v3180 = vlaneseq
    %v3181 = vshrl.u32 %v3180, 7
    %v3182 = vsub.s32 0, %v3181
    %v3183 = vrot.slane %v110, %v3182
    %vm3184 = vcmask 97280
    %v3186 = vsel %vm3184, %v3179, 0
    %vm3188 = vcmask 1043456
    %v3190 = vsel %vm3188, %v109, 0
    %3192 = vmatprep.subr.mxu0 0.0
    %v3193 = vand.u32 %v108, 4294901760
    %3194 = vmatpush1.msra.mxu0 %v3193
    %3195 = vmatprep.subr.mxu0 0.0
    %v3196 = vand.u32 %v3190, 4294901760
    %3197 = vmatpush1.msra.mxu0 %v3196
    %3198 = vmatprep.subr.mxu0 0.0
    %3199 = vmatpush1.msra.mxu0 0.0
    %3200 = vmatprep.subr.mxu0 0.0
    %3201 = vmatpush1.msra.mxu0 0.0
    %3202 = vmatprep.subr.mxu0 0.0
    %3203 = vmatpush1.msra.mxu0 0.0
    %3204 = vmatprep.subr.mxu0 0.0
    %3205 = vmatpush1.msra.mxu0 0.0
    %3206 = vmatprep.subr.mxu0 0.0
    %3207 = vmatpush1.msra.mxu0 0.0
    %3208 = vmatprep.subr.mxu0 0.0
    %3209 = vmatpush1.msra.mxu0 0.0
    %3210 = vmatprep.subr.mxu0 0.0
    %3211 = vmatpush1.msra.mxu0 0.0
    %3212 = vmatprep.subr.mxu0 0.0
    %3213 = vmatpush1.msra.mxu0 0.0
    %3214 = vmatprep.subr.mxu0 0.0
    %3215 = vmatpush1.msra.mxu0 0.0
    %3216 = vmatprep.subr.mxu0 0.0
    %3217 = vmatpush1.msra.mxu0 0.0
    %3218 = vmatprep.subr.mxu0 0.0
    %3219 = vmatpush1.msra.mxu0 0.0
    %3220 = vmatprep.subr.mxu0 0.0
    %3221 = vmatpush1.msra.mxu0 0.0
    %3222 = vmatprep.subr.mxu0 0.0
    %3223 = vmatpush1.msra.mxu0 0.0
    %3224 = vmatprep.subr.mxu0 0.0
    %3225 = vmatpush1.msra.mxu0 0.0
    %3226 = vmatprep.subr.mxu0 0.0
    %3227 = vmatpush1.msra.mxu0 0.0
    %3228 = vmatprep.subr.mxu0 0.0
    %3229 = vmatpush1.msra.mxu0 0.0
    %3230 = vmatprep.subr.mxu0 0.0
    %3231 = vmatpush1.msra.mxu0 0.0
    %3232 = vmatprep.subr.mxu0 0.0
    %3233 = vmatpush1.msra.mxu0 0.0
    %3234 = vmatprep.subr.mxu0 0.0
    %3235 = vmatpush1.msra.mxu0 0.0
    %3236 = vmatprep.subr.mxu0 0.0
    %3237 = vmatpush1.msra.mxu0 0.0
    %3238 = vmatprep.subr.mxu0 0.0
    %3239 = vmatpush1.msra.mxu0 0.0
    %3240 = vmatprep.subr.mxu0 0.0
    %3241 = vmatpush1.msra.mxu0 0.0
    %3242 = vmatprep.subr.mxu0 0.0
    %3243 = vmatpush1.msra.mxu0 0.0
    %3244 = vmatprep.subr.mxu0 0.0
    %3245 = vmatpush1.msra.mxu0 0.0
    %3246 = vmatprep.subr.mxu0 0.0
    %3247 = vmatpush1.msra.mxu0 0.0
    %3248 = vmatprep.subr.mxu0 0.0
    %3249 = vmatpush1.msra.mxu0 0.0
    %3250 = vmatprep.subr.mxu0 0.0
    %3251 = vmatpush1.msra.mxu0 0.0
    %3252 = vmatprep.subr.mxu0 0.0
    %3253 = vmatpush1.msra.mxu0 0.0
    %3254 = vmatprep.subr.mxu0 0.0
    %3255 = vmatpush1.msra.mxu0 0.0
    %3256 = vmatprep.subr.mxu0 0.0
    %3257 = vmatpush1.msra.mxu0 0.0
    %3258 = vmatprep.mubr.f32.mxu0 0.0
    %v3259 = vand.u32 %v3186, 4294901760
    %v3260 = vsub.f32 %v3186, %v3259
    %v3261 = vand.u32 %v3260, 4294901760
    %v3262 = vsub.f32 %v3260, %v3261
    %v3263 = vand.u32 %v3262, 4294901760
    %3264 = vmatmul.mubr.f32.gmra.mrb[0].mxu0 %v3263
    %v3265 = vpop.f32.mrb[0].mxu0
    %v3266 = vadd.f32 %v3183, %v3265
    %v3267 = vpop.f32.mrb[0].mxu0
    %3268 = vdwg.mxu0
    %3269 = vmatprep.subr.mxu0 0.0
    %v3270 = vand.u32 %v108, 4294901760
    %v3271 = vsub.f32 %v108, %v3270
    %v3272 = vand.u32 %v3271, 4294901760
    %v3273 = vsub.f32 %v3271, %v3272
    %v3274 = vand.u32 %v3273, 4294901760
    %3275 = vmatpush1.msra.mxu0 %v3274
    %3276 = vmatprep.subr.mxu0 0.0
    %v3277 = vand.u32 %v3190, 4294901760
    %v3278 = vsub.f32 %v3190, %v3277
    %v3279 = vand.u32 %v3278, 4294901760
    %v3280 = vsub.f32 %v3278, %v3279
    %v3281 = vand.u32 %v3280, 4294901760
    %3282 = vmatpush1.msra.mxu0 %v3281
    %3283 = vmatprep.subr.mxu0 0.0
    %3284 = vmatpush1.msra.mxu0 0.0
    %3285 = vmatprep.subr.mxu0 0.0
    %3286 = vmatpush1.msra.mxu0 0.0
    %3287 = vmatprep.subr.mxu0 0.0
    %3288 = vmatpush1.msra.mxu0 0.0
    %3289 = vmatprep.subr.mxu0 0.0
    %3290 = vmatpush1.msra.mxu0 0.0
    %3291 = vmatprep.subr.mxu0 0.0
    %3292 = vmatpush1.msra.mxu0 0.0
    %3293 = vmatprep.subr.mxu0 0.0
    %3294 = vmatpush1.msra.mxu0 0.0
    %3295 = vmatprep.subr.mxu0 0.0
    %3296 = vmatpush1.msra.mxu0 0.0
    %3297 = vmatprep.subr.mxu0 0.0
    %3298 = vmatpush1.msra.mxu0 0.0
    %3299 = vmatprep.subr.mxu0 0.0
    %3300 = vmatpush1.msra.mxu0 0.0
    %3301 = vmatprep.subr.mxu0 0.0
    %3302 = vmatpush1.msra.mxu0 0.0
    %3303 = vmatprep.subr.mxu0 0.0
    %3304 = vmatpush1.msra.mxu0 0.0
    %3305 = vmatprep.subr.mxu0 0.0
    %3306 = vmatpush1.msra.mxu0 0.0
    %3307 = vmatprep.subr.mxu0 0.0
    %3308 = vmatpush1.msra.mxu0 0.0
    %3309 = vmatprep.subr.mxu0 0.0
    %3310 = vmatpush1.msra.mxu0 0.0
    %3311 = vmatprep.subr.mxu0 0.0
    %3312 = vmatpush1.msra.mxu0 0.0
    %3313 = vmatprep.subr.mxu0 0.0
    %3314 = vmatpush1.msra.mxu0 0.0
    %3315 = vmatprep.subr.mxu0 0.0
    %3316 = vmatpush1.msra.mxu0 0.0
    %3317 = vmatprep.subr.mxu0 0.0
    %3318 = vmatpush1.msra.mxu0 0.0
    %3319 = vmatprep.subr.mxu0 0.0
    %3320 = vmatpush1.msra.mxu0 0.0
    %3321 = vmatprep.subr.mxu0 0.0
    %3322 = vmatpush1.msra.mxu0 0.0
    %3323 = vmatprep.subr.mxu0 0.0
    %3324 = vmatpush1.msra.mxu0 0.0
    %3325 = vmatprep.subr.mxu0 0.0
    %3326 = vmatpush1.msra.mxu0 0.0
    %3327 = vmatprep.subr.mxu0 0.0
    %3328 = vmatpush1.msra.mxu0 0.0
    %3329 = vmatprep.subr.mxu0 0.0
    %3330 = vmatpush1.msra.mxu0 0.0
    %3331 = vmatprep.subr.mxu0 0.0
    %3332 = vmatpush1.msra.mxu0 0.0
    %3333 = vmatprep.subr.mxu0 0.0
    %3334 = vmatpush1.msra.mxu0 0.0
    %3335 = vmatprep.subr.mxu0 0.0
    %3336 = vmatpush1.msra.mxu0 0.0
    %3337 = vmatprep.subr.mxu0 0.0
    %3338 = vmatpush1.msra.mxu0 0.0
    %3339 = vmatprep.subr.mxu0 0.0
    %3340 = vmatpush1.msra.mxu0 0.0
    %3341 = vmatprep.subr.mxu0 0.0
    %3342 = vmatpush1.msra.mxu0 0.0
    %3343 = vmatprep.mubr.f32.mxu0 0.0
    %v3344 = vand.u32 %v3186, 4294901760
    %3345 = vmatmul.mubr.f32.gmra.mrb[0].mxu0 %v3344
    %v3346 = vpop.f32.mrb[0].mxu0
    %v3347 = vadd.f32 %v3266, %v3346
    %v3348 = vpop.f32.mrb[0].mxu0
    %3349 = vdwg.mxu0
    %3350 = vmatprep.subr.mxu0 0.0
    %v3351 = vand.u32 %v108, 4294901760
    %v3352 = vsub.f32 %v108, %v3351
    %3353 = vmatpush1.msra.mxu0 %v3352
    %3354 = vmatprep.subr.mxu0 0.0
    %v3355 = vand.u32 %v3190, 4294901760
    %v3356 = vsub.f32 %v3190, %v3355
    %3357 = vmatpush1.msra.mxu0 %v3356
    %3358 = vmatprep.subr.mxu0 0.0
    %3359 = vmatpush1.msra.mxu0 0.0
    %3360 = vmatprep.subr.mxu0 0.0
    %3361 = vmatpush1.msra.mxu0 0.0
    %3362 = vmatprep.subr.mxu0 0.0
    %3363 = vmatpush1.msra.mxu0 0.0
    %3364 = vmatprep.subr.mxu0 0.0
    %3365 = vmatpush1.msra.mxu0 0.0
    %3366 = vmatprep.subr.mxu0 0.0
    %3367 = vmatpush1.msra.mxu0 0.0
    %3368 = vmatprep.subr.mxu0 0.0
    %3369 = vmatpush1.msra.mxu0 0.0
    %3370 = vmatprep.subr.mxu0 0.0
    %3371 = vmatpush1.msra.mxu0 0.0
    %3372 = vmatprep.subr.mxu0 0.0
    %3373 = vmatpush1.msra.mxu0 0.0
    %3374 = vmatprep.subr.mxu0 0.0
    %3375 = vmatpush1.msra.mxu0 0.0
    %3376 = vmatprep.subr.mxu0 0.0
    %3377 = vmatpush1.msra.mxu0 0.0
    %3378 = vmatprep.subr.mxu0 0.0
    %3379 = vmatpush1.msra.mxu0 0.0
    %3380 = vmatprep.subr.mxu0 0.0
    %3381 = vmatpush1.msra.mxu0 0.0
    %3382 = vmatprep.subr.mxu0 0.0
    %3383 = vmatpush1.msra.mxu0 0.0
    %3384 = vmatprep.subr.mxu0 0.0
    %3385 = vmatpush1.msra.mxu0 0.0
    %3386 = vmatprep.subr.mxu0 0.0
    %3387 = vmatpush1.msra.mxu0 0.0
    %3388 = vmatprep.subr.mxu0 0.0
    %3389 = vmatpush1.msra.mxu0 0.0
    %3390 = vmatprep.subr.mxu0 0.0
    %3391 = vmatpush1.msra.mxu0 0.0
    %3392 = vmatprep.subr.mxu0 0.0
    %3393 = vmatpush1.msra.mxu0 0.0
    %3394 = vmatprep.subr.mxu0 0.0
    %3395 = vmatpush1.msra.mxu0 0.0
    %3396 = vmatprep.subr.mxu0 0.0
    %3397 = vmatpush1.msra.mxu0 0.0
    %3398 = vmatprep.subr.mxu0 0.0
    %3399 = vmatpush1.msra.mxu0 0.0
    %3400 = vmatprep.subr.mxu0 0.0
    %3401 = vmatpush1.msra.mxu0 0.0
    %3402 = vmatprep.subr.mxu0 0.0
    %3403 = vmatpush1.msra.mxu0 0.0
    %3404 = vmatprep.subr.mxu0 0.0
    %3405 = vmatpush1.msra.mxu0 0.0
    %3406 = vmatprep.subr.mxu0 0.0
    %3407 = vmatpush1.msra.mxu0 0.0
    %3408 = vmatprep.subr.mxu0 0.0
    %3409 = vmatpush1.msra.mxu0 0.0
    %3410 = vmatprep.subr.mxu0 0.0
    %3411 = vmatpush1.msra.mxu0 0.0
    %3412 = vmatprep.subr.mxu0 0.0
    %3413 = vmatpush1.msra.mxu0 0.0
    %3414 = vmatprep.subr.mxu0 0.0
    %3415 = vmatpush1.msra.mxu0 0.0
    %3416 = vmatprep.subr.mxu0 0.0
    %3417 = vmatpush1.msra.mxu0 0.0
    %3418 = vmatprep.mubr.f32.mxu0 0.0
    %v3419 = vand.u32 %v3186, 4294901760
    %v3420 = vsub.f32 %v3186, %v3419
    %3421 = vmatmul.mubr.f32.gmra.mrb[0].mxu0 %v3420
    %v3422 = vpop.f32.mrb[0].mxu0
    %v3423 = vadd.f32 %v3347, %v3422
    %v3424 = vpop.f32.mrb[0].mxu0
    %3425 = vdwg.mxu0
    %3426 = vmatprep.subr.mxu0 0.0
    %v3427 = vand.u32 %v108, 4294901760
    %3428 = vmatpush1.msra.mxu0 %v3427
    %3429 = vmatprep.subr.mxu0 0.0
    %v3430 = vand.u32 %v3190, 4294901760
    %3431 = vmatpush1.msra.mxu0 %v3430
    %3432 = vmatprep.subr.mxu0 0.0
    %3433 = vmatpush1.msra.mxu0 0.0
    %3434 = vmatprep.subr.mxu0 0.0
    %3435 = vmatpush1.msra.mxu0 0.0
    %3436 = vmatprep.subr.mxu0 0.0
    %3437 = vmatpush1.msra.mxu0 0.0
    %3438 = vmatprep.subr.mxu0 0.0
    %3439 = vmatpush1.msra.mxu0 0.0
    %3440 = vmatprep.subr.mxu0 0.0
    %3441 = vmatpush1.msra.mxu0 0.0
    %3442 = vmatprep.subr.mxu0 0.0
    %3443 = vmatpush1.msra.mxu0 0.0
    %3444 = vmatprep.subr.mxu0 0.0
    %3445 = vmatpush1.msra.mxu0 0.0
    %3446 = vmatprep.subr.mxu0 0.0
    %3447 = vmatpush1.msra.mxu0 0.0
    %3448 = vmatprep.subr.mxu0 0.0
    %3449 = vmatpush1.msra.mxu0 0.0
    %3450 = vmatprep.subr.mxu0 0.0
    %3451 = vmatpush1.msra.mxu0 0.0
    %3452 = vmatprep.subr.mxu0 0.0
    %3453 = vmatpush1.msra.mxu0 0.0
    %3454 = vmatprep.subr.mxu0 0.0
    %3455 = vmatpush1.msra.mxu0 0.0
    %3456 = vmatprep.subr.mxu0 0.0
    %3457 = vmatpush1.msra.mxu0 0.0
    %3458 = vmatprep.subr.mxu0 0.0
    %3459 = vmatpush1.msra.mxu0 0.0
    %3460 = vmatprep.subr.mxu0 0.0
    %3461 = vmatpush1.msra.mxu0 0.0
    %3462 = vmatprep.subr.mxu0 0.0
    %3463 = vmatpush1.msra.mxu0 0.0
    %3464 = vmatprep.subr.mxu0 0.0
    %3465 = vmatpush1.msra.mxu0 0.0
    %3466 = vmatprep.subr.mxu0 0.0
    %3467 = vmatpush1.msra.mxu0 0.0
    %3468 = vmatprep.subr.mxu0 0.0
    %3469 = vmatpush1.msra.mxu0 0.0
    %3470 = vmatprep.subr.mxu0 0.0
    %3471 = vmatpush1.msra.mxu0 0.0
    %3472 = vmatprep.subr.mxu0 0.0
    %3473 = vmatpush1.msra.mxu0 0.0
    %3474 = vmatprep.subr.mxu0 0.0
    %3475 = vmatpush1.msra.mxu0 0.0
    %3476 = vmatprep.subr.mxu0 0.0
    %3477 = vmatpush1.msra.mxu0 0.0
    %3478 = vmatprep.subr.mxu0 0.0
    %3479 = vmatpush1.msra.mxu0 0.0
    %3480 = vmatprep.subr.mxu0 0.0
    %3481 = vmatpush1.msra.mxu0 0.0
    %3482 = vmatprep.subr.mxu0 0.0
    %3483 = vmatpush1.msra.mxu0 0.0
    %3484 = vmatprep.subr.mxu0 0.0
    %3485 = vmatpush1.msra.mxu0 0.0
    %3486 = vmatprep.subr.mxu0 0.0
    %3487 = vmatpush1.msra.mxu0 0.0
    %3488 = vmatprep.subr.mxu0 0.0
    %3489 = vmatpush1.msra.mxu0 0.0
    %3490 = vmatprep.subr.mxu0 0.0
    %3491 = vmatpush1.msra.mxu0 0.0
    %3492 = vmatprep.mubr.f32.mxu0 0.0
    %v3493 = vand.u32 %v3186, 4294901760
    %v3494 = vsub.f32 %v3186, %v3493
    %v3495 = vand.u32 %v3494, 4294901760
    %3496 = vmatmul.mubr.f32.gmra.mrb[0].mxu0 %v3495
    %v3497 = vpop.f32.mrb[0].mxu0
    %v3498 = vadd.f32 %v3423, %v3497
    %v3499 = vpop.f32.mrb[0].mxu0
    %3500 = vdwg.mxu0
    %3501 = vmatprep.subr.mxu0 0.0
    %v3502 = vand.u32 %v108, 4294901760
    %v3503 = vsub.f32 %v108, %v3502
    %v3504 = vand.u32 %v3503, 4294901760
    %3505 = vmatpush1.msra.mxu0 %v3504
    %3506 = vmatprep.subr.mxu0 0.0
    %v3507 = vand.u32 %v3190, 4294901760
    %v3508 = vsub.f32 %v3190, %v3507
    %v3509 = vand.u32 %v3508, 4294901760
    %3510 = vmatpush1.msra.mxu0 %v3509
    %3511 = vmatprep.subr.mxu0 0.0
    %3512 = vmatpush1.msra.mxu0 0.0
    %3513 = vmatprep.subr.mxu0 0.0
    %3514 = vmatpush1.msra.mxu0 0.0
    %3515 = vmatprep.subr.mxu0 0.0
    %3516 = vmatpush1.msra.mxu0 0.0
    %3517 = vmatprep.subr.mxu0 0.0
    %3518 = vmatpush1.msra.mxu0 0.0
    %3519 = vmatprep.subr.mxu0 0.0
    %3520 = vmatpush1.msra.mxu0 0.0
    %3521 = vmatprep.subr.mxu0 0.0
    %3522 = vmatpush1.msra.mxu0 0.0
    %3523 = vmatprep.subr.mxu0 0.0
    %3524 = vmatpush1.msra.mxu0 0.0
    %3525 = vmatprep.subr.mxu0 0.0
    %3526 = vmatpush1.msra.mxu0 0.0
    %3527 = vmatprep.subr.mxu0 0.0
    %3528 = vmatpush1.msra.mxu0 0.0
    %3529 = vmatprep.subr.mxu0 0.0
    %3530 = vmatpush1.msra.mxu0 0.0
    %3531 = vmatprep.subr.mxu0 0.0
    %3532 = vmatpush1.msra.mxu0 0.0
    %3533 = vmatprep.subr.mxu0 0.0
    %3534 = vmatpush1.msra.mxu0 0.0
    %3535 = vmatprep.subr.mxu0 0.0
    %3536 = vmatpush1.msra.mxu0 0.0
    %3537 = vmatprep.subr.mxu0 0.0
    %3538 = vmatpush1.msra.mxu0 0.0
    %3539 = vmatprep.subr.mxu0 0.0
    %3540 = vmatpush1.msra.mxu0 0.0
    %3541 = vmatprep.subr.mxu0 0.0
    %3542 = vmatpush1.msra.mxu0 0.0
    %3543 = vmatprep.subr.mxu0 0.0
    %3544 = vmatpush1.msra.mxu0 0.0
    %3545 = vmatprep.subr.mxu0 0.0
    %3546 = vmatpush1.msra.mxu0 0.0
    %3547 = vmatprep.subr.mxu0 0.0
    %3548 = vmatpush1.msra.mxu0 0.0
    %3549 = vmatprep.subr.mxu0 0.0
    %3550 = vmatpush1.msra.mxu0 0.0
    %3551 = vmatprep.subr.mxu0 0.0
    %3552 = vmatpush1.msra.mxu0 0.0
    %3553 = vmatprep.subr.mxu0 0.0
    %3554 = vmatpush1.msra.mxu0 0.0
    %3555 = vmatprep.subr.mxu0 0.0
    %3556 = vmatpush1.msra.mxu0 0.0
    %3557 = vmatprep.subr.mxu0 0.0
    %3558 = vmatpush1.msra.mxu0 0.0
    %3559 = vmatprep.subr.mxu0 0.0
    %3560 = vmatpush1.msra.mxu0 0.0
    %3561 = vmatprep.subr.mxu0 0.0
    %3562 = vmatpush1.msra.mxu0 0.0
    %3563 = vmatprep.subr.mxu0 0.0
    %3564 = vmatpush1.msra.mxu0 0.0
    %3565 = vmatprep.subr.mxu0 0.0
    %3566 = vmatpush1.msra.mxu0 0.0
    %3567 = vmatprep.subr.mxu0 0.0
    %3568 = vmatpush1.msra.mxu0 0.0
    %3569 = vmatprep.subr.mxu0 0.0
    %3570 = vmatpush1.msra.mxu0 0.0
    %3571 = vmatprep.mubr.f32.mxu0 0.0
    %v3572 = vand.u32 %v3186, 4294901760
    %3573 = vmatmul.mubr.f32.gmra.mrb[0].mxu0 %v3572
    %v3574 = vpop.f32.mrb[0].mxu0
    %v3575 = vadd.f32 %v3498, %v3574
    %v3576 = vpop.f32.mrb[0].mxu0
    %3577 = vdwg.mxu0
    %3578 = vmatprep.subr.mxu0 0.0
    %v3579 = vand.u32 %v108, 4294901760
    %3580 = vmatpush1.msra.mxu0 %v3579
    %3581 = vmatprep.subr.mxu0 0.0
    %v3582 = vand.u32 %v3190, 4294901760
    %3583 = vmatpush1.msra.mxu0 %v3582
    %3584 = vmatprep.subr.mxu0 0.0
    %3585 = vmatpush1.msra.mxu0 0.0
    %3586 = vmatprep.subr.mxu0 0.0
    %3587 = vmatpush1.msra.mxu0 0.0
    %3588 = vmatprep.subr.mxu0 0.0
    %3589 = vmatpush1.msra.mxu0 0.0
    %3590 = vmatprep.subr.mxu0 0.0
    %3591 = vmatpush1.msra.mxu0 0.0
    %3592 = vmatprep.subr.mxu0 0.0
    %3593 = vmatpush1.msra.mxu0 0.0
    %3594 = vmatprep.subr.mxu0 0.0
    %3595 = vmatpush1.msra.mxu0 0.0
    %3596 = vmatprep.subr.mxu0 0.0
    %3597 = vmatpush1.msra.mxu0 0.0
    %3598 = vmatprep.subr.mxu0 0.0
    %3599 = vmatpush1.msra.mxu0 0.0
    %3600 = vmatprep.subr.mxu0 0.0
    %3601 = vmatpush1.msra.mxu0 0.0
    %3602 = vmatprep.subr.mxu0 0.0
    %3603 = vmatpush1.msra.mxu0 0.0
    %3604 = vmatprep.subr.mxu0 0.0
    %3605 = vmatpush1.msra.mxu0 0.0
    %3606 = vmatprep.subr.mxu0 0.0
    %3607 = vmatpush1.msra.mxu0 0.0
    %3608 = vmatprep.subr.mxu0 0.0
    %3609 = vmatpush1.msra.mxu0 0.0
    %3610 = vmatprep.subr.mxu0 0.0
    %3611 = vmatpush1.msra.mxu0 0.0
    %3612 = vmatprep.subr.mxu0 0.0
    %3613 = vmatpush1.msra.mxu0 0.0
    %3614 = vmatprep.subr.mxu0 0.0
    %3615 = vmatpush1.msra.mxu0 0.0
    %3616 = vmatprep.subr.mxu0 0.0
    %3617 = vmatpush1.msra.mxu0 0.0
    %3618 = vmatprep.subr.mxu0 0.0
    %3619 = vmatpush1.msra.mxu0 0.0
    %3620 = vmatprep.subr.mxu0 0.0
    %3621 = vmatpush1.msra.mxu0 0.0
    %3622 = vmatprep.subr.mxu0 0.0
    %3623 = vmatpush1.msra.mxu0 0.0
    %3624 = vmatprep.subr.mxu0 0.0
    %3625 = vmatpush1.msra.mxu0 0.0
    %3626 = vmatprep.subr.mxu0 0.0
    %3627 = vmatpush1.msra.mxu0 0.0
    %3628 = vmatprep.subr.mxu0 0.0
    %3629 = vmatpush1.msra.mxu0 0.0
    %3630 = vmatprep.subr.mxu0 0.0
    %3631 = vmatpush1.msra.mxu0 0.0
    %3632 = vmatprep.subr.mxu0 0.0
    %3633 = vmatpush1.msra.mxu0 0.0
    %3634 = vmatprep.subr.mxu0 0.0
    %3635 = vmatpush1.msra.mxu0 0.0
    %3636 = vmatprep.subr.mxu0 0.0
    %3637 = vmatpush1.msra.mxu0 0.0
    %3638 = vmatprep.subr.mxu0 0.0
    %3639 = vmatpush1.msra.mxu0 0.0
    %3640 = vmatprep.subr.mxu0 0.0
    %3641 = vmatpush1.msra.mxu0 0.0
    %3642 = vmatprep.subr.mxu0 0.0
    %3643 = vmatpush1.msra.mxu0 0.0
    %3644 = vmatprep.mubr.f32.mxu0 0.0
    %v3645 = vand.u32 %v3186, 4294901760
    %3646 = vmatmul.mubr.f32.gmra.mrb[0].mxu0 %v3645
    %v3647 = vpop.f32.mrb[0].mxu0
    %v3648 = vadd.f32 %v3575, %v3647
    %v3649 = vpop.f32.mrb[0].mxu0
    %3650 = vdwg.mxu0
    %3651 = vst [vmem:[#allocation10] sm:$0xff] %v3648
    %v3652 = vlaneseq
    %v3653 = vand.u32 %v3652, 127
    %3654 = vmax.xlane.f32.xlu0 %v3648
    %v3655 = vpop.xlane.xlu0 %3654
    %vm3656 = vcmp.eq.f32.partialorder %v3648, %v3655
    %v3657 = vsel %vm3656, %v3653, 128
    %v3658 = vand.u32 %v3657, 65535
    %v3659 = vshra.s32 %v3657, 16
    %v3660 = vcvt.s32.f32 %v3658
    %v3661 = vcvt.s32.f32 %v3659
    %3662 = vmin.xlane.f32.xlu0 %v3661
    %v3663 = vpop.xlane.xlu0 %3662
    %vm3664 = vcmp.eq.f32.partialorder %v3661, %v3663
    %v3665 = vsel %vm3664, %v3660, inf
    %3666 = vmin.xlane.f32.xlu0 %v3665
    %v3667 = vpop.xlane.xlu0 %3666
    %v3668 = vcvt.f32.s32 %v3667
    %v3669 = vcvt.f32.s32 %v3663
    %v3670 = vshll.u32 %v3669, 16
    %v3671 = vadd.s32 %v3670, %v3668
    %vm3672 = vcmp.eq.s32.totalorder %v3653, %v3671
    %v3673 = vsel %vm3672, 1, 0
    %v3674 = vcvt.s32.f32 %v3673
    %s3675 = scalar_lea.vmem [#allocation5], 312
    %v3676 = vld [vmem:[%s3675] sm:$0xff]
    %v3677 = vld [vmem:[%s3675 + $0x18] sm:$0xff]
    %v3678 = vld [vmem:[%s3675 + $0x30] ss:$0 sm:$0xff]
    %v3679 = vld [vmem:[%s3675 + $0x48] sm:$0xff]
    %v3680 = vld [vmem:[%s3675 + $0x50] sm:$0xff]
    %v3681 = vld [vmem:[%s3675 + $0x58] sm:$0xff]
    %v3682 = vld [vmem:[%s3675 + $0x60] sm:$0xff]
    %v3683 = vld [vmem:[%s3675 + $0x68] sm:$0xff]
    %v3684 = vld [vmem:[%s3675 + $0x70] sm:$0xff]
    %v3685 = vld [vmem:[%s3675 + $0x78] sm:$0xff]
    %v3686 = vld [vmem:[%s3675 + $0x80] sm:$0xff]
    %v3687 = vld [vmem:[%s3675 + $0x88] sm:$0xff]
    %v3688 = vld [vmem:[%s3675 + $0x90] sm:$0xff]
    %v3689 = vld [vmem:[%s3675 + $0x98] sm:$0xff]
    %v3690 = vld [vmem:[%s3675 + $0xa0] sm:$0xff]
    %s3691 = scalar_lea.vmem %s3675, 168 [#allocation5]
    %v3692 = vld [vmem:[%s3691] ss:$8 sm:$0x7]
    %v3693 = vld [vmem:[%s3675 + $0xc0] sm:$0xff]
    %v3694 = vld [vmem:[%s3675 + $0xd8] sm:$0xff]
    %v3695 = vld [vmem:[%s3675 + $0xf0] sm:$0xff]
    %v3696 = vld [vmem:[%s3675 + $0x108] sm:$0xff]
    %v3697 = vld [vmem:[%s3675 + $0x120] ss:$0 sm:$0xff]
    %s3698 = scalar_lea.vmem [#allocation7], 24
    %v3699 = vld [vmem:[%s3698] sm:$0xff]
    %v3700 = vld [vmem:[%s3698 + $0x8] sm:$0xf]
    %v3701 = vld [vmem:[%s3698 + $0x10] sm:$0x1]
    %v3703 = vsel %vm111, %v3674, 0
    %3705 = vmatprep.subr.mxu0 0.0
    %v3706 = vand.u32 %v3676, 4294901760
    %3707 = vmatpush1.msra.mxu0 %v3706
    %3708 = vmatprep.subr.mxu0 0.0
    %v3709 = vand.u32 %v3677, 4294901760
    %3710 = vmatpush1.msra.mxu0 %v3709
    %3711 = vmatprep.subr.mxu0 0.0
    %3712 = vmatpush1.msra.mxu0 0.0
    %3713 = vmatprep.subr.mxu0 0.0
    %3714 = vmatpush1.msra.mxu0 0.0
    %3715 = vmatprep.subr.mxu0 0.0
    %3716 = vmatpush1.msra.mxu0 0.0
    %3717 = vmatprep.subr.mxu0 0.0
    %3718 = vmatpush1.msra.mxu0 0.0
    %3719 = vmatprep.subr.mxu0 0.0
    %3720 = vmatpush1.msra.mxu0 0.0
    %3721 = vmatprep.subr.mxu0 0.0
    %3722 = vmatpush1.msra.mxu0 0.0
    %3723 = vmatprep.subr.mxu0 0.0
    %3724 = vmatpush1.msra.mxu0 0.0
    %3725 = vmatprep.subr.mxu0 0.0
    %3726 = vmatpush1.msra.mxu0 0.0
    %3727 = vmatprep.subr.mxu0 0.0
    %3728 = vmatpush1.msra.mxu0 0.0
    %3729 = vmatprep.subr.mxu0 0.0
    %3730 = vmatpush1.msra.mxu0 0.0
    %3731 = vmatprep.subr.mxu0 0.0
    %3732 = vmatpush1.msra.mxu0 0.0
    %3733 = vmatprep.subr.mxu0 0.0
    %3734 = vmatpush1.msra.mxu0 0.0
    %3735 = vmatprep.subr.mxu0 0.0
    %3736 = vmatpush1.msra.mxu0 0.0
    %3737 = vmatprep.subr.mxu0 0.0
    %3738 = vmatpush1.msra.mxu0 0.0
    %3739 = vmatprep.subr.mxu0 0.0
    %3740 = vmatpush1.msra.mxu0 0.0
    %3741 = vmatprep.subr.mxu0 0.0
    %3742 = vmatpush1.msra.mxu0 0.0
    %3743 = vmatprep.subr.mxu0 0.0
    %3744 = vmatpush1.msra.mxu0 0.0
    %3745 = vmatprep.subr.mxu0 0.0
    %3746 = vmatpush1.msra.mxu0 0.0
    %3747 = vmatprep.subr.mxu0 0.0
    %3748 = vmatpush1.msra.mxu0 0.0
    %3749 = vmatprep.subr.mxu0 0.0
    %3750 = vmatpush1.msra.mxu0 0.0
    %3751 = vmatprep.subr.mxu0 0.0
    %3752 = vmatpush1.msra.mxu0 0.0
    %3753 = vmatprep.subr.mxu0 0.0
    %3754 = vmatpush1.msra.mxu0 0.0
    %3755 = vmatprep.subr.mxu0 0.0
    %3756 = vmatpush1.msra.mxu0 0.0
    %3757 = vmatprep.subr.mxu0 0.0
    %3758 = vmatpush1.msra.mxu0 0.0
    %3759 = vmatprep.subr.mxu0 0.0
    %3760 = vmatpush1.msra.mxu0 0.0
    %3761 = vmatprep.subr.mxu0 0.0
    %3762 = vmatpush1.msra.mxu0 0.0
    %3763 = vmatprep.subr.mxu0 0.0
    %3764 = vmatpush1.msra.mxu0 0.0
    %3765 = vmatprep.subr.mxu0 0.0
    %3766 = vmatpush1.msra.mxu0 0.0
    %3767 = vmatprep.subr.mxu0 0.0
    %3768 = vmatpush1.msra.mxu0 0.0
    %3769 = vmatprep.subr.mxu0 0.0
    %3770 = vmatpush1.msra.mxu0 0.0
    %3771 = vmatprep.mubr.f32.mxu0 0.0
    %v3772 = vand.u32 %v3703, 4294901760
    %v3773 = vsub.f32 %v3703, %v3772
    %v3774 = vand.u32 %v3773, 4294901760
    %v3775 = vsub.f32 %v3773, %v3774
    %v3776 = vand.u32 %v3775, 4294901760
    %3777 = vmatmul.mubr.f32.gmra.mrb[0].mxu0 %v3776
    %v3778 = vpop.f32.mrb[0].mxu0
    %v3779 = vadd.f32 %v3678, %v3778
    %v3780 = vpop.f32.mrb[0].mxu0
    %3781 = vdwg.mxu0
    %3782 = vmatprep.subr.mxu0 0.0
    %v3783 = vand.u32 %v3676, 4294901760
    %v3784 = vsub.f32 %v3676, %v3783
    %v3785 = vand.u32 %v3784, 4294901760
    %v3786 = vsub.f32 %v3784, %v3785
    %v3787 = vand.u32 %v3786, 4294901760
    %3788 = vmatpush1.msra.mxu0 %v3787
    %3789 = vmatprep.subr.mxu0 0.0
    %v3790 = vand.u32 %v3677, 4294901760
    %v3791 = vsub.f32 %v3677, %v3790
    %v3792 = vand.u32 %v3791, 4294901760
    %v3793 = vsub.f32 %v3791, %v3792
    %v3794 = vand.u32 %v3793, 4294901760
    %3795 = vmatpush1.msra.mxu0 %v3794
    %3796 = vmatprep.subr.mxu0 0.0
    %3797 = vmatpush1.msra.mxu0 0.0
    %3798 = vmatprep.subr.mxu0 0.0
    %3799 = vmatpush1.msra.mxu0 0.0
    %3800 = vmatprep.subr.mxu0 0.0
    %3801 = vmatpush1.msra.mxu0 0.0
    %3802 = vmatprep.subr.mxu0 0.0
    %3803 = vmatpush1.msra.mxu0 0.0
    %3804 = vmatprep.subr.mxu0 0.0
    %3805 = vmatpush1.msra.mxu0 0.0
    %3806 = vmatprep.subr.mxu0 0.0
    %3807 = vmatpush1.msra.mxu0 0.0
    %3808 = vmatprep.subr.mxu0 0.0
    %3809 = vmatpush1.msra.mxu0 0.0
    %3810 = vmatprep.subr.mxu0 0.0
    %3811 = vmatpush1.msra.mxu0 0.0
    %3812 = vmatprep.subr.mxu0 0.0
    %3813 = vmatpush1.msra.mxu0 0.0
    %3814 = vmatprep.subr.mxu0 0.0
    %3815 = vmatpush1.msra.mxu0 0.0
    %3816 = vmatprep.subr.mxu0 0.0
    %3817 = vmatpush1.msra.mxu0 0.0
    %3818 = vmatprep.subr.mxu0 0.0
    %3819 = vmatpush1.msra.mxu0 0.0
    %3820 = vmatprep.subr.mxu0 0.0
    %3821 = vmatpush1.msra.mxu0 0.0
    %3822 = vmatprep.subr.mxu0 0.0
    %3823 = vmatpush1.msra.mxu0 0.0
    %3824 = vmatprep.subr.mxu0 0.0
    %3825 = vmatpush1.msra.mxu0 0.0
    %3826 = vmatprep.subr.mxu0 0.0
    %3827 = vmatpush1.msra.mxu0 0.0
    %3828 = vmatprep.subr.mxu0 0.0
    %3829 = vmatpush1.msra.mxu0 0.0
    %3830 = vmatprep.subr.mxu0 0.0
    %3831 = vmatpush1.msra.mxu0 0.0
    %3832 = vmatprep.subr.mxu0 0.0
    %3833 = vmatpush1.msra.mxu0 0.0
    %3834 = vmatprep.subr.mxu0 0.0
    %3835 = vmatpush1.msra.mxu0 0.0
    %3836 = vmatprep.subr.mxu0 0.0
    %3837 = vmatpush1.msra.mxu0 0.0
    %3838 = vmatprep.subr.mxu0 0.0
    %3839 = vmatpush1.msra.mxu0 0.0
    %3840 = vmatprep.subr.mxu0 0.0
    %3841 = vmatpush1.msra.mxu0 0.0
    %3842 = vmatprep.subr.mxu0 0.0
    %3843 = vmatpush1.msra.mxu0 0.0
    %3844 = vmatprep.subr.mxu0 0.0
    %3845 = vmatpush1.msra.mxu0 0.0
    %3846 = vmatprep.subr.mxu0 0.0
    %3847 = vmatpush1.msra.mxu0 0.0
    %3848 = vmatprep.subr.mxu0 0.0
    %3849 = vmatpush1.msra.mxu0 0.0
    %3850 = vmatprep.subr.mxu0 0.0
    %3851 = vmatpush1.msra.mxu0 0.0
    %3852 = vmatprep.subr.mxu0 0.0
    %3853 = vmatpush1.msra.mxu0 0.0
    %3854 = vmatprep.subr.mxu0 0.0
    %3855 = vmatpush1.msra.mxu0 0.0
    %3856 = vmatprep.mubr.f32.mxu0 0.0
    %v3857 = vand.u32 %v3703, 4294901760
    %3858 = vmatmul.mubr.f32.gmra.mrb[0].mxu0 %v3857
    %v3859 = vpop.f32.mrb[0].mxu0
    %v3860 = vadd.f32 %v3779, %v3859
    %v3861 = vpop.f32.mrb[0].mxu0
    %3862 = vdwg.mxu0
    %3863 = vmatprep.subr.mxu0 0.0
    %v3864 = vand.u32 %v3676, 4294901760
    %v3865 = vsub.f32 %v3676, %v3864
    %3866 = vmatpush1.msra.mxu0 %v3865
    %3867 = vmatprep.subr.mxu0 0.0
    %v3868 = vand.u32 %v3677, 4294901760
    %v3869 = vsub.f32 %v3677, %v3868
    %3870 = vmatpush1.msra.mxu0 %v3869
    %3871 = vmatprep.subr.mxu0 0.0
    %3872 = vmatpush1.msra.mxu0 0.0
    %3873 = vmatprep.subr.mxu0 0.0
    %3874 = vmatpush1.msra.mxu0 0.0
    %3875 = vmatprep.subr.mxu0 0.0
    %3876 = vmatpush1.msra.mxu0 0.0
    %3877 = vmatprep.subr.mxu0 0.0
    %3878 = vmatpush1.msra.mxu0 0.0
    %3879 = vmatprep.subr.mxu0 0.0
    %3880 = vmatpush1.msra.mxu0 0.0
    %3881 = vmatprep.subr.mxu0 0.0
    %3882 = vmatpush1.msra.mxu0 0.0
    %3883 = vmatprep.subr.mxu0 0.0
    %3884 = vmatpush1.msra.mxu0 0.0
    %3885 = vmatprep.subr.mxu0 0.0
    %3886 = vmatpush1.msra.mxu0 0.0
    %3887 = vmatprep.subr.mxu0 0.0
    %3888 = vmatpush1.msra.mxu0 0.0
    %3889 = vmatprep.subr.mxu0 0.0
    %3890 = vmatpush1.msra.mxu0 0.0
    %3891 = vmatprep.subr.mxu0 0.0
    %3892 = vmatpush1.msra.mxu0 0.0
    %3893 = vmatprep.subr.mxu0 0.0
    %3894 = vmatpush1.msra.mxu0 0.0
    %3895 = vmatprep.subr.mxu0 0.0
    %3896 = vmatpush1.msra.mxu0 0.0
    %3897 = vmatprep.subr.mxu0 0.0
    %3898 = vmatpush1.msra.mxu0 0.0
    %3899 = vmatprep.subr.mxu0 0.0
    %3900 = vmatpush1.msra.mxu0 0.0
    %3901 = vmatprep.subr.mxu0 0.0
    %3902 = vmatpush1.msra.mxu0 0.0
    %3903 = vmatprep.subr.mxu0 0.0
    %3904 = vmatpush1.msra.mxu0 0.0
    %3905 = vmatprep.subr.mxu0 0.0
    %3906 = vmatpush1.msra.mxu0 0.0
    %3907 = vmatprep.subr.mxu0 0.0
    %3908 = vmatpush1.msra.mxu0 0.0
    %3909 = vmatprep.subr.mxu0 0.0
    %3910 = vmatpush1.msra.mxu0 0.0
    %3911 = vmatprep.subr.mxu0 0.0
    %3912 = vmatpush1.msra.mxu0 0.0
    %3913 = vmatprep.subr.mxu0 0.0
    %3914 = vmatpush1.msra.mxu0 0.0
    %3915 = vmatprep.subr.mxu0 0.0
    %3916 = vmatpush1.msra.mxu0 0.0
    %3917 = vmatprep.subr.mxu0 0.0
    %3918 = vmatpush1.msra.mxu0 0.0
    %3919 = vmatprep.subr.mxu0 0.0
    %3920 = vmatpush1.msra.mxu0 0.0
    %3921 = vmatprep.subr.mxu0 0.0
    %3922 = vmatpush1.msra.mxu0 0.0
    %3923 = vmatprep.subr.mxu0 0.0
    %3924 = vmatpush1.msra.mxu0 0.0
    %3925 = vmatprep.subr.mxu0 0.0
    %3926 = vmatpush1.msra.mxu0 0.0
    %3927 = vmatprep.subr.mxu0 0.0
    %3928 = vmatpush1.msra.mxu0 0.0
    %3929 = vmatprep.subr.mxu0 0.0
    %3930 = vmatpush1.msra.mxu0 0.0
    %3931 = vmatprep.mubr.f32.mxu0 0.0
    %v3932 = vand.u32 %v3703, 4294901760
    %v3933 = vsub.f32 %v3703, %v3932
    %3934 = vmatmul.mubr.f32.gmra.mrb[0].mxu0 %v3933
    %v3935 = vpop.f32.mrb[0].mxu0
    %v3936 = vadd.f32 %v3860, %v3935
    %v3937 = vpop.f32.mrb[0].mxu0
    %3938 = vdwg.mxu0
    %3939 = vmatprep.subr.mxu0 0.0
    %v3940 = vand.u32 %v3676, 4294901760
    %3941 = vmatpush1.msra.mxu0 %v3940
    %3942 = vmatprep.subr.mxu0 0.0
    %v3943 = vand.u32 %v3677, 4294901760
    %3944 = vmatpush1.msra.mxu0 %v3943
    %3945 = vmatprep.subr.mxu0 0.0
    %3946 = vmatpush1.msra.mxu0 0.0
    %3947 = vmatprep.subr.mxu0 0.0
    %3948 = vmatpush1.msra.mxu0 0.0
    %3949 = vmatprep.subr.mxu0 0.0
    %3950 = vmatpush1.msra.mxu0 0.0
    %3951 = vmatprep.subr.mxu0 0.0
    %3952 = vmatpush1.msra.mxu0 0.0
    %3953 = vmatprep.subr.mxu0 0.0
    %3954 = vmatpush1.msra.mxu0 0.0
    %3955 = vmatprep.subr.mxu0 0.0
    %3956 = vmatpush1.msra.mxu0 0.0
    %3957 = vmatprep.subr.mxu0 0.0
    %3958 = vmatpush1.msra.mxu0 0.0
    %3959 = vmatprep.subr.mxu0 0.0
    %3960 = vmatpush1.msra.mxu0 0.0
    %3961 = vmatprep.subr.mxu0 0.0
    %3962 = vmatpush1.msra.mxu0 0.0
    %3963 = vmatprep.subr.mxu0 0.0
    %3964 = vmatpush1.msra.mxu0 0.0
    %3965 = vmatprep.subr.mxu0 0.0
    %3966 = vmatpush1.msra.mxu0 0.0
    %3967 = vmatprep.subr.mxu0 0.0
    %3968 = vmatpush1.msra.mxu0 0.0
    %3969 = vmatprep.subr.mxu0 0.0
    %3970 = vmatpush1.msra.mxu0 0.0
    %3971 = vmatprep.subr.mxu0 0.0
    %3972 = vmatpush1.msra.mxu0 0.0
    %3973 = vmatprep.subr.mxu0 0.0
    %3974 = vmatpush1.msra.mxu0 0.0
    %3975 = vmatprep.subr.mxu0 0.0
    %3976 = vmatpush1.msra.mxu0 0.0
    %3977 = vmatprep.subr.mxu0 0.0
    %3978 = vmatpush1.msra.mxu0 0.0
    %3979 = vmatprep.subr.mxu0 0.0
    %3980 = vmatpush1.msra.mxu0 0.0
    %3981 = vmatprep.subr.mxu0 0.0
    %3982 = vmatpush1.msra.mxu0 0.0
    %3983 = vmatprep.subr.mxu0 0.0
    %3984 = vmatpush1.msra.mxu0 0.0
    %3985 = vmatprep.subr.mxu0 0.0
    %3986 = vmatpush1.msra.mxu0 0.0
    %3987 = vmatprep.subr.mxu0 0.0
    %3988 = vmatpush1.msra.mxu0 0.0
    %3989 = vmatprep.subr.mxu0 0.0
    %3990 = vmatpush1.msra.mxu0 0.0
    %3991 = vmatprep.subr.mxu0 0.0
    %3992 = vmatpush1.msra.mxu0 0.0
    %3993 = vmatprep.subr.mxu0 0.0
    %3994 = vmatpush1.msra.mxu0 0.0
    %3995 = vmatprep.subr.mxu0 0.0
    %3996 = vmatpush1.msra.mxu0 0.0
    %3997 = vmatprep.subr.mxu0 0.0
    %3998 = vmatpush1.msra.mxu0 0.0
    %3999 = vmatprep.subr.mxu0 0.0
    %4000 = vmatpush1.msra.mxu0 0.0
    %4001 = vmatprep.subr.mxu0 0.0
    %4002 = vmatpush1.msra.mxu0 0.0
    %4003 = vmatprep.subr.mxu0 0.0
    %4004 = vmatpush1.msra.mxu0 0.0
    %4005 = vmatprep.mubr.f32.mxu0 0.0
    %v4006 = vand.u32 %v3703, 4294901760
    %v4007 = vsub.f32 %v3703, %v4006
    %v4008 = vand.u32 %v4007, 4294901760
    %4009 = vmatmul.mubr.f32.gmra.mrb[0].mxu0 %v4008
    %v4010 = vpop.f32.mrb[0].mxu0
    %v4011 = vadd.f32 %v3936, %v4010
    %v4012 = vpop.f32.mrb[0].mxu0
    %4013 = vdwg.mxu0
    %4014 = vmatprep.subr.mxu0 0.0
    %v4015 = vand.u32 %v3676, 4294901760
    %v4016 = vsub.f32 %v3676, %v4015
    %v4017 = vand.u32 %v4016, 4294901760
    %4018 = vmatpush1.msra.mxu0 %v4017
    %4019 = vmatprep.subr.mxu0 0.0
    %v4020 = vand.u32 %v3677, 4294901760
    %v4021 = vsub.f32 %v3677, %v4020
    %v4022 = vand.u32 %v4021, 4294901760
    %4023 = vmatpush1.msra.mxu0 %v4022
    %4024 = vmatprep.subr.mxu0 0.0
    %4025 = vmatpush1.msra.mxu0 0.0
    %4026 = vmatprep.subr.mxu0 0.0
    %4027 = vmatpush1.msra.mxu0 0.0
    %4028 = vmatprep.subr.mxu0 0.0
    %4029 = vmatpush1.msra.mxu0 0.0
    %4030 = vmatprep.subr.mxu0 0.0
    %4031 = vmatpush1.msra.mxu0 0.0
    %4032 = vmatprep.subr.mxu0 0.0
    %4033 = vmatpush1.msra.mxu0 0.0
    %4034 = vmatprep.subr.mxu0 0.0
    %4035 = vmatpush1.msra.mxu0 0.0
    %4036 = vmatprep.subr.mxu0 0.0
    %4037 = vmatpush1.msra.mxu0 0.0
    %4038 = vmatprep.subr.mxu0 0.0
    %4039 = vmatpush1.msra.mxu0 0.0
    %4040 = vmatprep.subr.mxu0 0.0
    %4041 = vmatpush1.msra.mxu0 0.0
    %4042 = vmatprep.subr.mxu0 0.0
    %4043 = vmatpush1.msra.mxu0 0.0
    %4044 = vmatprep.subr.mxu0 0.0
    %4045 = vmatpush1.msra.mxu0 0.0
    %4046 = vmatprep.subr.mxu0 0.0
    %4047 = vmatpush1.msra.mxu0 0.0
    %4048 = vmatprep.subr.mxu0 0.0
    %4049 = vmatpush1.msra.mxu0 0.0
    %4050 = vmatprep.subr.mxu0 0.0
    %4051 = vmatpush1.msra.mxu0 0.0
    %4052 = vmatprep.subr.mxu0 0.0
    %4053 = vmatpush1.msra.mxu0 0.0
    %4054 = vmatprep.subr.mxu0 0.0
    %4055 = vmatpush1.msra.mxu0 0.0
    %4056 = vmatprep.subr.mxu0 0.0
    %4057 = vmatpush1.msra.mxu0 0.0
    %4058 = vmatprep.subr.mxu0 0.0
    %4059 = vmatpush1.msra.mxu0 0.0
    %4060 = vmatprep.subr.mxu0 0.0
    %4061 = vmatpush1.msra.mxu0 0.0
    %4062 = vmatprep.subr.mxu0 0.0
    %4063 = vmatpush1.msra.mxu0 0.0
    %4064 = vmatprep.subr.mxu0 0.0
    %4065 = vmatpush1.msra.mxu0 0.0
    %4066 = vmatprep.subr.mxu0 0.0
    %4067 = vmatpush1.msra.mxu0 0.0
    %4068 = vmatprep.subr.mxu0 0.0
    %4069 = vmatpush1.msra.mxu0 0.0
    %4070 = vmatprep.subr.mxu0 0.0
    %4071 = vmatpush1.msra.mxu0 0.0
    %4072 = vmatprep.subr.mxu0 0.0
    %4073 = vmatpush1.msra.mxu0 0.0
    %4074 = vmatprep.subr.mxu0 0.0
    %4075 = vmatpush1.msra.mxu0 0.0
    %4076 = vmatprep.subr.mxu0 0.0
    %4077 = vmatpush1.msra.mxu0 0.0
    %4078 = vmatprep.subr.mxu0 0.0
    %4079 = vmatpush1.msra.mxu0 0.0
    %4080 = vmatprep.subr.mxu0 0.0
    %4081 = vmatpush1.msra.mxu0 0.0
    %4082 = vmatprep.subr.mxu0 0.0
    %4083 = vmatpush1.msra.mxu0 0.0
    %4084 = vmatprep.mubr.f32.mxu0 0.0
    %v4085 = vand.u32 %v3703, 4294901760
    %4086 = vmatmul.mubr.f32.gmra.mrb[0].mxu0 %v4085
    %v4087 = vpop.f32.mrb[0].mxu0
    %v4088 = vadd.f32 %v4011, %v4087
    %v4089 = vpop.f32.mrb[0].mxu0
    %4090 = vdwg.mxu0
    %4091 = vmatprep.subr.mxu0 0.0
    %v4092 = vand.u32 %v3676, 4294901760
    %4093 = vmatpush1.msra.mxu0 %v4092
    %4094 = vmatprep.subr.mxu0 0.0
    %v4095 = vand.u32 %v3677, 4294901760
    %4096 = vmatpush1.msra.mxu0 %v4095
    %4097 = vmatprep.subr.mxu0 0.0
    %4098 = vmatpush1.msra.mxu0 0.0
    %4099 = vmatprep.subr.mxu0 0.0
    %4100 = vmatpush1.msra.mxu0 0.0
    %4101 = vmatprep.subr.mxu0 0.0
    %4102 = vmatpush1.msra.mxu0 0.0
    %4103 = vmatprep.subr.mxu0 0.0
    %4104 = vmatpush1.msra.mxu0 0.0
    %4105 = vmatprep.subr.mxu0 0.0
    %4106 = vmatpush1.msra.mxu0 0.0
    %4107 = vmatprep.subr.mxu0 0.0
    %4108 = vmatpush1.msra.mxu0 0.0
    %4109 = vmatprep.subr.mxu0 0.0
    %4110 = vmatpush1.msra.mxu0 0.0
    %4111 = vmatprep.subr.mxu0 0.0
    %4112 = vmatpush1.msra.mxu0 0.0
    %4113 = vmatprep.subr.mxu0 0.0
    %4114 = vmatpush1.msra.mxu0 0.0
    %4115 = vmatprep.subr.mxu0 0.0
    %4116 = vmatpush1.msra.mxu0 0.0
    %4117 = vmatprep.subr.mxu0 0.0
    %4118 = vmatpush1.msra.mxu0 0.0
    %4119 = vmatprep.subr.mxu0 0.0
    %4120 = vmatpush1.msra.mxu0 0.0
    %4121 = vmatprep.subr.mxu0 0.0
    %4122 = vmatpush1.msra.mxu0 0.0
    %4123 = vmatprep.subr.mxu0 0.0
    %4124 = vmatpush1.msra.mxu0 0.0
    %4125 = vmatprep.subr.mxu0 0.0
    %4126 = vmatpush1.msra.mxu0 0.0
    %4127 = vmatprep.subr.mxu0 0.0
    %4128 = vmatpush1.msra.mxu0 0.0
    %4129 = vmatprep.subr.mxu0 0.0
    %4130 = vmatpush1.msra.mxu0 0.0
    %4131 = vmatprep.subr.mxu0 0.0
    %4132 = vmatpush1.msra.mxu0 0.0
    %4133 = vmatprep.subr.mxu0 0.0
    %4134 = vmatpush1.msra.mxu0 0.0
    %4135 = vmatprep.subr.mxu0 0.0
    %4136 = vmatpush1.msra.mxu0 0.0
    %4137 = vmatprep.subr.mxu0 0.0
    %4138 = vmatpush1.msra.mxu0 0.0
    %4139 = vmatprep.subr.mxu0 0.0
    %4140 = vmatpush1.msra.mxu0 0.0
    %4141 = vmatprep.subr.mxu0 0.0
    %4142 = vmatpush1.msra.mxu0 0.0
    %4143 = vmatprep.subr.mxu0 0.0
    %4144 = vmatpush1.msra.mxu0 0.0
    %4145 = vmatprep.subr.mxu0 0.0
    %4146 = vmatpush1.msra.mxu0 0.0
    %4147 = vmatprep.subr.mxu0 0.0
    %4148 = vmatpush1.msra.mxu0 0.0
    %4149 = vmatprep.subr.mxu0 0.0
    %4150 = vmatpush1.msra.mxu0 0.0
    %4151 = vmatprep.subr.mxu0 0.0
    %4152 = vmatpush1.msra.mxu0 0.0
    %4153 = vmatprep.subr.mxu0 0.0
    %4154 = vmatpush1.msra.mxu0 0.0
    %4155 = vmatprep.subr.mxu0 0.0
    %4156 = vmatpush1.msra.mxu0 0.0
    %4157 = vmatprep.mubr.f32.mxu0 0.0
    %v4158 = vand.u32 %v3703, 4294901760
    %4159 = vmatmul.mubr.f32.gmra.mrb[0].mxu0 %v4158
    %v4160 = vpop.f32.mrb[0].mxu0
    %v4161 = vadd.f32 %v4088, %v4160
    %v4162 = vpop.f32.mrb[0].mxu0
    %4163 = vdwg.mxu0
    %v4164 = vmax.f32 %v4161, 0.0
    %v4166 = vlaneseq
    %v4167 = vshrl.u32 %v4166, 7
    %v4168 = vsub.s32 0, %v4167
    %v4169 = vrot.slane %v3692, %v4168
    %v4170 = vlaneseq
    %v4171 = vshrl.u32 %v4170, 7
    %v4172 = vsub.s32 1, %v4171
    %v4173 = vrot.slane %v3692, %v4172
    %v4174 = vlaneseq
    %v4175 = vshrl.u32 %v4174, 7
    %v4176 = vsub.s32 2, %v4175
    %v4177 = vrot.slane %v3692, %v4176
    %v4182 = vsel %vm591, %v4164, 0
    %v4184 = vand.u32 %v3680, 4294901760
    %4185 = vmatprep.subr.mxu0 %v4184
    %v4186 = vand.u32 %v3679, 4294901760
    %4187 = vmatpush1.msra.mxu0 %v4186
    %v4188 = vand.u32 %v3683, 4294901760
    %4189 = vmatprep.subr.mxu0 %v4188
    %v4190 = vand.u32 %v3682, 4294901760
    %4191 = vmatpush1.msra.mxu0 %v4190
    %v4192 = vand.u32 %v3686, 4294901760
    %4193 = vmatprep.subr.mxu0 %v4192
    %v4194 = vand.u32 %v3685, 4294901760
    %4195 = vmatpush1.msra.mxu0 %v4194
    %v4196 = vand.u32 %v3689, 4294901760
    %4197 = vmatprep.subr.mxu0 %v4196
    %v4198 = vand.u32 %v3688, 4294901760
    %4199 = vmatpush1.msra.mxu0 %v4198
    %4200 = vmatprep.subr.mxu0 0.0
    %4201 = vmatpush1.msra.mxu0 0.0
    %4202 = vmatprep.subr.mxu0 0.0
    %4203 = vmatpush1.msra.mxu0 0.0
    %4204 = vmatprep.subr.mxu0 0.0
    %4205 = vmatpush1.msra.mxu0 0.0
    %4206 = vmatprep.subr.mxu0 0.0
    %4207 = vmatpush1.msra.mxu0 0.0
    %4208 = vmatprep.subr.mxu0 0.0
    %4209 = vmatpush1.msra.mxu0 0.0
    %4210 = vmatprep.subr.mxu0 0.0
    %4211 = vmatpush1.msra.mxu0 0.0
    %4212 = vmatprep.subr.mxu0 0.0
    %4213 = vmatpush1.msra.mxu0 0.0
    %4214 = vmatprep.subr.mxu0 0.0
    %4215 = vmatpush1.msra.mxu0 0.0
    %4216 = vmatprep.subr.mxu0 0.0
    %4217 = vmatpush1.msra.mxu0 0.0
    %4218 = vmatprep.subr.mxu0 0.0
    %4219 = vmatpush1.msra.mxu0 0.0
    %4220 = vmatprep.subr.mxu0 0.0
    %4221 = vmatpush1.msra.mxu0 0.0
    %4222 = vmatprep.subr.mxu0 0.0
    %4223 = vmatpush1.msra.mxu0 0.0
    %4224 = vmatprep.subr.mxu0 0.0
    %4225 = vmatpush1.msra.mxu0 0.0
    %4226 = vmatprep.subr.mxu0 0.0
    %4227 = vmatpush1.msra.mxu0 0.0
    %4228 = vmatprep.subr.mxu0 0.0
    %4229 = vmatpush1.msra.mxu0 0.0
    %4230 = vmatprep.subr.mxu0 0.0
    %4231 = vmatpush1.msra.mxu0 0.0
    %4232 = vmatprep.subr.mxu0 0.0
    %4233 = vmatpush1.msra.mxu0 0.0
    %4234 = vmatprep.subr.mxu0 0.0
    %4235 = vmatpush1.msra.mxu0 0.0
    %4236 = vmatprep.subr.mxu0 0.0
    %4237 = vmatpush1.msra.mxu0 0.0
    %4238 = vmatprep.subr.mxu0 0.0
    %4239 = vmatpush1.msra.mxu0 0.0
    %4240 = vmatprep.subr.mxu0 0.0
    %4241 = vmatpush1.msra.mxu0 0.0
    %4242 = vmatprep.subr.mxu0 0.0
    %4243 = vmatpush1.msra.mxu0 0.0
    %4244 = vmatprep.subr.mxu0 0.0
    %4245 = vmatpush1.msra.mxu0 0.0
    %4246 = vmatprep.subr.mxu0 0.0
    %4247 = vmatpush1.msra.mxu0 0.0
    %4248 = vmatprep.subr.mxu0 0.0
    %4249 = vmatpush1.msra.mxu0 0.0
    %4250 = vmatprep.subr.mxu0 0.0
    %4251 = vmatpush1.msra.mxu0 0.0
    %4252 = vmatprep.subr.mxu0 0.0
    %4253 = vmatpush1.msra.mxu0 0.0
    %4254 = vmatprep.subr.mxu0 0.0
    %4255 = vmatpush1.msra.mxu0 0.0
    %4256 = vmatprep.mubr.f32.mxu0 0.0
    %v4257 = vand.u32 %v4182, 4294901760
    %v4258 = vsub.f32 %v4182, %v4257
    %v4259 = vand.u32 %v4258, 4294901760
    %v4260 = vsub.f32 %v4258, %v4259
    %v4261 = vand.u32 %v4260, 4294901760
    %4262 = vmatmul.mubr.f32.gmra.mrb[0].mxu0 %v4261
    %v4263 = vpop.f32.mrb[0].mxu0
    %v4264 = vadd.f32 %v4169, %v4263
    %v4265 = vpop.f32.mrb[0].mxu0
    %v4266 = vadd.f32 %v4173, %v4265
    %4267 = vdwg.mxu0
    %v4268 = vand.u32 %v3680, 4294901760
    %v4269 = vsub.f32 %v3680, %v4268
    %v4270 = vand.u32 %v4269, 4294901760
    %v4271 = vsub.f32 %v4269, %v4270
    %v4272 = vand.u32 %v4271, 4294901760
    %4273 = vmatprep.subr.mxu0 %v4272
    %v4274 = vand.u32 %v3679, 4294901760
    %v4275 = vsub.f32 %v3679, %v4274
    %v4276 = vand.u32 %v4275, 4294901760
    %v4277 = vsub.f32 %v4275, %v4276
    %v4278 = vand.u32 %v4277, 4294901760
    %4279 = vmatpush1.msra.mxu0 %v4278
    %v4280 = vand.u32 %v3683, 4294901760
    %v4281 = vsub.f32 %v3683, %v4280
    %v4282 = vand.u32 %v4281, 4294901760
    %v4283 = vsub.f32 %v4281, %v4282
    %v4284 = vand.u32 %v4283, 4294901760
    %4285 = vmatprep.subr.mxu0 %v4284
    %v4286 = vand.u32 %v3682, 4294901760
    %v4287 = vsub.f32 %v3682, %v4286
    %v4288 = vand.u32 %v4287, 4294901760
    %v4289 = vsub.f32 %v4287, %v4288
    %v4290 = vand.u32 %v4289, 4294901760
    %4291 = vmatpush1.msra.mxu0 %v4290
    %v4292 = vand.u32 %v3686, 4294901760
    %v4293 = vsub.f32 %v3686, %v4292
    %v4294 = vand.u32 %v4293, 4294901760
    %v4295 = vsub.f32 %v4293, %v4294
    %v4296 = vand.u32 %v4295, 4294901760
    %4297 = vmatprep.subr.mxu0 %v4296
    %v4298 = vand.u32 %v3685, 4294901760
    %v4299 = vsub.f32 %v3685, %v4298
    %v4300 = vand.u32 %v4299, 4294901760
    %v4301 = vsub.f32 %v4299, %v4300
    %v4302 = vand.u32 %v4301, 4294901760
    %4303 = vmatpush1.msra.mxu0 %v4302
    %v4304 = vand.u32 %v3689, 4294901760
    %v4305 = vsub.f32 %v3689, %v4304
    %v4306 = vand.u32 %v4305, 4294901760
    %v4307 = vsub.f32 %v4305, %v4306
    %v4308 = vand.u32 %v4307, 4294901760
    %4309 = vmatprep.subr.mxu0 %v4308
    %v4310 = vand.u32 %v3688, 4294901760
    %v4311 = vsub.f32 %v3688, %v4310
    %v4312 = vand.u32 %v4311, 4294901760
    %v4313 = vsub.f32 %v4311, %v4312
    %v4314 = vand.u32 %v4313, 4294901760
    %4315 = vmatpush1.msra.mxu0 %v4314
    %4316 = vmatprep.subr.mxu0 0.0
    %4317 = vmatpush1.msra.mxu0 0.0
    %4318 = vmatprep.subr.mxu0 0.0
    %4319 = vmatpush1.msra.mxu0 0.0
    %4320 = vmatprep.subr.mxu0 0.0
    %4321 = vmatpush1.msra.mxu0 0.0
    %4322 = vmatprep.subr.mxu0 0.0
    %4323 = vmatpush1.msra.mxu0 0.0
    %4324 = vmatprep.subr.mxu0 0.0
    %4325 = vmatpush1.msra.mxu0 0.0
    %4326 = vmatprep.subr.mxu0 0.0
    %4327 = vmatpush1.msra.mxu0 0.0
    %4328 = vmatprep.subr.mxu0 0.0
    %4329 = vmatpush1.msra.mxu0 0.0
    %4330 = vmatprep.subr.mxu0 0.0
    %4331 = vmatpush1.msra.mxu0 0.0
    %4332 = vmatprep.subr.mxu0 0.0
    %4333 = vmatpush1.msra.mxu0 0.0
    %4334 = vmatprep.subr.mxu0 0.0
    %4335 = vmatpush1.msra.mxu0 0.0
    %4336 = vmatprep.subr.mxu0 0.0
    %4337 = vmatpush1.msra.mxu0 0.0
    %4338 = vmatprep.subr.mxu0 0.0
    %4339 = vmatpush1.msra.mxu0 0.0
    %4340 = vmatprep.subr.mxu0 0.0
    %4341 = vmatpush1.msra.mxu0 0.0
    %4342 = vmatprep.subr.mxu0 0.0
    %4343 = vmatpush1.msra.mxu0 0.0
    %4344 = vmatprep.subr.mxu0 0.0
    %4345 = vmatpush1.msra.mxu0 0.0
    %4346 = vmatprep.subr.mxu0 0.0
    %4347 = vmatpush1.msra.mxu0 0.0
    %4348 = vmatprep.subr.mxu0 0.0
    %4349 = vmatpush1.msra.mxu0 0.0
    %4350 = vmatprep.subr.mxu0 0.0
    %4351 = vmatpush1.msra.mxu0 0.0
    %4352 = vmatprep.subr.mxu0 0.0
    %4353 = vmatpush1.msra.mxu0 0.0
    %4354 = vmatprep.subr.mxu0 0.0
    %4355 = vmatpush1.msra.mxu0 0.0
    %4356 = vmatprep.subr.mxu0 0.0
    %4357 = vmatpush1.msra.mxu0 0.0
    %4358 = vmatprep.subr.mxu0 0.0
    %4359 = vmatpush1.msra.mxu0 0.0
    %4360 = vmatprep.subr.mxu0 0.0
    %4361 = vmatpush1.msra.mxu0 0.0
    %4362 = vmatprep.subr.mxu0 0.0
    %4363 = vmatpush1.msra.mxu0 0.0
    %4364 = vmatprep.subr.mxu0 0.0
    %4365 = vmatpush1.msra.mxu0 0.0
    %4366 = vmatprep.subr.mxu0 0.0
    %4367 = vmatpush1.msra.mxu0 0.0
    %4368 = vmatprep.subr.mxu0 0.0
    %4369 = vmatpush1.msra.mxu0 0.0
    %4370 = vmatprep.subr.mxu0 0.0
    %4371 = vmatpush1.msra.mxu0 0.0
    %4372 = vmatprep.mubr.f32.mxu0 0.0
    %v4373 = vand.u32 %v4182, 4294901760
    %4374 = vmatmul.mubr.f32.gmra.mrb[0].mxu0 %v4373
    %v4375 = vpop.f32.mrb[0].mxu0
    %v4376 = vadd.f32 %v4264, %v4375
    %v4377 = vpop.f32.mrb[0].mxu0
    %v4378 = vadd.f32 %v4266, %v4377
    %4379 = vdwg.mxu0
    %v4380 = vand.u32 %v3680, 4294901760
    %v4381 = vsub.f32 %v3680, %v4380
    %4382 = vmatprep.subr.mxu0 %v4381
    %v4383 = vand.u32 %v3679, 4294901760
    %v4384 = vsub.f32 %v3679, %v4383
    %4385 = vmatpush1.msra.mxu0 %v4384
    %v4386 = vand.u32 %v3683, 4294901760
    %v4387 = vsub.f32 %v3683, %v4386
    %4388 = vmatprep.subr.mxu0 %v4387
    %v4389 = vand.u32 %v3682, 4294901760
    %v4390 = vsub.f32 %v3682, %v4389
    %4391 = vmatpush1.msra.mxu0 %v4390
    %v4392 = vand.u32 %v3686, 4294901760
    %v4393 = vsub.f32 %v3686, %v4392
    %4394 = vmatprep.subr.mxu0 %v4393
    %v4395 = vand.u32 %v3685, 4294901760
    %v4396 = vsub.f32 %v3685, %v4395
    %4397 = vmatpush1.msra.mxu0 %v4396
    %v4398 = vand.u32 %v3689, 4294901760
    %v4399 = vsub.f32 %v3689, %v4398
    %4400 = vmatprep.subr.mxu0 %v4399
    %v4401 = vand.u32 %v3688, 4294901760
    %v4402 = vsub.f32 %v3688, %v4401
    %4403 = vmatpush1.msra.mxu0 %v4402
    %4404 = vmatprep.subr.mxu0 0.0
    %4405 = vmatpush1.msra.mxu0 0.0
    %4406 = vmatprep.subr.mxu0 0.0
    %4407 = vmatpush1.msra.mxu0 0.0
    %4408 = vmatprep.subr.mxu0 0.0
    %4409 = vmatpush1.msra.mxu0 0.0
    %4410 = vmatprep.subr.mxu0 0.0
    %4411 = vmatpush1.msra.mxu0 0.0
    %4412 = vmatprep.subr.mxu0 0.0
    %4413 = vmatpush1.msra.mxu0 0.0
    %4414 = vmatprep.subr.mxu0 0.0
    %4415 = vmatpush1.msra.mxu0 0.0
    %4416 = vmatprep.subr.mxu0 0.0
    %4417 = vmatpush1.msra.mxu0 0.0
    %4418 = vmatprep.subr.mxu0 0.0
    %4419 = vmatpush1.msra.mxu0 0.0
    %4420 = vmatprep.subr.mxu0 0.0
    %4421 = vmatpush1.msra.mxu0 0.0
    %4422 = vmatprep.subr.mxu0 0.0
    %4423 = vmatpush1.msra.mxu0 0.0
    %4424 = vmatprep.subr.mxu0 0.0
    %4425 = vmatpush1.msra.mxu0 0.0
    %4426 = vmatprep.subr.mxu0 0.0
    %4427 = vmatpush1.msra.mxu0 0.0
    %4428 = vmatprep.subr.mxu0 0.0
    %4429 = vmatpush1.msra.mxu0 0.0
    %4430 = vmatprep.subr.mxu0 0.0
    %4431 = vmatpush1.msra.mxu0 0.0
    %4432 = vmatprep.subr.mxu0 0.0
    %4433 = vmatpush1.msra.mxu0 0.0
    %4434 = vmatprep.subr.mxu0 0.0
    %4435 = vmatpush1.msra.mxu0 0.0
    %4436 = vmatprep.subr.mxu0 0.0
    %4437 = vmatpush1.msra.mxu0 0.0
    %4438 = vmatprep.subr.mxu0 0.0
    %4439 = vmatpush1.msra.mxu0 0.0
    %4440 = vmatprep.subr.mxu0 0.0
    %4441 = vmatpush1.msra.mxu0 0.0
    %4442 = vmatprep.subr.mxu0 0.0
    %4443 = vmatpush1.msra.mxu0 0.0
    %4444 = vmatprep.subr.mxu0 0.0
    %4445 = vmatpush1.msra.mxu0 0.0
    %4446 = vmatprep.subr.mxu0 0.0
    %4447 = vmatpush1.msra.mxu0 0.0
    %4448 = vmatprep.subr.mxu0 0.0
    %4449 = vmatpush1.msra.mxu0 0.0
    %4450 = vmatprep.subr.mxu0 0.0
    %4451 = vmatpush1.msra.mxu0 0.0
    %4452 = vmatprep.subr.mxu0 0.0
    %4453 = vmatpush1.msra.mxu0 0.0
    %4454 = vmatprep.subr.mxu0 0.0
    %4455 = vmatpush1.msra.mxu0 0.0
    %4456 = vmatprep.subr.mxu0 0.0
    %4457 = vmatpush1.msra.mxu0 0.0
    %4458 = vmatprep.subr.mxu0 0.0
    %4459 = vmatpush1.msra.mxu0 0.0
    %4460 = vmatprep.mubr.f32.mxu0 0.0
    %v4461 = vand.u32 %v4182, 4294901760
    %v4462 = vsub.f32 %v4182, %v4461
    %4463 = vmatmul.mubr.f32.gmra.mrb[0].mxu0 %v4462
    %v4464 = vpop.f32.mrb[0].mxu0
    %v4465 = vadd.f32 %v4376, %v4464
    %v4466 = vpop.f32.mrb[0].mxu0
    %v4467 = vadd.f32 %v4378, %v4466
    %4468 = vdwg.mxu0
    %v4469 = vand.u32 %v3680, 4294901760
    %4470 = vmatprep.subr.mxu0 %v4469
    %v4471 = vand.u32 %v3679, 4294901760
    %4472 = vmatpush1.msra.mxu0 %v4471
    %v4473 = vand.u32 %v3683, 4294901760
    %4474 = vmatprep.subr.mxu0 %v4473
    %v4475 = vand.u32 %v3682, 4294901760
    %4476 = vmatpush1.msra.mxu0 %v4475
    %v4477 = vand.u32 %v3686, 4294901760
    %4478 = vmatprep.subr.mxu0 %v4477
    %v4479 = vand.u32 %v3685, 4294901760
    %4480 = vmatpush1.msra.mxu0 %v4479
    %v4481 = vand.u32 %v3689, 4294901760
    %4482 = vmatprep.subr.mxu0 %v4481
    %v4483 = vand.u32 %v3688, 4294901760
    %4484 = vmatpush1.msra.mxu0 %v4483
    %4485 = vmatprep.subr.mxu0 0.0
    %4486 = vmatpush1.msra.mxu0 0.0
    %4487 = vmatprep.subr.mxu0 0.0
    %4488 = vmatpush1.msra.mxu0 0.0
    %4489 = vmatprep.subr.mxu0 0.0
    %4490 = vmatpush1.msra.mxu0 0.0
    %4491 = vmatprep.subr.mxu0 0.0
    %4492 = vmatpush1.msra.mxu0 0.0
    %4493 = vmatprep.subr.mxu0 0.0
    %4494 = vmatpush1.msra.mxu0 0.0
    %4495 = vmatprep.subr.mxu0 0.0
    %4496 = vmatpush1.msra.mxu0 0.0
    %4497 = vmatprep.subr.mxu0 0.0
    %4498 = vmatpush1.msra.mxu0 0.0
    %4499 = vmatprep.subr.mxu0 0.0
    %4500 = vmatpush1.msra.mxu0 0.0
    %4501 = vmatprep.subr.mxu0 0.0
    %4502 = vmatpush1.msra.mxu0 0.0
    %4503 = vmatprep.subr.mxu0 0.0
    %4504 = vmatpush1.msra.mxu0 0.0
    %4505 = vmatprep.subr.mxu0 0.0
    %4506 = vmatpush1.msra.mxu0 0.0
    %4507 = vmatprep.subr.mxu0 0.0
    %4508 = vmatpush1.msra.mxu0 0.0
    %4509 = vmatprep.subr.mxu0 0.0
    %4510 = vmatpush1.msra.mxu0 0.0
    %4511 = vmatprep.subr.mxu0 0.0
    %4512 = vmatpush1.msra.mxu0 0.0
    %4513 = vmatprep.subr.mxu0 0.0
    %4514 = vmatpush1.msra.mxu0 0.0
    %4515 = vmatprep.subr.mxu0 0.0
    %4516 = vmatpush1.msra.mxu0 0.0
    %4517 = vmatprep.subr.mxu0 0.0
    %4518 = vmatpush1.msra.mxu0 0.0
    %4519 = vmatprep.subr.mxu0 0.0
    %4520 = vmatpush1.msra.mxu0 0.0
    %4521 = vmatprep.subr.mxu0 0.0
    %4522 = vmatpush1.msra.mxu0 0.0
    %4523 = vmatprep.subr.mxu0 0.0
    %4524 = vmatpush1.msra.mxu0 0.0
    %4525 = vmatprep.subr.mxu0 0.0
    %4526 = vmatpush1.msra.mxu0 0.0
    %4527 = vmatprep.subr.mxu0 0.0
    %4528 = vmatpush1.msra.mxu0 0.0
    %4529 = vmatprep.subr.mxu0 0.0
    %4530 = vmatpush1.msra.mxu0 0.0
    %4531 = vmatprep.subr.mxu0 0.0
    %4532 = vmatpush1.msra.mxu0 0.0
    %4533 = vmatprep.subr.mxu0 0.0
    %4534 = vmatpush1.msra.mxu0 0.0
    %4535 = vmatprep.subr.mxu0 0.0
    %4536 = vmatpush1.msra.mxu0 0.0
    %4537 = vmatprep.subr.mxu0 0.0
    %4538 = vmatpush1.msra.mxu0 0.0
    %4539 = vmatprep.subr.mxu0 0.0
    %4540 = vmatpush1.msra.mxu0 0.0
    %4541 = vmatprep.mubr.f32.mxu0 0.0
    %v4542 = vand.u32 %v4182, 4294901760
    %v4543 = vsub.f32 %v4182, %v4542
    %v4544 = vand.u32 %v4543, 4294901760
    %4545 = vmatmul.mubr.f32.gmra.mrb[0].mxu0 %v4544
    %v4546 = vpop.f32.mrb[0].mxu0
    %v4547 = vadd.f32 %v4465, %v4546
    %v4548 = vpop.f32.mrb[0].mxu0
    %v4549 = vadd.f32 %v4467, %v4548
    %4550 = vdwg.mxu0
    %v4551 = vand.u32 %v3680, 4294901760
    %v4552 = vsub.f32 %v3680, %v4551
    %v4553 = vand.u32 %v4552, 4294901760
    %4554 = vmatprep.subr.mxu0 %v4553
    %v4555 = vand.u32 %v3679, 4294901760
    %v4556 = vsub.f32 %v3679, %v4555
    %v4557 = vand.u32 %v4556, 4294901760
    %4558 = vmatpush1.msra.mxu0 %v4557
    %v4559 = vand.u32 %v3683, 4294901760
    %v4560 = vsub.f32 %v3683, %v4559
    %v4561 = vand.u32 %v4560, 4294901760
    %4562 = vmatprep.subr.mxu0 %v4561
    %v4563 = vand.u32 %v3682, 4294901760
    %v4564 = vsub.f32 %v3682, %v4563
    %v4565 = vand.u32 %v4564, 4294901760
    %4566 = vmatpush1.msra.mxu0 %v4565
    %v4567 = vand.u32 %v3686, 4294901760
    %v4568 = vsub.f32 %v3686, %v4567
    %v4569 = vand.u32 %v4568, 4294901760
    %4570 = vmatprep.subr.mxu0 %v4569
    %v4571 = vand.u32 %v3685, 4294901760
    %v4572 = vsub.f32 %v3685, %v4571
    %v4573 = vand.u32 %v4572, 4294901760
    %4574 = vmatpush1.msra.mxu0 %v4573
    %v4575 = vand.u32 %v3689, 4294901760
    %v4576 = vsub.f32 %v3689, %v4575
    %v4577 = vand.u32 %v4576, 4294901760
    %4578 = vmatprep.subr.mxu0 %v4577
    %v4579 = vand.u32 %v3688, 4294901760
    %v4580 = vsub.f32 %v3688, %v4579
    %v4581 = vand.u32 %v4580, 4294901760
    %4582 = vmatpush1.msra.mxu0 %v4581
    %4583 = vmatprep.subr.mxu0 0.0
    %4584 = vmatpush1.msra.mxu0 0.0
    %4585 = vmatprep.subr.mxu0 0.0
    %4586 = vmatpush1.msra.mxu0 0.0
    %4587 = vmatprep.subr.mxu0 0.0
    %4588 = vmatpush1.msra.mxu0 0.0
    %4589 = vmatprep.subr.mxu0 0.0
    %4590 = vmatpush1.msra.mxu0 0.0
    %4591 = vmatprep.subr.mxu0 0.0
    %4592 = vmatpush1.msra.mxu0 0.0
    %4593 = vmatprep.subr.mxu0 0.0
    %4594 = vmatpush1.msra.mxu0 0.0
    %4595 = vmatprep.subr.mxu0 0.0
    %4596 = vmatpush1.msra.mxu0 0.0
    %4597 = vmatprep.subr.mxu0 0.0
    %4598 = vmatpush1.msra.mxu0 0.0
    %4599 = vmatprep.subr.mxu0 0.0
    %4600 = vmatpush1.msra.mxu0 0.0
    %4601 = vmatprep.subr.mxu0 0.0
    %4602 = vmatpush1.msra.mxu0 0.0
    %4603 = vmatprep.subr.mxu0 0.0
    %4604 = vmatpush1.msra.mxu0 0.0
    %4605 = vmatprep.subr.mxu0 0.0
    %4606 = vmatpush1.msra.mxu0 0.0
    %4607 = vmatprep.subr.mxu0 0.0
    %4608 = vmatpush1.msra.mxu0 0.0
    %4609 = vmatprep.subr.mxu0 0.0
    %4610 = vmatpush1.msra.mxu0 0.0
    %4611 = vmatprep.subr.mxu0 0.0
    %4612 = vmatpush1.msra.mxu0 0.0
    %4613 = vmatprep.subr.mxu0 0.0
    %4614 = vmatpush1.msra.mxu0 0.0
    %4615 = vmatprep.subr.mxu0 0.0
    %4616 = vmatpush1.msra.mxu0 0.0
    %4617 = vmatprep.subr.mxu0 0.0
    %4618 = vmatpush1.msra.mxu0 0.0
    %4619 = vmatprep.subr.mxu0 0.0
    %4620 = vmatpush1.msra.mxu0 0.0
    %4621 = vmatprep.subr.mxu0 0.0
    %4622 = vmatpush1.msra.mxu0 0.0
    %4623 = vmatprep.subr.mxu0 0.0
    %4624 = vmatpush1.msra.mxu0 0.0
    %4625 = vmatprep.subr.mxu0 0.0
    %4626 = vmatpush1.msra.mxu0 0.0
    %4627 = vmatprep.subr.mxu0 0.0
    %4628 = vmatpush1.msra.mxu0 0.0
    %4629 = vmatprep.subr.mxu0 0.0
    %4630 = vmatpush1.msra.mxu0 0.0
    %4631 = vmatprep.subr.mxu0 0.0
    %4632 = vmatpush1.msra.mxu0 0.0
    %4633 = vmatprep.subr.mxu0 0.0
    %4634 = vmatpush1.msra.mxu0 0.0
    %4635 = vmatprep.subr.mxu0 0.0
    %4636 = vmatpush1.msra.mxu0 0.0
    %4637 = vmatprep.subr.mxu0 0.0
    %4638 = vmatpush1.msra.mxu0 0.0
    %4639 = vmatprep.mubr.f32.mxu0 0.0
    %v4640 = vand.u32 %v4182, 4294901760
    %4641 = vmatmul.mubr.f32.gmra.mrb[0].mxu0 %v4640
    %v4642 = vpop.f32.mrb[0].mxu0
    %v4643 = vadd.f32 %v4547, %v4642
    %v4644 = vpop.f32.mrb[0].mxu0
    %v4645 = vadd.f32 %v4549, %v4644
    %4646 = vdwg.mxu0
    %v4647 = vand.u32 %v3680, 4294901760
    %4648 = vmatprep.subr.mxu0 %v4647
    %v4649 = vand.u32 %v3679, 4294901760
    %4650 = vmatpush1.msra.mxu0 %v4649
    %v4651 = vand.u32 %v3683, 4294901760
    %4652 = vmatprep.subr.mxu0 %v4651
    %v4653 = vand.u32 %v3682, 4294901760
    %4654 = vmatpush1.msra.mxu0 %v4653
    %v4655 = vand.u32 %v3686, 4294901760
    %4656 = vmatprep.subr.mxu0 %v4655
    %v4657 = vand.u32 %v3685, 4294901760
    %4658 = vmatpush1.msra.mxu0 %v4657
    %v4659 = vand.u32 %v3689, 4294901760
    %4660 = vmatprep.subr.mxu0 %v4659
    %v4661 = vand.u32 %v3688, 4294901760
    %4662 = vmatpush1.msra.mxu0 %v4661
    %4663 = vmatprep.subr.mxu0 0.0
    %4664 = vmatpush1.msra.mxu0 0.0
    %4665 = vmatprep.subr.mxu0 0.0
    %4666 = vmatpush1.msra.mxu0 0.0
    %4667 = vmatprep.subr.mxu0 0.0
    %4668 = vmatpush1.msra.mxu0 0.0
    %4669 = vmatprep.subr.mxu0 0.0
    %4670 = vmatpush1.msra.mxu0 0.0
    %4671 = vmatprep.subr.mxu0 0.0
    %4672 = vmatpush1.msra.mxu0 0.0
    %4673 = vmatprep.subr.mxu0 0.0
    %4674 = vmatpush1.msra.mxu0 0.0
    %4675 = vmatprep.subr.mxu0 0.0
    %4676 = vmatpush1.msra.mxu0 0.0
    %4677 = vmatprep.subr.mxu0 0.0
    %4678 = vmatpush1.msra.mxu0 0.0
    %4679 = vmatprep.subr.mxu0 0.0
    %4680 = vmatpush1.msra.mxu0 0.0
    %4681 = vmatprep.subr.mxu0 0.0
    %4682 = vmatpush1.msra.mxu0 0.0
    %4683 = vmatprep.subr.mxu0 0.0
    %4684 = vmatpush1.msra.mxu0 0.0
    %4685 = vmatprep.subr.mxu0 0.0
    %4686 = vmatpush1.msra.mxu0 0.0
    %4687 = vmatprep.subr.mxu0 0.0
    %4688 = vmatpush1.msra.mxu0 0.0
    %4689 = vmatprep.subr.mxu0 0.0
    %4690 = vmatpush1.msra.mxu0 0.0
    %4691 = vmatprep.subr.mxu0 0.0
    %4692 = vmatpush1.msra.mxu0 0.0
    %4693 = vmatprep.subr.mxu0 0.0
    %4694 = vmatpush1.msra.mxu0 0.0
    %4695 = vmatprep.subr.mxu0 0.0
    %4696 = vmatpush1.msra.mxu0 0.0
    %4697 = vmatprep.subr.mxu0 0.0
    %4698 = vmatpush1.msra.mxu0 0.0
    %4699 = vmatprep.subr.mxu0 0.0
    %4700 = vmatpush1.msra.mxu0 0.0
    %4701 = vmatprep.subr.mxu0 0.0
    %4702 = vmatpush1.msra.mxu0 0.0
    %4703 = vmatprep.subr.mxu0 0.0
    %4704 = vmatpush1.msra.mxu0 0.0
    %4705 = vmatprep.subr.mxu0 0.0
    %4706 = vmatpush1.msra.mxu0 0.0
    %4707 = vmatprep.subr.mxu0 0.0
    %4708 = vmatpush1.msra.mxu0 0.0
    %4709 = vmatprep.subr.mxu0 0.0
    %4710 = vmatpush1.msra.mxu0 0.0
    %4711 = vmatprep.subr.mxu0 0.0
    %4712 = vmatpush1.msra.mxu0 0.0
    %4713 = vmatprep.subr.mxu0 0.0
    %4714 = vmatpush1.msra.mxu0 0.0
    %4715 = vmatprep.subr.mxu0 0.0
    %4716 = vmatpush1.msra.mxu0 0.0
    %4717 = vmatprep.subr.mxu0 0.0
    %4718 = vmatpush1.msra.mxu0 0.0
    %4719 = vmatprep.mubr.f32.mxu0 0.0
    %v4720 = vand.u32 %v4182, 4294901760
    %4721 = vmatmul.mubr.f32.gmra.mrb[0].mxu0 %v4720
    %v4722 = vpop.f32.mrb[0].mxu0
    %v4723 = vadd.f32 %v4643, %v4722
    %v4724 = vpop.f32.mrb[0].mxu0
    %v4725 = vadd.f32 %v4645, %v4724
    %4726 = vdwg.mxu0
    %4727 = vmatprep.subr.mxu0 0.0
    %v4728 = vand.u32 %v3681, 4294901760
    %4729 = vmatpush1.msra.mxu0 %v4728
    %4730 = vmatprep.subr.mxu0 0.0
    %v4731 = vand.u32 %v3684, 4294901760
    %4732 = vmatpush1.msra.mxu0 %v4731
    %4733 = vmatprep.subr.mxu0 0.0
    %v4734 = vand.u32 %v3687, 4294901760
    %4735 = vmatpush1.msra.mxu0 %v4734
    %4736 = vmatprep.subr.mxu0 0.0
    %v4737 = vand.u32 %v3690, 4294901760
    %4738 = vmatpush1.msra.mxu0 %v4737
    %4739 = vmatprep.subr.mxu0 0.0
    %4740 = vmatpush1.msra.mxu0 0.0
    %4741 = vmatprep.subr.mxu0 0.0
    %4742 = vmatpush1.msra.mxu0 0.0
    %4743 = vmatprep.subr.mxu0 0.0
    %4744 = vmatpush1.msra.mxu0 0.0
    %4745 = vmatprep.subr.mxu0 0.0
    %4746 = vmatpush1.msra.mxu0 0.0
    %4747 = vmatprep.subr.mxu0 0.0
    %4748 = vmatpush1.msra.mxu0 0.0
    %4749 = vmatprep.subr.mxu0 0.0
    %4750 = vmatpush1.msra.mxu0 0.0
    %4751 = vmatprep.subr.mxu0 0.0
    %4752 = vmatpush1.msra.mxu0 0.0
    %4753 = vmatprep.subr.mxu0 0.0
    %4754 = vmatpush1.msra.mxu0 0.0
    %4755 = vmatprep.subr.mxu0 0.0
    %4756 = vmatpush1.msra.mxu0 0.0
    %4757 = vmatprep.subr.mxu0 0.0
    %4758 = vmatpush1.msra.mxu0 0.0
    %4759 = vmatprep.subr.mxu0 0.0
    %4760 = vmatpush1.msra.mxu0 0.0
    %4761 = vmatprep.subr.mxu0 0.0
    %4762 = vmatpush1.msra.mxu0 0.0
    %4763 = vmatprep.subr.mxu0 0.0
    %4764 = vmatpush1.msra.mxu0 0.0
    %4765 = vmatprep.subr.mxu0 0.0
    %4766 = vmatpush1.msra.mxu0 0.0
    %4767 = vmatprep.subr.mxu0 0.0
    %4768 = vmatpush1.msra.mxu0 0.0
    %4769 = vmatprep.subr.mxu0 0.0
    %4770 = vmatpush1.msra.mxu0 0.0
    %4771 = vmatprep.subr.mxu0 0.0
    %4772 = vmatpush1.msra.mxu0 0.0
    %4773 = vmatprep.subr.mxu0 0.0
    %4774 = vmatpush1.msra.mxu0 0.0
    %4775 = vmatprep.subr.mxu0 0.0
    %4776 = vmatpush1.msra.mxu0 0.0
    %4777 = vmatprep.subr.mxu0 0.0
    %4778 = vmatpush1.msra.mxu0 0.0
    %4779 = vmatprep.subr.mxu0 0.0
    %4780 = vmatpush1.msra.mxu0 0.0
    %4781 = vmatprep.subr.mxu0 0.0
    %4782 = vmatpush1.msra.mxu0 0.0
    %4783 = vmatprep.subr.mxu0 0.0
    %4784 = vmatpush1.msra.mxu0 0.0
    %4785 = vmatprep.subr.mxu0 0.0
    %4786 = vmatpush1.msra.mxu0 0.0
    %4787 = vmatprep.subr.mxu0 0.0
    %4788 = vmatpush1.msra.mxu0 0.0
    %4789 = vmatprep.subr.mxu0 0.0
    %4790 = vmatpush1.msra.mxu0 0.0
    %4791 = vmatprep.subr.mxu0 0.0
    %4792 = vmatpush1.msra.mxu0 0.0
    %4793 = vmatprep.subr.mxu0 0.0
    %4794 = vmatpush1.msra.mxu0 0.0
    %4795 = vmatprep.mubr.f32.mxu0 0.0
    %v4796 = vand.u32 %v4182, 4294901760
    %v4797 = vsub.f32 %v4182, %v4796
    %v4798 = vand.u32 %v4797, 4294901760
    %v4799 = vsub.f32 %v4797, %v4798
    %v4800 = vand.u32 %v4799, 4294901760
    %4801 = vmatmul.mubr.f32.gmra.mrb[0].mxu0 %v4800
    %v4802 = vpop.f32.mrb[0].mxu0
    %v4803 = vadd.f32 %v4177, %v4802
    %v4804 = vpop.f32.mrb[0].mxu0
    %4805 = vdwg.mxu0
    %4806 = vmatprep.subr.mxu0 0.0
    %v4807 = vand.u32 %v3681, 4294901760
    %v4808 = vsub.f32 %v3681, %v4807
    %v4809 = vand.u32 %v4808, 4294901760
    %v4810 = vsub.f32 %v4808, %v4809
    %v4811 = vand.u32 %v4810, 4294901760
    %4812 = vmatpush1.msra.mxu0 %v4811
    %4813 = vmatprep.subr.mxu0 0.0
    %v4814 = vand.u32 %v3684, 4294901760
    %v4815 = vsub.f32 %v3684, %v4814
    %v4816 = vand.u32 %v4815, 4294901760
    %v4817 = vsub.f32 %v4815, %v4816
    %v4818 = vand.u32 %v4817, 4294901760
    %4819 = vmatpush1.msra.mxu0 %v4818
    %4820 = vmatprep.subr.mxu0 0.0
    %v4821 = vand.u32 %v3687, 4294901760
    %v4822 = vsub.f32 %v3687, %v4821
    %v4823 = vand.u32 %v4822, 4294901760
    %v4824 = vsub.f32 %v4822, %v4823
    %v4825 = vand.u32 %v4824, 4294901760
    %4826 = vmatpush1.msra.mxu0 %v4825
    %4827 = vmatprep.subr.mxu0 0.0
    %v4828 = vand.u32 %v3690, 4294901760
    %v4829 = vsub.f32 %v3690, %v4828
    %v4830 = vand.u32 %v4829, 4294901760
    %v4831 = vsub.f32 %v4829, %v4830
    %v4832 = vand.u32 %v4831, 4294901760
    %4833 = vmatpush1.msra.mxu0 %v4832
    %4834 = vmatprep.subr.mxu0 0.0
    %4835 = vmatpush1.msra.mxu0 0.0
    %4836 = vmatprep.subr.mxu0 0.0
    %4837 = vmatpush1.msra.mxu0 0.0
    %4838 = vmatprep.subr.mxu0 0.0
    %4839 = vmatpush1.msra.mxu0 0.0
    %4840 = vmatprep.subr.mxu0 0.0
    %4841 = vmatpush1.msra.mxu0 0.0
    %4842 = vmatprep.subr.mxu0 0.0
    %4843 = vmatpush1.msra.mxu0 0.0
    %4844 = vmatprep.subr.mxu0 0.0
    %4845 = vmatpush1.msra.mxu0 0.0
    %4846 = vmatprep.subr.mxu0 0.0
    %4847 = vmatpush1.msra.mxu0 0.0
    %4848 = vmatprep.subr.mxu0 0.0
    %4849 = vmatpush1.msra.mxu0 0.0
    %4850 = vmatprep.subr.mxu0 0.0
    %4851 = vmatpush1.msra.mxu0 0.0
    %4852 = vmatprep.subr.mxu0 0.0
    %4853 = vmatpush1.msra.mxu0 0.0
    %4854 = vmatprep.subr.mxu0 0.0
    %4855 = vmatpush1.msra.mxu0 0.0
    %4856 = vmatprep.subr.mxu0 0.0
    %4857 = vmatpush1.msra.mxu0 0.0
    %4858 = vmatprep.subr.mxu0 0.0
    %4859 = vmatpush1.msra.mxu0 0.0
    %4860 = vmatprep.subr.mxu0 0.0
    %4861 = vmatpush1.msra.mxu0 0.0
    %4862 = vmatprep.subr.mxu0 0.0
    %4863 = vmatpush1.msra.mxu0 0.0
    %4864 = vmatprep.subr.mxu0 0.0
    %4865 = vmatpush1.msra.mxu0 0.0
    %4866 = vmatprep.subr.mxu0 0.0
    %4867 = vmatpush1.msra.mxu0 0.0
    %4868 = vmatprep.subr.mxu0 0.0
    %4869 = vmatpush1.msra.mxu0 0.0
    %4870 = vmatprep.subr.mxu0 0.0
    %4871 = vmatpush1.msra.mxu0 0.0
    %4872 = vmatprep.subr.mxu0 0.0
    %4873 = vmatpush1.msra.mxu0 0.0
    %4874 = vmatprep.subr.mxu0 0.0
    %4875 = vmatpush1.msra.mxu0 0.0
    %4876 = vmatprep.subr.mxu0 0.0
    %4877 = vmatpush1.msra.mxu0 0.0
    %4878 = vmatprep.subr.mxu0 0.0
    %4879 = vmatpush1.msra.mxu0 0.0
    %4880 = vmatprep.subr.mxu0 0.0
    %4881 = vmatpush1.msra.mxu0 0.0
    %4882 = vmatprep.subr.mxu0 0.0
    %4883 = vmatpush1.msra.mxu0 0.0
    %4884 = vmatprep.subr.mxu0 0.0
    %4885 = vmatpush1.msra.mxu0 0.0
    %4886 = vmatprep.subr.mxu0 0.0
    %4887 = vmatpush1.msra.mxu0 0.0
    %4888 = vmatprep.subr.mxu0 0.0
    %4889 = vmatpush1.msra.mxu0 0.0
    %4890 = vmatprep.mubr.f32.mxu0 0.0
    %v4891 = vand.u32 %v4182, 4294901760
    %4892 = vmatmul.mubr.f32.gmra.mrb[0].mxu0 %v4891
    %v4893 = vpop.f32.mrb[0].mxu0
    %v4894 = vadd.f32 %v4803, %v4893
    %v4895 = vpop.f32.mrb[0].mxu0
    %4896 = vdwg.mxu0
    %4897 = vmatprep.subr.mxu0 0.0
    %v4898 = vand.u32 %v3681, 4294901760
    %v4899 = vsub.f32 %v3681, %v4898
    %4900 = vmatpush1.msra.mxu0 %v4899
    %4901 = vmatprep.subr.mxu0 0.0
    %v4902 = vand.u32 %v3684, 4294901760
    %v4903 = vsub.f32 %v3684, %v4902
    %4904 = vmatpush1.msra.mxu0 %v4903
    %4905 = vmatprep.subr.mxu0 0.0
    %v4906 = vand.u32 %v3687, 4294901760
    %v4907 = vsub.f32 %v3687, %v4906
    %4908 = vmatpush1.msra.mxu0 %v4907
    %4909 = vmatprep.subr.mxu0 0.0
    %v4910 = vand.u32 %v3690, 4294901760
    %v4911 = vsub.f32 %v3690, %v4910
    %4912 = vmatpush1.msra.mxu0 %v4911
    %4913 = vmatprep.subr.mxu0 0.0
    %4914 = vmatpush1.msra.mxu0 0.0
    %4915 = vmatprep.subr.mxu0 0.0
    %4916 = vmatpush1.msra.mxu0 0.0
    %4917 = vmatprep.subr.mxu0 0.0
    %4918 = vmatpush1.msra.mxu0 0.0
    %4919 = vmatprep.subr.mxu0 0.0
    %4920 = vmatpush1.msra.mxu0 0.0
    %4921 = vmatprep.subr.mxu0 0.0
    %4922 = vmatpush1.msra.mxu0 0.0
    %4923 = vmatprep.subr.mxu0 0.0
    %4924 = vmatpush1.msra.mxu0 0.0
    %4925 = vmatprep.subr.mxu0 0.0
    %4926 = vmatpush1.msra.mxu0 0.0
    %4927 = vmatprep.subr.mxu0 0.0
    %4928 = vmatpush1.msra.mxu0 0.0
    %4929 = vmatprep.subr.mxu0 0.0
    %4930 = vmatpush1.msra.mxu0 0.0
    %4931 = vmatprep.subr.mxu0 0.0
    %4932 = vmatpush1.msra.mxu0 0.0
    %4933 = vmatprep.subr.mxu0 0.0
    %4934 = vmatpush1.msra.mxu0 0.0
    %4935 = vmatprep.subr.mxu0 0.0
    %4936 = vmatpush1.msra.mxu0 0.0
    %4937 = vmatprep.subr.mxu0 0.0
    %4938 = vmatpush1.msra.mxu0 0.0
    %4939 = vmatprep.subr.mxu0 0.0
    %4940 = vmatpush1.msra.mxu0 0.0
    %4941 = vmatprep.subr.mxu0 0.0
    %4942 = vmatpush1.msra.mxu0 0.0
    %4943 = vmatprep.subr.mxu0 0.0
    %4944 = vmatpush1.msra.mxu0 0.0
    %4945 = vmatprep.subr.mxu0 0.0
    %4946 = vmatpush1.msra.mxu0 0.0
    %4947 = vmatprep.subr.mxu0 0.0
    %4948 = vmatpush1.msra.mxu0 0.0
    %4949 = vmatprep.subr.mxu0 0.0
    %4950 = vmatpush1.msra.mxu0 0.0
    %4951 = vmatprep.subr.mxu0 0.0
    %4952 = vmatpush1.msra.mxu0 0.0
    %4953 = vmatprep.subr.mxu0 0.0
    %4954 = vmatpush1.msra.mxu0 0.0
    %4955 = vmatprep.subr.mxu0 0.0
    %4956 = vmatpush1.msra.mxu0 0.0
    %4957 = vmatprep.subr.mxu0 0.0
    %4958 = vmatpush1.msra.mxu0 0.0
    %4959 = vmatprep.subr.mxu0 0.0
    %4960 = vmatpush1.msra.mxu0 0.0
    %4961 = vmatprep.subr.mxu0 0.0
    %4962 = vmatpush1.msra.mxu0 0.0
    %4963 = vmatprep.subr.mxu0 0.0
    %4964 = vmatpush1.msra.mxu0 0.0
    %4965 = vmatprep.subr.mxu0 0.0
    %4966 = vmatpush1.msra.mxu0 0.0
    %4967 = vmatprep.subr.mxu0 0.0
    %4968 = vmatpush1.msra.mxu0 0.0
    %4969 = vmatprep.mubr.f32.mxu0 0.0
    %v4970 = vand.u32 %v4182, 4294901760
    %v4971 = vsub.f32 %v4182, %v4970
    %4972 = vmatmul.mubr.f32.gmra.mrb[0].mxu0 %v4971
    %v4973 = vpop.f32.mrb[0].mxu0
    %v4974 = vadd.f32 %v4894, %v4973
    %v4975 = vpop.f32.mrb[0].mxu0
    %4976 = vdwg.mxu0
    %4977 = vmatprep.subr.mxu0 0.0
    %v4978 = vand.u32 %v3681, 4294901760
    %4979 = vmatpush1.msra.mxu0 %v4978
    %4980 = vmatprep.subr.mxu0 0.0
    %v4981 = vand.u32 %v3684, 4294901760
    %4982 = vmatpush1.msra.mxu0 %v4981
    %4983 = vmatprep.subr.mxu0 0.0
    %v4984 = vand.u32 %v3687, 4294901760
    %4985 = vmatpush1.msra.mxu0 %v4984
    %4986 = vmatprep.subr.mxu0 0.0
    %v4987 = vand.u32 %v3690, 4294901760
    %4988 = vmatpush1.msra.mxu0 %v4987
    %4989 = vmatprep.subr.mxu0 0.0
    %4990 = vmatpush1.msra.mxu0 0.0
    %4991 = vmatprep.subr.mxu0 0.0
    %4992 = vmatpush1.msra.mxu0 0.0
    %4993 = vmatprep.subr.mxu0 0.0
    %4994 = vmatpush1.msra.mxu0 0.0
    %4995 = vmatprep.subr.mxu0 0.0
    %4996 = vmatpush1.msra.mxu0 0.0
    %4997 = vmatprep.subr.mxu0 0.0
    %4998 = vmatpush1.msra.mxu0 0.0
    %4999 = vmatprep.subr.mxu0 0.0
    %5000 = vmatpush1.msra.mxu0 0.0
    %5001 = vmatprep.subr.mxu0 0.0
    %5002 = vmatpush1.msra.mxu0 0.0
    %5003 = vmatprep.subr.mxu0 0.0
    %5004 = vmatpush1.msra.mxu0 0.0
    %5005 = vmatprep.subr.mxu0 0.0
    %5006 = vmatpush1.msra.mxu0 0.0
    %5007 = vmatprep.subr.mxu0 0.0
    %5008 = vmatpush1.msra.mxu0 0.0
    %5009 = vmatprep.subr.mxu0 0.0
    %5010 = vmatpush1.msra.mxu0 0.0
    %5011 = vmatprep.subr.mxu0 0.0
    %5012 = vmatpush1.msra.mxu0 0.0
    %5013 = vmatprep.subr.mxu0 0.0
    %5014 = vmatpush1.msra.mxu0 0.0
    %5015 = vmatprep.subr.mxu0 0.0
    %5016 = vmatpush1.msra.mxu0 0.0
    %5017 = vmatprep.subr.mxu0 0.0
    %5018 = vmatpush1.msra.mxu0 0.0
    %5019 = vmatprep.subr.mxu0 0.0
    %5020 = vmatpush1.msra.mxu0 0.0
    %5021 = vmatprep.subr.mxu0 0.0
    %5022 = vmatpush1.msra.mxu0 0.0
    %5023 = vmatprep.subr.mxu0 0.0
    %5024 = vmatpush1.msra.mxu0 0.0
    %5025 = vmatprep.subr.mxu0 0.0
    %5026 = vmatpush1.msra.mxu0 0.0
    %5027 = vmatprep.subr.mxu0 0.0
    %5028 = vmatpush1.msra.mxu0 0.0
    %5029 = vmatprep.subr.mxu0 0.0
    %5030 = vmatpush1.msra.mxu0 0.0
    %5031 = vmatprep.subr.mxu0 0.0
    %5032 = vmatpush1.msra.mxu0 0.0
    %5033 = vmatprep.subr.mxu0 0.0
    %5034 = vmatpush1.msra.mxu0 0.0
    %5035 = vmatprep.subr.mxu0 0.0
    %5036 = vmatpush1.msra.mxu0 0.0
    %5037 = vmatprep.subr.mxu0 0.0
    %5038 = vmatpush1.msra.mxu0 0.0
    %5039 = vmatprep.subr.mxu0 0.0
    %5040 = vmatpush1.msra.mxu0 0.0
    %5041 = vmatprep.subr.mxu0 0.0
    %5042 = vmatpush1.msra.mxu0 0.0
    %5043 = vmatprep.subr.mxu0 0.0
    %5044 = vmatpush1.msra.mxu0 0.0
    %5045 = vmatprep.mubr.f32.mxu0 0.0
    %v5046 = vand.u32 %v4182, 4294901760
    %v5047 = vsub.f32 %v4182, %v5046
    %v5048 = vand.u32 %v5047, 4294901760
    %5049 = vmatmul.mubr.f32.gmra.mrb[0].mxu0 %v5048
    %v5050 = vpop.f32.mrb[0].mxu0
    %v5051 = vadd.f32 %v4974, %v5050
    %v5052 = vpop.f32.mrb[0].mxu0
    %5053 = vdwg.mxu0
    %5054 = vmatprep.subr.mxu0 0.0
    %v5055 = vand.u32 %v3681, 4294901760
    %v5056 = vsub.f32 %v3681, %v5055
    %v5057 = vand.u32 %v5056, 4294901760
    %5058 = vmatpush1.msra.mxu0 %v5057
    %5059 = vmatprep.subr.mxu0 0.0
    %v5060 = vand.u32 %v3684, 4294901760
    %v5061 = vsub.f32 %v3684, %v5060
    %v5062 = vand.u32 %v5061, 4294901760
    %5063 = vmatpush1.msra.mxu0 %v5062
    %5064 = vmatprep.subr.mxu0 0.0
    %v5065 = vand.u32 %v3687, 4294901760
    %v5066 = vsub.f32 %v3687, %v5065
    %v5067 = vand.u32 %v5066, 4294901760
    %5068 = vmatpush1.msra.mxu0 %v5067
    %5069 = vmatprep.subr.mxu0 0.0
    %v5070 = vand.u32 %v3690, 4294901760
    %v5071 = vsub.f32 %v3690, %v5070
    %v5072 = vand.u32 %v5071, 4294901760
    %5073 = vmatpush1.msra.mxu0 %v5072
    %5074 = vmatprep.subr.mxu0 0.0
    %5075 = vmatpush1.msra.mxu0 0.0
    %5076 = vmatprep.subr.mxu0 0.0
    %5077 = vmatpush1.msra.mxu0 0.0
    %5078 = vmatprep.subr.mxu0 0.0
    %5079 = vmatpush1.msra.mxu0 0.0
    %5080 = vmatprep.subr.mxu0 0.0
    %5081 = vmatpush1.msra.mxu0 0.0
    %5082 = vmatprep.subr.mxu0 0.0
    %5083 = vmatpush1.msra.mxu0 0.0
    %5084 = vmatprep.subr.mxu0 0.0
    %5085 = vmatpush1.msra.mxu0 0.0
    %5086 = vmatprep.subr.mxu0 0.0
    %5087 = vmatpush1.msra.mxu0 0.0
    %5088 = vmatprep.subr.mxu0 0.0
    %5089 = vmatpush1.msra.mxu0 0.0
    %5090 = vmatprep.subr.mxu0 0.0
    %5091 = vmatpush1.msra.mxu0 0.0
    %5092 = vmatprep.subr.mxu0 0.0
    %5093 = vmatpush1.msra.mxu0 0.0
    %5094 = vmatprep.subr.mxu0 0.0
    %5095 = vmatpush1.msra.mxu0 0.0
    %5096 = vmatprep.subr.mxu0 0.0
    %5097 = vmatpush1.msra.mxu0 0.0
    %5098 = vmatprep.subr.mxu0 0.0
    %5099 = vmatpush1.msra.mxu0 0.0
    %5100 = vmatprep.subr.mxu0 0.0
    %5101 = vmatpush1.msra.mxu0 0.0
    %5102 = vmatprep.subr.mxu0 0.0
    %5103 = vmatpush1.msra.mxu0 0.0
    %5104 = vmatprep.subr.mxu0 0.0
    %5105 = vmatpush1.msra.mxu0 0.0
    %5106 = vmatprep.subr.mxu0 0.0
    %5107 = vmatpush1.msra.mxu0 0.0
    %5108 = vmatprep.subr.mxu0 0.0
    %5109 = vmatpush1.msra.mxu0 0.0
    %5110 = vmatprep.subr.mxu0 0.0
    %5111 = vmatpush1.msra.mxu0 0.0
    %5112 = vmatprep.subr.mxu0 0.0
    %5113 = vmatpush1.msra.mxu0 0.0
    %5114 = vmatprep.subr.mxu0 0.0
    %5115 = vmatpush1.msra.mxu0 0.0
    %5116 = vmatprep.subr.mxu0 0.0
    %5117 = vmatpush1.msra.mxu0 0.0
    %5118 = vmatprep.subr.mxu0 0.0
    %5119 = vmatpush1.msra.mxu0 0.0
    %5120 = vmatprep.subr.mxu0 0.0
    %5121 = vmatpush1.msra.mxu0 0.0
    %5122 = vmatprep.subr.mxu0 0.0
    %5123 = vmatpush1.msra.mxu0 0.0
    %5124 = vmatprep.subr.mxu0 0.0
    %5125 = vmatpush1.msra.mxu0 0.0
    %5126 = vmatprep.subr.mxu0 0.0
    %5127 = vmatpush1.msra.mxu0 0.0
    %5128 = vmatprep.subr.mxu0 0.0
    %5129 = vmatpush1.msra.mxu0 0.0
    %5130 = vmatprep.mubr.f32.mxu0 0.0
    %v5131 = vand.u32 %v4182, 4294901760
    %5132 = vmatmul.mubr.f32.gmra.mrb[0].mxu0 %v5131
    %v5133 = vpop.f32.mrb[0].mxu0
    %v5134 = vadd.f32 %v5051, %v5133
    %v5135 = vpop.f32.mrb[0].mxu0
    %5136 = vdwg.mxu0
    %5137 = vmatprep.subr.mxu0 0.0
    %v5138 = vand.u32 %v3681, 4294901760
    %5139 = vmatpush1.msra.mxu0 %v5138
    %5140 = vmatprep.subr.mxu0 0.0
    %v5141 = vand.u32 %v3684, 4294901760
    %5142 = vmatpush1.msra.mxu0 %v5141
    %5143 = vmatprep.subr.mxu0 0.0
    %v5144 = vand.u32 %v3687, 4294901760
    %5145 = vmatpush1.msra.mxu0 %v5144
    %5146 = vmatprep.subr.mxu0 0.0
    %v5147 = vand.u32 %v3690, 4294901760
    %5148 = vmatpush1.msra.mxu0 %v5147
    %5149 = vmatprep.subr.mxu0 0.0
    %5150 = vmatpush1.msra.mxu0 0.0
    %5151 = vmatprep.subr.mxu0 0.0
    %5152 = vmatpush1.msra.mxu0 0.0
    %5153 = vmatprep.subr.mxu0 0.0
    %5154 = vmatpush1.msra.mxu0 0.0
    %5155 = vmatprep.subr.mxu0 0.0
    %5156 = vmatpush1.msra.mxu0 0.0
    %5157 = vmatprep.subr.mxu0 0.0
    %5158 = vmatpush1.msra.mxu0 0.0
    %5159 = vmatprep.subr.mxu0 0.0
    %5160 = vmatpush1.msra.mxu0 0.0
    %5161 = vmatprep.subr.mxu0 0.0
    %5162 = vmatpush1.msra.mxu0 0.0
    %5163 = vmatprep.subr.mxu0 0.0
    %5164 = vmatpush1.msra.mxu0 0.0
    %5165 = vmatprep.subr.mxu0 0.0
    %5166 = vmatpush1.msra.mxu0 0.0
    %5167 = vmatprep.subr.mxu0 0.0
    %5168 = vmatpush1.msra.mxu0 0.0
    %5169 = vmatprep.subr.mxu0 0.0
    %5170 = vmatpush1.msra.mxu0 0.0
    %5171 = vmatprep.subr.mxu0 0.0
    %5172 = vmatpush1.msra.mxu0 0.0
    %5173 = vmatprep.subr.mxu0 0.0
    %5174 = vmatpush1.msra.mxu0 0.0
    %5175 = vmatprep.subr.mxu0 0.0
    %5176 = vmatpush1.msra.mxu0 0.0
    %5177 = vmatprep.subr.mxu0 0.0
    %5178 = vmatpush1.msra.mxu0 0.0
    %5179 = vmatprep.subr.mxu0 0.0
    %5180 = vmatpush1.msra.mxu0 0.0
    %5181 = vmatprep.subr.mxu0 0.0
    %5182 = vmatpush1.msra.mxu0 0.0
    %5183 = vmatprep.subr.mxu0 0.0
    %5184 = vmatpush1.msra.mxu0 0.0
    %5185 = vmatprep.subr.mxu0 0.0
    %5186 = vmatpush1.msra.mxu0 0.0
    %5187 = vmatprep.subr.mxu0 0.0
    %5188 = vmatpush1.msra.mxu0 0.0
    %5189 = vmatprep.subr.mxu0 0.0
    %5190 = vmatpush1.msra.mxu0 0.0
    %5191 = vmatprep.subr.mxu0 0.0
    %5192 = vmatpush1.msra.mxu0 0.0
    %5193 = vmatprep.subr.mxu0 0.0
    %5194 = vmatpush1.msra.mxu0 0.0
    %5195 = vmatprep.subr.mxu0 0.0
    %5196 = vmatpush1.msra.mxu0 0.0
    %5197 = vmatprep.subr.mxu0 0.0
    %5198 = vmatpush1.msra.mxu0 0.0
    %5199 = vmatprep.subr.mxu0 0.0
    %5200 = vmatpush1.msra.mxu0 0.0
    %5201 = vmatprep.subr.mxu0 0.0
    %5202 = vmatpush1.msra.mxu0 0.0
    %5203 = vmatprep.subr.mxu0 0.0
    %5204 = vmatpush1.msra.mxu0 0.0
    %5205 = vmatprep.mubr.f32.mxu0 0.0
    %v5206 = vand.u32 %v4182, 4294901760
    %5207 = vmatmul.mubr.f32.gmra.mrb[0].mxu0 %v5206
    %v5208 = vpop.f32.mrb[0].mxu0
    %v5209 = vadd.f32 %v5134, %v5208
    %v5210 = vpop.f32.mrb[0].mxu0
    %5211 = vdwg.mxu0
    %v5212 = vand.u32 %v73, 4294901760
    %5213 = vmatprep.subr.mxu0 %v5212
    %v5214 = vand.u32 %v72, 4294901760
    %5215 = vmatpush1.msra.mxu0 %v5214
    %v5216 = vand.u32 %v76, 4294901760
    %5217 = vmatprep.subr.mxu0 %v5216
    %v5218 = vand.u32 %v75, 4294901760
    %5219 = vmatpush1.msra.mxu0 %v5218
    %v5220 = vand.u32 %v79, 4294901760
    %5221 = vmatprep.subr.mxu0 %v5220
    %v5222 = vand.u32 %v78, 4294901760
    %5223 = vmatpush1.msra.mxu0 %v5222
    %v5224 = vand.u32 %v82, 4294901760
    %5225 = vmatprep.subr.mxu0 %v5224
    %v5226 = vand.u32 %v81, 4294901760
    %5227 = vmatpush1.msra.mxu0 %v5226
    %5228 = vmatprep.subr.mxu0 0.0
    %5229 = vmatpush1.msra.mxu0 0.0
    %5230 = vmatprep.subr.mxu0 0.0
    %5231 = vmatpush1.msra.mxu0 0.0
    %5232 = vmatprep.subr.mxu0 0.0
    %5233 = vmatpush1.msra.mxu0 0.0
    %5234 = vmatprep.subr.mxu0 0.0
    %5235 = vmatpush1.msra.mxu0 0.0
    %5236 = vmatprep.subr.mxu0 0.0
    %5237 = vmatpush1.msra.mxu0 0.0
    %5238 = vmatprep.subr.mxu0 0.0
    %5239 = vmatpush1.msra.mxu0 0.0
    %5240 = vmatprep.subr.mxu0 0.0
    %5241 = vmatpush1.msra.mxu0 0.0
    %5242 = vmatprep.subr.mxu0 0.0
    %5243 = vmatpush1.msra.mxu0 0.0
    %5244 = vmatprep.subr.mxu0 0.0
    %5245 = vmatpush1.msra.mxu0 0.0
    %5246 = vmatprep.subr.mxu0 0.0
    %5247 = vmatpush1.msra.mxu0 0.0
    %5248 = vmatprep.subr.mxu0 0.0
    %5249 = vmatpush1.msra.mxu0 0.0
    %5250 = vmatprep.subr.mxu0 0.0
    %5251 = vmatpush1.msra.mxu0 0.0
    %5252 = vmatprep.subr.mxu0 0.0
    %5253 = vmatpush1.msra.mxu0 0.0
    %5254 = vmatprep.subr.mxu0 0.0
    %5255 = vmatpush1.msra.mxu0 0.0
    %5256 = vmatprep.subr.mxu0 0.0
    %5257 = vmatpush1.msra.mxu0 0.0
    %5258 = vmatprep.subr.mxu0 0.0
    %5259 = vmatpush1.msra.mxu0 0.0
    %5260 = vmatprep.subr.mxu0 0.0
    %5261 = vmatpush1.msra.mxu0 0.0
    %5262 = vmatprep.subr.mxu0 0.0
    %5263 = vmatpush1.msra.mxu0 0.0
    %5264 = vmatprep.subr.mxu0 0.0
    %5265 = vmatpush1.msra.mxu0 0.0
    %5266 = vmatprep.subr.mxu0 0.0
    %5267 = vmatpush1.msra.mxu0 0.0
    %5268 = vmatprep.subr.mxu0 0.0
    %5269 = vmatpush1.msra.mxu0 0.0
    %5270 = vmatprep.subr.mxu0 0.0
    %5271 = vmatpush1.msra.mxu0 0.0
    %5272 = vmatprep.subr.mxu0 0.0
    %5273 = vmatpush1.msra.mxu0 0.0
    %5274 = vmatprep.subr.mxu0 0.0
    %5275 = vmatpush1.msra.mxu0 0.0
    %5276 = vmatprep.subr.mxu0 0.0
    %5277 = vmatpush1.msra.mxu0 0.0
    %5278 = vmatprep.subr.mxu0 0.0
    %5279 = vmatpush1.msra.mxu0 0.0
    %5280 = vmatprep.subr.mxu0 0.0
    %5281 = vmatpush1.msra.mxu0 0.0
    %5282 = vmatprep.subr.mxu0 0.0
    %5283 = vmatpush1.msra.mxu0 0.0
    %5284 = vmatprep.mubr.f32.mxu0 0.0
    %v5285 = vand.u32 %v2692, 4294901760
    %v5286 = vsub.f32 %v2692, %v5285
    %v5287 = vand.u32 %v5286, 4294901760
    %v5288 = vsub.f32 %v5286, %v5287
    %v5289 = vand.u32 %v5288, 4294901760
    %5290 = vmatmul.mubr.f32.gmra.mrb[0].mxu0 %v5289
    %v5291 = vpop.f32.mrb[0].mxu0
    %v5292 = vadd.f32 %v1627, %v5291
    %v5293 = vpop.f32.mrb[0].mxu0
    %v5294 = vadd.f32 %v1631, %v5293
    %5295 = vdwg.mxu0
    %v5296 = vand.u32 %v73, 4294901760
    %v5297 = vsub.f32 %v73, %v5296
    %v5298 = vand.u32 %v5297, 4294901760
    %v5299 = vsub.f32 %v5297, %v5298
    %v5300 = vand.u32 %v5299, 4294901760
    %5301 = vmatprep.subr.mxu0 %v5300
    %v5302 = vand.u32 %v72, 4294901760
    %v5303 = vsub.f32 %v72, %v5302
    %v5304 = vand.u32 %v5303, 4294901760
    %v5305 = vsub.f32 %v5303, %v5304
    %v5306 = vand.u32 %v5305, 4294901760
    %5307 = vmatpush1.msra.mxu0 %v5306
    %v5308 = vand.u32 %v76, 4294901760
    %v5309 = vsub.f32 %v76, %v5308
    %v5310 = vand.u32 %v5309, 4294901760
    %v5311 = vsub.f32 %v5309, %v5310
    %v5312 = vand.u32 %v5311, 4294901760
    %5313 = vmatprep.subr.mxu0 %v5312
    %v5314 = vand.u32 %v75, 4294901760
    %v5315 = vsub.f32 %v75, %v5314
    %v5316 = vand.u32 %v5315, 4294901760
    %v5317 = vsub.f32 %v5315, %v5316
    %v5318 = vand.u32 %v5317, 4294901760
    %5319 = vmatpush1.msra.mxu0 %v5318
    %v5320 = vand.u32 %v79, 4294901760
    %v5321 = vsub.f32 %v79, %v5320
    %v5322 = vand.u32 %v5321, 4294901760
    %v5323 = vsub.f32 %v5321, %v5322
    %v5324 = vand.u32 %v5323, 4294901760
    %5325 = vmatprep.subr.mxu0 %v5324
    %v5326 = vand.u32 %v78, 4294901760
    %v5327 = vsub.f32 %v78, %v5326
    %v5328 = vand.u32 %v5327, 4294901760
    %v5329 = vsub.f32 %v5327, %v5328
    %v5330 = vand.u32 %v5329, 4294901760
    %5331 = vmatpush1.msra.mxu0 %v5330
    %v5332 = vand.u32 %v82, 4294901760
    %v5333 = vsub.f32 %v82, %v5332
    %v5334 = vand.u32 %v5333, 4294901760
    %v5335 = vsub.f32 %v5333, %v5334
    %v5336 = vand.u32 %v5335, 4294901760
    %5337 = vmatprep.subr.mxu0 %v5336
    %v5338 = vand.u32 %v81, 4294901760
    %v5339 = vsub.f32 %v81, %v5338
    %v5340 = vand.u32 %v5339, 4294901760
    %v5341 = vsub.f32 %v5339, %v5340
    %v5342 = vand.u32 %v5341, 4294901760
    %5343 = vmatpush1.msra.mxu0 %v5342
    %5344 = vmatprep.subr.mxu0 0.0
    %5345 = vmatpush1.msra.mxu0 0.0
    %5346 = vmatprep.subr.mxu0 0.0
    %5347 = vmatpush1.msra.mxu0 0.0
    %5348 = vmatprep.subr.mxu0 0.0
    %5349 = vmatpush1.msra.mxu0 0.0
    %5350 = vmatprep.subr.mxu0 0.0
    %5351 = vmatpush1.msra.mxu0 0.0
    %5352 = vmatprep.subr.mxu0 0.0
    %5353 = vmatpush1.msra.mxu0 0.0
    %5354 = vmatprep.subr.mxu0 0.0
    %5355 = vmatpush1.msra.mxu0 0.0
    %5356 = vmatprep.subr.mxu0 0.0
    %5357 = vmatpush1.msra.mxu0 0.0
    %5358 = vmatprep.subr.mxu0 0.0
    %5359 = vmatpush1.msra.mxu0 0.0
    %5360 = vmatprep.subr.mxu0 0.0
    %5361 = vmatpush1.msra.mxu0 0.0
    %5362 = vmatprep.subr.mxu0 0.0
    %5363 = vmatpush1.msra.mxu0 0.0
    %5364 = vmatprep.subr.mxu0 0.0
    %5365 = vmatpush1.msra.mxu0 0.0
    %5366 = vmatprep.subr.mxu0 0.0
    %5367 = vmatpush1.msra.mxu0 0.0
    %5368 = vmatprep.subr.mxu0 0.0
    %5369 = vmatpush1.msra.mxu0 0.0
    %5370 = vmatprep.subr.mxu0 0.0
    %5371 = vmatpush1.msra.mxu0 0.0
    %5372 = vmatprep.subr.mxu0 0.0
    %5373 = vmatpush1.msra.mxu0 0.0
    %5374 = vmatprep.subr.mxu0 0.0
    %5375 = vmatpush1.msra.mxu0 0.0
    %5376 = vmatprep.subr.mxu0 0.0
    %5377 = vmatpush1.msra.mxu0 0.0
    %5378 = vmatprep.subr.mxu0 0.0
    %5379 = vmatpush1.msra.mxu0 0.0
    %5380 = vmatprep.subr.mxu0 0.0
    %5381 = vmatpush1.msra.mxu0 0.0
    %5382 = vmatprep.subr.mxu0 0.0
    %5383 = vmatpush1.msra.mxu0 0.0
    %5384 = vmatprep.subr.mxu0 0.0
    %5385 = vmatpush1.msra.mxu0 0.0
    %5386 = vmatprep.subr.mxu0 0.0
    %5387 = vmatpush1.msra.mxu0 0.0
    %5388 = vmatprep.subr.mxu0 0.0
    %5389 = vmatpush1.msra.mxu0 0.0
    %5390 = vmatprep.subr.mxu0 0.0
    %5391 = vmatpush1.msra.mxu0 0.0
    %5392 = vmatprep.subr.mxu0 0.0
    %5393 = vmatpush1.msra.mxu0 0.0
    %5394 = vmatprep.subr.mxu0 0.0
    %5395 = vmatpush1.msra.mxu0 0.0
    %5396 = vmatprep.subr.mxu0 0.0
    %5397 = vmatpush1.msra.mxu0 0.0
    %5398 = vmatprep.subr.mxu0 0.0
    %5399 = vmatpush1.msra.mxu0 0.0
    %5400 = vmatprep.mubr.f32.mxu0 0.0
    %v5401 = vand.u32 %v2692, 4294901760
    %5402 = vmatmul.mubr.f32.gmra.mrb[0].mxu0 %v5401
    %v5403 = vpop.f32.mrb[0].mxu0
    %v5404 = vadd.f32 %v5292, %v5403
    %v5405 = vpop.f32.mrb[0].mxu0
    %v5406 = vadd.f32 %v5294, %v5405
    %5407 = vdwg.mxu0
    %v5408 = vand.u32 %v73, 4294901760
    %v5409 = vsub.f32 %v73, %v5408
    %5410 = vmatprep.subr.mxu0 %v5409
    %v5411 = vand.u32 %v72, 4294901760
    %v5412 = vsub.f32 %v72, %v5411
    %5413 = vmatpush1.msra.mxu0 %v5412
    %v5414 = vand.u32 %v76, 4294901760
    %v5415 = vsub.f32 %v76, %v5414
    %5416 = vmatprep.subr.mxu0 %v5415
    %v5417 = vand.u32 %v75, 4294901760
    %v5418 = vsub.f32 %v75, %v5417
    %5419 = vmatpush1.msra.mxu0 %v5418
    %v5420 = vand.u32 %v79, 4294901760
    %v5421 = vsub.f32 %v79, %v5420
    %5422 = vmatprep.subr.mxu0 %v5421
    %v5423 = vand.u32 %v78, 4294901760
    %v5424 = vsub.f32 %v78, %v5423
    %5425 = vmatpush1.msra.mxu0 %v5424
    %v5426 = vand.u32 %v82, 4294901760
    %v5427 = vsub.f32 %v82, %v5426
    %5428 = vmatprep.subr.mxu0 %v5427
    %v5429 = vand.u32 %v81, 4294901760
    %v5430 = vsub.f32 %v81, %v5429
    %5431 = vmatpush1.msra.mxu0 %v5430
    %5432 = vmatprep.subr.mxu0 0.0
    %5433 = vmatpush1.msra.mxu0 0.0
    %5434 = vmatprep.subr.mxu0 0.0
    %5435 = vmatpush1.msra.mxu0 0.0
    %5436 = vmatprep.subr.mxu0 0.0
    %5437 = vmatpush1.msra.mxu0 0.0
    %5438 = vmatprep.subr.mxu0 0.0
    %5439 = vmatpush1.msra.mxu0 0.0
    %5440 = vmatprep.subr.mxu0 0.0
    %5441 = vmatpush1.msra.mxu0 0.0
    %5442 = vmatprep.subr.mxu0 0.0
    %5443 = vmatpush1.msra.mxu0 0.0
    %5444 = vmatprep.subr.mxu0 0.0
    %5445 = vmatpush1.msra.mxu0 0.0
    %5446 = vmatprep.subr.mxu0 0.0
    %5447 = vmatpush1.msra.mxu0 0.0
    %5448 = vmatprep.subr.mxu0 0.0
    %5449 = vmatpush1.msra.mxu0 0.0
    %5450 = vmatprep.subr.mxu0 0.0
    %5451 = vmatpush1.msra.mxu0 0.0
    %5452 = vmatprep.subr.mxu0 0.0
    %5453 = vmatpush1.msra.mxu0 0.0
    %5454 = vmatprep.subr.mxu0 0.0
    %5455 = vmatpush1.msra.mxu0 0.0
    %5456 = vmatprep.subr.mxu0 0.0
    %5457 = vmatpush1.msra.mxu0 0.0
    %5458 = vmatprep.subr.mxu0 0.0
    %5459 = vmatpush1.msra.mxu0 0.0
    %5460 = vmatprep.subr.mxu0 0.0
    %5461 = vmatpush1.msra.mxu0 0.0
    %5462 = vmatprep.subr.mxu0 0.0
    %5463 = vmatpush1.msra.mxu0 0.0
    %5464 = vmatprep.subr.mxu0 0.0
    %5465 = vmatpush1.msra.mxu0 0.0
    %5466 = vmatprep.subr.mxu0 0.0
    %5467 = vmatpush1.msra.mxu0 0.0
    %5468 = vmatprep.subr.mxu0 0.0
    %5469 = vmatpush1.msra.mxu0 0.0
    %5470 = vmatprep.subr.mxu0 0.0
    %5471 = vmatpush1.msra.mxu0 0.0
    %5472 = vmatprep.subr.mxu0 0.0
    %5473 = vmatpush1.msra.mxu0 0.0
    %5474 = vmatprep.subr.mxu0 0.0
    %5475 = vmatpush1.msra.mxu0 0.0
    %5476 = vmatprep.subr.mxu0 0.0
    %5477 = vmatpush1.msra.mxu0 0.0
    %5478 = vmatprep.subr.mxu0 0.0
    %5479 = vmatpush1.msra.mxu0 0.0
    %5480 = vmatprep.subr.mxu0 0.0
    %5481 = vmatpush1.msra.mxu0 0.0
    %5482 = vmatprep.subr.mxu0 0.0
    %5483 = vmatpush1.msra.mxu0 0.0
    %5484 = vmatprep.subr.mxu0 0.0
    %5485 = vmatpush1.msra.mxu0 0.0
    %5486 = vmatprep.subr.mxu0 0.0
    %5487 = vmatpush1.msra.mxu0 0.0
    %5488 = vmatprep.mubr.f32.mxu0 0.0
    %v5489 = vand.u32 %v2692, 4294901760
    %v5490 = vsub.f32 %v2692, %v5489
    %5491 = vmatmul.mubr.f32.gmra.mrb[0].mxu0 %v5490
    %v5492 = vpop.f32.mrb[0].mxu0
    %v5493 = vadd.f32 %v5404, %v5492
    %v5494 = vpop.f32.mrb[0].mxu0
    %v5495 = vadd.f32 %v5406, %v5494
    %5496 = vdwg.mxu0
    %v5497 = vand.u32 %v73, 4294901760
    %5498 = vmatprep.subr.mxu0 %v5497
    %v5499 = vand.u32 %v72, 4294901760
    %5500 = vmatpush1.msra.mxu0 %v5499
    %v5501 = vand.u32 %v76, 4294901760
    %5502 = vmatprep.subr.mxu0 %v5501
    %v5503 = vand.u32 %v75, 4294901760
    %5504 = vmatpush1.msra.mxu0 %v5503
    %v5505 = vand.u32 %v79, 4294901760
    %5506 = vmatprep.subr.mxu0 %v5505
    %v5507 = vand.u32 %v78, 4294901760
    %5508 = vmatpush1.msra.mxu0 %v5507
    %v5509 = vand.u32 %v82, 4294901760
    %5510 = vmatprep.subr.mxu0 %v5509
    %v5511 = vand.u32 %v81, 4294901760
    %5512 = vmatpush1.msra.mxu0 %v5511
    %5513 = vmatprep.subr.mxu0 0.0
    %5514 = vmatpush1.msra.mxu0 0.0
    %5515 = vmatprep.subr.mxu0 0.0
    %5516 = vmatpush1.msra.mxu0 0.0
    %5517 = vmatprep.subr.mxu0 0.0
    %5518 = vmatpush1.msra.mxu0 0.0
    %5519 = vmatprep.subr.mxu0 0.0
    %5520 = vmatpush1.msra.mxu0 0.0
    %5521 = vmatprep.subr.mxu0 0.0
    %5522 = vmatpush1.msra.mxu0 0.0
    %5523 = vmatprep.subr.mxu0 0.0
    %5524 = vmatpush1.msra.mxu0 0.0
    %5525 = vmatprep.subr.mxu0 0.0
    %5526 = vmatpush1.msra.mxu0 0.0
    %5527 = vmatprep.subr.mxu0 0.0
    %5528 = vmatpush1.msra.mxu0 0.0
    %5529 = vmatprep.subr.mxu0 0.0
    %5530 = vmatpush1.msra.mxu0 0.0
    %5531 = vmatprep.subr.mxu0 0.0
    %5532 = vmatpush1.msra.mxu0 0.0
    %5533 = vmatprep.subr.mxu0 0.0
    %5534 = vmatpush1.msra.mxu0 0.0
    %5535 = vmatprep.subr.mxu0 0.0
    %5536 = vmatpush1.msra.mxu0 0.0
    %5537 = vmatprep.subr.mxu0 0.0
    %5538 = vmatpush1.msra.mxu0 0.0
    %5539 = vmatprep.subr.mxu0 0.0
    %5540 = vmatpush1.msra.mxu0 0.0
    %5541 = vmatprep.subr.mxu0 0.0
    %5542 = vmatpush1.msra.mxu0 0.0
    %5543 = vmatprep.subr.mxu0 0.0
    %5544 = vmatpush1.msra.mxu0 0.0
    %5545 = vmatprep.subr.mxu0 0.0
    %5546 = vmatpush1.msra.mxu0 0.0
    %5547 = vmatprep.subr.mxu0 0.0
    %5548 = vmatpush1.msra.mxu0 0.0
    %5549 = vmatprep.subr.mxu0 0.0
    %5550 = vmatpush1.msra.mxu0 0.0
    %5551 = vmatprep.subr.mxu0 0.0
    %5552 = vmatpush1.msra.mxu0 0.0
    %5553 = vmatprep.subr.mxu0 0.0
    %5554 = vmatpush1.msra.mxu0 0.0
    %5555 = vmatprep.subr.mxu0 0.0
    %5556 = vmatpush1.msra.mxu0 0.0
    %5557 = vmatprep.subr.mxu0 0.0
    %5558 = vmatpush1.msra.mxu0 0.0
    %5559 = vmatprep.subr.mxu0 0.0
    %5560 = vmatpush1.msra.mxu0 0.0
    %5561 = vmatprep.subr.mxu0 0.0
    %5562 = vmatpush1.msra.mxu0 0.0
    %5563 = vmatprep.subr.mxu0 0.0
    %5564 = vmatpush1.msra.mxu0 0.0
    %5565 = vmatprep.subr.mxu0 0.0
    %5566 = vmatpush1.msra.mxu0 0.0
    %5567 = vmatprep.subr.mxu0 0.0
    %5568 = vmatpush1.msra.mxu0 0.0
    %5569 = vmatprep.mubr.f32.mxu0 0.0
    %v5570 = vand.u32 %v2692, 4294901760
    %v5571 = vsub.f32 %v2692, %v5570
    %v5572 = vand.u32 %v5571, 4294901760
    %5573 = vmatmul.mubr.f32.gmra.mrb[0].mxu0 %v5572
    %v5574 = vpop.f32.mrb[0].mxu0
    %v5575 = vadd.f32 %v5493, %v5574
    %v5576 = vpop.f32.mrb[0].mxu0
    %v5577 = vadd.f32 %v5495, %v5576
    %5578 = vdwg.mxu0
    %v5579 = vand.u32 %v73, 4294901760
    %v5580 = vsub.f32 %v73, %v5579
    %v5581 = vand.u32 %v5580, 4294901760
    %5582 = vmatprep.subr.mxu0 %v5581
    %v5583 = vand.u32 %v72, 4294901760
    %v5584 = vsub.f32 %v72, %v5583
    %v5585 = vand.u32 %v5584, 4294901760
    %5586 = vmatpush1.msra.mxu0 %v5585
    %v5587 = vand.u32 %v76, 4294901760
    %v5588 = vsub.f32 %v76, %v5587
    %v5589 = vand.u32 %v5588, 4294901760
    %5590 = vmatprep.subr.mxu0 %v5589
    %v5591 = vand.u32 %v75, 4294901760
    %v5592 = vsub.f32 %v75, %v5591
    %v5593 = vand.u32 %v5592, 4294901760
    %5594 = vmatpush1.msra.mxu0 %v5593
    %v5595 = vand.u32 %v79, 4294901760
    %v5596 = vsub.f32 %v79, %v5595
    %v5597 = vand.u32 %v5596, 4294901760
    %5598 = vmatprep.subr.mxu0 %v5597
    %v5599 = vand.u32 %v78, 4294901760
    %v5600 = vsub.f32 %v78, %v5599
    %v5601 = vand.u32 %v5600, 4294901760
    %5602 = vmatpush1.msra.mxu0 %v5601
    %v5603 = vand.u32 %v82, 4294901760
    %v5604 = vsub.f32 %v82, %v5603
    %v5605 = vand.u32 %v5604, 4294901760
    %5606 = vmatprep.subr.mxu0 %v5605
    %v5607 = vand.u32 %v81, 4294901760
    %v5608 = vsub.f32 %v81, %v5607
    %v5609 = vand.u32 %v5608, 4294901760
    %5610 = vmatpush1.msra.mxu0 %v5609
    %5611 = vmatprep.subr.mxu0 0.0
    %5612 = vmatpush1.msra.mxu0 0.0
    %5613 = vmatprep.subr.mxu0 0.0
    %5614 = vmatpush1.msra.mxu0 0.0
    %5615 = vmatprep.subr.mxu0 0.0
    %5616 = vmatpush1.msra.mxu0 0.0
    %5617 = vmatprep.subr.mxu0 0.0
    %5618 = vmatpush1.msra.mxu0 0.0
    %5619 = vmatprep.subr.mxu0 0.0
    %5620 = vmatpush1.msra.mxu0 0.0
    %5621 = vmatprep.subr.mxu0 0.0
    %5622 = vmatpush1.msra.mxu0 0.0
    %5623 = vmatprep.subr.mxu0 0.0
    %5624 = vmatpush1.msra.mxu0 0.0
    %5625 = vmatprep.subr.mxu0 0.0
    %5626 = vmatpush1.msra.mxu0 0.0
    %5627 = vmatprep.subr.mxu0 0.0
    %5628 = vmatpush1.msra.mxu0 0.0
    %5629 = vmatprep.subr.mxu0 0.0
    %5630 = vmatpush1.msra.mxu0 0.0
    %5631 = vmatprep.subr.mxu0 0.0
    %5632 = vmatpush1.msra.mxu0 0.0
    %5633 = vmatprep.subr.mxu0 0.0
    %5634 = vmatpush1.msra.mxu0 0.0
    %5635 = vmatprep.subr.mxu0 0.0
    %5636 = vmatpush1.msra.mxu0 0.0
    %5637 = vmatprep.subr.mxu0 0.0
    %5638 = vmatpush1.msra.mxu0 0.0
    %5639 = vmatprep.subr.mxu0 0.0
    %5640 = vmatpush1.msra.mxu0 0.0
    %5641 = vmatprep.subr.mxu0 0.0
    %5642 = vmatpush1.msra.mxu0 0.0
    %5643 = vmatprep.subr.mxu0 0.0
    %5644 = vmatpush1.msra.mxu0 0.0
    %5645 = vmatprep.subr.mxu0 0.0
    %5646 = vmatpush1.msra.mxu0 0.0
    %5647 = vmatprep.subr.mxu0 0.0
    %5648 = vmatpush1.msra.mxu0 0.0
    %5649 = vmatprep.subr.mxu0 0.0
    %5650 = vmatpush1.msra.mxu0 0.0
    %5651 = vmatprep.subr.mxu0 0.0
    %5652 = vmatpush1.msra.mxu0 0.0
    %5653 = vmatprep.subr.mxu0 0.0
    %5654 = vmatpush1.msra.mxu0 0.0
    %5655 = vmatprep.subr.mxu0 0.0
    %5656 = vmatpush1.msra.mxu0 0.0
    %5657 = vmatprep.subr.mxu0 0.0
    %5658 = vmatpush1.msra.mxu0 0.0
    %5659 = vmatprep.subr.mxu0 0.0
    %5660 = vmatpush1.msra.mxu0 0.0
    %5661 = vmatprep.subr.mxu0 0.0
    %5662 = vmatpush1.msra.mxu0 0.0
    %5663 = vmatprep.subr.mxu0 0.0
    %5664 = vmatpush1.msra.mxu0 0.0
    %5665 = vmatprep.subr.mxu0 0.0
    %5666 = vmatpush1.msra.mxu0 0.0
    %5667 = vmatprep.mubr.f32.mxu0 0.0
    %v5668 = vand.u32 %v2692, 4294901760
    %5669 = vmatmul.mubr.f32.gmra.mrb[0].mxu0 %v5668
    %v5670 = vpop.f32.mrb[0].mxu0
    %v5671 = vadd.f32 %v5575, %v5670
    %v5672 = vpop.f32.mrb[0].mxu0
    %v5673 = vadd.f32 %v5577, %v5672
    %5674 = vdwg.mxu0
    %v5675 = vand.u32 %v73, 4294901760
    %5676 = vmatprep.subr.mxu0 %v5675
    %v5677 = vand.u32 %v72, 4294901760
    %5678 = vmatpush1.msra.mxu0 %v5677
    %v5679 = vand.u32 %v76, 4294901760
    %5680 = vmatprep.subr.mxu0 %v5679
    %v5681 = vand.u32 %v75, 4294901760
    %5682 = vmatpush1.msra.mxu0 %v5681
    %v5683 = vand.u32 %v79, 4294901760
    %5684 = vmatprep.subr.mxu0 %v5683
    %v5685 = vand.u32 %v78, 4294901760
    %5686 = vmatpush1.msra.mxu0 %v5685
    %v5687 = vand.u32 %v82, 4294901760
    %5688 = vmatprep.subr.mxu0 %v5687
    %v5689 = vand.u32 %v81, 4294901760
    %5690 = vmatpush1.msra.mxu0 %v5689
    %5691 = vmatprep.subr.mxu0 0.0
    %5692 = vmatpush1.msra.mxu0 0.0
    %5693 = vmatprep.subr.mxu0 0.0
    %5694 = vmatpush1.msra.mxu0 0.0
    %5695 = vmatprep.subr.mxu0 0.0
    %5696 = vmatpush1.msra.mxu0 0.0
    %5697 = vmatprep.subr.mxu0 0.0
    %5698 = vmatpush1.msra.mxu0 0.0
    %5699 = vmatprep.subr.mxu0 0.0
    %5700 = vmatpush1.msra.mxu0 0.0
    %5701 = vmatprep.subr.mxu0 0.0
    %5702 = vmatpush1.msra.mxu0 0.0
    %5703 = vmatprep.subr.mxu0 0.0
    %5704 = vmatpush1.msra.mxu0 0.0
    %5705 = vmatprep.subr.mxu0 0.0
    %5706 = vmatpush1.msra.mxu0 0.0
    %5707 = vmatprep.subr.mxu0 0.0
    %5708 = vmatpush1.msra.mxu0 0.0
    %5709 = vmatprep.subr.mxu0 0.0
    %5710 = vmatpush1.msra.mxu0 0.0
    %5711 = vmatprep.subr.mxu0 0.0
    %5712 = vmatpush1.msra.mxu0 0.0
    %5713 = vmatprep.subr.mxu0 0.0
    %5714 = vmatpush1.msra.mxu0 0.0
    %5715 = vmatprep.subr.mxu0 0.0
    %5716 = vmatpush1.msra.mxu0 0.0
    %5717 = vmatprep.subr.mxu0 0.0
    %5718 = vmatpush1.msra.mxu0 0.0
    %5719 = vmatprep.subr.mxu0 0.0
    %5720 = vmatpush1.msra.mxu0 0.0
    %5721 = vmatprep.subr.mxu0 0.0
    %5722 = vmatpush1.msra.mxu0 0.0
    %5723 = vmatprep.subr.mxu0 0.0
    %5724 = vmatpush1.msra.mxu0 0.0
    %5725 = vmatprep.subr.mxu0 0.0
    %5726 = vmatpush1.msra.mxu0 0.0
    %5727 = vmatprep.subr.mxu0 0.0
    %5728 = vmatpush1.msra.mxu0 0.0
    %5729 = vmatprep.subr.mxu0 0.0
    %5730 = vmatpush1.msra.mxu0 0.0
    %5731 = vmatprep.subr.mxu0 0.0
    %5732 = vmatpush1.msra.mxu0 0.0
    %5733 = vmatprep.subr.mxu0 0.0
    %5734 = vmatpush1.msra.mxu0 0.0
    %5735 = vmatprep.subr.mxu0 0.0
    %5736 = vmatpush1.msra.mxu0 0.0
    %5737 = vmatprep.subr.mxu0 0.0
    %5738 = vmatpush1.msra.mxu0 0.0
    %5739 = vmatprep.subr.mxu0 0.0
    %5740 = vmatpush1.msra.mxu0 0.0
    %5741 = vmatprep.subr.mxu0 0.0
    %5742 = vmatpush1.msra.mxu0 0.0
    %5743 = vmatprep.subr.mxu0 0.0
    %5744 = vmatpush1.msra.mxu0 0.0
    %5745 = vmatprep.subr.mxu0 0.0
    %5746 = vmatpush1.msra.mxu0 0.0
    %5747 = vmatprep.mubr.f32.mxu0 0.0
    %v5748 = vand.u32 %v2692, 4294901760
    %5749 = vmatmul.mubr.f32.gmra.mrb[0].mxu0 %v5748
    %v5750 = vpop.f32.mrb[0].mxu0
    %v5751 = vadd.f32 %v5671, %v5750
    %v5752 = vpop.f32.mrb[0].mxu0
    %v5753 = vadd.f32 %v5673, %v5752
    %5754 = vdwg.mxu0
    %5755 = vmatprep.subr.mxu0 0.0
    %v5756 = vand.u32 %v74, 4294901760
    %5757 = vmatpush1.msra.mxu0 %v5756
    %5758 = vmatprep.subr.mxu0 0.0
    %v5759 = vand.u32 %v77, 4294901760
    %5760 = vmatpush1.msra.mxu0 %v5759
    %5761 = vmatprep.subr.mxu0 0.0
    %v5762 = vand.u32 %v80, 4294901760
    %5763 = vmatpush1.msra.mxu0 %v5762
    %5764 = vmatprep.subr.mxu0 0.0
    %v5765 = vand.u32 %v83, 4294901760
    %5766 = vmatpush1.msra.mxu0 %v5765
    %5767 = vmatprep.subr.mxu0 0.0
    %5768 = vmatpush1.msra.mxu0 0.0
    %5769 = vmatprep.subr.mxu0 0.0
    %5770 = vmatpush1.msra.mxu0 0.0
    %5771 = vmatprep.subr.mxu0 0.0
    %5772 = vmatpush1.msra.mxu0 0.0
    %5773 = vmatprep.subr.mxu0 0.0
    %5774 = vmatpush1.msra.mxu0 0.0
    %5775 = vmatprep.subr.mxu0 0.0
    %5776 = vmatpush1.msra.mxu0 0.0
    %5777 = vmatprep.subr.mxu0 0.0
    %5778 = vmatpush1.msra.mxu0 0.0
    %5779 = vmatprep.subr.mxu0 0.0
    %5780 = vmatpush1.msra.mxu0 0.0
    %5781 = vmatprep.subr.mxu0 0.0
    %5782 = vmatpush1.msra.mxu0 0.0
    %5783 = vmatprep.subr.mxu0 0.0
    %5784 = vmatpush1.msra.mxu0 0.0
    %5785 = vmatprep.subr.mxu0 0.0
    %5786 = vmatpush1.msra.mxu0 0.0
    %5787 = vmatprep.subr.mxu0 0.0
    %5788 = vmatpush1.msra.mxu0 0.0
    %5789 = vmatprep.subr.mxu0 0.0
    %5790 = vmatpush1.msra.mxu0 0.0
    %5791 = vmatprep.subr.mxu0 0.0
    %5792 = vmatpush1.msra.mxu0 0.0
    %5793 = vmatprep.subr.mxu0 0.0
    %5794 = vmatpush1.msra.mxu0 0.0
    %5795 = vmatprep.subr.mxu0 0.0
    %5796 = vmatpush1.msra.mxu0 0.0
    %5797 = vmatprep.subr.mxu0 0.0
    %5798 = vmatpush1.msra.mxu0 0.0
    %5799 = vmatprep.subr.mxu0 0.0
    %5800 = vmatpush1.msra.mxu0 0.0
    %5801 = vmatprep.subr.mxu0 0.0
    %5802 = vmatpush1.msra.mxu0 0.0
    %5803 = vmatprep.subr.mxu0 0.0
    %5804 = vmatpush1.msra.mxu0 0.0
    %5805 = vmatprep.subr.mxu0 0.0
    %5806 = vmatpush1.msra.mxu0 0.0
    %5807 = vmatprep.subr.mxu0 0.0
    %5808 = vmatpush1.msra.mxu0 0.0
    %5809 = vmatprep.subr.mxu0 0.0
    %5810 = vmatpush1.msra.mxu0 0.0
    %5811 = vmatprep.subr.mxu0 0.0
    %5812 = vmatpush1.msra.mxu0 0.0
    %5813 = vmatprep.subr.mxu0 0.0
    %5814 = vmatpush1.msra.mxu0 0.0
    %5815 = vmatprep.subr.mxu0 0.0
    %5816 = vmatpush1.msra.mxu0 0.0
    %5817 = vmatprep.subr.mxu0 0.0
    %5818 = vmatpush1.msra.mxu0 0.0
    %5819 = vmatprep.subr.mxu0 0.0
    %5820 = vmatpush1.msra.mxu0 0.0
    %5821 = vmatprep.subr.mxu0 0.0
    %5822 = vmatpush1.msra.mxu0 0.0
    %5823 = vmatprep.mubr.f32.mxu0 0.0
    %v5824 = vand.u32 %v2692, 4294901760
    %v5825 = vsub.f32 %v2692, %v5824
    %v5826 = vand.u32 %v5825, 4294901760
    %v5827 = vsub.f32 %v5825, %v5826
    %v5828 = vand.u32 %v5827, 4294901760
    %5829 = vmatmul.mubr.f32.gmra.mrb[0].mxu0 %v5828
    %v5830 = vpop.f32.mrb[0].mxu0
    %v5831 = vadd.f32 %v1635, %v5830
    %v5832 = vpop.f32.mrb[0].mxu0
    %5833 = vdwg.mxu0
    %5834 = vmatprep.subr.mxu0 0.0
    %v5835 = vand.u32 %v74, 4294901760
    %v5836 = vsub.f32 %v74, %v5835
    %v5837 = vand.u32 %v5836, 4294901760
    %v5838 = vsub.f32 %v5836, %v5837
    %v5839 = vand.u32 %v5838, 4294901760
    %5840 = vmatpush1.msra.mxu0 %v5839
    %5841 = vmatprep.subr.mxu0 0.0
    %v5842 = vand.u32 %v77, 4294901760
    %v5843 = vsub.f32 %v77, %v5842
    %v5844 = vand.u32 %v5843, 4294901760
    %v5845 = vsub.f32 %v5843, %v5844
    %v5846 = vand.u32 %v5845, 4294901760
    %5847 = vmatpush1.msra.mxu0 %v5846
    %5848 = vmatprep.subr.mxu0 0.0
    %v5849 = vand.u32 %v80, 4294901760
    %v5850 = vsub.f32 %v80, %v5849
    %v5851 = vand.u32 %v5850, 4294901760
    %v5852 = vsub.f32 %v5850, %v5851
    %v5853 = vand.u32 %v5852, 4294901760
    %5854 = vmatpush1.msra.mxu0 %v5853
    %5855 = vmatprep.subr.mxu0 0.0
    %v5856 = vand.u32 %v83, 4294901760
    %v5857 = vsub.f32 %v83, %v5856
    %v5858 = vand.u32 %v5857, 4294901760
    %v5859 = vsub.f32 %v5857, %v5858
    %v5860 = vand.u32 %v5859, 4294901760
    %5861 = vmatpush1.msra.mxu0 %v5860
    %5862 = vmatprep.subr.mxu0 0.0
    %5863 = vmatpush1.msra.mxu0 0.0
    %5864 = vmatprep.subr.mxu0 0.0
    %5865 = vmatpush1.msra.mxu0 0.0
    %5866 = vmatprep.subr.mxu0 0.0
    %5867 = vmatpush1.msra.mxu0 0.0
    %5868 = vmatprep.subr.mxu0 0.0
    %5869 = vmatpush1.msra.mxu0 0.0
    %5870 = vmatprep.subr.mxu0 0.0
    %5871 = vmatpush1.msra.mxu0 0.0
    %5872 = vmatprep.subr.mxu0 0.0
    %5873 = vmatpush1.msra.mxu0 0.0
    %5874 = vmatprep.subr.mxu0 0.0
    %5875 = vmatpush1.msra.mxu0 0.0
    %5876 = vmatprep.subr.mxu0 0.0
    %5877 = vmatpush1.msra.mxu0 0.0
    %5878 = vmatprep.subr.mxu0 0.0
    %5879 = vmatpush1.msra.mxu0 0.0
    %5880 = vmatprep.subr.mxu0 0.0
    %5881 = vmatpush1.msra.mxu0 0.0
    %5882 = vmatprep.subr.mxu0 0.0
    %5883 = vmatpush1.msra.mxu0 0.0
    %5884 = vmatprep.subr.mxu0 0.0
    %5885 = vmatpush1.msra.mxu0 0.0
    %5886 = vmatprep.subr.mxu0 0.0
    %5887 = vmatpush1.msra.mxu0 0.0
    %5888 = vmatprep.subr.mxu0 0.0
    %5889 = vmatpush1.msra.mxu0 0.0
    %5890 = vmatprep.subr.mxu0 0.0
    %5891 = vmatpush1.msra.mxu0 0.0
    %5892 = vmatprep.subr.mxu0 0.0
    %5893 = vmatpush1.msra.mxu0 0.0
    %5894 = vmatprep.subr.mxu0 0.0
    %5895 = vmatpush1.msra.mxu0 0.0
    %5896 = vmatprep.subr.mxu0 0.0
    %5897 = vmatpush1.msra.mxu0 0.0
    %5898 = vmatprep.subr.mxu0 0.0
    %5899 = vmatpush1.msra.mxu0 0.0
    %5900 = vmatprep.subr.mxu0 0.0
    %5901 = vmatpush1.msra.mxu0 0.0
    %5902 = vmatprep.subr.mxu0 0.0
    %5903 = vmatpush1.msra.mxu0 0.0
    %5904 = vmatprep.subr.mxu0 0.0
    %5905 = vmatpush1.msra.mxu0 0.0
    %5906 = vmatprep.subr.mxu0 0.0
    %5907 = vmatpush1.msra.mxu0 0.0
    %5908 = vmatprep.subr.mxu0 0.0
    %5909 = vmatpush1.msra.mxu0 0.0
    %5910 = vmatprep.subr.mxu0 0.0
    %5911 = vmatpush1.msra.mxu0 0.0
    %5912 = vmatprep.subr.mxu0 0.0
    %5913 = vmatpush1.msra.mxu0 0.0
    %5914 = vmatprep.subr.mxu0 0.0
    %5915 = vmatpush1.msra.mxu0 0.0
    %5916 = vmatprep.subr.mxu0 0.0
    %5917 = vmatpush1.msra.mxu0 0.0
    %5918 = vmatprep.mubr.f32.mxu0 0.0
    %v5919 = vand.u32 %v2692, 4294901760
    %5920 = vmatmul.mubr.f32.gmra.mrb[0].mxu0 %v5919
    %v5921 = vpop.f32.mrb[0].mxu0
    %v5922 = vadd.f32 %v5831, %v5921
    %v5923 = vpop.f32.mrb[0].mxu0
    %5924 = vdwg.mxu0
    %5925 = vmatprep.subr.mxu0 0.0
    %v5926 = vand.u32 %v74, 4294901760
    %v5927 = vsub.f32 %v74, %v5926
    %5928 = vmatpush1.msra.mxu0 %v5927
    %5929 = vmatprep.subr.mxu0 0.0
    %v5930 = vand.u32 %v77, 4294901760
    %v5931 = vsub.f32 %v77, %v5930
    %5932 = vmatpush1.msra.mxu0 %v5931
    %5933 = vmatprep.subr.mxu0 0.0
    %v5934 = vand.u32 %v80, 4294901760
    %v5935 = vsub.f32 %v80, %v5934
    %5936 = vmatpush1.msra.mxu0 %v5935
    %5937 = vmatprep.subr.mxu0 0.0
    %v5938 = vand.u32 %v83, 4294901760
    %v5939 = vsub.f32 %v83, %v5938
    %5940 = vmatpush1.msra.mxu0 %v5939
    %5941 = vmatprep.subr.mxu0 0.0
    %5942 = vmatpush1.msra.mxu0 0.0
    %5943 = vmatprep.subr.mxu0 0.0
    %5944 = vmatpush1.msra.mxu0 0.0
    %5945 = vmatprep.subr.mxu0 0.0
    %5946 = vmatpush1.msra.mxu0 0.0
    %5947 = vmatprep.subr.mxu0 0.0
    %5948 = vmatpush1.msra.mxu0 0.0
    %5949 = vmatprep.subr.mxu0 0.0
    %5950 = vmatpush1.msra.mxu0 0.0
    %5951 = vmatprep.subr.mxu0 0.0
    %5952 = vmatpush1.msra.mxu0 0.0
    %5953 = vmatprep.subr.mxu0 0.0
    %5954 = vmatpush1.msra.mxu0 0.0
    %5955 = vmatprep.subr.mxu0 0.0
    %5956 = vmatpush1.msra.mxu0 0.0
    %5957 = vmatprep.subr.mxu0 0.0
    %5958 = vmatpush1.msra.mxu0 0.0
    %5959 = vmatprep.subr.mxu0 0.0
    %5960 = vmatpush1.msra.mxu0 0.0
    %5961 = vmatprep.subr.mxu0 0.0
    %5962 = vmatpush1.msra.mxu0 0.0
    %5963 = vmatprep.subr.mxu0 0.0
    %5964 = vmatpush1.msra.mxu0 0.0
    %5965 = vmatprep.subr.mxu0 0.0
    %5966 = vmatpush1.msra.mxu0 0.0
    %5967 = vmatprep.subr.mxu0 0.0
    %5968 = vmatpush1.msra.mxu0 0.0
    %5969 = vmatprep.subr.mxu0 0.0
    %5970 = vmatpush1.msra.mxu0 0.0
    %5971 = vmatprep.subr.mxu0 0.0
    %5972 = vmatpush1.msra.mxu0 0.0
    %5973 = vmatprep.subr.mxu0 0.0
    %5974 = vmatpush1.msra.mxu0 0.0
    %5975 = vmatprep.subr.mxu0 0.0
    %5976 = vmatpush1.msra.mxu0 0.0
    %5977 = vmatprep.subr.mxu0 0.0
    %5978 = vmatpush1.msra.mxu0 0.0
    %5979 = vmatprep.subr.mxu0 0.0
    %5980 = vmatpush1.msra.mxu0 0.0
    %5981 = vmatprep.subr.mxu0 0.0
    %5982 = vmatpush1.msra.mxu0 0.0
    %5983 = vmatprep.subr.mxu0 0.0
    %5984 = vmatpush1.msra.mxu0 0.0
    %5985 = vmatprep.subr.mxu0 0.0
    %5986 = vmatpush1.msra.mxu0 0.0
    %5987 = vmatprep.subr.mxu0 0.0
    %5988 = vmatpush1.msra.mxu0 0.0
    %5989 = vmatprep.subr.mxu0 0.0
    %5990 = vmatpush1.msra.mxu0 0.0
    %5991 = vmatprep.subr.mxu0 0.0
    %5992 = vmatpush1.msra.mxu0 0.0
    %5993 = vmatprep.subr.mxu0 0.0
    %5994 = vmatpush1.msra.mxu0 0.0
    %5995 = vmatprep.subr.mxu0 0.0
    %5996 = vmatpush1.msra.mxu0 0.0
    %5997 = vmatprep.mubr.f32.mxu0 0.0
    %v5998 = vand.u32 %v2692, 4294901760
    %v5999 = vsub.f32 %v2692, %v5998
    %6000 = vmatmul.mubr.f32.gmra.mrb[0].mxu0 %v5999
    %v6001 = vpop.f32.mrb[0].mxu0
    %v6002 = vadd.f32 %v5922, %v6001
    %v6003 = vpop.f32.mrb[0].mxu0
    %6004 = vdwg.mxu0
    %6005 = vmatprep.subr.mxu0 0.0
    %v6006 = vand.u32 %v74, 4294901760
    %6007 = vmatpush1.msra.mxu0 %v6006
    %6008 = vmatprep.subr.mxu0 0.0
    %v6009 = vand.u32 %v77, 4294901760
    %6010 = vmatpush1.msra.mxu0 %v6009
    %6011 = vmatprep.subr.mxu0 0.0
    %v6012 = vand.u32 %v80, 4294901760
    %6013 = vmatpush1.msra.mxu0 %v6012
    %6014 = vmatprep.subr.mxu0 0.0
    %v6015 = vand.u32 %v83, 4294901760
    %6016 = vmatpush1.msra.mxu0 %v6015
    %6017 = vmatprep.subr.mxu0 0.0
    %6018 = vmatpush1.msra.mxu0 0.0
    %6019 = vmatprep.subr.mxu0 0.0
    %6020 = vmatpush1.msra.mxu0 0.0
    %6021 = vmatprep.subr.mxu0 0.0
    %6022 = vmatpush1.msra.mxu0 0.0
    %6023 = vmatprep.subr.mxu0 0.0
    %6024 = vmatpush1.msra.mxu0 0.0
    %6025 = vmatprep.subr.mxu0 0.0
    %6026 = vmatpush1.msra.mxu0 0.0
    %6027 = vmatprep.subr.mxu0 0.0
    %6028 = vmatpush1.msra.mxu0 0.0
    %6029 = vmatprep.subr.mxu0 0.0
    %6030 = vmatpush1.msra.mxu0 0.0
    %6031 = vmatprep.subr.mxu0 0.0
    %6032 = vmatpush1.msra.mxu0 0.0
    %6033 = vmatprep.subr.mxu0 0.0
    %6034 = vmatpush1.msra.mxu0 0.0
    %6035 = vmatprep.subr.mxu0 0.0
    %6036 = vmatpush1.msra.mxu0 0.0
    %6037 = vmatprep.subr.mxu0 0.0
    %6038 = vmatpush1.msra.mxu0 0.0
    %6039 = vmatprep.subr.mxu0 0.0
    %6040 = vmatpush1.msra.mxu0 0.0
    %6041 = vmatprep.subr.mxu0 0.0
    %6042 = vmatpush1.msra.mxu0 0.0
    %6043 = vmatprep.subr.mxu0 0.0
    %6044 = vmatpush1.msra.mxu0 0.0
    %6045 = vmatprep.subr.mxu0 0.0
    %6046 = vmatpush1.msra.mxu0 0.0
    %6047 = vmatprep.subr.mxu0 0.0
    %6048 = vmatpush1.msra.mxu0 0.0
    %6049 = vmatprep.subr.mxu0 0.0
    %6050 = vmatpush1.msra.mxu0 0.0
    %6051 = vmatprep.subr.mxu0 0.0
    %6052 = vmatpush1.msra.mxu0 0.0
    %6053 = vmatprep.subr.mxu0 0.0
    %6054 = vmatpush1.msra.mxu0 0.0
    %6055 = vmatprep.subr.mxu0 0.0
    %6056 = vmatpush1.msra.mxu0 0.0
    %6057 = vmatprep.subr.mxu0 0.0
    %6058 = vmatpush1.msra.mxu0 0.0
    %6059 = vmatprep.subr.mxu0 0.0
    %6060 = vmatpush1.msra.mxu0 0.0
    %6061 = vmatprep.subr.mxu0 0.0
    %6062 = vmatpush1.msra.mxu0 0.0
    %6063 = vmatprep.subr.mxu0 0.0
    %6064 = vmatpush1.msra.mxu0 0.0
    %6065 = vmatprep.subr.mxu0 0.0
    %6066 = vmatpush1.msra.mxu0 0.0
    %6067 = vmatprep.subr.mxu0 0.0
    %6068 = vmatpush1.msra.mxu0 0.0
    %6069 = vmatprep.subr.mxu0 0.0
    %6070 = vmatpush1.msra.mxu0 0.0
    %6071 = vmatprep.subr.mxu0 0.0
    %6072 = vmatpush1.msra.mxu0 0.0
    %6073 = vmatprep.mubr.f32.mxu0 0.0
    %v6074 = vand.u32 %v2692, 4294901760
    %v6075 = vsub.f32 %v2692, %v6074
    %v6076 = vand.u32 %v6075, 4294901760
    %6077 = vmatmul.mubr.f32.gmra.mrb[0].mxu0 %v6076
    %v6078 = vpop.f32.mrb[0].mxu0
    %v6079 = vadd.f32 %v6002, %v6078
    %v6080 = vpop.f32.mrb[0].mxu0
    %6081 = vdwg.mxu0
    %6082 = vmatprep.subr.mxu0 0.0
    %v6083 = vand.u32 %v74, 4294901760
    %v6084 = vsub.f32 %v74, %v6083
    %v6085 = vand.u32 %v6084, 4294901760
    %6086 = vmatpush1.msra.mxu0 %v6085
    %6087 = vmatprep.subr.mxu0 0.0
    %v6088 = vand.u32 %v77, 4294901760
    %v6089 = vsub.f32 %v77, %v6088
    %v6090 = vand.u32 %v6089, 4294901760
    %6091 = vmatpush1.msra.mxu0 %v6090
    %6092 = vmatprep.subr.mxu0 0.0
    %v6093 = vand.u32 %v80, 4294901760
    %v6094 = vsub.f32 %v80, %v6093
    %v6095 = vand.u32 %v6094, 4294901760
    %6096 = vmatpush1.msra.mxu0 %v6095
    %6097 = vmatprep.subr.mxu0 0.0
    %v6098 = vand.u32 %v83, 4294901760
    %v6099 = vsub.f32 %v83, %v6098
    %v6100 = vand.u32 %v6099, 4294901760
    %6101 = vmatpush1.msra.mxu0 %v6100
    %6102 = vmatprep.subr.mxu0 0.0
    %6103 = vmatpush1.msra.mxu0 0.0
    %6104 = vmatprep.subr.mxu0 0.0
    %6105 = vmatpush1.msra.mxu0 0.0
    %6106 = vmatprep.subr.mxu0 0.0
    %6107 = vmatpush1.msra.mxu0 0.0
    %6108 = vmatprep.subr.mxu0 0.0
    %6109 = vmatpush1.msra.mxu0 0.0
    %6110 = vmatprep.subr.mxu0 0.0
    %6111 = vmatpush1.msra.mxu0 0.0
    %6112 = vmatprep.subr.mxu0 0.0
    %6113 = vmatpush1.msra.mxu0 0.0
    %6114 = vmatprep.subr.mxu0 0.0
    %6115 = vmatpush1.msra.mxu0 0.0
    %6116 = vmatprep.subr.mxu0 0.0
    %6117 = vmatpush1.msra.mxu0 0.0
    %6118 = vmatprep.subr.mxu0 0.0
    %6119 = vmatpush1.msra.mxu0 0.0
    %6120 = vmatprep.subr.mxu0 0.0
    %6121 = vmatpush1.msra.mxu0 0.0
    %6122 = vmatprep.subr.mxu0 0.0
    %6123 = vmatpush1.msra.mxu0 0.0
    %6124 = vmatprep.subr.mxu0 0.0
    %6125 = vmatpush1.msra.mxu0 0.0
    %6126 = vmatprep.subr.mxu0 0.0
    %6127 = vmatpush1.msra.mxu0 0.0
    %6128 = vmatprep.subr.mxu0 0.0
    %6129 = vmatpush1.msra.mxu0 0.0
    %6130 = vmatprep.subr.mxu0 0.0
    %6131 = vmatpush1.msra.mxu0 0.0
    %6132 = vmatprep.subr.mxu0 0.0
    %6133 = vmatpush1.msra.mxu0 0.0
    %6134 = vmatprep.subr.mxu0 0.0
    %6135 = vmatpush1.msra.mxu0 0.0
    %6136 = vmatprep.subr.mxu0 0.0
    %6137 = vmatpush1.msra.mxu0 0.0
    %6138 = vmatprep.subr.mxu0 0.0
    %6139 = vmatpush1.msra.mxu0 0.0
    %6140 = vmatprep.subr.mxu0 0.0
    %6141 = vmatpush1.msra.mxu0 0.0
    %6142 = vmatprep.subr.mxu0 0.0
    %6143 = vmatpush1.msra.mxu0 0.0
    %6144 = vmatprep.subr.mxu0 0.0
    %6145 = vmatpush1.msra.mxu0 0.0
    %6146 = vmatprep.subr.mxu0 0.0
    %6147 = vmatpush1.msra.mxu0 0.0
    %6148 = vmatprep.subr.mxu0 0.0
    %6149 = vmatpush1.msra.mxu0 0.0
    %6150 = vmatprep.subr.mxu0 0.0
    %6151 = vmatpush1.msra.mxu0 0.0
    %6152 = vmatprep.subr.mxu0 0.0
    %6153 = vmatpush1.msra.mxu0 0.0
    %6154 = vmatprep.subr.mxu0 0.0
    %6155 = vmatpush1.msra.mxu0 0.0
    %6156 = vmatprep.subr.mxu0 0.0
    %6157 = vmatpush1.msra.mxu0 0.0
    %6158 = vmatprep.mubr.f32.mxu0 0.0
    %v6159 = vand.u32 %v2692, 4294901760
    %6160 = vmatmul.mubr.f32.gmra.mrb[0].mxu0 %v6159
    %v6161 = vpop.f32.mrb[0].mxu0
    %v6162 = vadd.f32 %v6079, %v6161
    %v6163 = vpop.f32.mrb[0].mxu0
    %6164 = vdwg.mxu0
    %6165 = vmatprep.subr.mxu0 0.0
    %v6166 = vand.u32 %v74, 4294901760
    %6167 = vmatpush1.msra.mxu0 %v6166
    %6168 = vmatprep.subr.mxu0 0.0
    %v6169 = vand.u32 %v77, 4294901760
    %6170 = vmatpush1.msra.mxu0 %v6169
    %6171 = vmatprep.subr.mxu0 0.0
    %v6172 = vand.u32 %v80, 4294901760
    %6173 = vmatpush1.msra.mxu0 %v6172
    %6174 = vmatprep.subr.mxu0 0.0
    %v6175 = vand.u32 %v83, 4294901760
    %6176 = vmatpush1.msra.mxu0 %v6175
    %6177 = vmatprep.subr.mxu0 0.0
    %6178 = vmatpush1.msra.mxu0 0.0
    %6179 = vmatprep.subr.mxu0 0.0
    %6180 = vmatpush1.msra.mxu0 0.0
    %6181 = vmatprep.subr.mxu0 0.0
    %6182 = vmatpush1.msra.mxu0 0.0
    %6183 = vmatprep.subr.mxu0 0.0
    %6184 = vmatpush1.msra.mxu0 0.0
    %6185 = vmatprep.subr.mxu0 0.0
    %6186 = vmatpush1.msra.mxu0 0.0
    %6187 = vmatprep.subr.mxu0 0.0
    %6188 = vmatpush1.msra.mxu0 0.0
    %6189 = vmatprep.subr.mxu0 0.0
    %6190 = vmatpush1.msra.mxu0 0.0
    %6191 = vmatprep.subr.mxu0 0.0
    %6192 = vmatpush1.msra.mxu0 0.0
    %6193 = vmatprep.subr.mxu0 0.0
    %6194 = vmatpush1.msra.mxu0 0.0
    %6195 = vmatprep.subr.mxu0 0.0
    %6196 = vmatpush1.msra.mxu0 0.0
    %6197 = vmatprep.subr.mxu0 0.0
    %6198 = vmatpush1.msra.mxu0 0.0
    %6199 = vmatprep.subr.mxu0 0.0
    %6200 = vmatpush1.msra.mxu0 0.0
    %6201 = vmatprep.subr.mxu0 0.0
    %6202 = vmatpush1.msra.mxu0 0.0
    %6203 = vmatprep.subr.mxu0 0.0
    %6204 = vmatpush1.msra.mxu0 0.0
    %6205 = vmatprep.subr.mxu0 0.0
    %6206 = vmatpush1.msra.mxu0 0.0
    %6207 = vmatprep.subr.mxu0 0.0
    %6208 = vmatpush1.msra.mxu0 0.0
    %6209 = vmatprep.subr.mxu0 0.0
    %6210 = vmatpush1.msra.mxu0 0.0
    %6211 = vmatprep.subr.mxu0 0.0
    %6212 = vmatpush1.msra.mxu0 0.0
    %6213 = vmatprep.subr.mxu0 0.0
    %6214 = vmatpush1.msra.mxu0 0.0
    %6215 = vmatprep.subr.mxu0 0.0
    %6216 = vmatpush1.msra.mxu0 0.0
    %6217 = vmatprep.subr.mxu0 0.0
    %6218 = vmatpush1.msra.mxu0 0.0
    %6219 = vmatprep.subr.mxu0 0.0
    %6220 = vmatpush1.msra.mxu0 0.0
    %6221 = vmatprep.subr.mxu0 0.0
    %6222 = vmatpush1.msra.mxu0 0.0
    %6223 = vmatprep.subr.mxu0 0.0
    %6224 = vmatpush1.msra.mxu0 0.0
    %6225 = vmatprep.subr.mxu0 0.0
    %6226 = vmatpush1.msra.mxu0 0.0
    %6227 = vmatprep.subr.mxu0 0.0
    %6228 = vmatpush1.msra.mxu0 0.0
    %6229 = vmatprep.subr.mxu0 0.0
    %6230 = vmatpush1.msra.mxu0 0.0
    %6231 = vmatprep.subr.mxu0 0.0
    %6232 = vmatpush1.msra.mxu0 0.0
    %6233 = vmatprep.mubr.f32.mxu0 0.0
    %v6234 = vand.u32 %v2692, 4294901760
    %6235 = vmatmul.mubr.f32.gmra.mrb[0].mxu0 %v6234
    %v6236 = vpop.f32.mrb[0].mxu0
    %v6237 = vadd.f32 %v6162, %v6236
    %v6238 = vpop.f32.mrb[0].mxu0
    %6239 = vdwg.mxu0
    %v6240 = vadd.f32 %v4723, %v5751
    %v6241 = vxor.u32 %v6240, 2147483648
    %v6242 = vmul.f32 %v6241, 1.442695
    %v6243 = vpow.pop %v6242
    %v6244 = vadd.f32 %v6243, 1.0
    %v6245 = vrcp.pop %v6244
    %v6246 = vmul.f32 1.0, %v6245
    %v6247 = vadd.f32 %v4725, %v5753
    %v6248 = vxor.u32 %v6247, 2147483648
    %v6249 = vmul.f32 %v6248, 1.442695
    %v6250 = vpow.pop %v6249
    %v6251 = vadd.f32 %v6250, 1.0
    %v6252 = vrcp.pop %v6251
    %v6253 = vmul.f32 1.0, %v6252
    %v6254 = vmul.f32 %v6246, %v6237
    %v6255 = vadd.f32 %v5209, %v6254
    %v6256 = vtanh.pop %v6255
    %v6257 = vsub.f32 1.0, %v6253
    %v6258 = vmul.f32 %v6257, %v6256
    %v6259 = vmul.f32 %v6253, %v2690
    %v6260 = vadd.f32 %v6258, %v6259
    %v6262 = vsel %vm591, %v6260, 0
    %6264 = vmatprep.subr.mxu0 0.0
    %v6265 = vand.u32 %v3693, 4294901760
    %6266 = vmatpush1.msra.mxu0 %v6265
    %6267 = vmatprep.subr.mxu0 0.0
    %v6268 = vand.u32 %v3694, 4294901760
    %6269 = vmatpush1.msra.mxu0 %v6268
    %6270 = vmatprep.subr.mxu0 0.0
    %v6271 = vand.u32 %v3695, 4294901760
    %6272 = vmatpush1.msra.mxu0 %v6271
    %6273 = vmatprep.subr.mxu0 0.0
    %v6274 = vand.u32 %v3696, 4294901760
    %6275 = vmatpush1.msra.mxu0 %v6274
    %6276 = vmatprep.subr.mxu0 0.0
    %6277 = vmatpush1.msra.mxu0 0.0
    %6278 = vmatprep.subr.mxu0 0.0
    %6279 = vmatpush1.msra.mxu0 0.0
    %6280 = vmatprep.subr.mxu0 0.0
    %6281 = vmatpush1.msra.mxu0 0.0
    %6282 = vmatprep.subr.mxu0 0.0
    %6283 = vmatpush1.msra.mxu0 0.0
    %6284 = vmatprep.subr.mxu0 0.0
    %6285 = vmatpush1.msra.mxu0 0.0
    %6286 = vmatprep.subr.mxu0 0.0
    %6287 = vmatpush1.msra.mxu0 0.0
    %6288 = vmatprep.subr.mxu0 0.0
    %6289 = vmatpush1.msra.mxu0 0.0
    %6290 = vmatprep.subr.mxu0 0.0
    %6291 = vmatpush1.msra.mxu0 0.0
    %6292 = vmatprep.subr.mxu0 0.0
    %6293 = vmatpush1.msra.mxu0 0.0
    %6294 = vmatprep.subr.mxu0 0.0
    %6295 = vmatpush1.msra.mxu0 0.0
    %6296 = vmatprep.subr.mxu0 0.0
    %6297 = vmatpush1.msra.mxu0 0.0
    %6298 = vmatprep.subr.mxu0 0.0
    %6299 = vmatpush1.msra.mxu0 0.0
    %6300 = vmatprep.subr.mxu0 0.0
    %6301 = vmatpush1.msra.mxu0 0.0
    %6302 = vmatprep.subr.mxu0 0.0
    %6303 = vmatpush1.msra.mxu0 0.0
    %6304 = vmatprep.subr.mxu0 0.0
    %6305 = vmatpush1.msra.mxu0 0.0
    %6306 = vmatprep.subr.mxu0 0.0
    %6307 = vmatpush1.msra.mxu0 0.0
    %6308 = vmatprep.subr.mxu0 0.0
    %6309 = vmatpush1.msra.mxu0 0.0
    %6310 = vmatprep.subr.mxu0 0.0
    %6311 = vmatpush1.msra.mxu0 0.0
    %6312 = vmatprep.subr.mxu0 0.0
    %6313 = vmatpush1.msra.mxu0 0.0
    %6314 = vmatprep.subr.mxu0 0.0
    %6315 = vmatpush1.msra.mxu0 0.0
    %6316 = vmatprep.subr.mxu0 0.0
    %6317 = vmatpush1.msra.mxu0 0.0
    %6318 = vmatprep.subr.mxu0 0.0
    %6319 = vmatpush1.msra.mxu0 0.0
    %6320 = vmatprep.subr.mxu0 0.0
    %6321 = vmatpush1.msra.mxu0 0.0
    %6322 = vmatprep.subr.mxu0 0.0
    %6323 = vmatpush1.msra.mxu0 0.0
    %6324 = vmatprep.subr.mxu0 0.0
    %6325 = vmatpush1.msra.mxu0 0.0
    %6326 = vmatprep.subr.mxu0 0.0
    %6327 = vmatpush1.msra.mxu0 0.0
    %6328 = vmatprep.subr.mxu0 0.0
    %6329 = vmatpush1.msra.mxu0 0.0
    %6330 = vmatprep.subr.mxu0 0.0
    %6331 = vmatpush1.msra.mxu0 0.0
    %6332 = vmatprep.mubr.f32.mxu0 0.0
    %v6333 = vand.u32 %v6262, 4294901760
    %v6334 = vsub.f32 %v6262, %v6333
    %v6335 = vand.u32 %v6334, 4294901760
    %v6336 = vsub.f32 %v6334, %v6335
    %v6337 = vand.u32 %v6336, 4294901760
    %6338 = vmatmul.mubr.f32.gmra.mrb[0].mxu0 %v6337
    %v6339 = vpop.f32.mrb[0].mxu0
    %v6340 = vadd.f32 %v3697, %v6339
    %v6341 = vpop.f32.mrb[0].mxu0
    %6342 = vdwg.mxu0
    %6343 = vmatprep.subr.mxu0 0.0
    %v6344 = vand.u32 %v3693, 4294901760
    %v6345 = vsub.f32 %v3693, %v6344
    %v6346 = vand.u32 %v6345, 4294901760
    %v6347 = vsub.f32 %v6345, %v6346
    %v6348 = vand.u32 %v6347, 4294901760
    %6349 = vmatpush1.msra.mxu0 %v6348
    %6350 = vmatprep.subr.mxu0 0.0
    %v6351 = vand.u32 %v3694, 4294901760
    %v6352 = vsub.f32 %v3694, %v6351
    %v6353 = vand.u32 %v6352, 4294901760
    %v6354 = vsub.f32 %v6352, %v6353
    %v6355 = vand.u32 %v6354, 4294901760
    %6356 = vmatpush1.msra.mxu0 %v6355
    %6357 = vmatprep.subr.mxu0 0.0
    %v6358 = vand.u32 %v3695, 4294901760
    %v6359 = vsub.f32 %v3695, %v6358
    %v6360 = vand.u32 %v6359, 4294901760
    %v6361 = vsub.f32 %v6359, %v6360
    %v6362 = vand.u32 %v6361, 4294901760
    %6363 = vmatpush1.msra.mxu0 %v6362
    %6364 = vmatprep.subr.mxu0 0.0
    %v6365 = vand.u32 %v3696, 4294901760
    %v6366 = vsub.f32 %v3696, %v6365
    %v6367 = vand.u32 %v6366, 4294901760
    %v6368 = vsub.f32 %v6366, %v6367
    %v6369 = vand.u32 %v6368, 4294901760
    %6370 = vmatpush1.msra.mxu0 %v6369
    %6371 = vmatprep.subr.mxu0 0.0
    %6372 = vmatpush1.msra.mxu0 0.0
    %6373 = vmatprep.subr.mxu0 0.0
    %6374 = vmatpush1.msra.mxu0 0.0
    %6375 = vmatprep.subr.mxu0 0.0
    %6376 = vmatpush1.msra.mxu0 0.0
    %6377 = vmatprep.subr.mxu0 0.0
    %6378 = vmatpush1.msra.mxu0 0.0
    %6379 = vmatprep.subr.mxu0 0.0
    %6380 = vmatpush1.msra.mxu0 0.0
    %6381 = vmatprep.subr.mxu0 0.0
    %6382 = vmatpush1.msra.mxu0 0.0
    %6383 = vmatprep.subr.mxu0 0.0
    %6384 = vmatpush1.msra.mxu0 0.0
    %6385 = vmatprep.subr.mxu0 0.0
    %6386 = vmatpush1.msra.mxu0 0.0
    %6387 = vmatprep.subr.mxu0 0.0
    %6388 = vmatpush1.msra.mxu0 0.0
    %6389 = vmatprep.subr.mxu0 0.0
    %6390 = vmatpush1.msra.mxu0 0.0
    %6391 = vmatprep.subr.mxu0 0.0
    %6392 = vmatpush1.msra.mxu0 0.0
    %6393 = vmatprep.subr.mxu0 0.0
    %6394 = vmatpush1.msra.mxu0 0.0
    %6395 = vmatprep.subr.mxu0 0.0
    %6396 = vmatpush1.msra.mxu0 0.0
    %6397 = vmatprep.subr.mxu0 0.0
    %6398 = vmatpush1.msra.mxu0 0.0
    %6399 = vmatprep.subr.mxu0 0.0
    %6400 = vmatpush1.msra.mxu0 0.0
    %6401 = vmatprep.subr.mxu0 0.0
    %6402 = vmatpush1.msra.mxu0 0.0
    %6403 = vmatprep.subr.mxu0 0.0
    %6404 = vmatpush1.msra.mxu0 0.0
    %6405 = vmatprep.subr.mxu0 0.0
    %6406 = vmatpush1.msra.mxu0 0.0
    %6407 = vmatprep.subr.mxu0 0.0
    %6408 = vmatpush1.msra.mxu0 0.0
    %6409 = vmatprep.subr.mxu0 0.0
    %6410 = vmatpush1.msra.mxu0 0.0
    %6411 = vmatprep.subr.mxu0 0.0
    %6412 = vmatpush1.msra.mxu0 0.0
    %6413 = vmatprep.subr.mxu0 0.0
    %6414 = vmatpush1.msra.mxu0 0.0
    %6415 = vmatprep.subr.mxu0 0.0
    %6416 = vmatpush1.msra.mxu0 0.0
    %6417 = vmatprep.subr.mxu0 0.0
    %6418 = vmatpush1.msra.mxu0 0.0
    %6419 = vmatprep.subr.mxu0 0.0
    %6420 = vmatpush1.msra.mxu0 0.0
    %6421 = vmatprep.subr.mxu0 0.0
    %6422 = vmatpush1.msra.mxu0 0.0
    %6423 = vmatprep.subr.mxu0 0.0
    %6424 = vmatpush1.msra.mxu0 0.0
    %6425 = vmatprep.subr.mxu0 0.0
    %6426 = vmatpush1.msra.mxu0 0.0
    %6427 = vmatprep.mubr.f32.mxu0 0.0
    %v6428 = vand.u32 %v6262, 4294901760
    %6429 = vmatmul.mubr.f32.gmra.mrb[0].mxu0 %v6428
    %v6430 = vpop.f32.mrb[0].mxu0
    %v6431 = vadd.f32 %v6340, %v6430
    %v6432 = vpop.f32.mrb[0].mxu0
    %6433 = vdwg.mxu0
    %6434 = vmatprep.subr.mxu0 0.0
    %v6435 = vand.u32 %v3693, 4294901760
    %v6436 = vsub.f32 %v3693, %v6435
    %6437 = vmatpush1.msra.mxu0 %v6436
    %6438 = vmatprep.subr.mxu0 0.0
    %v6439 = vand.u32 %v3694, 4294901760
    %v6440 = vsub.f32 %v3694, %v6439
    %6441 = vmatpush1.msra.mxu0 %v6440
    %6442 = vmatprep.subr.mxu0 0.0
    %v6443 = vand.u32 %v3695, 4294901760
    %v6444 = vsub.f32 %v3695, %v6443
    %6445 = vmatpush1.msra.mxu0 %v6444
    %6446 = vmatprep.subr.mxu0 0.0
    %v6447 = vand.u32 %v3696, 4294901760
    %v6448 = vsub.f32 %v3696, %v6447
    %6449 = vmatpush1.msra.mxu0 %v6448
    %6450 = vmatprep.subr.mxu0 0.0
    %6451 = vmatpush1.msra.mxu0 0.0
    %6452 = vmatprep.subr.mxu0 0.0
    %6453 = vmatpush1.msra.mxu0 0.0
    %6454 = vmatprep.subr.mxu0 0.0
    %6455 = vmatpush1.msra.mxu0 0.0
    %6456 = vmatprep.subr.mxu0 0.0
    %6457 = vmatpush1.msra.mxu0 0.0
    %6458 = vmatprep.subr.mxu0 0.0
    %6459 = vmatpush1.msra.mxu0 0.0
    %6460 = vmatprep.subr.mxu0 0.0
    %6461 = vmatpush1.msra.mxu0 0.0
    %6462 = vmatprep.subr.mxu0 0.0
    %6463 = vmatpush1.msra.mxu0 0.0
    %6464 = vmatprep.subr.mxu0 0.0
    %6465 = vmatpush1.msra.mxu0 0.0
    %6466 = vmatprep.subr.mxu0 0.0
    %6467 = vmatpush1.msra.mxu0 0.0
    %6468 = vmatprep.subr.mxu0 0.0
    %6469 = vmatpush1.msra.mxu0 0.0
    %6470 = vmatprep.subr.mxu0 0.0
    %6471 = vmatpush1.msra.mxu0 0.0
    %6472 = vmatprep.subr.mxu0 0.0
    %6473 = vmatpush1.msra.mxu0 0.0
    %6474 = vmatprep.subr.mxu0 0.0
    %6475 = vmatpush1.msra.mxu0 0.0
    %6476 = vmatprep.subr.mxu0 0.0
    %6477 = vmatpush1.msra.mxu0 0.0
    %6478 = vmatprep.subr.mxu0 0.0
    %6479 = vmatpush1.msra.mxu0 0.0
    %6480 = vmatprep.subr.mxu0 0.0
    %6481 = vmatpush1.msra.mxu0 0.0
    %6482 = vmatprep.subr.mxu0 0.0
    %6483 = vmatpush1.msra.mxu0 0.0
    %6484 = vmatprep.subr.mxu0 0.0
    %6485 = vmatpush1.msra.mxu0 0.0
    %6486 = vmatprep.subr.mxu0 0.0
    %6487 = vmatpush1.msra.mxu0 0.0
    %6488 = vmatprep.subr.mxu0 0.0
    %6489 = vmatpush1.msra.mxu0 0.0
    %6490 = vmatprep.subr.mxu0 0.0
    %6491 = vmatpush1.msra.mxu0 0.0
    %6492 = vmatprep.subr.mxu0 0.0
    %6493 = vmatpush1.msra.mxu0 0.0
    %6494 = vmatprep.subr.mxu0 0.0
    %6495 = vmatpush1.msra.mxu0 0.0
    %6496 = vmatprep.subr.mxu0 0.0
    %6497 = vmatpush1.msra.mxu0 0.0
    %6498 = vmatprep.subr.mxu0 0.0
    %6499 = vmatpush1.msra.mxu0 0.0
    %6500 = vmatprep.subr.mxu0 0.0
    %6501 = vmatpush1.msra.mxu0 0.0
    %6502 = vmatprep.subr.mxu0 0.0
    %6503 = vmatpush1.msra.mxu0 0.0
    %6504 = vmatprep.subr.mxu0 0.0
    %6505 = vmatpush1.msra.mxu0 0.0
    %6506 = vmatprep.mubr.f32.mxu0 0.0
    %v6507 = vand.u32 %v6262, 4294901760
    %v6508 = vsub.f32 %v6262, %v6507
    %6509 = vmatmul.mubr.f32.gmra.mrb[0].mxu0 %v6508
    %v6510 = vpop.f32.mrb[0].mxu0
    %v6511 = vadd.f32 %v6431, %v6510
    %v6512 = vpop.f32.mrb[0].mxu0
    %6513 = vdwg.mxu0
    %6514 = vmatprep.subr.mxu0 0.0
    %v6515 = vand.u32 %v3693, 4294901760
    %6516 = vmatpush1.msra.mxu0 %v6515
    %6517 = vmatprep.subr.mxu0 0.0
    %v6518 = vand.u32 %v3694, 4294901760
    %6519 = vmatpush1.msra.mxu0 %v6518
    %6520 = vmatprep.subr.mxu0 0.0
    %v6521 = vand.u32 %v3695, 4294901760
    %6522 = vmatpush1.msra.mxu0 %v6521
    %6523 = vmatprep.subr.mxu0 0.0
    %v6524 = vand.u32 %v3696, 4294901760
    %6525 = vmatpush1.msra.mxu0 %v6524
    %6526 = vmatprep.subr.mxu0 0.0
    %6527 = vmatpush1.msra.mxu0 0.0
    %6528 = vmatprep.subr.mxu0 0.0
    %6529 = vmatpush1.msra.mxu0 0.0
    %6530 = vmatprep.subr.mxu0 0.0
    %6531 = vmatpush1.msra.mxu0 0.0
    %6532 = vmatprep.subr.mxu0 0.0
    %6533 = vmatpush1.msra.mxu0 0.0
    %6534 = vmatprep.subr.mxu0 0.0
    %6535 = vmatpush1.msra.mxu0 0.0
    %6536 = vmatprep.subr.mxu0 0.0
    %6537 = vmatpush1.msra.mxu0 0.0
    %6538 = vmatprep.subr.mxu0 0.0
    %6539 = vmatpush1.msra.mxu0 0.0
    %6540 = vmatprep.subr.mxu0 0.0
    %6541 = vmatpush1.msra.mxu0 0.0
    %6542 = vmatprep.subr.mxu0 0.0
    %6543 = vmatpush1.msra.mxu0 0.0
    %6544 = vmatprep.subr.mxu0 0.0
    %6545 = vmatpush1.msra.mxu0 0.0
    %6546 = vmatprep.subr.mxu0 0.0
    %6547 = vmatpush1.msra.mxu0 0.0
    %6548 = vmatprep.subr.mxu0 0.0
    %6549 = vmatpush1.msra.mxu0 0.0
    %6550 = vmatprep.subr.mxu0 0.0
    %6551 = vmatpush1.msra.mxu0 0.0
    %6552 = vmatprep.subr.mxu0 0.0
    %6553 = vmatpush1.msra.mxu0 0.0
    %6554 = vmatprep.subr.mxu0 0.0
    %6555 = vmatpush1.msra.mxu0 0.0
    %6556 = vmatprep.subr.mxu0 0.0
    %6557 = vmatpush1.msra.mxu0 0.0
    %6558 = vmatprep.subr.mxu0 0.0
    %6559 = vmatpush1.msra.mxu0 0.0
    %6560 = vmatprep.subr.mxu0 0.0
    %6561 = vmatpush1.msra.mxu0 0.0
    %6562 = vmatprep.subr.mxu0 0.0
    %6563 = vmatpush1.msra.mxu0 0.0
    %6564 = vmatprep.subr.mxu0 0.0
    %6565 = vmatpush1.msra.mxu0 0.0
    %6566 = vmatprep.subr.mxu0 0.0
    %6567 = vmatpush1.msra.mxu0 0.0
    %6568 = vmatprep.subr.mxu0 0.0
    %6569 = vmatpush1.msra.mxu0 0.0
    %6570 = vmatprep.subr.mxu0 0.0
    %6571 = vmatpush1.msra.mxu0 0.0
    %6572 = vmatprep.subr.mxu0 0.0
    %6573 = vmatpush1.msra.mxu0 0.0
    %6574 = vmatprep.subr.mxu0 0.0
    %6575 = vmatpush1.msra.mxu0 0.0
    %6576 = vmatprep.subr.mxu0 0.0
    %6577 = vmatpush1.msra.mxu0 0.0
    %6578 = vmatprep.subr.mxu0 0.0
    %6579 = vmatpush1.msra.mxu0 0.0
    %6580 = vmatprep.subr.mxu0 0.0
    %6581 = vmatpush1.msra.mxu0 0.0
    %6582 = vmatprep.mubr.f32.mxu0 0.0
    %v6583 = vand.u32 %v6262, 4294901760
    %v6584 = vsub.f32 %v6262, %v6583
    %v6585 = vand.u32 %v6584, 4294901760
    %6586 = vmatmul.mubr.f32.gmra.mrb[0].mxu0 %v6585
    %v6587 = vpop.f32.mrb[0].mxu0
    %v6588 = vadd.f32 %v6511, %v6587
    %v6589 = vpop.f32.mrb[0].mxu0
    %6590 = vdwg.mxu0
    %6591 = vmatprep.subr.mxu0 0.0
    %v6592 = vand.u32 %v3693, 4294901760
    %v6593 = vsub.f32 %v3693, %v6592
    %v6594 = vand.u32 %v6593, 4294901760
    %6595 = vmatpush1.msra.mxu0 %v6594
    %6596 = vmatprep.subr.mxu0 0.0
    %v6597 = vand.u32 %v3694, 4294901760
    %v6598 = vsub.f32 %v3694, %v6597
    %v6599 = vand.u32 %v6598, 4294901760
    %6600 = vmatpush1.msra.mxu0 %v6599
    %6601 = vmatprep.subr.mxu0 0.0
    %v6602 = vand.u32 %v3695, 4294901760
    %v6603 = vsub.f32 %v3695, %v6602
    %v6604 = vand.u32 %v6603, 4294901760
    %6605 = vmatpush1.msra.mxu0 %v6604
    %6606 = vmatprep.subr.mxu0 0.0
    %v6607 = vand.u32 %v3696, 4294901760
    %v6608 = vsub.f32 %v3696, %v6607
    %v6609 = vand.u32 %v6608, 4294901760
    %6610 = vmatpush1.msra.mxu0 %v6609
    %6611 = vmatprep.subr.mxu0 0.0
    %6612 = vmatpush1.msra.mxu0 0.0
    %6613 = vmatprep.subr.mxu0 0.0
    %6614 = vmatpush1.msra.mxu0 0.0
    %6615 = vmatprep.subr.mxu0 0.0
    %6616 = vmatpush1.msra.mxu0 0.0
    %6617 = vmatprep.subr.mxu0 0.0
    %6618 = vmatpush1.msra.mxu0 0.0
    %6619 = vmatprep.subr.mxu0 0.0
    %6620 = vmatpush1.msra.mxu0 0.0
    %6621 = vmatprep.subr.mxu0 0.0
    %6622 = vmatpush1.msra.mxu0 0.0
    %6623 = vmatprep.subr.mxu0 0.0
    %6624 = vmatpush1.msra.mxu0 0.0
    %6625 = vmatprep.subr.mxu0 0.0
    %6626 = vmatpush1.msra.mxu0 0.0
    %6627 = vmatprep.subr.mxu0 0.0
    %6628 = vmatpush1.msra.mxu0 0.0
    %6629 = vmatprep.subr.mxu0 0.0
    %6630 = vmatpush1.msra.mxu0 0.0
    %6631 = vmatprep.subr.mxu0 0.0
    %6632 = vmatpush1.msra.mxu0 0.0
    %6633 = vmatprep.subr.mxu0 0.0
    %6634 = vmatpush1.msra.mxu0 0.0
    %6635 = vmatprep.subr.mxu0 0.0
    %6636 = vmatpush1.msra.mxu0 0.0
    %6637 = vmatprep.subr.mxu0 0.0
    %6638 = vmatpush1.msra.mxu0 0.0
    %6639 = vmatprep.subr.mxu0 0.0
    %6640 = vmatpush1.msra.mxu0 0.0
    %6641 = vmatprep.subr.mxu0 0.0
    %6642 = vmatpush1.msra.mxu0 0.0
    %6643 = vmatprep.subr.mxu0 0.0
    %6644 = vmatpush1.msra.mxu0 0.0
    %6645 = vmatprep.subr.mxu0 0.0
    %6646 = vmatpush1.msra.mxu0 0.0
    %6647 = vmatprep.subr.mxu0 0.0
    %6648 = vmatpush1.msra.mxu0 0.0
    %6649 = vmatprep.subr.mxu0 0.0
    %6650 = vmatpush1.msra.mxu0 0.0
    %6651 = vmatprep.subr.mxu0 0.0
    %6652 = vmatpush1.msra.mxu0 0.0
    %6653 = vmatprep.subr.mxu0 0.0
    %6654 = vmatpush1.msra.mxu0 0.0
    %6655 = vmatprep.subr.mxu0 0.0
    %6656 = vmatpush1.msra.mxu0 0.0
    %6657 = vmatprep.subr.mxu0 0.0
    %6658 = vmatpush1.msra.mxu0 0.0
    %6659 = vmatprep.subr.mxu0 0.0
    %6660 = vmatpush1.msra.mxu0 0.0
    %6661 = vmatprep.subr.mxu0 0.0
    %6662 = vmatpush1.msra.mxu0 0.0
    %6663 = vmatprep.subr.mxu0 0.0
    %6664 = vmatpush1.msra.mxu0 0.0
    %6665 = vmatprep.subr.mxu0 0.0
    %6666 = vmatpush1.msra.mxu0 0.0
    %6667 = vmatprep.mubr.f32.mxu0 0.0
    %v6668 = vand.u32 %v6262, 4294901760
    %6669 = vmatmul.mubr.f32.gmra.mrb[0].mxu0 %v6668
    %v6670 = vpop.f32.mrb[0].mxu0
    %v6671 = vadd.f32 %v6588, %v6670
    %v6672 = vpop.f32.mrb[0].mxu0
    %6673 = vdwg.mxu0
    %6674 = vmatprep.subr.mxu0 0.0
    %v6675 = vand.u32 %v3693, 4294901760
    %6676 = vmatpush1.msra.mxu0 %v6675
    %6677 = vmatprep.subr.mxu0 0.0
    %v6678 = vand.u32 %v3694, 4294901760
    %6679 = vmatpush1.msra.mxu0 %v6678
    %6680 = vmatprep.subr.mxu0 0.0
    %v6681 = vand.u32 %v3695, 4294901760
    %6682 = vmatpush1.msra.mxu0 %v6681
    %6683 = vmatprep.subr.mxu0 0.0
    %v6684 = vand.u32 %v3696, 4294901760
    %6685 = vmatpush1.msra.mxu0 %v6684
    %6686 = vmatprep.subr.mxu0 0.0
    %6687 = vmatpush1.msra.mxu0 0.0
    %6688 = vmatprep.subr.mxu0 0.0
    %6689 = vmatpush1.msra.mxu0 0.0
    %6690 = vmatprep.subr.mxu0 0.0
    %6691 = vmatpush1.msra.mxu0 0.0
    %6692 = vmatprep.subr.mxu0 0.0
    %6693 = vmatpush1.msra.mxu0 0.0
    %6694 = vmatprep.subr.mxu0 0.0
    %6695 = vmatpush1.msra.mxu0 0.0
    %6696 = vmatprep.subr.mxu0 0.0
    %6697 = vmatpush1.msra.mxu0 0.0
    %6698 = vmatprep.subr.mxu0 0.0
    %6699 = vmatpush1.msra.mxu0 0.0
    %6700 = vmatprep.subr.mxu0 0.0
    %6701 = vmatpush1.msra.mxu0 0.0
    %6702 = vmatprep.subr.mxu0 0.0
    %6703 = vmatpush1.msra.mxu0 0.0
    %6704 = vmatprep.subr.mxu0 0.0
    %6705 = vmatpush1.msra.mxu0 0.0
    %6706 = vmatprep.subr.mxu0 0.0
    %6707 = vmatpush1.msra.mxu0 0.0
    %6708 = vmatprep.subr.mxu0 0.0
    %6709 = vmatpush1.msra.mxu0 0.0
    %6710 = vmatprep.subr.mxu0 0.0
    %6711 = vmatpush1.msra.mxu0 0.0
    %6712 = vmatprep.subr.mxu0 0.0
    %6713 = vmatpush1.msra.mxu0 0.0
    %6714 = vmatprep.subr.mxu0 0.0
    %6715 = vmatpush1.msra.mxu0 0.0
    %6716 = vmatprep.subr.mxu0 0.0
    %6717 = vmatpush1.msra.mxu0 0.0
    %6718 = vmatprep.subr.mxu0 0.0
    %6719 = vmatpush1.msra.mxu0 0.0
    %6720 = vmatprep.subr.mxu0 0.0
    %6721 = vmatpush1.msra.mxu0 0.0
    %6722 = vmatprep.subr.mxu0 0.0
    %6723 = vmatpush1.msra.mxu0 0.0
    %6724 = vmatprep.subr.mxu0 0.0
    %6725 = vmatpush1.msra.mxu0 0.0
    %6726 = vmatprep.subr.mxu0 0.0
    %6727 = vmatpush1.msra.mxu0 0.0
    %6728 = vmatprep.subr.mxu0 0.0
    %6729 = vmatpush1.msra.mxu0 0.0
    %6730 = vmatprep.subr.mxu0 0.0
    %6731 = vmatpush1.msra.mxu0 0.0
    %6732 = vmatprep.subr.mxu0 0.0
    %6733 = vmatpush1.msra.mxu0 0.0
    %6734 = vmatprep.subr.mxu0 0.0
    %6735 = vmatpush1.msra.mxu0 0.0
    %6736 = vmatprep.subr.mxu0 0.0
    %6737 = vmatpush1.msra.mxu0 0.0
    %6738 = vmatprep.subr.mxu0 0.0
    %6739 = vmatpush1.msra.mxu0 0.0
    %6740 = vmatprep.subr.mxu0 0.0
    %6741 = vmatpush1.msra.mxu0 0.0
    %6742 = vmatprep.mubr.f32.mxu0 0.0
    %v6743 = vand.u32 %v6262, 4294901760
    %6744 = vmatmul.mubr.f32.gmra.mrb[0].mxu0 %v6743
    %v6745 = vpop.f32.mrb[0].mxu0
    %v6746 = vadd.f32 %v6671, %v6745
    %v6747 = vpop.f32.mrb[0].mxu0
    %6748 = vdwg.mxu0
    %v6749 = vmax.f32 %v6746, 0.0
    %v6750 = vlaneseq
    %v6751 = vshrl.u32 %v6750, 7
    %v6752 = vsub.s32 0, %v6751
    %v6753 = vrot.slane %v3701, %v6752
    %v6755 = vsel %vm3184, %v6749, 0
    %v6758 = vsel %vm3188, %v3700, 0
    %6760 = vmatprep.subr.mxu0 0.0
    %v6761 = vand.u32 %v3699, 4294901760
    %6762 = vmatpush1.msra.mxu0 %v6761
    %6763 = vmatprep.subr.mxu0 0.0
    %v6764 = vand.u32 %v6758, 4294901760
    %6765 = vmatpush1.msra.mxu0 %v6764
    %6766 = vmatprep.subr.mxu0 0.0
    %6767 = vmatpush1.msra.mxu0 0.0
    %6768 = vmatprep.subr.mxu0 0.0
    %6769 = vmatpush1.msra.mxu0 0.0
    %6770 = vmatprep.subr.mxu0 0.0
    %6771 = vmatpush1.msra.mxu0 0.0
    %6772 = vmatprep.subr.mxu0 0.0
    %6773 = vmatpush1.msra.mxu0 0.0
    %6774 = vmatprep.subr.mxu0 0.0
    %6775 = vmatpush1.msra.mxu0 0.0
    %6776 = vmatprep.subr.mxu0 0.0
    %6777 = vmatpush1.msra.mxu0 0.0
    %6778 = vmatprep.subr.mxu0 0.0
    %6779 = vmatpush1.msra.mxu0 0.0
    %6780 = vmatprep.subr.mxu0 0.0
    %6781 = vmatpush1.msra.mxu0 0.0
    %6782 = vmatprep.subr.mxu0 0.0
    %6783 = vmatpush1.msra.mxu0 0.0
    %6784 = vmatprep.subr.mxu0 0.0
    %6785 = vmatpush1.msra.mxu0 0.0
    %6786 = vmatprep.subr.mxu0 0.0
    %6787 = vmatpush1.msra.mxu0 0.0
    %6788 = vmatprep.subr.mxu0 0.0
    %6789 = vmatpush1.msra.mxu0 0.0
    %6790 = vmatprep.subr.mxu0 0.0
    %6791 = vmatpush1.msra.mxu0 0.0
    %6792 = vmatprep.subr.mxu0 0.0
    %6793 = vmatpush1.msra.mxu0 0.0
    %6794 = vmatprep.subr.mxu0 0.0
    %6795 = vmatpush1.msra.mxu0 0.0
    %6796 = vmatprep.subr.mxu0 0.0
    %6797 = vmatpush1.msra.mxu0 0.0
    %6798 = vmatprep.subr.mxu0 0.0
    %6799 = vmatpush1.msra.mxu0 0.0
    %6800 = vmatprep.subr.mxu0 0.0
    %6801 = vmatpush1.msra.mxu0 0.0
    %6802 = vmatprep.subr.mxu0 0.0
    %6803 = vmatpush1.msra.mxu0 0.0
    %6804 = vmatprep.subr.mxu0 0.0
    %6805 = vmatpush1.msra.mxu0 0.0
    %6806 = vmatprep.subr.mxu0 0.0
    %6807 = vmatpush1.msra.mxu0 0.0
    %6808 = vmatprep.subr.mxu0 0.0
    %6809 = vmatpush1.msra.mxu0 0.0
    %6810 = vmatprep.subr.mxu0 0.0
    %6811 = vmatpush1.msra.mxu0 0.0
    %6812 = vmatprep.subr.mxu0 0.0
    %6813 = vmatpush1.msra.mxu0 0.0
    %6814 = vmatprep.subr.mxu0 0.0
    %6815 = vmatpush1.msra.mxu0 0.0
    %6816 = vmatprep.subr.mxu0 0.0
    %6817 = vmatpush1.msra.mxu0 0.0
    %6818 = vmatprep.subr.mxu0 0.0
    %6819 = vmatpush1.msra.mxu0 0.0
    %6820 = vmatprep.subr.mxu0 0.0
    %6821 = vmatpush1.msra.mxu0 0.0
    %6822 = vmatprep.subr.mxu0 0.0
    %6823 = vmatpush1.msra.mxu0 0.0
    %6824 = vmatprep.subr.mxu0 0.0
    %6825 = vmatpush1.msra.mxu0 0.0
    %6826 = vmatprep.mubr.f32.mxu0 0.0
    %v6827 = vand.u32 %v6755, 4294901760
    %v6828 = vsub.f32 %v6755, %v6827
    %v6829 = vand.u32 %v6828, 4294901760
    %v6830 = vsub.f32 %v6828, %v6829
    %v6831 = vand.u32 %v6830, 4294901760
    %6832 = vmatmul.mubr.f32.gmra.mrb[0].mxu0 %v6831
    %v6833 = vpop.f32.mrb[0].mxu0
    %v6834 = vadd.f32 %v6753, %v6833
    %v6835 = vpop.f32.mrb[0].mxu0
    %6836 = vdwg.mxu0
    %6837 = vmatprep.subr.mxu0 0.0
    %v6838 = vand.u32 %v3699, 4294901760
    %v6839 = vsub.f32 %v3699, %v6838
    %v6840 = vand.u32 %v6839, 4294901760
    %v6841 = vsub.f32 %v6839, %v6840
    %v6842 = vand.u32 %v6841, 4294901760
    %6843 = vmatpush1.msra.mxu0 %v6842
    %6844 = vmatprep.subr.mxu0 0.0
    %v6845 = vand.u32 %v6758, 4294901760
    %v6846 = vsub.f32 %v6758, %v6845
    %v6847 = vand.u32 %v6846, 4294901760
    %v6848 = vsub.f32 %v6846, %v6847
    %v6849 = vand.u32 %v6848, 4294901760
    %6850 = vmatpush1.msra.mxu0 %v6849
    %6851 = vmatprep.subr.mxu0 0.0
    %6852 = vmatpush1.msra.mxu0 0.0
    %6853 = vmatprep.subr.mxu0 0.0
    %6854 = vmatpush1.msra.mxu0 0.0
    %6855 = vmatprep.subr.mxu0 0.0
    %6856 = vmatpush1.msra.mxu0 0.0
    %6857 = vmatprep.subr.mxu0 0.0
    %6858 = vmatpush1.msra.mxu0 0.0
    %6859 = vmatprep.subr.mxu0 0.0
    %6860 = vmatpush1.msra.mxu0 0.0
    %6861 = vmatprep.subr.mxu0 0.0
    %6862 = vmatpush1.msra.mxu0 0.0
    %6863 = vmatprep.subr.mxu0 0.0
    %6864 = vmatpush1.msra.mxu0 0.0
    %6865 = vmatprep.subr.mxu0 0.0
    %6866 = vmatpush1.msra.mxu0 0.0
    %6867 = vmatprep.subr.mxu0 0.0
    %6868 = vmatpush1.msra.mxu0 0.0
    %6869 = vmatprep.subr.mxu0 0.0
    %6870 = vmatpush1.msra.mxu0 0.0
    %6871 = vmatprep.subr.mxu0 0.0
    %6872 = vmatpush1.msra.mxu0 0.0
    %6873 = vmatprep.subr.mxu0 0.0
    %6874 = vmatpush1.msra.mxu0 0.0
    %6875 = vmatprep.subr.mxu0 0.0
    %6876 = vmatpush1.msra.mxu0 0.0
    %6877 = vmatprep.subr.mxu0 0.0
    %6878 = vmatpush1.msra.mxu0 0.0
    %6879 = vmatprep.subr.mxu0 0.0
    %6880 = vmatpush1.msra.mxu0 0.0
    %6881 = vmatprep.subr.mxu0 0.0
    %6882 = vmatpush1.msra.mxu0 0.0
    %6883 = vmatprep.subr.mxu0 0.0
    %6884 = vmatpush1.msra.mxu0 0.0
    %6885 = vmatprep.subr.mxu0 0.0
    %6886 = vmatpush1.msra.mxu0 0.0
    %6887 = vmatprep.subr.mxu0 0.0
    %6888 = vmatpush1.msra.mxu0 0.0
    %6889 = vmatprep.subr.mxu0 0.0
    %6890 = vmatpush1.msra.mxu0 0.0
    %6891 = vmatprep.subr.mxu0 0.0
    %6892 = vmatpush1.msra.mxu0 0.0
    %6893 = vmatprep.subr.mxu0 0.0
    %6894 = vmatpush1.msra.mxu0 0.0
    %6895 = vmatprep.subr.mxu0 0.0
    %6896 = vmatpush1.msra.mxu0 0.0
    %6897 = vmatprep.subr.mxu0 0.0
    %6898 = vmatpush1.msra.mxu0 0.0
    %6899 = vmatprep.subr.mxu0 0.0
    %6900 = vmatpush1.msra.mxu0 0.0
    %6901 = vmatprep.subr.mxu0 0.0
    %6902 = vmatpush1.msra.mxu0 0.0
    %6903 = vmatprep.subr.mxu0 0.0
    %6904 = vmatpush1.msra.mxu0 0.0
    %6905 = vmatprep.subr.mxu0 0.0
    %6906 = vmatpush1.msra.mxu0 0.0
    %6907 = vmatprep.subr.mxu0 0.0
    %6908 = vmatpush1.msra.mxu0 0.0
    %6909 = vmatprep.subr.mxu0 0.0
    %6910 = vmatpush1.msra.mxu0 0.0
    %6911 = vmatprep.mubr.f32.mxu0 0.0
    %v6912 = vand.u32 %v6755, 4294901760
    %6913 = vmatmul.mubr.f32.gmra.mrb[0].mxu0 %v6912
    %v6914 = vpop.f32.mrb[0].mxu0
    %v6915 = vadd.f32 %v6834, %v6914
    %v6916 = vpop.f32.mrb[0].mxu0
    %6917 = vdwg.mxu0
    %6918 = vmatprep.subr.mxu0 0.0
    %v6919 = vand.u32 %v3699, 4294901760
    %v6920 = vsub.f32 %v3699, %v6919
    %6921 = vmatpush1.msra.mxu0 %v6920
    %6922 = vmatprep.subr.mxu0 0.0
    %v6923 = vand.u32 %v6758, 4294901760
    %v6924 = vsub.f32 %v6758, %v6923
    %6925 = vmatpush1.msra.mxu0 %v6924
    %6926 = vmatprep.subr.mxu0 0.0
    %6927 = vmatpush1.msra.mxu0 0.0
    %6928 = vmatprep.subr.mxu0 0.0
    %6929 = vmatpush1.msra.mxu0 0.0
    %6930 = vmatprep.subr.mxu0 0.0
    %6931 = vmatpush1.msra.mxu0 0.0
    %6932 = vmatprep.subr.mxu0 0.0
    %6933 = vmatpush1.msra.mxu0 0.0
    %6934 = vmatprep.subr.mxu0 0.0
    %6935 = vmatpush1.msra.mxu0 0.0
    %6936 = vmatprep.subr.mxu0 0.0
    %6937 = vmatpush1.msra.mxu0 0.0
    %6938 = vmatprep.subr.mxu0 0.0
    %6939 = vmatpush1.msra.mxu0 0.0
    %6940 = vmatprep.subr.mxu0 0.0
    %6941 = vmatpush1.msra.mxu0 0.0
    %6942 = vmatprep.subr.mxu0 0.0
    %6943 = vmatpush1.msra.mxu0 0.0
    %6944 = vmatprep.subr.mxu0 0.0
    %6945 = vmatpush1.msra.mxu0 0.0
    %6946 = vmatprep.subr.mxu0 0.0
    %6947 = vmatpush1.msra.mxu0 0.0
    %6948 = vmatprep.subr.mxu0 0.0
    %6949 = vmatpush1.msra.mxu0 0.0
    %6950 = vmatprep.subr.mxu0 0.0
    %6951 = vmatpush1.msra.mxu0 0.0
    %6952 = vmatprep.subr.mxu0 0.0
    %6953 = vmatpush1.msra.mxu0 0.0
    %6954 = vmatprep.subr.mxu0 0.0
    %6955 = vmatpush1.msra.mxu0 0.0
    %6956 = vmatprep.subr.mxu0 0.0
    %6957 = vmatpush1.msra.mxu0 0.0
    %6958 = vmatprep.subr.mxu0 0.0
    %6959 = vmatpush1.msra.mxu0 0.0
    %6960 = vmatprep.subr.mxu0 0.0
    %6961 = vmatpush1.msra.mxu0 0.0
    %6962 = vmatprep.subr.mxu0 0.0
    %6963 = vmatpush1.msra.mxu0 0.0
    %6964 = vmatprep.subr.mxu0 0.0
    %6965 = vmatpush1.msra.mxu0 0.0
    %6966 = vmatprep.subr.mxu0 0.0
    %6967 = vmatpush1.msra.mxu0 0.0
    %6968 = vmatprep.subr.mxu0 0.0
    %6969 = vmatpush1.msra.mxu0 0.0
    %6970 = vmatprep.subr.mxu0 0.0
    %6971 = vmatpush1.msra.mxu0 0.0
    %6972 = vmatprep.subr.mxu0 0.0
    %6973 = vmatpush1.msra.mxu0 0.0
    %6974 = vmatprep.subr.mxu0 0.0
    %6975 = vmatpush1.msra.mxu0 0.0
    %6976 = vmatprep.subr.mxu0 0.0
    %6977 = vmatpush1.msra.mxu0 0.0
    %6978 = vmatprep.subr.mxu0 0.0
    %6979 = vmatpush1.msra.mxu0 0.0
    %6980 = vmatprep.subr.mxu0 0.0
    %6981 = vmatpush1.msra.mxu0 0.0
    %6982 = vmatprep.subr.mxu0 0.0
    %6983 = vmatpush1.msra.mxu0 0.0
    %6984 = vmatprep.subr.mxu0 0.0
    %6985 = vmatpush1.msra.mxu0 0.0
    %6986 = vmatprep.mubr.f32.mxu0 0.0
    %v6987 = vand.u32 %v6755, 4294901760
    %v6988 = vsub.f32 %v6755, %v6987
    %6989 = vmatmul.mubr.f32.gmra.mrb[0].mxu0 %v6988
    %v6990 = vpop.f32.mrb[0].mxu0
    %v6991 = vadd.f32 %v6915, %v6990
    %v6992 = vpop.f32.mrb[0].mxu0
    %6993 = vdwg.mxu0
    %6994 = vmatprep.subr.mxu0 0.0
    %v6995 = vand.u32 %v3699, 4294901760
    %6996 = vmatpush1.msra.mxu0 %v6995
    %6997 = vmatprep.subr.mxu0 0.0
    %v6998 = vand.u32 %v6758, 4294901760
    %6999 = vmatpush1.msra.mxu0 %v6998
    %7000 = vmatprep.subr.mxu0 0.0
    %7001 = vmatpush1.msra.mxu0 0.0
    %7002 = vmatprep.subr.mxu0 0.0
    %7003 = vmatpush1.msra.mxu0 0.0
    %7004 = vmatprep.subr.mxu0 0.0
    %7005 = vmatpush1.msra.mxu0 0.0
    %7006 = vmatprep.subr.mxu0 0.0
    %7007 = vmatpush1.msra.mxu0 0.0
    %7008 = vmatprep.subr.mxu0 0.0
    %7009 = vmatpush1.msra.mxu0 0.0
    %7010 = vmatprep.subr.mxu0 0.0
    %7011 = vmatpush1.msra.mxu0 0.0
    %7012 = vmatprep.subr.mxu0 0.0
    %7013 = vmatpush1.msra.mxu0 0.0
    %7014 = vmatprep.subr.mxu0 0.0
    %7015 = vmatpush1.msra.mxu0 0.0
    %7016 = vmatprep.subr.mxu0 0.0
    %7017 = vmatpush1.msra.mxu0 0.0
    %7018 = vmatprep.subr.mxu0 0.0
    %7019 = vmatpush1.msra.mxu0 0.0
    %7020 = vmatprep.subr.mxu0 0.0
    %7021 = vmatpush1.msra.mxu0 0.0
    %7022 = vmatprep.subr.mxu0 0.0
    %7023 = vmatpush1.msra.mxu0 0.0
    %7024 = vmatprep.subr.mxu0 0.0
    %7025 = vmatpush1.msra.mxu0 0.0
    %7026 = vmatprep.subr.mxu0 0.0
    %7027 = vmatpush1.msra.mxu0 0.0
    %7028 = vmatprep.subr.mxu0 0.0
    %7029 = vmatpush1.msra.mxu0 0.0
    %7030 = vmatprep.subr.mxu0 0.0
    %7031 = vmatpush1.msra.mxu0 0.0
    %7032 = vmatprep.subr.mxu0 0.0
    %7033 = vmatpush1.msra.mxu0 0.0
    %7034 = vmatprep.subr.mxu0 0.0
    %7035 = vmatpush1.msra.mxu0 0.0
    %7036 = vmatprep.subr.mxu0 0.0
    %7037 = vmatpush1.msra.mxu0 0.0
    %7038 = vmatprep.subr.mxu0 0.0
    %7039 = vmatpush1.msra.mxu0 0.0
    %7040 = vmatprep.subr.mxu0 0.0
    %7041 = vmatpush1.msra.mxu0 0.0
    %7042 = vmatprep.subr.mxu0 0.0
    %7043 = vmatpush1.msra.mxu0 0.0
    %7044 = vmatprep.subr.mxu0 0.0
    %7045 = vmatpush1.msra.mxu0 0.0
    %7046 = vmatprep.subr.mxu0 0.0
    %7047 = vmatpush1.msra.mxu0 0.0
    %7048 = vmatprep.subr.mxu0 0.0
    %7049 = vmatpush1.msra.mxu0 0.0
    %7050 = vmatprep.subr.mxu0 0.0
    %7051 = vmatpush1.msra.mxu0 0.0
    %7052 = vmatprep.subr.mxu0 0.0
    %7053 = vmatpush1.msra.mxu0 0.0
    %7054 = vmatprep.subr.mxu0 0.0
    %7055 = vmatpush1.msra.mxu0 0.0
    %7056 = vmatprep.subr.mxu0 0.0
    %7057 = vmatpush1.msra.mxu0 0.0
    %7058 = vmatprep.subr.mxu0 0.0
    %7059 = vmatpush1.msra.mxu0 0.0
    %7060 = vmatprep.mubr.f32.mxu0 0.0
    %v7061 = vand.u32 %v6755, 4294901760
    %v7062 = vsub.f32 %v6755, %v7061
    %v7063 = vand.u32 %v7062, 4294901760
    %7064 = vmatmul.mubr.f32.gmra.mrb[0].mxu0 %v7063
    %v7065 = vpop.f32.mrb[0].mxu0
    %v7066 = vadd.f32 %v6991, %v7065
    %v7067 = vpop.f32.mrb[0].mxu0
    %7068 = vdwg.mxu0
    %7069 = vmatprep.subr.mxu0 0.0
    %v7070 = vand.u32 %v3699, 4294901760
    %v7071 = vsub.f32 %v3699, %v7070
    %v7072 = vand.u32 %v7071, 4294901760
    %7073 = vmatpush1.msra.mxu0 %v7072
    %7074 = vmatprep.subr.mxu0 0.0
    %v7075 = vand.u32 %v6758, 4294901760
    %v7076 = vsub.f32 %v6758, %v7075
    %v7077 = vand.u32 %v7076, 4294901760
    %7078 = vmatpush1.msra.mxu0 %v7077
    %7079 = vmatprep.subr.mxu0 0.0
    %7080 = vmatpush1.msra.mxu0 0.0
    %7081 = vmatprep.subr.mxu0 0.0
    %7082 = vmatpush1.msra.mxu0 0.0
    %7083 = vmatprep.subr.mxu0 0.0
    %7084 = vmatpush1.msra.mxu0 0.0
    %7085 = vmatprep.subr.mxu0 0.0
    %7086 = vmatpush1.msra.mxu0 0.0
    %7087 = vmatprep.subr.mxu0 0.0
    %7088 = vmatpush1.msra.mxu0 0.0
    %7089 = vmatprep.subr.mxu0 0.0
    %7090 = vmatpush1.msra.mxu0 0.0
    %7091 = vmatprep.subr.mxu0 0.0
    %7092 = vmatpush1.msra.mxu0 0.0
    %7093 = vmatprep.subr.mxu0 0.0
    %7094 = vmatpush1.msra.mxu0 0.0
    %7095 = vmatprep.subr.mxu0 0.0
    %7096 = vmatpush1.msra.mxu0 0.0
    %7097 = vmatprep.subr.mxu0 0.0
    %7098 = vmatpush1.msra.mxu0 0.0
    %7099 = vmatprep.subr.mxu0 0.0
    %7100 = vmatpush1.msra.mxu0 0.0
    %7101 = vmatprep.subr.mxu0 0.0
    %7102 = vmatpush1.msra.mxu0 0.0
    %7103 = vmatprep.subr.mxu0 0.0
    %7104 = vmatpush1.msra.mxu0 0.0
    %7105 = vmatprep.subr.mxu0 0.0
    %7106 = vmatpush1.msra.mxu0 0.0
    %7107 = vmatprep.subr.mxu0 0.0
    %7108 = vmatpush1.msra.mxu0 0.0
    %7109 = vmatprep.subr.mxu0 0.0
    %7110 = vmatpush1.msra.mxu0 0.0
    %7111 = vmatprep.subr.mxu0 0.0
    %7112 = vmatpush1.msra.mxu0 0.0
    %7113 = vmatprep.subr.mxu0 0.0
    %7114 = vmatpush1.msra.mxu0 0.0
    %7115 = vmatprep.subr.mxu0 0.0
    %7116 = vmatpush1.msra.mxu0 0.0
    %7117 = vmatprep.subr.mxu0 0.0
    %7118 = vmatpush1.msra.mxu0 0.0
    %7119 = vmatprep.subr.mxu0 0.0
    %7120 = vmatpush1.msra.mxu0 0.0
    %7121 = vmatprep.subr.mxu0 0.0
    %7122 = vmatpush1.msra.mxu0 0.0
    %7123 = vmatprep.subr.mxu0 0.0
    %7124 = vmatpush1.msra.mxu0 0.0
    %7125 = vmatprep.subr.mxu0 0.0
    %7126 = vmatpush1.msra.mxu0 0.0
    %7127 = vmatprep.subr.mxu0 0.0
    %7128 = vmatpush1.msra.mxu0 0.0
    %7129 = vmatprep.subr.mxu0 0.0
    %7130 = vmatpush1.msra.mxu0 0.0
    %7131 = vmatprep.subr.mxu0 0.0
    %7132 = vmatpush1.msra.mxu0 0.0
    %7133 = vmatprep.subr.mxu0 0.0
    %7134 = vmatpush1.msra.mxu0 0.0
    %7135 = vmatprep.subr.mxu0 0.0
    %7136 = vmatpush1.msra.mxu0 0.0
    %7137 = vmatprep.subr.mxu0 0.0
    %7138 = vmatpush1.msra.mxu0 0.0
    %7139 = vmatprep.mubr.f32.mxu0 0.0
    %v7140 = vand.u32 %v6755, 4294901760
    %7141 = vmatmul.mubr.f32.gmra.mrb[0].mxu0 %v7140
    %v7142 = vpop.f32.mrb[0].mxu0
    %v7143 = vadd.f32 %v7066, %v7142
    %v7144 = vpop.f32.mrb[0].mxu0
    %7145 = vdwg.mxu0
    %7146 = vmatprep.subr.mxu0 0.0
    %v7147 = vand.u32 %v3699, 4294901760
    %7148 = vmatpush1.msra.mxu0 %v7147
    %7149 = vmatprep.subr.mxu0 0.0
    %v7150 = vand.u32 %v6758, 4294901760
    %7151 = vmatpush1.msra.mxu0 %v7150
    %7152 = vmatprep.subr.mxu0 0.0
    %7153 = vmatpush1.msra.mxu0 0.0
    %7154 = vmatprep.subr.mxu0 0.0
    %7155 = vmatpush1.msra.mxu0 0.0
    %7156 = vmatprep.subr.mxu0 0.0
    %7157 = vmatpush1.msra.mxu0 0.0
    %7158 = vmatprep.subr.mxu0 0.0
    %7159 = vmatpush1.msra.mxu0 0.0
    %7160 = vmatprep.subr.mxu0 0.0
    %7161 = vmatpush1.msra.mxu0 0.0
    %7162 = vmatprep.subr.mxu0 0.0
    %7163 = vmatpush1.msra.mxu0 0.0
    %7164 = vmatprep.subr.mxu0 0.0
    %7165 = vmatpush1.msra.mxu0 0.0
    %7166 = vmatprep.subr.mxu0 0.0
    %7167 = vmatpush1.msra.mxu0 0.0
    %7168 = vmatprep.subr.mxu0 0.0
    %7169 = vmatpush1.msra.mxu0 0.0
    %7170 = vmatprep.subr.mxu0 0.0
    %7171 = vmatpush1.msra.mxu0 0.0
    %7172 = vmatprep.subr.mxu0 0.0
    %7173 = vmatpush1.msra.mxu0 0.0
    %7174 = vmatprep.subr.mxu0 0.0
    %7175 = vmatpush1.msra.mxu0 0.0
    %7176 = vmatprep.subr.mxu0 0.0
    %7177 = vmatpush1.msra.mxu0 0.0
    %7178 = vmatprep.subr.mxu0 0.0
    %7179 = vmatpush1.msra.mxu0 0.0
    %7180 = vmatprep.subr.mxu0 0.0
    %7181 = vmatpush1.msra.mxu0 0.0
    %7182 = vmatprep.subr.mxu0 0.0
    %7183 = vmatpush1.msra.mxu0 0.0
    %7184 = vmatprep.subr.mxu0 0.0
    %7185 = vmatpush1.msra.mxu0 0.0
    %7186 = vmatprep.subr.mxu0 0.0
    %7187 = vmatpush1.msra.mxu0 0.0
    %7188 = vmatprep.subr.mxu0 0.0
    %7189 = vmatpush1.msra.mxu0 0.0
    %7190 = vmatprep.subr.mxu0 0.0
    %7191 = vmatpush1.msra.mxu0 0.0
    %7192 = vmatprep.subr.mxu0 0.0
    %7193 = vmatpush1.msra.mxu0 0.0
    %7194 = vmatprep.subr.mxu0 0.0
    %7195 = vmatpush1.msra.mxu0 0.0
    %7196 = vmatprep.subr.mxu0 0.0
    %7197 = vmatpush1.msra.mxu0 0.0
    %7198 = vmatprep.subr.mxu0 0.0
    %7199 = vmatpush1.msra.mxu0 0.0
    %7200 = vmatprep.subr.mxu0 0.0
    %7201 = vmatpush1.msra.mxu0 0.0
    %7202 = vmatprep.subr.mxu0 0.0
    %7203 = vmatpush1.msra.mxu0 0.0
    %7204 = vmatprep.subr.mxu0 0.0
    %7205 = vmatpush1.msra.mxu0 0.0
    %7206 = vmatprep.subr.mxu0 0.0
    %7207 = vmatpush1.msra.mxu0 0.0
    %7208 = vmatprep.subr.mxu0 0.0
    %7209 = vmatpush1.msra.mxu0 0.0
    %7210 = vmatprep.subr.mxu0 0.0
    %7211 = vmatpush1.msra.mxu0 0.0
    %7212 = vmatprep.mubr.f32.mxu0 0.0
    %v7213 = vand.u32 %v6755, 4294901760
    %7214 = vmatmul.mubr.f32.gmra.mrb[0].mxu0 %v7213
    %v7215 = vpop.f32.mrb[0].mxu0
    %v7216 = vadd.f32 %v7143, %v7215
    %v7217 = vpop.f32.mrb[0].mxu0
    %7218 = vdwg.mxu0
    %s7219 = scalar_lea.vmem [#allocation10], 8
    %7220 = vst [vmem:[%s7219] sm:$0xff] %v7216
    %7221 = vmax.xlane.f32.xlu0 %v7216
    %v7222 = vpop.xlane.xlu0 %7221
    %vm7223 = vcmp.eq.f32.partialorder %v7216, %v7222
    %v7224 = vsel %vm7223, %v3653, 128
    %v7225 = vand.u32 %v7224, 65535
    %v7226 = vshra.s32 %v7224, 16
    %v7227 = vcvt.s32.f32 %v7225
    %v7228 = vcvt.s32.f32 %v7226
    %7229 = vmin.xlane.f32.xlu0 %v7228
    %v7230 = vpop.xlane.xlu0 %7229
    %vm7231 = vcmp.eq.f32.partialorder %v7228, %v7230
    %v7232 = vsel %vm7231, %v7227, inf
    %7233 = vmin.xlane.f32.xlu0 %v7232
    %v7234 = vpop.xlane.xlu0 %7233
    %v7235 = vcvt.f32.s32 %v7234
    %v7236 = vcvt.f32.s32 %v7230
    %v7237 = vshll.u32 %v7236, 16
    %v7238 = vadd.s32 %v7237, %v7235
    %vm7239 = vcmp.eq.s32.totalorder %v3653, %v7238
    %v7240 = vsel %vm7239, 1, 0
    %v7241 = vcvt.s32.f32 %v7240
    %s7242 = scalar_lea.vmem [#allocation5], 624
    %v7243 = vld [vmem:[%s7242] sm:$0xff]
    %v7244 = vld [vmem:[%s7242 + $0x18] sm:$0xff]
    %v7245 = vld [vmem:[%s7242 + $0x30] ss:$0 sm:$0xff]
    %v7246 = vld [vmem:[%s7242 + $0x48] sm:$0xff]
    %v7247 = vld [vmem:[%s7242 + $0x50] sm:$0xff]
    %v7248 = vld [vmem:[%s7242 + $0x58] sm:$0xff]
    %v7249 = vld [vmem:[%s7242 + $0x60] sm:$0xff]
    %v7250 = vld [vmem:[%s7242 + $0x68] sm:$0xff]
    %v7251 = vld [vmem:[%s7242 + $0x70] sm:$0xff]
    %v7252 = vld [vmem:[%s7242 + $0x78] sm:$0xff]
    %v7253 = vld [vmem:[%s7242 + $0x80] sm:$0xff]
    %v7254 = vld [vmem:[%s7242 + $0x88] sm:$0xff]
    %v7255 = vld [vmem:[%s7242 + $0x90] sm:$0xff]
    %v7256 = vld [vmem:[%s7242 + $0x98] sm:$0xff]
    %v7257 = vld [vmem:[%s7242 + $0xa0] sm:$0xff]
    %s7258 = scalar_lea.vmem %s7242, 168 [#allocation5]
    %v7259 = vld [vmem:[%s7258] ss:$8 sm:$0x7]
    %v7260 = vld [vmem:[%s7242 + $0xc0] sm:$0xff]
    %v7261 = vld [vmem:[%s7242 + $0xd8] sm:$0xff]
    %v7262 = vld [vmem:[%s7242 + $0xf0] sm:$0xff]
    %v7263 = vld [vmem:[%s7242 + $0x108] sm:$0xff]
    %v7264 = vld [vmem:[%s7242 + $0x120] ss:$0 sm:$0xff]
    %s7265 = scalar_lea.vmem [#allocation7], 48
    %v7266 = vld [vmem:[%s7265] sm:$0xff]
    %v7267 = vld [vmem:[%s7265 + $0x8] sm:$0xf]
    %v7268 = vld [vmem:[%s7265 + $0x10] sm:$0x1]
    %v7270 = vsel %vm111, %v7241, 0
    %7272 = vmatprep.subr.mxu0 0.0
    %v7273 = vand.u32 %v7243, 4294901760
    %7274 = vmatpush1.msra.mxu0 %v7273
    %7275 = vmatprep.subr.mxu0 0.0
    %v7276 = vand.u32 %v7244, 4294901760
    %7277 = vmatpush1.msra.mxu0 %v7276
    %7278 = vmatprep.subr.mxu0 0.0
    %7279 = vmatpush1.msra.mxu0 0.0
    %7280 = vmatprep.subr.mxu0 0.0
    %7281 = vmatpush1.msra.mxu0 0.0
    %7282 = vmatprep.subr.mxu0 0.0
    %7283 = vmatpush1.msra.mxu0 0.0
    %7284 = vmatprep.subr.mxu0 0.0
    %7285 = vmatpush1.msra.mxu0 0.0
    %7286 = vmatprep.subr.mxu0 0.0
    %7287 = vmatpush1.msra.mxu0 0.0
    %7288 = vmatprep.subr.mxu0 0.0
    %7289 = vmatpush1.msra.mxu0 0.0
    %7290 = vmatprep.subr.mxu0 0.0
    %7291 = vmatpush1.msra.mxu0 0.0
    %7292 = vmatprep.subr.mxu0 0.0
    %7293 = vmatpush1.msra.mxu0 0.0
    %7294 = vmatprep.subr.mxu0 0.0
    %7295 = vmatpush1.msra.mxu0 0.0
    %7296 = vmatprep.subr.mxu0 0.0
    %7297 = vmatpush1.msra.mxu0 0.0
    %7298 = vmatprep.subr.mxu0 0.0
    %7299 = vmatpush1.msra.mxu0 0.0
    %7300 = vmatprep.subr.mxu0 0.0
    %7301 = vmatpush1.msra.mxu0 0.0
    %7302 = vmatprep.subr.mxu0 0.0
    %7303 = vmatpush1.msra.mxu0 0.0
    %7304 = vmatprep.subr.mxu0 0.0
    %7305 = vmatpush1.msra.mxu0 0.0
    %7306 = vmatprep.subr.mxu0 0.0
    %7307 = vmatpush1.msra.mxu0 0.0
    %7308 = vmatprep.subr.mxu0 0.0
    %7309 = vmatpush1.msra.mxu0 0.0
    %7310 = vmatprep.subr.mxu0 0.0
    %7311 = vmatpush1.msra.mxu0 0.0
    %7312 = vmatprep.subr.mxu0 0.0
    %7313 = vmatpush1.msra.mxu0 0.0
    %7314 = vmatprep.subr.mxu0 0.0
    %7315 = vmatpush1.msra.mxu0 0.0
    %7316 = vmatprep.subr.mxu0 0.0
    %7317 = vmatpush1.msra.mxu0 0.0
    %7318 = vmatprep.subr.mxu0 0.0
    %7319 = vmatpush1.msra.mxu0 0.0
    %7320 = vmatprep.subr.mxu0 0.0
    %7321 = vmatpush1.msra.mxu0 0.0
    %7322 = vmatprep.subr.mxu0 0.0
    %7323 = vmatpush1.msra.mxu0 0.0
    %7324 = vmatprep.subr.mxu0 0.0
    %7325 = vmatpush1.msra.mxu0 0.0
    %7326 = vmatprep.subr.mxu0 0.0
    %7327 = vmatpush1.msra.mxu0 0.0
    %7328 = vmatprep.subr.mxu0 0.0
    %7329 = vmatpush1.msra.mxu0 0.0
    %7330 = vmatprep.subr.mxu0 0.0
    %7331 = vmatpush1.msra.mxu0 0.0
    %7332 = vmatprep.subr.mxu0 0.0
    %7333 = vmatpush1.msra.mxu0 0.0
    %7334 = vmatprep.subr.mxu0 0.0
    %7335 = vmatpush1.msra.mxu0 0.0
    %7336 = vmatprep.subr.mxu0 0.0
    %7337 = vmatpush1.msra.mxu0 0.0
    %7338 = vmatprep.mubr.f32.mxu0 0.0
    %v7339 = vand.u32 %v7270, 4294901760
    %v7340 = vsub.f32 %v7270, %v7339
    %v7341 = vand.u32 %v7340, 4294901760
    %v7342 = vsub.f32 %v7340, %v7341
    %v7343 = vand.u32 %v7342, 4294901760
    %7344 = vmatmul.mubr.f32.gmra.mrb[0].mxu0 %v7343
    %v7345 = vpop.f32.mrb[0].mxu0
    %v7346 = vadd.f32 %v7245, %v7345
    %v7347 = vpop.f32.mrb[0].mxu0
    %7348 = vdwg.mxu0
    %7349 = vmatprep.subr.mxu0 0.0
    %v7350 = vand.u32 %v7243, 4294901760
    %v7351 = vsub.f32 %v7243, %v7350
    %v7352 = vand.u32 %v7351, 4294901760
    %v7353 = vsub.f32 %v7351, %v7352
    %v7354 = vand.u32 %v7353, 4294901760
    %7355 = vmatpush1.msra.mxu0 %v7354
    %7356 = vmatprep.subr.mxu0 0.0
    %v7357 = vand.u32 %v7244, 4294901760
    %v7358 = vsub.f32 %v7244, %v7357
    %v7359 = vand.u32 %v7358, 4294901760
    %v7360 = vsub.f32 %v7358, %v7359
    %v7361 = vand.u32 %v7360, 4294901760
    %7362 = vmatpush1.msra.mxu0 %v7361
    %7363 = vmatprep.subr.mxu0 0.0
    %7364 = vmatpush1.msra.mxu0 0.0
    %7365 = vmatprep.subr.mxu0 0.0
    %7366 = vmatpush1.msra.mxu0 0.0
    %7367 = vmatprep.subr.mxu0 0.0
    %7368 = vmatpush1.msra.mxu0 0.0
    %7369 = vmatprep.subr.mxu0 0.0
    %7370 = vmatpush1.msra.mxu0 0.0
    %7371 = vmatprep.subr.mxu0 0.0
    %7372 = vmatpush1.msra.mxu0 0.0
    %7373 = vmatprep.subr.mxu0 0.0
    %7374 = vmatpush1.msra.mxu0 0.0
    %7375 = vmatprep.subr.mxu0 0.0
    %7376 = vmatpush1.msra.mxu0 0.0
    %7377 = vmatprep.subr.mxu0 0.0
    %7378 = vmatpush1.msra.mxu0 0.0
    %7379 = vmatprep.subr.mxu0 0.0
    %7380 = vmatpush1.msra.mxu0 0.0
    %7381 = vmatprep.subr.mxu0 0.0
    %7382 = vmatpush1.msra.mxu0 0.0
    %7383 = vmatprep.subr.mxu0 0.0
    %7384 = vmatpush1.msra.mxu0 0.0
    %7385 = vmatprep.subr.mxu0 0.0
    %7386 = vmatpush1.msra.mxu0 0.0
    %7387 = vmatprep.subr.mxu0 0.0
    %7388 = vmatpush1.msra.mxu0 0.0
    %7389 = vmatprep.subr.mxu0 0.0
    %7390 = vmatpush1.msra.mxu0 0.0
    %7391 = vmatprep.subr.mxu0 0.0
    %7392 = vmatpush1.msra.mxu0 0.0
    %7393 = vmatprep.subr.mxu0 0.0
    %7394 = vmatpush1.msra.mxu0 0.0
    %7395 = vmatprep.subr.mxu0 0.0
    %7396 = vmatpush1.msra.mxu0 0.0
    %7397 = vmatprep.subr.mxu0 0.0
    %7398 = vmatpush1.msra.mxu0 0.0
    %7399 = vmatprep.subr.mxu0 0.0
    %7400 = vmatpush1.msra.mxu0 0.0
    %7401 = vmatprep.subr.mxu0 0.0
    %7402 = vmatpush1.msra.mxu0 0.0
    %7403 = vmatprep.subr.mxu0 0.0
    %7404 = vmatpush1.msra.mxu0 0.0
    %7405 = vmatprep.subr.mxu0 0.0
    %7406 = vmatpush1.msra.mxu0 0.0
    %7407 = vmatprep.subr.mxu0 0.0
    %7408 = vmatpush1.msra.mxu0 0.0
    %7409 = vmatprep.subr.mxu0 0.0
    %7410 = vmatpush1.msra.mxu0 0.0
    %7411 = vmatprep.subr.mxu0 0.0
    %7412 = vmatpush1.msra.mxu0 0.0
    %7413 = vmatprep.subr.mxu0 0.0
    %7414 = vmatpush1.msra.mxu0 0.0
    %7415 = vmatprep.subr.mxu0 0.0
    %7416 = vmatpush1.msra.mxu0 0.0
    %7417 = vmatprep.subr.mxu0 0.0
    %7418 = vmatpush1.msra.mxu0 0.0
    %7419 = vmatprep.subr.mxu0 0.0
    %7420 = vmatpush1.msra.mxu0 0.0
    %7421 = vmatprep.subr.mxu0 0.0
    %7422 = vmatpush1.msra.mxu0 0.0
    %7423 = vmatprep.mubr.f32.mxu0 0.0
    %v7424 = vand.u32 %v7270, 4294901760
    %7425 = vmatmul.mubr.f32.gmra.mrb[0].mxu0 %v7424
    %v7426 = vpop.f32.mrb[0].mxu0
    %v7427 = vadd.f32 %v7346, %v7426
    %v7428 = vpop.f32.mrb[0].mxu0
    %7429 = vdwg.mxu0
    %7430 = vmatprep.subr.mxu0 0.0
    %v7431 = vand.u32 %v7243, 4294901760
    %v7432 = vsub.f32 %v7243, %v7431
    %7433 = vmatpush1.msra.mxu0 %v7432
    %7434 = vmatprep.subr.mxu0 0.0
    %v7435 = vand.u32 %v7244, 4294901760
    %v7436 = vsub.f32 %v7244, %v7435
    %7437 = vmatpush1.msra.mxu0 %v7436
    %7438 = vmatprep.subr.mxu0 0.0
    %7439 = vmatpush1.msra.mxu0 0.0
    %7440 = vmatprep.subr.mxu0 0.0
    %7441 = vmatpush1.msra.mxu0 0.0
    %7442 = vmatprep.subr.mxu0 0.0
    %7443 = vmatpush1.msra.mxu0 0.0
    %7444 = vmatprep.subr.mxu0 0.0
    %7445 = vmatpush1.msra.mxu0 0.0
    %7446 = vmatprep.subr.mxu0 0.0
    %7447 = vmatpush1.msra.mxu0 0.0
    %7448 = vmatprep.subr.mxu0 0.0
    %7449 = vmatpush1.msra.mxu0 0.0
    %7450 = vmatprep.subr.mxu0 0.0
    %7451 = vmatpush1.msra.mxu0 0.0
    %7452 = vmatprep.subr.mxu0 0.0
    %7453 = vmatpush1.msra.mxu0 0.0
    %7454 = vmatprep.subr.mxu0 0.0
    %7455 = vmatpush1.msra.mxu0 0.0
    %7456 = vmatprep.subr.mxu0 0.0
    %7457 = vmatpush1.msra.mxu0 0.0
    %7458 = vmatprep.subr.mxu0 0.0
    %7459 = vmatpush1.msra.mxu0 0.0
    %7460 = vmatprep.subr.mxu0 0.0
    %7461 = vmatpush1.msra.mxu0 0.0
    %7462 = vmatprep.subr.mxu0 0.0
    %7463 = vmatpush1.msra.mxu0 0.0
    %7464 = vmatprep.subr.mxu0 0.0
    %7465 = vmatpush1.msra.mxu0 0.0
    %7466 = vmatprep.subr.mxu0 0.0
    %7467 = vmatpush1.msra.mxu0 0.0
    %7468 = vmatprep.subr.mxu0 0.0
    %7469 = vmatpush1.msra.mxu0 0.0
    %7470 = vmatprep.subr.mxu0 0.0
    %7471 = vmatpush1.msra.mxu0 0.0
    %7472 = vmatprep.subr.mxu0 0.0
    %7473 = vmatpush1.msra.mxu0 0.0
    %7474 = vmatprep.subr.mxu0 0.0
    %7475 = vmatpush1.msra.mxu0 0.0
    %7476 = vmatprep.subr.mxu0 0.0
    %7477 = vmatpush1.msra.mxu0 0.0
    %7478 = vmatprep.subr.mxu0 0.0
    %7479 = vmatpush1.msra.mxu0 0.0
    %7480 = vmatprep.subr.mxu0 0.0
    %7481 = vmatpush1.msra.mxu0 0.0
    %7482 = vmatprep.subr.mxu0 0.0
    %7483 = vmatpush1.msra.mxu0 0.0
    %7484 = vmatprep.subr.mxu0 0.0
    %7485 = vmatpush1.msra.mxu0 0.0
    %7486 = vmatprep.subr.mxu0 0.0
    %7487 = vmatpush1.msra.mxu0 0.0
    %7488 = vmatprep.subr.mxu0 0.0
    %7489 = vmatpush1.msra.mxu0 0.0
    %7490 = vmatprep.subr.mxu0 0.0
    %7491 = vmatpush1.msra.mxu0 0.0
    %7492 = vmatprep.subr.mxu0 0.0
    %7493 = vmatpush1.msra.mxu0 0.0
    %7494 = vmatprep.subr.mxu0 0.0
    %7495 = vmatpush1.msra.mxu0 0.0
    %7496 = vmatprep.subr.mxu0 0.0
    %7497 = vmatpush1.msra.mxu0 0.0
    %7498 = vmatprep.mubr.f32.mxu0 0.0
    %v7499 = vand.u32 %v7270, 4294901760
    %v7500 = vsub.f32 %v7270, %v7499
    %7501 = vmatmul.mubr.f32.gmra.mrb[0].mxu0 %v7500
    %v7502 = vpop.f32.mrb[0].mxu0
    %v7503 = vadd.f32 %v7427, %v7502
    %v7504 = vpop.f32.mrb[0].mxu0
    %7505 = vdwg.mxu0
    %7506 = vmatprep.subr.mxu0 0.0
    %v7507 = vand.u32 %v7243, 4294901760
    %7508 = vmatpush1.msra.mxu0 %v7507
    %7509 = vmatprep.subr.mxu0 0.0
    %v7510 = vand.u32 %v7244, 4294901760
    %7511 = vmatpush1.msra.mxu0 %v7510
    %7512 = vmatprep.subr.mxu0 0.0
    %7513 = vmatpush1.msra.mxu0 0.0
    %7514 = vmatprep.subr.mxu0 0.0
    %7515 = vmatpush1.msra.mxu0 0.0
    %7516 = vmatprep.subr.mxu0 0.0
    %7517 = vmatpush1.msra.mxu0 0.0
    %7518 = vmatprep.subr.mxu0 0.0
    %7519 = vmatpush1.msra.mxu0 0.0
    %7520 = vmatprep.subr.mxu0 0.0
    %7521 = vmatpush1.msra.mxu0 0.0
    %7522 = vmatprep.subr.mxu0 0.0
    %7523 = vmatpush1.msra.mxu0 0.0
    %7524 = vmatprep.subr.mxu0 0.0
    %7525 = vmatpush1.msra.mxu0 0.0
    %7526 = vmatprep.subr.mxu0 0.0
    %7527 = vmatpush1.msra.mxu0 0.0
    %7528 = vmatprep.subr.mxu0 0.0
    %7529 = vmatpush1.msra.mxu0 0.0
    %7530 = vmatprep.subr.mxu0 0.0
    %7531 = vmatpush1.msra.mxu0 0.0
    %7532 = vmatprep.subr.mxu0 0.0
    %7533 = vmatpush1.msra.mxu0 0.0
    %7534 = vmatprep.subr.mxu0 0.0
    %7535 = vmatpush1.msra.mxu0 0.0
    %7536 = vmatprep.subr.mxu0 0.0
    %7537 = vmatpush1.msra.mxu0 0.0
    %7538 = vmatprep.subr.mxu0 0.0
    %7539 = vmatpush1.msra.mxu0 0.0
    %7540 = vmatprep.subr.mxu0 0.0
    %7541 = vmatpush1.msra.mxu0 0.0
    %7542 = vmatprep.subr.mxu0 0.0
    %7543 = vmatpush1.msra.mxu0 0.0
    %7544 = vmatprep.subr.mxu0 0.0
    %7545 = vmatpush1.msra.mxu0 0.0
    %7546 = vmatprep.subr.mxu0 0.0
    %7547 = vmatpush1.msra.mxu0 0.0
    %7548 = vmatprep.subr.mxu0 0.0
    %7549 = vmatpush1.msra.mxu0 0.0
    %7550 = vmatprep.subr.mxu0 0.0
    %7551 = vmatpush1.msra.mxu0 0.0
    %7552 = vmatprep.subr.mxu0 0.0
    %7553 = vmatpush1.msra.mxu0 0.0
    %7554 = vmatprep.subr.mxu0 0.0
    %7555 = vmatpush1.msra.mxu0 0.0
    %7556 = vmatprep.subr.mxu0 0.0
    %7557 = vmatpush1.msra.mxu0 0.0
    %7558 = vmatprep.subr.mxu0 0.0
    %7559 = vmatpush1.msra.mxu0 0.0
    %7560 = vmatprep.subr.mxu0 0.0
    %7561 = vmatpush1.msra.mxu0 0.0
    %7562 = vmatprep.subr.mxu0 0.0
    %7563 = vmatpush1.msra.mxu0 0.0
    %7564 = vmatprep.subr.mxu0 0.0
    %7565 = vmatpush1.msra.mxu0 0.0
    %7566 = vmatprep.subr.mxu0 0.0
    %7567 = vmatpush1.msra.mxu0 0.0
    %7568 = vmatprep.subr.mxu0 0.0
    %7569 = vmatpush1.msra.mxu0 0.0
    %7570 = vmatprep.subr.mxu0 0.0
    %7571 = vmatpush1.msra.mxu0 0.0
    %7572 = vmatprep.mubr.f32.mxu0 0.0
    %v7573 = vand.u32 %v7270, 4294901760
    %v7574 = vsub.f32 %v7270, %v7573
    %v7575 = vand.u32 %v7574, 4294901760
    %7576 = vmatmul.mubr.f32.gmra.mrb[0].mxu0 %v7575
    %v7577 = vpop.f32.mrb[0].mxu0
    %v7578 = vadd.f32 %v7503, %v7577
    %v7579 = vpop.f32.mrb[0].mxu0
    %7580 = vdwg.mxu0
    %7581 = vmatprep.subr.mxu0 0.0
    %v7582 = vand.u32 %v7243, 4294901760
    %v7583 = vsub.f32 %v7243, %v7582
    %v7584 = vand.u32 %v7583, 4294901760
    %7585 = vmatpush1.msra.mxu0 %v7584
    %7586 = vmatprep.subr.mxu0 0.0
    %v7587 = vand.u32 %v7244, 4294901760
    %v7588 = vsub.f32 %v7244, %v7587
    %v7589 = vand.u32 %v7588, 4294901760
    %7590 = vmatpush1.msra.mxu0 %v7589
    %7591 = vmatprep.subr.mxu0 0.0
    %7592 = vmatpush1.msra.mxu0 0.0
    %7593 = vmatprep.subr.mxu0 0.0
    %7594 = vmatpush1.msra.mxu0 0.0
    %7595 = vmatprep.subr.mxu0 0.0
    %7596 = vmatpush1.msra.mxu0 0.0
    %7597 = vmatprep.subr.mxu0 0.0
    %7598 = vmatpush1.msra.mxu0 0.0
    %7599 = vmatprep.subr.mxu0 0.0
    %7600 = vmatpush1.msra.mxu0 0.0
    %7601 = vmatprep.subr.mxu0 0.0
    %7602 = vmatpush1.msra.mxu0 0.0
    %7603 = vmatprep.subr.mxu0 0.0
    %7604 = vmatpush1.msra.mxu0 0.0
    %7605 = vmatprep.subr.mxu0 0.0
    %7606 = vmatpush1.msra.mxu0 0.0
    %7607 = vmatprep.subr.mxu0 0.0
    %7608 = vmatpush1.msra.mxu0 0.0
    %7609 = vmatprep.subr.mxu0 0.0
    %7610 = vmatpush1.msra.mxu0 0.0
    %7611 = vmatprep.subr.mxu0 0.0
    %7612 = vmatpush1.msra.mxu0 0.0
    %7613 = vmatprep.subr.mxu0 0.0
    %7614 = vmatpush1.msra.mxu0 0.0
    %7615 = vmatprep.subr.mxu0 0.0
    %7616 = vmatpush1.msra.mxu0 0.0
    %7617 = vmatprep.subr.mxu0 0.0
    %7618 = vmatpush1.msra.mxu0 0.0
    %7619 = vmatprep.subr.mxu0 0.0
    %7620 = vmatpush1.msra.mxu0 0.0
    %7621 = vmatprep.subr.mxu0 0.0
    %7622 = vmatpush1.msra.mxu0 0.0
    %7623 = vmatprep.subr.mxu0 0.0
    %7624 = vmatpush1.msra.mxu0 0.0
    %7625 = vmatprep.subr.mxu0 0.0
    %7626 = vmatpush1.msra.mxu0 0.0
    %7627 = vmatprep.subr.mxu0 0.0
    %7628 = vmatpush1.msra.mxu0 0.0
    %7629 = vmatprep.subr.mxu0 0.0
    %7630 = vmatpush1.msra.mxu0 0.0
    %7631 = vmatprep.subr.mxu0 0.0
    %7632 = vmatpush1.msra.mxu0 0.0
    %7633 = vmatprep.subr.mxu0 0.0
    %7634 = vmatpush1.msra.mxu0 0.0
    %7635 = vmatprep.subr.mxu0 0.0
    %7636 = vmatpush1.msra.mxu0 0.0
    %7637 = vmatprep.subr.mxu0 0.0
    %7638 = vmatpush1.msra.mxu0 0.0
    %7639 = vmatprep.subr.mxu0 0.0
    %7640 = vmatpush1.msra.mxu0 0.0
    %7641 = vmatprep.subr.mxu0 0.0
    %7642 = vmatpush1.msra.mxu0 0.0
    %7643 = vmatprep.subr.mxu0 0.0
    %7644 = vmatpush1.msra.mxu0 0.0
    %7645 = vmatprep.subr.mxu0 0.0
    %7646 = vmatpush1.msra.mxu0 0.0
    %7647 = vmatprep.subr.mxu0 0.0
    %7648 = vmatpush1.msra.mxu0 0.0
    %7649 = vmatprep.subr.mxu0 0.0
    %7650 = vmatpush1.msra.mxu0 0.0
    %7651 = vmatprep.mubr.f32.mxu0 0.0
    %v7652 = vand.u32 %v7270, 4294901760
    %7653 = vmatmul.mubr.f32.gmra.mrb[0].mxu0 %v7652
    %v7654 = vpop.f32.mrb[0].mxu0
    %v7655 = vadd.f32 %v7578, %v7654
    %v7656 = vpop.f32.mrb[0].mxu0
    %7657 = vdwg.mxu0
    %7658 = vmatprep.subr.mxu0 0.0
    %v7659 = vand.u32 %v7243, 4294901760
    %7660 = vmatpush1.msra.mxu0 %v7659
    %7661 = vmatprep.subr.mxu0 0.0
    %v7662 = vand.u32 %v7244, 4294901760
    %7663 = vmatpush1.msra.mxu0 %v7662
    %7664 = vmatprep.subr.mxu0 0.0
    %7665 = vmatpush1.msra.mxu0 0.0
    %7666 = vmatprep.subr.mxu0 0.0
    %7667 = vmatpush1.msra.mxu0 0.0
    %7668 = vmatprep.subr.mxu0 0.0
    %7669 = vmatpush1.msra.mxu0 0.0
    %7670 = vmatprep.subr.mxu0 0.0
    %7671 = vmatpush1.msra.mxu0 0.0
    %7672 = vmatprep.subr.mxu0 0.0
    %7673 = vmatpush1.msra.mxu0 0.0
    %7674 = vmatprep.subr.mxu0 0.0
    %7675 = vmatpush1.msra.mxu0 0.0
    %7676 = vmatprep.subr.mxu0 0.0
    %7677 = vmatpush1.msra.mxu0 0.0
    %7678 = vmatprep.subr.mxu0 0.0
    %7679 = vmatpush1.msra.mxu0 0.0
    %7680 = vmatprep.subr.mxu0 0.0
    %7681 = vmatpush1.msra.mxu0 0.0
    %7682 = vmatprep.subr.mxu0 0.0
    %7683 = vmatpush1.msra.mxu0 0.0
    %7684 = vmatprep.subr.mxu0 0.0
    %7685 = vmatpush1.msra.mxu0 0.0
    %7686 = vmatprep.subr.mxu0 0.0
    %7687 = vmatpush1.msra.mxu0 0.0
    %7688 = vmatprep.subr.mxu0 0.0
    %7689 = vmatpush1.msra.mxu0 0.0
    %7690 = vmatprep.subr.mxu0 0.0
    %7691 = vmatpush1.msra.mxu0 0.0
    %7692 = vmatprep.subr.mxu0 0.0
    %7693 = vmatpush1.msra.mxu0 0.0
    %7694 = vmatprep.subr.mxu0 0.0
    %7695 = vmatpush1.msra.mxu0 0.0
    %7696 = vmatprep.subr.mxu0 0.0
    %7697 = vmatpush1.msra.mxu0 0.0
    %7698 = vmatprep.subr.mxu0 0.0
    %7699 = vmatpush1.msra.mxu0 0.0
    %7700 = vmatprep.subr.mxu0 0.0
    %7701 = vmatpush1.msra.mxu0 0.0
    %7702 = vmatprep.subr.mxu0 0.0
    %7703 = vmatpush1.msra.mxu0 0.0
    %7704 = vmatprep.subr.mxu0 0.0
    %7705 = vmatpush1.msra.mxu0 0.0
    %7706 = vmatprep.subr.mxu0 0.0
    %7707 = vmatpush1.msra.mxu0 0.0
    %7708 = vmatprep.subr.mxu0 0.0
    %7709 = vmatpush1.msra.mxu0 0.0
    %7710 = vmatprep.subr.mxu0 0.0
    %7711 = vmatpush1.msra.mxu0 0.0
    %7712 = vmatprep.subr.mxu0 0.0
    %7713 = vmatpush1.msra.mxu0 0.0
    %7714 = vmatprep.subr.mxu0 0.0
    %7715 = vmatpush1.msra.mxu0 0.0
    %7716 = vmatprep.subr.mxu0 0.0
    %7717 = vmatpush1.msra.mxu0 0.0
    %7718 = vmatprep.subr.mxu0 0.0
    %7719 = vmatpush1.msra.mxu0 0.0
    %7720 = vmatprep.subr.mxu0 0.0
    %7721 = vmatpush1.msra.mxu0 0.0
    %7722 = vmatprep.subr.mxu0 0.0
    %7723 = vmatpush1.msra.mxu0 0.0
    %7724 = vmatprep.mubr.f32.mxu0 0.0
    %v7725 = vand.u32 %v7270, 4294901760
    %7726 = vmatmul.mubr.f32.gmra.mrb[0].mxu0 %v7725
    %v7727 = vpop.f32.mrb[0].mxu0
    %v7728 = vadd.f32 %v7655, %v7727
    %v7729 = vpop.f32.mrb[0].mxu0
    %7730 = vdwg.mxu0
    %v7731 = vmax.f32 %v7728, 0.0
    %v7733 = vlaneseq
    %v7734 = vshrl.u32 %v7733, 7
    %v7735 = vsub.s32 0, %v7734
    %v7736 = vrot.slane %v7259, %v7735
    %v7737 = vlaneseq
    %v7738 = vshrl.u32 %v7737, 7
    %v7739 = vsub.s32 1, %v7738
    %v7740 = vrot.slane %v7259, %v7739
    %v7741 = vlaneseq
    %v7742 = vshrl.u32 %v7741, 7
    %v7743 = vsub.s32 2, %v7742
    %v7744 = vrot.slane %v7259, %v7743
    %v7749 = vsel %vm591, %v7731, 0
    %v7751 = vand.u32 %v7247, 4294901760
    %7752 = vmatprep.subr.mxu0 %v7751
    %v7753 = vand.u32 %v7246, 4294901760
    %7754 = vmatpush1.msra.mxu0 %v7753
    %v7755 = vand.u32 %v7250, 4294901760
    %7756 = vmatprep.subr.mxu0 %v7755
    %v7757 = vand.u32 %v7249, 4294901760
    %7758 = vmatpush1.msra.mxu0 %v7757
    %v7759 = vand.u32 %v7253, 4294901760
    %7760 = vmatprep.subr.mxu0 %v7759
    %v7761 = vand.u32 %v7252, 4294901760
    %7762 = vmatpush1.msra.mxu0 %v7761
    %v7763 = vand.u32 %v7256, 4294901760
    %7764 = vmatprep.subr.mxu0 %v7763
    %v7765 = vand.u32 %v7255, 4294901760
    %7766 = vmatpush1.msra.mxu0 %v7765
    %7767 = vmatprep.subr.mxu0 0.0
    %7768 = vmatpush1.msra.mxu0 0.0
    %7769 = vmatprep.subr.mxu0 0.0
    %7770 = vmatpush1.msra.mxu0 0.0
    %7771 = vmatprep.subr.mxu0 0.0
    %7772 = vmatpush1.msra.mxu0 0.0
    %7773 = vmatprep.subr.mxu0 0.0
    %7774 = vmatpush1.msra.mxu0 0.0
    %7775 = vmatprep.subr.mxu0 0.0
    %7776 = vmatpush1.msra.mxu0 0.0
    %7777 = vmatprep.subr.mxu0 0.0
    %7778 = vmatpush1.msra.mxu0 0.0
    %7779 = vmatprep.subr.mxu0 0.0
    %7780 = vmatpush1.msra.mxu0 0.0
    %7781 = vmatprep.subr.mxu0 0.0
    %7782 = vmatpush1.msra.mxu0 0.0
    %7783 = vmatprep.subr.mxu0 0.0
    %7784 = vmatpush1.msra.mxu0 0.0
    %7785 = vmatprep.subr.mxu0 0.0
    %7786 = vmatpush1.msra.mxu0 0.0
    %7787 = vmatprep.subr.mxu0 0.0
    %7788 = vmatpush1.msra.mxu0 0.0
    %7789 = vmatprep.subr.mxu0 0.0
    %7790 = vmatpush1.msra.mxu0 0.0
    %7791 = vmatprep.subr.mxu0 0.0
    %7792 = vmatpush1.msra.mxu0 0.0
    %7793 = vmatprep.subr.mxu0 0.0
    %7794 = vmatpush1.msra.mxu0 0.0
    %7795 = vmatprep.subr.mxu0 0.0
    %7796 = vmatpush1.msra.mxu0 0.0
    %7797 = vmatprep.subr.mxu0 0.0
    %7798 = vmatpush1.msra.mxu0 0.0
    %7799 = vmatprep.subr.mxu0 0.0
    %7800 = vmatpush1.msra.mxu0 0.0
    %7801 = vmatprep.subr.mxu0 0.0
    %7802 = vmatpush1.msra.mxu0 0.0
    %7803 = vmatprep.subr.mxu0 0.0
    %7804 = vmatpush1.msra.mxu0 0.0
    %7805 = vmatprep.subr.mxu0 0.0
    %7806 = vmatpush1.msra.mxu0 0.0
    %7807 = vmatprep.subr.mxu0 0.0
    %7808 = vmatpush1.msra.mxu0 0.0
    %7809 = vmatprep.subr.mxu0 0.0
    %7810 = vmatpush1.msra.mxu0 0.0
    %7811 = vmatprep.subr.mxu0 0.0
    %7812 = vmatpush1.msra.mxu0 0.0
    %7813 = vmatprep.subr.mxu0 0.0
    %7814 = vmatpush1.msra.mxu0 0.0
    %7815 = vmatprep.subr.mxu0 0.0
    %7816 = vmatpush1.msra.mxu0 0.0
    %7817 = vmatprep.subr.mxu0 0.0
    %7818 = vmatpush1.msra.mxu0 0.0
    %7819 = vmatprep.subr.mxu0 0.0
    %7820 = vmatpush1.msra.mxu0 0.0
    %7821 = vmatprep.subr.mxu0 0.0
    %7822 = vmatpush1.msra.mxu0 0.0
    %7823 = vmatprep.mubr.f32.mxu0 0.0
    %v7824 = vand.u32 %v7749, 4294901760
    %v7825 = vsub.f32 %v7749, %v7824
    %v7826 = vand.u32 %v7825, 4294901760
    %v7827 = vsub.f32 %v7825, %v7826
    %v7828 = vand.u32 %v7827, 4294901760
    %7829 = vmatmul.mubr.f32.gmra.mrb[0].mxu0 %v7828
    %v7830 = vpop.f32.mrb[0].mxu0
    %v7831 = vadd.f32 %v7736, %v7830
    %v7832 = vpop.f32.mrb[0].mxu0
    %v7833 = vadd.f32 %v7740, %v7832
    %7834 = vdwg.mxu0
    %v7835 = vand.u32 %v7247, 4294901760
    %v7836 = vsub.f32 %v7247, %v7835
    %v7837 = vand.u32 %v7836, 4294901760
    %v7838 = vsub.f32 %v7836, %v7837
    %v7839 = vand.u32 %v7838, 4294901760
    %7840 = vmatprep.subr.mxu0 %v7839
    %v7841 = vand.u32 %v7246, 4294901760
    %v7842 = vsub.f32 %v7246, %v7841
    %v7843 = vand.u32 %v7842, 4294901760
    %v7844 = vsub.f32 %v7842, %v7843
    %v7845 = vand.u32 %v7844, 4294901760
    %7846 = vmatpush1.msra.mxu0 %v7845
    %v7847 = vand.u32 %v7250, 4294901760
    %v7848 = vsub.f32 %v7250, %v7847
    %v7849 = vand.u32 %v7848, 4294901760
    %v7850 = vsub.f32 %v7848, %v7849
    %v7851 = vand.u32 %v7850, 4294901760
    %7852 = vmatprep.subr.mxu0 %v7851
    %v7853 = vand.u32 %v7249, 4294901760
    %v7854 = vsub.f32 %v7249, %v7853
    %v7855 = vand.u32 %v7854, 4294901760
    %v7856 = vsub.f32 %v7854, %v7855
    %v7857 = vand.u32 %v7856, 4294901760
    %7858 = vmatpush1.msra.mxu0 %v7857
    %v7859 = vand.u32 %v7253, 4294901760
    %v7860 = vsub.f32 %v7253, %v7859
    %v7861 = vand.u32 %v7860, 4294901760
    %v7862 = vsub.f32 %v7860, %v7861
    %v7863 = vand.u32 %v7862, 4294901760
    %7864 = vmatprep.subr.mxu0 %v7863
    %v7865 = vand.u32 %v7252, 4294901760
    %v7866 = vsub.f32 %v7252, %v7865
    %v7867 = vand.u32 %v7866, 4294901760
    %v7868 = vsub.f32 %v7866, %v7867
    %v7869 = vand.u32 %v7868, 4294901760
    %7870 = vmatpush1.msra.mxu0 %v7869
    %v7871 = vand.u32 %v7256, 4294901760
    %v7872 = vsub.f32 %v7256, %v7871
    %v7873 = vand.u32 %v7872, 4294901760
    %v7874 = vsub.f32 %v7872, %v7873
    %v7875 = vand.u32 %v7874, 4294901760
    %7876 = vmatprep.subr.mxu0 %v7875
    %v7877 = vand.u32 %v7255, 4294901760
    %v7878 = vsub.f32 %v7255, %v7877
    %v7879 = vand.u32 %v7878, 4294901760
    %v7880 = vsub.f32 %v7878, %v7879
    %v7881 = vand.u32 %v7880, 4294901760
    %7882 = vmatpush1.msra.mxu0 %v7881
    %7883 = vmatprep.subr.mxu0 0.0
    %7884 = vmatpush1.msra.mxu0 0.0
    %7885 = vmatprep.subr.mxu0 0.0
    %7886 = vmatpush1.msra.mxu0 0.0
    %7887 = vmatprep.subr.mxu0 0.0
    %7888 = vmatpush1.msra.mxu0 0.0
    %7889 = vmatprep.subr.mxu0 0.0
    %7890 = vmatpush1.msra.mxu0 0.0
    %7891 = vmatprep.subr.mxu0 0.0
    %7892 = vmatpush1.msra.mxu0 0.0
    %7893 = vmatprep.subr.mxu0 0.0
    %7894 = vmatpush1.msra.mxu0 0.0
    %7895 = vmatprep.subr.mxu0 0.0
    %7896 = vmatpush1.msra.mxu0 0.0
    %7897 = vmatprep.subr.mxu0 0.0
    %7898 = vmatpush1.msra.mxu0 0.0
    %7899 = vmatprep.subr.mxu0 0.0
    %7900 = vmatpush1.msra.mxu0 0.0
    %7901 = vmatprep.subr.mxu0 0.0
    %7902 = vmatpush1.msra.mxu0 0.0
    %7903 = vmatprep.subr.mxu0 0.0
    %7904 = vmatpush1.msra.mxu0 0.0
    %7905 = vmatprep.subr.mxu0 0.0
    %7906 = vmatpush1.msra.mxu0 0.0
    %7907 = vmatprep.subr.mxu0 0.0
    %7908 = vmatpush1.msra.mxu0 0.0
    %7909 = vmatprep.subr.mxu0 0.0
    %7910 = vmatpush1.msra.mxu0 0.0
    %7911 = vmatprep.subr.mxu0 0.0
    %7912 = vmatpush1.msra.mxu0 0.0
    %7913 = vmatprep.subr.mxu0 0.0
    %7914 = vmatpush1.msra.mxu0 0.0
    %7915 = vmatprep.subr.mxu0 0.0
    %7916 = vmatpush1.msra.mxu0 0.0
    %7917 = vmatprep.subr.mxu0 0.0
    %7918 = vmatpush1.msra.mxu0 0.0
    %7919 = vmatprep.subr.mxu0 0.0
    %7920 = vmatpush1.msra.mxu0 0.0
    %7921 = vmatprep.subr.mxu0 0.0
    %7922 = vmatpush1.msra.mxu0 0.0
    %7923 = vmatprep.subr.mxu0 0.0
    %7924 = vmatpush1.msra.mxu0 0.0
    %7925 = vmatprep.subr.mxu0 0.0
    %7926 = vmatpush1.msra.mxu0 0.0
    %7927 = vmatprep.subr.mxu0 0.0
    %7928 = vmatpush1.msra.mxu0 0.0
    %7929 = vmatprep.subr.mxu0 0.0
    %7930 = vmatpush1.msra.mxu0 0.0
    %7931 = vmatprep.subr.mxu0 0.0
    %7932 = vmatpush1.msra.mxu0 0.0
    %7933 = vmatprep.subr.mxu0 0.0
    %7934 = vmatpush1.msra.mxu0 0.0
    %7935 = vmatprep.subr.mxu0 0.0
    %7936 = vmatpush1.msra.mxu0 0.0
    %7937 = vmatprep.subr.mxu0 0.0
    %7938 = vmatpush1.msra.mxu0 0.0
    %7939 = vmatprep.mubr.f32.mxu0 0.0
    %v7940 = vand.u32 %v7749, 4294901760
    %7941 = vmatmul.mubr.f32.gmra.mrb[0].mxu0 %v7940
    %v7942 = vpop.f32.mrb[0].mxu0
    %v7943 = vadd.f32 %v7831, %v7942
    %v7944 = vpop.f32.mrb[0].mxu0
    %v7945 = vadd.f32 %v7833, %v7944
    %7946 = vdwg.mxu0
    %v7947 = vand.u32 %v7247, 4294901760
    %v7948 = vsub.f32 %v7247, %v7947
    %7949 = vmatprep.subr.mxu0 %v7948
    %v7950 = vand.u32 %v7246, 4294901760
    %v7951 = vsub.f32 %v7246, %v7950
    %7952 = vmatpush1.msra.mxu0 %v7951
    %v7953 = vand.u32 %v7250, 4294901760
    %v7954 = vsub.f32 %v7250, %v7953
    %7955 = vmatprep.subr.mxu0 %v7954
    %v7956 = vand.u32 %v7249, 4294901760
    %v7957 = vsub.f32 %v7249, %v7956
    %7958 = vmatpush1.msra.mxu0 %v7957
    %v7959 = vand.u32 %v7253, 4294901760
    %v7960 = vsub.f32 %v7253, %v7959
    %7961 = vmatprep.subr.mxu0 %v7960
    %v7962 = vand.u32 %v7252, 4294901760
    %v7963 = vsub.f32 %v7252, %v7962
    %7964 = vmatpush1.msra.mxu0 %v7963
    %v7965 = vand.u32 %v7256, 4294901760
    %v7966 = vsub.f32 %v7256, %v7965
    %7967 = vmatprep.subr.mxu0 %v7966
    %v7968 = vand.u32 %v7255, 4294901760
    %v7969 = vsub.f32 %v7255, %v7968
    %7970 = vmatpush1.msra.mxu0 %v7969
    %7971 = vmatprep.subr.mxu0 0.0
    %7972 = vmatpush1.msra.mxu0 0.0
    %7973 = vmatprep.subr.mxu0 0.0
    %7974 = vmatpush1.msra.mxu0 0.0
    %7975 = vmatprep.subr.mxu0 0.0
    %7976 = vmatpush1.msra.mxu0 0.0
    %7977 = vmatprep.subr.mxu0 0.0
    %7978 = vmatpush1.msra.mxu0 0.0
    %7979 = vmatprep.subr.mxu0 0.0
    %7980 = vmatpush1.msra.mxu0 0.0
    %7981 = vmatprep.subr.mxu0 0.0
    %7982 = vmatpush1.msra.mxu0 0.0
    %7983 = vmatprep.subr.mxu0 0.0
    %7984 = vmatpush1.msra.mxu0 0.0
    %7985 = vmatprep.subr.mxu0 0.0
    %7986 = vmatpush1.msra.mxu0 0.0
    %7987 = vmatprep.subr.mxu0 0.0
    %7988 = vmatpush1.msra.mxu0 0.0
    %7989 = vmatprep.subr.mxu0 0.0
    %7990 = vmatpush1.msra.mxu0 0.0
    %7991 = vmatprep.subr.mxu0 0.0
    %7992 = vmatpush1.msra.mxu0 0.0
    %7993 = vmatprep.subr.mxu0 0.0
    %7994 = vmatpush1.msra.mxu0 0.0
    %7995 = vmatprep.subr.mxu0 0.0
    %7996 = vmatpush1.msra.mxu0 0.0
    %7997 = vmatprep.subr.mxu0 0.0
    %7998 = vmatpush1.msra.mxu0 0.0
    %7999 = vmatprep.subr.mxu0 0.0
    %8000 = vmatpush1.msra.mxu0 0.0
    %8001 = vmatprep.subr.mxu0 0.0
    %8002 = vmatpush1.msra.mxu0 0.0
    %8003 = vmatprep.subr.mxu0 0.0
    %8004 = vmatpush1.msra.mxu0 0.0
    %8005 = vmatprep.subr.mxu0 0.0
    %8006 = vmatpush1.msra.mxu0 0.0
    %8007 = vmatprep.subr.mxu0 0.0
    %8008 = vmatpush1.msra.mxu0 0.0
    %8009 = vmatprep.subr.mxu0 0.0
    %8010 = vmatpush1.msra.mxu0 0.0
    %8011 = vmatprep.subr.mxu0 0.0
    %8012 = vmatpush1.msra.mxu0 0.0
    %8013 = vmatprep.subr.mxu0 0.0
    %8014 = vmatpush1.msra.mxu0 0.0
    %8015 = vmatprep.subr.mxu0 0.0
    %8016 = vmatpush1.msra.mxu0 0.0
    %8017 = vmatprep.subr.mxu0 0.0
    %8018 = vmatpush1.msra.mxu0 0.0
    %8019 = vmatprep.subr.mxu0 0.0
    %8020 = vmatpush1.msra.mxu0 0.0
    %8021 = vmatprep.subr.mxu0 0.0
    %8022 = vmatpush1.msra.mxu0 0.0
    %8023 = vmatprep.subr.mxu0 0.0
    %8024 = vmatpush1.msra.mxu0 0.0
    %8025 = vmatprep.subr.mxu0 0.0
    %8026 = vmatpush1.msra.mxu0 0.0
    %8027 = vmatprep.mubr.f32.mxu0 0.0
    %v8028 = vand.u32 %v7749, 4294901760
    %v8029 = vsub.f32 %v7749, %v8028
    %8030 = vmatmul.mubr.f32.gmra.mrb[0].mxu0 %v8029
    %v8031 = vpop.f32.mrb[0].mxu0
    %v8032 = vadd.f32 %v7943, %v8031
    %v8033 = vpop.f32.mrb[0].mxu0
    %v8034 = vadd.f32 %v7945, %v8033
    %8035 = vdwg.mxu0
    %v8036 = vand.u32 %v7247, 4294901760
    %8037 = vmatprep.subr.mxu0 %v8036
    %v8038 = vand.u32 %v7246, 4294901760
    %8039 = vmatpush1.msra.mxu0 %v8038
    %v8040 = vand.u32 %v7250, 4294901760
    %8041 = vmatprep.subr.mxu0 %v8040
    %v8042 = vand.u32 %v7249, 4294901760
    %8043 = vmatpush1.msra.mxu0 %v8042
    %v8044 = vand.u32 %v7253, 4294901760
    %8045 = vmatprep.subr.mxu0 %v8044
    %v8046 = vand.u32 %v7252, 4294901760
    %8047 = vmatpush1.msra.mxu0 %v8046
    %v8048 = vand.u32 %v7256, 4294901760
    %8049 = vmatprep.subr.mxu0 %v8048
    %v8050 = vand.u32 %v7255, 4294901760
    %8051 = vmatpush1.msra.mxu0 %v8050
    %8052 = vmatprep.subr.mxu0 0.0
    %8053 = vmatpush1.msra.mxu0 0.0
    %8054 = vmatprep.subr.mxu0 0.0
    %8055 = vmatpush1.msra.mxu0 0.0
    %8056 = vmatprep.subr.mxu0 0.0
    %8057 = vmatpush1.msra.mxu0 0.0
    %8058 = vmatprep.subr.mxu0 0.0
    %8059 = vmatpush1.msra.mxu0 0.0
    %8060 = vmatprep.subr.mxu0 0.0
    %8061 = vmatpush1.msra.mxu0 0.0
    %8062 = vmatprep.subr.mxu0 0.0
    %8063 = vmatpush1.msra.mxu0 0.0
    %8064 = vmatprep.subr.mxu0 0.0
    %8065 = vmatpush1.msra.mxu0 0.0
    %8066 = vmatprep.subr.mxu0 0.0
    %8067 = vmatpush1.msra.mxu0 0.0
    %8068 = vmatprep.subr.mxu0 0.0
    %8069 = vmatpush1.msra.mxu0 0.0
    %8070 = vmatprep.subr.mxu0 0.0
    %8071 = vmatpush1.msra.mxu0 0.0
    %8072 = vmatprep.subr.mxu0 0.0
    %8073 = vmatpush1.msra.mxu0 0.0
    %8074 = vmatprep.subr.mxu0 0.0
    %8075 = vmatpush1.msra.mxu0 0.0
    %8076 = vmatprep.subr.mxu0 0.0
    %8077 = vmatpush1.msra.mxu0 0.0
    %8078 = vmatprep.subr.mxu0 0.0
    %8079 = vmatpush1.msra.mxu0 0.0
    %8080 = vmatprep.subr.mxu0 0.0
    %8081 = vmatpush1.msra.mxu0 0.0
    %8082 = vmatprep.subr.mxu0 0.0
    %8083 = vmatpush1.msra.mxu0 0.0
    %8084 = vmatprep.subr.mxu0 0.0
    %8085 = vmatpush1.msra.mxu0 0.0
    %8086 = vmatprep.subr.mxu0 0.0
    %8087 = vmatpush1.msra.mxu0 0.0
    %8088 = vmatprep.subr.mxu0 0.0
    %8089 = vmatpush1.msra.mxu0 0.0
    %8090 = vmatprep.subr.mxu0 0.0
    %8091 = vmatpush1.msra.mxu0 0.0
    %8092 = vmatprep.subr.mxu0 0.0
    %8093 = vmatpush1.msra.mxu0 0.0
    %8094 = vmatprep.subr.mxu0 0.0
    %8095 = vmatpush1.msra.mxu0 0.0
    %8096 = vmatprep.subr.mxu0 0.0
    %8097 = vmatpush1.msra.mxu0 0.0
    %8098 = vmatprep.subr.mxu0 0.0
    %8099 = vmatpush1.msra.mxu0 0.0
    %8100 = vmatprep.subr.mxu0 0.0
    %8101 = vmatpush1.msra.mxu0 0.0
    %8102 = vmatprep.subr.mxu0 0.0
    %8103 = vmatpush1.msra.mxu0 0.0
    %8104 = vmatprep.subr.mxu0 0.0
    %8105 = vmatpush1.msra.mxu0 0.0
    %8106 = vmatprep.subr.mxu0 0.0
    %8107 = vmatpush1.msra.mxu0 0.0
    %8108 = vmatprep.mubr.f32.mxu0 0.0
    %v8109 = vand.u32 %v7749, 4294901760
    %v8110 = vsub.f32 %v7749, %v8109
    %v8111 = vand.u32 %v8110, 4294901760
    %8112 = vmatmul.mubr.f32.gmra.mrb[0].mxu0 %v8111
    %v8113 = vpop.f32.mrb[0].mxu0
    %v8114 = vadd.f32 %v8032, %v8113
    %v8115 = vpop.f32.mrb[0].mxu0
    %v8116 = vadd.f32 %v8034, %v8115
    %8117 = vdwg.mxu0
    %v8118 = vand.u32 %v7247, 4294901760
    %v8119 = vsub.f32 %v7247, %v8118
    %v8120 = vand.u32 %v8119, 4294901760
    %8121 = vmatprep.subr.mxu0 %v8120
    %v8122 = vand.u32 %v7246, 4294901760
    %v8123 = vsub.f32 %v7246, %v8122
    %v8124 = vand.u32 %v8123, 4294901760
    %8125 = vmatpush1.msra.mxu0 %v8124
    %v8126 = vand.u32 %v7250, 4294901760
    %v8127 = vsub.f32 %v7250, %v8126
    %v8128 = vand.u32 %v8127, 4294901760
    %8129 = vmatprep.subr.mxu0 %v8128
    %v8130 = vand.u32 %v7249, 4294901760
    %v8131 = vsub.f32 %v7249, %v8130
    %v8132 = vand.u32 %v8131, 4294901760
    %8133 = vmatpush1.msra.mxu0 %v8132
    %v8134 = vand.u32 %v7253, 4294901760
    %v8135 = vsub.f32 %v7253, %v8134
    %v8136 = vand.u32 %v8135, 4294901760
    %8137 = vmatprep.subr.mxu0 %v8136
    %v8138 = vand.u32 %v7252, 4294901760
    %v8139 = vsub.f32 %v7252, %v8138
    %v8140 = vand.u32 %v8139, 4294901760
    %8141 = vmatpush1.msra.mxu0 %v8140
    %v8142 = vand.u32 %v7256, 4294901760
    %v8143 = vsub.f32 %v7256, %v8142
    %v8144 = vand.u32 %v8143, 4294901760
    %8145 = vmatprep.subr.mxu0 %v8144
    %v8146 = vand.u32 %v7255, 4294901760
    %v8147 = vsub.f32 %v7255, %v8146
    %v8148 = vand.u32 %v8147, 4294901760
    %8149 = vmatpush1.msra.mxu0 %v8148
    %8150 = vmatprep.subr.mxu0 0.0
    %8151 = vmatpush1.msra.mxu0 0.0
    %8152 = vmatprep.subr.mxu0 0.0
    %8153 = vmatpush1.msra.mxu0 0.0
    %8154 = vmatprep.subr.mxu0 0.0
    %8155 = vmatpush1.msra.mxu0 0.0
    %8156 = vmatprep.subr.mxu0 0.0
    %8157 = vmatpush1.msra.mxu0 0.0
    %8158 = vmatprep.subr.mxu0 0.0
    %8159 = vmatpush1.msra.mxu0 0.0
    %8160 = vmatprep.subr.mxu0 0.0
    %8161 = vmatpush1.msra.mxu0 0.0
    %8162 = vmatprep.subr.mxu0 0.0
    %8163 = vmatpush1.msra.mxu0 0.0
    %8164 = vmatprep.subr.mxu0 0.0
    %8165 = vmatpush1.msra.mxu0 0.0
    %8166 = vmatprep.subr.mxu0 0.0
    %8167 = vmatpush1.msra.mxu0 0.0
    %8168 = vmatprep.subr.mxu0 0.0
    %8169 = vmatpush1.msra.mxu0 0.0
    %8170 = vmatprep.subr.mxu0 0.0
    %8171 = vmatpush1.msra.mxu0 0.0
    %8172 = vmatprep.subr.mxu0 0.0
    %8173 = vmatpush1.msra.mxu0 0.0
    %8174 = vmatprep.subr.mxu0 0.0
    %8175 = vmatpush1.msra.mxu0 0.0
    %8176 = vmatprep.subr.mxu0 0.0
    %8177 = vmatpush1.msra.mxu0 0.0
    %8178 = vmatprep.subr.mxu0 0.0
    %8179 = vmatpush1.msra.mxu0 0.0
    %8180 = vmatprep.subr.mxu0 0.0
    %8181 = vmatpush1.msra.mxu0 0.0
    %8182 = vmatprep.subr.mxu0 0.0
    %8183 = vmatpush1.msra.mxu0 0.0
    %8184 = vmatprep.subr.mxu0 0.0
    %8185 = vmatpush1.msra.mxu0 0.0
    %8186 = vmatprep.subr.mxu0 0.0
    %8187 = vmatpush1.msra.mxu0 0.0
    %8188 = vmatprep.subr.mxu0 0.0
    %8189 = vmatpush1.msra.mxu0 0.0
    %8190 = vmatprep.subr.mxu0 0.0
    %8191 = vmatpush1.msra.mxu0 0.0
    %8192 = vmatprep.subr.mxu0 0.0
    %8193 = vmatpush1.msra.mxu0 0.0
    %8194 = vmatprep.subr.mxu0 0.0
    %8195 = vmatpush1.msra.mxu0 0.0
    %8196 = vmatprep.subr.mxu0 0.0
    %8197 = vmatpush1.msra.mxu0 0.0
    %8198 = vmatprep.subr.mxu0 0.0
    %8199 = vmatpush1.msra.mxu0 0.0
    %8200 = vmatprep.subr.mxu0 0.0
    %8201 = vmatpush1.msra.mxu0 0.0
    %8202 = vmatprep.subr.mxu0 0.0
    %8203 = vmatpush1.msra.mxu0 0.0
    %8204 = vmatprep.subr.mxu0 0.0
    %8205 = vmatpush1.msra.mxu0 0.0
    %8206 = vmatprep.mubr.f32.mxu0 0.0
    %v8207 = vand.u32 %v7749, 4294901760
    %8208 = vmatmul.mubr.f32.gmra.mrb[0].mxu0 %v8207
    %v8209 = vpop.f32.mrb[0].mxu0
    %v8210 = vadd.f32 %v8114, %v8209
    %v8211 = vpop.f32.mrb[0].mxu0
    %v8212 = vadd.f32 %v8116, %v8211
    %8213 = vdwg.mxu0
    %v8214 = vand.u32 %v7247, 4294901760
    %8215 = vmatprep.subr.mxu0 %v8214
    %v8216 = vand.u32 %v7246, 4294901760
    %8217 = vmatpush1.msra.mxu0 %v8216
    %v8218 = vand.u32 %v7250, 4294901760
    %8219 = vmatprep.subr.mxu0 %v8218
    %v8220 = vand.u32 %v7249, 4294901760
    %8221 = vmatpush1.msra.mxu0 %v8220
    %v8222 = vand.u32 %v7253, 4294901760
    %8223 = vmatprep.subr.mxu0 %v8222
    %v8224 = vand.u32 %v7252, 4294901760
    %8225 = vmatpush1.msra.mxu0 %v8224
    %v8226 = vand.u32 %v7256, 4294901760
    %8227 = vmatprep.subr.mxu0 %v8226
    %v8228 = vand.u32 %v7255, 4294901760
    %8229 = vmatpush1.msra.mxu0 %v8228
    %8230 = vmatprep.subr.mxu0 0.0
    %8231 = vmatpush1.msra.mxu0 0.0
    %8232 = vmatprep.subr.mxu0 0.0
    %8233 = vmatpush1.msra.mxu0 0.0
    %8234 = vmatprep.subr.mxu0 0.0
    %8235 = vmatpush1.msra.mxu0 0.0
    %8236 = vmatprep.subr.mxu0 0.0
    %8237 = vmatpush1.msra.mxu0 0.0
    %8238 = vmatprep.subr.mxu0 0.0
    %8239 = vmatpush1.msra.mxu0 0.0
    %8240 = vmatprep.subr.mxu0 0.0
    %8241 = vmatpush1.msra.mxu0 0.0
    %8242 = vmatprep.subr.mxu0 0.0
    %8243 = vmatpush1.msra.mxu0 0.0
    %8244 = vmatprep.subr.mxu0 0.0
    %8245 = vmatpush1.msra.mxu0 0.0
    %8246 = vmatprep.subr.mxu0 0.0
    %8247 = vmatpush1.msra.mxu0 0.0
    %8248 = vmatprep.subr.mxu0 0.0
    %8249 = vmatpush1.msra.mxu0 0.0
    %8250 = vmatprep.subr.mxu0 0.0
    %8251 = vmatpush1.msra.mxu0 0.0
    %8252 = vmatprep.subr.mxu0 0.0
    %8253 = vmatpush1.msra.mxu0 0.0
    %8254 = vmatprep.subr.mxu0 0.0
    %8255 = vmatpush1.msra.mxu0 0.0
    %8256 = vmatprep.subr.mxu0 0.0
    %8257 = vmatpush1.msra.mxu0 0.0
    %8258 = vmatprep.subr.mxu0 0.0
    %8259 = vmatpush1.msra.mxu0 0.0
    %8260 = vmatprep.subr.mxu0 0.0
    %8261 = vmatpush1.msra.mxu0 0.0
    %8262 = vmatprep.subr.mxu0 0.0
    %8263 = vmatpush1.msra.mxu0 0.0
    %8264 = vmatprep.subr.mxu0 0.0
    %8265 = vmatpush1.msra.mxu0 0.0
    %8266 = vmatprep.subr.mxu0 0.0
    %8267 = vmatpush1.msra.mxu0 0.0
    %8268 = vmatprep.subr.mxu0 0.0
    %8269 = vmatpush1.msra.mxu0 0.0
    %8270 = vmatprep.subr.mxu0 0.0
    %8271 = vmatpush1.msra.mxu0 0.0
    %8272 = vmatprep.subr.mxu0 0.0
    %8273 = vmatpush1.msra.mxu0 0.0
    %8274 = vmatprep.subr.mxu0 0.0
    %8275 = vmatpush1.msra.mxu0 0.0
    %8276 = vmatprep.subr.mxu0 0.0
    %8277 = vmatpush1.msra.mxu0 0.0
    %8278 = vmatprep.subr.mxu0 0.0
    %8279 = vmatpush1.msra.mxu0 0.0
    %8280 = vmatprep.subr.mxu0 0.0
    %8281 = vmatpush1.msra.mxu0 0.0
    %8282 = vmatprep.subr.mxu0 0.0
    %8283 = vmatpush1.msra.mxu0 0.0
    %8284 = vmatprep.subr.mxu0 0.0
    %8285 = vmatpush1.msra.mxu0 0.0
    %8286 = vmatprep.mubr.f32.mxu0 0.0
    %v8287 = vand.u32 %v7749, 4294901760
    %8288 = vmatmul.mubr.f32.gmra.mrb[0].mxu0 %v8287
    %v8289 = vpop.f32.mrb[0].mxu0
    %v8290 = vadd.f32 %v8210, %v8289
    %v8291 = vpop.f32.mrb[0].mxu0
    %v8292 = vadd.f32 %v8212, %v8291
    %8293 = vdwg.mxu0
    %8294 = vmatprep.subr.mxu0 0.0
    %v8295 = vand.u32 %v7248, 4294901760
    %8296 = vmatpush1.msra.mxu0 %v8295
    %8297 = vmatprep.subr.mxu0 0.0
    %v8298 = vand.u32 %v7251, 4294901760
    %8299 = vmatpush1.msra.mxu0 %v8298
    %8300 = vmatprep.subr.mxu0 0.0
    %v8301 = vand.u32 %v7254, 4294901760
    %8302 = vmatpush1.msra.mxu0 %v8301
    %8303 = vmatprep.subr.mxu0 0.0
    %v8304 = vand.u32 %v7257, 4294901760
    %8305 = vmatpush1.msra.mxu0 %v8304
    %8306 = vmatprep.subr.mxu0 0.0
    %8307 = vmatpush1.msra.mxu0 0.0
    %8308 = vmatprep.subr.mxu0 0.0
    %8309 = vmatpush1.msra.mxu0 0.0
    %8310 = vmatprep.subr.mxu0 0.0
    %8311 = vmatpush1.msra.mxu0 0.0
    %8312 = vmatprep.subr.mxu0 0.0
    %8313 = vmatpush1.msra.mxu0 0.0
    %8314 = vmatprep.subr.mxu0 0.0
    %8315 = vmatpush1.msra.mxu0 0.0
    %8316 = vmatprep.subr.mxu0 0.0
    %8317 = vmatpush1.msra.mxu0 0.0
    %8318 = vmatprep.subr.mxu0 0.0
    %8319 = vmatpush1.msra.mxu0 0.0
    %8320 = vmatprep.subr.mxu0 0.0
    %8321 = vmatpush1.msra.mxu0 0.0
    %8322 = vmatprep.subr.mxu0 0.0
    %8323 = vmatpush1.msra.mxu0 0.0
    %8324 = vmatprep.subr.mxu0 0.0
    %8325 = vmatpush1.msra.mxu0 0.0
    %8326 = vmatprep.subr.mxu0 0.0
    %8327 = vmatpush1.msra.mxu0 0.0
    %8328 = vmatprep.subr.mxu0 0.0
    %8329 = vmatpush1.msra.mxu0 0.0
    %8330 = vmatprep.subr.mxu0 0.0
    %8331 = vmatpush1.msra.mxu0 0.0
    %8332 = vmatprep.subr.mxu0 0.0
    %8333 = vmatpush1.msra.mxu0 0.0
    %8334 = vmatprep.subr.mxu0 0.0
    %8335 = vmatpush1.msra.mxu0 0.0
    %8336 = vmatprep.subr.mxu0 0.0
    %8337 = vmatpush1.msra.mxu0 0.0
    %8338 = vmatprep.subr.mxu0 0.0
    %8339 = vmatpush1.msra.mxu0 0.0
    %8340 = vmatprep.subr.mxu0 0.0
    %8341 = vmatpush1.msra.mxu0 0.0
    %8342 = vmatprep.subr.mxu0 0.0
    %8343 = vmatpush1.msra.mxu0 0.0
    %8344 = vmatprep.subr.mxu0 0.0
    %8345 = vmatpush1.msra.mxu0 0.0
    %8346 = vmatprep.subr.mxu0 0.0
    %8347 = vmatpush1.msra.mxu0 0.0
    %8348 = vmatprep.subr.mxu0 0.0
    %8349 = vmatpush1.msra.mxu0 0.0
    %8350 = vmatprep.subr.mxu0 0.0
    %8351 = vmatpush1.msra.mxu0 0.0
    %8352 = vmatprep.subr.mxu0 0.0
    %8353 = vmatpush1.msra.mxu0 0.0
    %8354 = vmatprep.subr.mxu0 0.0
    %8355 = vmatpush1.msra.mxu0 0.0
    %8356 = vmatprep.subr.mxu0 0.0
    %8357 = vmatpush1.msra.mxu0 0.0
    %8358 = vmatprep.subr.mxu0 0.0
    %8359 = vmatpush1.msra.mxu0 0.0
    %8360 = vmatprep.subr.mxu0 0.0
    %8361 = vmatpush1.msra.mxu0 0.0
    %8362 = vmatprep.mubr.f32.mxu0 0.0
    %v8363 = vand.u32 %v7749, 4294901760
    %v8364 = vsub.f32 %v7749, %v8363
    %v8365 = vand.u32 %v8364, 4294901760
    %v8366 = vsub.f32 %v8364, %v8365
    %v8367 = vand.u32 %v8366, 4294901760
    %8368 = vmatmul.mubr.f32.gmra.mrb[0].mxu0 %v8367
    %v8369 = vpop.f32.mrb[0].mxu0
    %v8370 = vadd.f32 %v7744, %v8369
    %v8371 = vpop.f32.mrb[0].mxu0
    %8372 = vdwg.mxu0
    %8373 = vmatprep.subr.mxu0 0.0
    %v8374 = vand.u32 %v7248, 4294901760
    %v8375 = vsub.f32 %v7248, %v8374
    %v8376 = vand.u32 %v8375, 4294901760
    %v8377 = vsub.f32 %v8375, %v8376
    %v8378 = vand.u32 %v8377, 4294901760
    %8379 = vmatpush1.msra.mxu0 %v8378
    %8380 = vmatprep.subr.mxu0 0.0
    %v8381 = vand.u32 %v7251, 4294901760
    %v8382 = vsub.f32 %v7251, %v8381
    %v8383 = vand.u32 %v8382, 4294901760
    %v8384 = vsub.f32 %v8382, %v8383
    %v8385 = vand.u32 %v8384, 4294901760
    %8386 = vmatpush1.msra.mxu0 %v8385
    %8387 = vmatprep.subr.mxu0 0.0
    %v8388 = vand.u32 %v7254, 4294901760
    %v8389 = vsub.f32 %v7254, %v8388
    %v8390 = vand.u32 %v8389, 4294901760
    %v8391 = vsub.f32 %v8389, %v8390
    %v8392 = vand.u32 %v8391, 4294901760
    %8393 = vmatpush1.msra.mxu0 %v8392
    %8394 = vmatprep.subr.mxu0 0.0
    %v8395 = vand.u32 %v7257, 4294901760
    %v8396 = vsub.f32 %v7257, %v8395
    %v8397 = vand.u32 %v8396, 4294901760
    %v8398 = vsub.f32 %v8396, %v8397
    %v8399 = vand.u32 %v8398, 4294901760
    %8400 = vmatpush1.msra.mxu0 %v8399
    %8401 = vmatprep.subr.mxu0 0.0
    %8402 = vmatpush1.msra.mxu0 0.0
    %8403 = vmatprep.subr.mxu0 0.0
    %8404 = vmatpush1.msra.mxu0 0.0
    %8405 = vmatprep.subr.mxu0 0.0
    %8406 = vmatpush1.msra.mxu0 0.0
    %8407 = vmatprep.subr.mxu0 0.0
    %8408 = vmatpush1.msra.mxu0 0.0
    %8409 = vmatprep.subr.mxu0 0.0
    %8410 = vmatpush1.msra.mxu0 0.0
    %8411 = vmatprep.subr.mxu0 0.0
    %8412 = vmatpush1.msra.mxu0 0.0
    %8413 = vmatprep.subr.mxu0 0.0
    %8414 = vmatpush1.msra.mxu0 0.0
    %8415 = vmatprep.subr.mxu0 0.0
    %8416 = vmatpush1.msra.mxu0 0.0
    %8417 = vmatprep.subr.mxu0 0.0
    %8418 = vmatpush1.msra.mxu0 0.0
    %8419 = vmatprep.subr.mxu0 0.0
    %8420 = vmatpush1.msra.mxu0 0.0
    %8421 = vmatprep.subr.mxu0 0.0
    %8422 = vmatpush1.msra.mxu0 0.0
    %8423 = vmatprep.subr.mxu0 0.0
    %8424 = vmatpush1.msra.mxu0 0.0
    %8425 = vmatprep.subr.mxu0 0.0
    %8426 = vmatpush1.msra.mxu0 0.0
    %8427 = vmatprep.subr.mxu0 0.0
    %8428 = vmatpush1.msra.mxu0 0.0
    %8429 = vmatprep.subr.mxu0 0.0
    %8430 = vmatpush1.msra.mxu0 0.0
    %8431 = vmatprep.subr.mxu0 0.0
    %8432 = vmatpush1.msra.mxu0 0.0
    %8433 = vmatprep.subr.mxu0 0.0
    %8434 = vmatpush1.msra.mxu0 0.0
    %8435 = vmatprep.subr.mxu0 0.0
    %8436 = vmatpush1.msra.mxu0 0.0
    %8437 = vmatprep.subr.mxu0 0.0
    %8438 = vmatpush1.msra.mxu0 0.0
    %8439 = vmatprep.subr.mxu0 0.0
    %8440 = vmatpush1.msra.mxu0 0.0
    %8441 = vmatprep.subr.mxu0 0.0
    %8442 = vmatpush1.msra.mxu0 0.0
    %8443 = vmatprep.subr.mxu0 0.0
    %8444 = vmatpush1.msra.mxu0 0.0
    %8445 = vmatprep.subr.mxu0 0.0
    %8446 = vmatpush1.msra.mxu0 0.0
    %8447 = vmatprep.subr.mxu0 0.0
    %8448 = vmatpush1.msra.mxu0 0.0
    %8449 = vmatprep.subr.mxu0 0.0
    %8450 = vmatpush1.msra.mxu0 0.0
    %8451 = vmatprep.subr.mxu0 0.0
    %8452 = vmatpush1.msra.mxu0 0.0
    %8453 = vmatprep.subr.mxu0 0.0
    %8454 = vmatpush1.msra.mxu0 0.0
    %8455 = vmatprep.subr.mxu0 0.0
    %8456 = vmatpush1.msra.mxu0 0.0
    %8457 = vmatprep.mubr.f32.mxu0 0.0
    %v8458 = vand.u32 %v7749, 4294901760
    %8459 = vmatmul.mubr.f32.gmra.mrb[0].mxu0 %v8458
    %v8460 = vpop.f32.mrb[0].mxu0
    %v8461 = vadd.f32 %v8370, %v8460
    %v8462 = vpop.f32.mrb[0].mxu0
    %8463 = vdwg.mxu0
    %8464 = vmatprep.subr.mxu0 0.0
    %v8465 = vand.u32 %v7248, 4294901760
    %v8466 = vsub.f32 %v7248, %v8465
    %8467 = vmatpush1.msra.mxu0 %v8466
    %8468 = vmatprep.subr.mxu0 0.0
    %v8469 = vand.u32 %v7251, 4294901760
    %v8470 = vsub.f32 %v7251, %v8469
    %8471 = vmatpush1.msra.mxu0 %v8470
    %8472 = vmatprep.subr.mxu0 0.0
    %v8473 = vand.u32 %v7254, 4294901760
    %v8474 = vsub.f32 %v7254, %v8473
    %8475 = vmatpush1.msra.mxu0 %v8474
    %8476 = vmatprep.subr.mxu0 0.0
    %v8477 = vand.u32 %v7257, 4294901760
    %v8478 = vsub.f32 %v7257, %v8477
    %8479 = vmatpush1.msra.mxu0 %v8478
    %8480 = vmatprep.subr.mxu0 0.0
    %8481 = vmatpush1.msra.mxu0 0.0
    %8482 = vmatprep.subr.mxu0 0.0
    %8483 = vmatpush1.msra.mxu0 0.0
    %8484 = vmatprep.subr.mxu0 0.0
    %8485 = vmatpush1.msra.mxu0 0.0
    %8486 = vmatprep.subr.mxu0 0.0
    %8487 = vmatpush1.msra.mxu0 0.0
    %8488 = vmatprep.subr.mxu0 0.0
    %8489 = vmatpush1.msra.mxu0 0.0
    %8490 = vmatprep.subr.mxu0 0.0
    %8491 = vmatpush1.msra.mxu0 0.0
    %8492 = vmatprep.subr.mxu0 0.0
    %8493 = vmatpush1.msra.mxu0 0.0
    %8494 = vmatprep.subr.mxu0 0.0
    %8495 = vmatpush1.msra.mxu0 0.0
    %8496 = vmatprep.subr.mxu0 0.0
    %8497 = vmatpush1.msra.mxu0 0.0
    %8498 = vmatprep.subr.mxu0 0.0
    %8499 = vmatpush1.msra.mxu0 0.0
    %8500 = vmatprep.subr.mxu0 0.0
    %8501 = vmatpush1.msra.mxu0 0.0
    %8502 = vmatprep.subr.mxu0 0.0
    %8503 = vmatpush1.msra.mxu0 0.0
    %8504 = vmatprep.subr.mxu0 0.0
    %8505 = vmatpush1.msra.mxu0 0.0
    %8506 = vmatprep.subr.mxu0 0.0
    %8507 = vmatpush1.msra.mxu0 0.0
    %8508 = vmatprep.subr.mxu0 0.0
    %8509 = vmatpush1.msra.mxu0 0.0
    %8510 = vmatprep.subr.mxu0 0.0
    %8511 = vmatpush1.msra.mxu0 0.0
    %8512 = vmatprep.subr.mxu0 0.0
    %8513 = vmatpush1.msra.mxu0 0.0
    %8514 = vmatprep.subr.mxu0 0.0
    %8515 = vmatpush1.msra.mxu0 0.0
    %8516 = vmatprep.subr.mxu0 0.0
    %8517 = vmatpush1.msra.mxu0 0.0
    %8518 = vmatprep.subr.mxu0 0.0
    %8519 = vmatpush1.msra.mxu0 0.0
    %8520 = vmatprep.subr.mxu0 0.0
    %8521 = vmatpush1.msra.mxu0 0.0
    %8522 = vmatprep.subr.mxu0 0.0
    %8523 = vmatpush1.msra.mxu0 0.0
    %8524 = vmatprep.subr.mxu0 0.0
    %8525 = vmatpush1.msra.mxu0 0.0
    %8526 = vmatprep.subr.mxu0 0.0
    %8527 = vmatpush1.msra.mxu0 0.0
    %8528 = vmatprep.subr.mxu0 0.0
    %8529 = vmatpush1.msra.mxu0 0.0
    %8530 = vmatprep.subr.mxu0 0.0
    %8531 = vmatpush1.msra.mxu0 0.0
    %8532 = vmatprep.subr.mxu0 0.0
    %8533 = vmatpush1.msra.mxu0 0.0
    %8534 = vmatprep.subr.mxu0 0.0
    %8535 = vmatpush1.msra.mxu0 0.0
    %8536 = vmatprep.mubr.f32.mxu0 0.0
    %v8537 = vand.u32 %v7749, 4294901760
    %v8538 = vsub.f32 %v7749, %v8537
    %8539 = vmatmul.mubr.f32.gmra.mrb[0].mxu0 %v8538
    %v8540 = vpop.f32.mrb[0].mxu0
    %v8541 = vadd.f32 %v8461, %v8540
    %v8542 = vpop.f32.mrb[0].mxu0
    %8543 = vdwg.mxu0
    %8544 = vmatprep.subr.mxu0 0.0
    %v8545 = vand.u32 %v7248, 4294901760
    %8546 = vmatpush1.msra.mxu0 %v8545
    %8547 = vmatprep.subr.mxu0 0.0
    %v8548 = vand.u32 %v7251, 4294901760
    %8549 = vmatpush1.msra.mxu0 %v8548
    %8550 = vmatprep.subr.mxu0 0.0
    %v8551 = vand.u32 %v7254, 4294901760
    %8552 = vmatpush1.msra.mxu0 %v8551
    %8553 = vmatprep.subr.mxu0 0.0
    %v8554 = vand.u32 %v7257, 4294901760
    %8555 = vmatpush1.msra.mxu0 %v8554
    %8556 = vmatprep.subr.mxu0 0.0
    %8557 = vmatpush1.msra.mxu0 0.0
    %8558 = vmatprep.subr.mxu0 0.0
    %8559 = vmatpush1.msra.mxu0 0.0
    %8560 = vmatprep.subr.mxu0 0.0
    %8561 = vmatpush1.msra.mxu0 0.0
    %8562 = vmatprep.subr.mxu0 0.0
    %8563 = vmatpush1.msra.mxu0 0.0
    %8564 = vmatprep.subr.mxu0 0.0
    %8565 = vmatpush1.msra.mxu0 0.0
    %8566 = vmatprep.subr.mxu0 0.0
    %8567 = vmatpush1.msra.mxu0 0.0
    %8568 = vmatprep.subr.mxu0 0.0
    %8569 = vmatpush1.msra.mxu0 0.0
    %8570 = vmatprep.subr.mxu0 0.0
    %8571 = vmatpush1.msra.mxu0 0.0
    %8572 = vmatprep.subr.mxu0 0.0
    %8573 = vmatpush1.msra.mxu0 0.0
    %8574 = vmatprep.subr.mxu0 0.0
    %8575 = vmatpush1.msra.mxu0 0.0
    %8576 = vmatprep.subr.mxu0 0.0
    %8577 = vmatpush1.msra.mxu0 0.0
    %8578 = vmatprep.subr.mxu0 0.0
    %8579 = vmatpush1.msra.mxu0 0.0
    %8580 = vmatprep.subr.mxu0 0.0
    %8581 = vmatpush1.msra.mxu0 0.0
    %8582 = vmatprep.subr.mxu0 0.0
    %8583 = vmatpush1.msra.mxu0 0.0
    %8584 = vmatprep.subr.mxu0 0.0
    %8585 = vmatpush1.msra.mxu0 0.0
    %8586 = vmatprep.subr.mxu0 0.0
    %8587 = vmatpush1.msra.mxu0 0.0
    %8588 = vmatprep.subr.mxu0 0.0
    %8589 = vmatpush1.msra.mxu0 0.0
    %8590 = vmatprep.subr.mxu0 0.0
    %8591 = vmatpush1.msra.mxu0 0.0
    %8592 = vmatprep.subr.mxu0 0.0
    %8593 = vmatpush1.msra.mxu0 0.0
    %8594 = vmatprep.subr.mxu0 0.0
    %8595 = vmatpush1.msra.mxu0 0.0
    %8596 = vmatprep.subr.mxu0 0.0
    %8597 = vmatpush1.msra.mxu0 0.0
    %8598 = vmatprep.subr.mxu0 0.0
    %8599 = vmatpush1.msra.mxu0 0.0
    %8600 = vmatprep.subr.mxu0 0.0
    %8601 = vmatpush1.msra.mxu0 0.0
    %8602 = vmatprep.subr.mxu0 0.0
    %8603 = vmatpush1.msra.mxu0 0.0
    %8604 = vmatprep.subr.mxu0 0.0
    %8605 = vmatpush1.msra.mxu0 0.0
    %8606 = vmatprep.subr.mxu0 0.0
    %8607 = vmatpush1.msra.mxu0 0.0
    %8608 = vmatprep.subr.mxu0 0.0
    %8609 = vmatpush1.msra.mxu0 0.0
    %8610 = vmatprep.subr.mxu0 0.0
    %8611 = vmatpush1.msra.mxu0 0.0
    %8612 = vmatprep.mubr.f32.mxu0 0.0
    %v8613 = vand.u32 %v7749, 4294901760
    %v8614 = vsub.f32 %v7749, %v8613
    %v8615 = vand.u32 %v8614, 4294901760
    %8616 = vmatmul.mubr.f32.gmra.mrb[0].mxu0 %v8615
    %v8617 = vpop.f32.mrb[0].mxu0
    %v8618 = vadd.f32 %v8541, %v8617
    %v8619 = vpop.f32.mrb[0].mxu0
    %8620 = vdwg.mxu0
    %8621 = vmatprep.subr.mxu0 0.0
    %v8622 = vand.u32 %v7248, 4294901760
    %v8623 = vsub.f32 %v7248, %v8622
    %v8624 = vand.u32 %v8623, 4294901760
    %8625 = vmatpush1.msra.mxu0 %v8624
    %8626 = vmatprep.subr.mxu0 0.0
    %v8627 = vand.u32 %v7251, 4294901760
    %v8628 = vsub.f32 %v7251, %v8627
    %v8629 = vand.u32 %v8628, 4294901760
    %8630 = vmatpush1.msra.mxu0 %v8629
    %8631 = vmatprep.subr.mxu0 0.0
    %v8632 = vand.u32 %v7254, 4294901760
    %v8633 = vsub.f32 %v7254, %v8632
    %v8634 = vand.u32 %v8633, 4294901760
    %8635 = vmatpush1.msra.mxu0 %v8634
    %8636 = vmatprep.subr.mxu0 0.0
    %v8637 = vand.u32 %v7257, 4294901760
    %v8638 = vsub.f32 %v7257, %v8637
    %v8639 = vand.u32 %v8638, 4294901760
    %8640 = vmatpush1.msra.mxu0 %v8639
    %8641 = vmatprep.subr.mxu0 0.0
    %8642 = vmatpush1.msra.mxu0 0.0
    %8643 = vmatprep.subr.mxu0 0.0
    %8644 = vmatpush1.msra.mxu0 0.0
    %8645 = vmatprep.subr.mxu0 0.0
    %8646 = vmatpush1.msra.mxu0 0.0
    %8647 = vmatprep.subr.mxu0 0.0
    %8648 = vmatpush1.msra.mxu0 0.0
    %8649 = vmatprep.subr.mxu0 0.0
    %8650 = vmatpush1.msra.mxu0 0.0
    %8651 = vmatprep.subr.mxu0 0.0
    %8652 = vmatpush1.msra.mxu0 0.0
    %8653 = vmatprep.subr.mxu0 0.0
    %8654 = vmatpush1.msra.mxu0 0.0
    %8655 = vmatprep.subr.mxu0 0.0
    %8656 = vmatpush1.msra.mxu0 0.0
    %8657 = vmatprep.subr.mxu0 0.0
    %8658 = vmatpush1.msra.mxu0 0.0
    %8659 = vmatprep.subr.mxu0 0.0
    %8660 = vmatpush1.msra.mxu0 0.0
    %8661 = vmatprep.subr.mxu0 0.0
    %8662 = vmatpush1.msra.mxu0 0.0
    %8663 = vmatprep.subr.mxu0 0.0
    %8664 = vmatpush1.msra.mxu0 0.0
    %8665 = vmatprep.subr.mxu0 0.0
    %8666 = vmatpush1.msra.mxu0 0.0
    %8667 = vmatprep.subr.mxu0 0.0
    %8668 = vmatpush1.msra.mxu0 0.0
    %8669 = vmatprep.subr.mxu0 0.0
    %8670 = vmatpush1.msra.mxu0 0.0
    %8671 = vmatprep.subr.mxu0 0.0
    %8672 = vmatpush1.msra.mxu0 0.0
    %8673 = vmatprep.subr.mxu0 0.0
    %8674 = vmatpush1.msra.mxu0 0.0
    %8675 = vmatprep.subr.mxu0 0.0
    %8676 = vmatpush1.msra.mxu0 0.0
    %8677 = vmatprep.subr.mxu0 0.0
    %8678 = vmatpush1.msra.mxu0 0.0
    %8679 = vmatprep.subr.mxu0 0.0
    %8680 = vmatpush1.msra.mxu0 0.0
    %8681 = vmatprep.subr.mxu0 0.0
    %8682 = vmatpush1.msra.mxu0 0.0
    %8683 = vmatprep.subr.mxu0 0.0
    %8684 = vmatpush1.msra.mxu0 0.0
    %8685 = vmatprep.subr.mxu0 0.0
    %8686 = vmatpush1.msra.mxu0 0.0
    %8687 = vmatprep.subr.mxu0 0.0
    %8688 = vmatpush1.msra.mxu0 0.0
    %8689 = vmatprep.subr.mxu0 0.0
    %8690 = vmatpush1.msra.mxu0 0.0
    %8691 = vmatprep.subr.mxu0 0.0
    %8692 = vmatpush1.msra.mxu0 0.0
    %8693 = vmatprep.subr.mxu0 0.0
    %8694 = vmatpush1.msra.mxu0 0.0
    %8695 = vmatprep.subr.mxu0 0.0
    %8696 = vmatpush1.msra.mxu0 0.0
    %8697 = vmatprep.mubr.f32.mxu0 0.0
    %v8698 = vand.u32 %v7749, 4294901760
    %8699 = vmatmul.mubr.f32.gmra.mrb[0].mxu0 %v8698
    %v8700 = vpop.f32.mrb[0].mxu0
    %v8701 = vadd.f32 %v8618, %v8700
    %v8702 = vpop.f32.mrb[0].mxu0
    %8703 = vdwg.mxu0
    %8704 = vmatprep.subr.mxu0 0.0
    %v8705 = vand.u32 %v7248, 4294901760
    %8706 = vmatpush1.msra.mxu0 %v8705
    %8707 = vmatprep.subr.mxu0 0.0
    %v8708 = vand.u32 %v7251, 4294901760
    %8709 = vmatpush1.msra.mxu0 %v8708
    %8710 = vmatprep.subr.mxu0 0.0
    %v8711 = vand.u32 %v7254, 4294901760
    %8712 = vmatpush1.msra.mxu0 %v8711
    %8713 = vmatprep.subr.mxu0 0.0
    %v8714 = vand.u32 %v7257, 4294901760
    %8715 = vmatpush1.msra.mxu0 %v8714
    %8716 = vmatprep.subr.mxu0 0.0
    %8717 = vmatpush1.msra.mxu0 0.0
    %8718 = vmatprep.subr.mxu0 0.0
    %8719 = vmatpush1.msra.mxu0 0.0
    %8720 = vmatprep.subr.mxu0 0.0
    %8721 = vmatpush1.msra.mxu0 0.0
    %8722 = vmatprep.subr.mxu0 0.0
    %8723 = vmatpush1.msra.mxu0 0.0
    %8724 = vmatprep.subr.mxu0 0.0
    %8725 = vmatpush1.msra.mxu0 0.0
    %8726 = vmatprep.subr.mxu0 0.0
    %8727 = vmatpush1.msra.mxu0 0.0
    %8728 = vmatprep.subr.mxu0 0.0
    %8729 = vmatpush1.msra.mxu0 0.0
    %8730 = vmatprep.subr.mxu0 0.0
    %8731 = vmatpush1.msra.mxu0 0.0
    %8732 = vmatprep.subr.mxu0 0.0
    %8733 = vmatpush1.msra.mxu0 0.0
    %8734 = vmatprep.subr.mxu0 0.0
    %8735 = vmatpush1.msra.mxu0 0.0
    %8736 = vmatprep.subr.mxu0 0.0
    %8737 = vmatpush1.msra.mxu0 0.0
    %8738 = vmatprep.subr.mxu0 0.0
    %8739 = vmatpush1.msra.mxu0 0.0
    %8740 = vmatprep.subr.mxu0 0.0
    %8741 = vmatpush1.msra.mxu0 0.0
    %8742 = vmatprep.subr.mxu0 0.0
    %8743 = vmatpush1.msra.mxu0 0.0
    %8744 = vmatprep.subr.mxu0 0.0
    %8745 = vmatpush1.msra.mxu0 0.0
    %8746 = vmatprep.subr.mxu0 0.0
    %8747 = vmatpush1.msra.mxu0 0.0
    %8748 = vmatprep.subr.mxu0 0.0
    %8749 = vmatpush1.msra.mxu0 0.0
    %8750 = vmatprep.subr.mxu0 0.0
    %8751 = vmatpush1.msra.mxu0 0.0
    %8752 = vmatprep.subr.mxu0 0.0
    %8753 = vmatpush1.msra.mxu0 0.0
    %8754 = vmatprep.subr.mxu0 0.0
    %8755 = vmatpush1.msra.mxu0 0.0
    %8756 = vmatprep.subr.mxu0 0.0
    %8757 = vmatpush1.msra.mxu0 0.0
    %8758 = vmatprep.subr.mxu0 0.0
    %8759 = vmatpush1.msra.mxu0 0.0
    %8760 = vmatprep.subr.mxu0 0.0
    %8761 = vmatpush1.msra.mxu0 0.0
    %8762 = vmatprep.subr.mxu0 0.0
    %8763 = vmatpush1.msra.mxu0 0.0
    %8764 = vmatprep.subr.mxu0 0.0
    %8765 = vmatpush1.msra.mxu0 0.0
    %8766 = vmatprep.subr.mxu0 0.0
    %8767 = vmatpush1.msra.mxu0 0.0
    %8768 = vmatprep.subr.mxu0 0.0
    %8769 = vmatpush1.msra.mxu0 0.0
    %8770 = vmatprep.subr.mxu0 0.0
    %8771 = vmatpush1.msra.mxu0 0.0
    %8772 = vmatprep.mubr.f32.mxu0 0.0
    %v8773 = vand.u32 %v7749, 4294901760
    %8774 = vmatmul.mubr.f32.gmra.mrb[0].mxu0 %v8773
    %v8775 = vpop.f32.mrb[0].mxu0
    %v8776 = vadd.f32 %v8701, %v8775
    %v8777 = vpop.f32.mrb[0].mxu0
    %8778 = vdwg.mxu0
    %v8779 = vand.u32 %v73, 4294901760
    %8780 = vmatprep.subr.mxu0 %v8779
    %v8781 = vand.u32 %v72, 4294901760
    %8782 = vmatpush1.msra.mxu0 %v8781
    %v8783 = vand.u32 %v76, 4294901760
    %8784 = vmatprep.subr.mxu0 %v8783
    %v8785 = vand.u32 %v75, 4294901760
    %8786 = vmatpush1.msra.mxu0 %v8785
    %v8787 = vand.u32 %v79, 4294901760
    %8788 = vmatprep.subr.mxu0 %v8787
    %v8789 = vand.u32 %v78, 4294901760
    %8790 = vmatpush1.msra.mxu0 %v8789
    %v8791 = vand.u32 %v82, 4294901760
    %8792 = vmatprep.subr.mxu0 %v8791
    %v8793 = vand.u32 %v81, 4294901760
    %8794 = vmatpush1.msra.mxu0 %v8793
    %8795 = vmatprep.subr.mxu0 0.0
    %8796 = vmatpush1.msra.mxu0 0.0
    %8797 = vmatprep.subr.mxu0 0.0
    %8798 = vmatpush1.msra.mxu0 0.0
    %8799 = vmatprep.subr.mxu0 0.0
    %8800 = vmatpush1.msra.mxu0 0.0
    %8801 = vmatprep.subr.mxu0 0.0
    %8802 = vmatpush1.msra.mxu0 0.0
    %8803 = vmatprep.subr.mxu0 0.0
    %8804 = vmatpush1.msra.mxu0 0.0
    %8805 = vmatprep.subr.mxu0 0.0
    %8806 = vmatpush1.msra.mxu0 0.0
    %8807 = vmatprep.subr.mxu0 0.0
    %8808 = vmatpush1.msra.mxu0 0.0
    %8809 = vmatprep.subr.mxu0 0.0
    %8810 = vmatpush1.msra.mxu0 0.0
    %8811 = vmatprep.subr.mxu0 0.0
    %8812 = vmatpush1.msra.mxu0 0.0
    %8813 = vmatprep.subr.mxu0 0.0
    %8814 = vmatpush1.msra.mxu0 0.0
    %8815 = vmatprep.subr.mxu0 0.0
    %8816 = vmatpush1.msra.mxu0 0.0
    %8817 = vmatprep.subr.mxu0 0.0
    %8818 = vmatpush1.msra.mxu0 0.0
    %8819 = vmatprep.subr.mxu0 0.0
    %8820 = vmatpush1.msra.mxu0 0.0
    %8821 = vmatprep.subr.mxu0 0.0
    %8822 = vmatpush1.msra.mxu0 0.0
    %8823 = vmatprep.subr.mxu0 0.0
    %8824 = vmatpush1.msra.mxu0 0.0
    %8825 = vmatprep.subr.mxu0 0.0
    %8826 = vmatpush1.msra.mxu0 0.0
    %8827 = vmatprep.subr.mxu0 0.0
    %8828 = vmatpush1.msra.mxu0 0.0
    %8829 = vmatprep.subr.mxu0 0.0
    %8830 = vmatpush1.msra.mxu0 0.0
    %8831 = vmatprep.subr.mxu0 0.0
    %8832 = vmatpush1.msra.mxu0 0.0
    %8833 = vmatprep.subr.mxu0 0.0
    %8834 = vmatpush1.msra.mxu0 0.0
    %8835 = vmatprep.subr.mxu0 0.0
    %8836 = vmatpush1.msra.mxu0 0.0
    %8837 = vmatprep.subr.mxu0 0.0
    %8838 = vmatpush1.msra.mxu0 0.0
    %8839 = vmatprep.subr.mxu0 0.0
    %8840 = vmatpush1.msra.mxu0 0.0
    %8841 = vmatprep.subr.mxu0 0.0
    %8842 = vmatpush1.msra.mxu0 0.0
    %8843 = vmatprep.subr.mxu0 0.0
    %8844 = vmatpush1.msra.mxu0 0.0
    %8845 = vmatprep.subr.mxu0 0.0
    %8846 = vmatpush1.msra.mxu0 0.0
    %8847 = vmatprep.subr.mxu0 0.0
    %8848 = vmatpush1.msra.mxu0 0.0
    %8849 = vmatprep.subr.mxu0 0.0
    %8850 = vmatpush1.msra.mxu0 0.0
    %8851 = vmatprep.mubr.f32.mxu0 0.0
    %v8852 = vand.u32 %v6262, 4294901760
    %v8853 = vsub.f32 %v6262, %v8852
    %v8854 = vand.u32 %v8853, 4294901760
    %v8855 = vsub.f32 %v8853, %v8854
    %v8856 = vand.u32 %v8855, 4294901760
    %8857 = vmatmul.mubr.f32.gmra.mrb[0].mxu0 %v8856
    %v8858 = vpop.f32.mrb[0].mxu0
    %v8859 = vadd.f32 %v1627, %v8858
    %v8860 = vpop.f32.mrb[0].mxu0
    %v8861 = vadd.f32 %v1631, %v8860
    %8862 = vdwg.mxu0
    %v8863 = vand.u32 %v73, 4294901760
    %v8864 = vsub.f32 %v73, %v8863
    %v8865 = vand.u32 %v8864, 4294901760
    %v8866 = vsub.f32 %v8864, %v8865
    %v8867 = vand.u32 %v8866, 4294901760
    %8868 = vmatprep.subr.mxu0 %v8867
    %v8869 = vand.u32 %v72, 4294901760
    %v8870 = vsub.f32 %v72, %v8869
    %v8871 = vand.u32 %v8870, 4294901760
    %v8872 = vsub.f32 %v8870, %v8871
    %v8873 = vand.u32 %v8872, 4294901760
    %8874 = vmatpush1.msra.mxu0 %v8873
    %v8875 = vand.u32 %v76, 4294901760
    %v8876 = vsub.f32 %v76, %v8875
    %v8877 = vand.u32 %v8876, 4294901760
    %v8878 = vsub.f32 %v8876, %v8877
    %v8879 = vand.u32 %v8878, 4294901760
    %8880 = vmatprep.subr.mxu0 %v8879
    %v8881 = vand.u32 %v75, 4294901760
    %v8882 = vsub.f32 %v75, %v8881
    %v8883 = vand.u32 %v8882, 4294901760
    %v8884 = vsub.f32 %v8882, %v8883
    %v8885 = vand.u32 %v8884, 4294901760
    %8886 = vmatpush1.msra.mxu0 %v8885
    %v8887 = vand.u32 %v79, 4294901760
    %v8888 = vsub.f32 %v79, %v8887
    %v8889 = vand.u32 %v8888, 4294901760
    %v8890 = vsub.f32 %v8888, %v8889
    %v8891 = vand.u32 %v8890, 4294901760
    %8892 = vmatprep.subr.mxu0 %v8891
    %v8893 = vand.u32 %v78, 4294901760
    %v8894 = vsub.f32 %v78, %v8893
    %v8895 = vand.u32 %v8894, 4294901760
    %v8896 = vsub.f32 %v8894, %v8895
    %v8897 = vand.u32 %v8896, 4294901760
    %8898 = vmatpush1.msra.mxu0 %v8897
    %v8899 = vand.u32 %v82, 4294901760
    %v8900 = vsub.f32 %v82, %v8899
    %v8901 = vand.u32 %v8900, 4294901760
    %v8902 = vsub.f32 %v8900, %v8901
    %v8903 = vand.u32 %v8902, 4294901760
    %8904 = vmatprep.subr.mxu0 %v8903
    %v8905 = vand.u32 %v81, 4294901760
    %v8906 = vsub.f32 %v81, %v8905
    %v8907 = vand.u32 %v8906, 4294901760
    %v8908 = vsub.f32 %v8906, %v8907
    %v8909 = vand.u32 %v8908, 4294901760
    %8910 = vmatpush1.msra.mxu0 %v8909
    %8911 = vmatprep.subr.mxu0 0.0
    %8912 = vmatpush1.msra.mxu0 0.0
    %8913 = vmatprep.subr.mxu0 0.0
    %8914 = vmatpush1.msra.mxu0 0.0
    %8915 = vmatprep.subr.mxu0 0.0
    %8916 = vmatpush1.msra.mxu0 0.0
    %8917 = vmatprep.subr.mxu0 0.0
    %8918 = vmatpush1.msra.mxu0 0.0
    %8919 = vmatprep.subr.mxu0 0.0
    %8920 = vmatpush1.msra.mxu0 0.0
    %8921 = vmatprep.subr.mxu0 0.0
    %8922 = vmatpush1.msra.mxu0 0.0
    %8923 = vmatprep.subr.mxu0 0.0
    %8924 = vmatpush1.msra.mxu0 0.0
    %8925 = vmatprep.subr.mxu0 0.0
    %8926 = vmatpush1.msra.mxu0 0.0
    %8927 = vmatprep.subr.mxu0 0.0
    %8928 = vmatpush1.msra.mxu0 0.0
    %8929 = vmatprep.subr.mxu0 0.0
    %8930 = vmatpush1.msra.mxu0 0.0
    %8931 = vmatprep.subr.mxu0 0.0
    %8932 = vmatpush1.msra.mxu0 0.0
    %8933 = vmatprep.subr.mxu0 0.0
    %8934 = vmatpush1.msra.mxu0 0.0
    %8935 = vmatprep.subr.mxu0 0.0
    %8936 = vmatpush1.msra.mxu0 0.0
    %8937 = vmatprep.subr.mxu0 0.0
    %8938 = vmatpush1.msra.mxu0 0.0
    %8939 = vmatprep.subr.mxu0 0.0
    %8940 = vmatpush1.msra.mxu0 0.0
    %8941 = vmatprep.subr.mxu0 0.0
    %8942 = vmatpush1.msra.mxu0 0.0
    %8943 = vmatprep.subr.mxu0 0.0
    %8944 = vmatpush1.msra.mxu0 0.0
    %8945 = vmatprep.subr.mxu0 0.0
    %8946 = vmatpush1.msra.mxu0 0.0
    %8947 = vmatprep.subr.mxu0 0.0
    %8948 = vmatpush1.msra.mxu0 0.0
    %8949 = vmatprep.subr.mxu0 0.0
    %8950 = vmatpush1.msra.mxu0 0.0
    %8951 = vmatprep.subr.mxu0 0.0
    %8952 = vmatpush1.msra.mxu0 0.0
    %8953 = vmatprep.subr.mxu0 0.0
    %8954 = vmatpush1.msra.mxu0 0.0
    %8955 = vmatprep.subr.mxu0 0.0
    %8956 = vmatpush1.msra.mxu0 0.0
    %8957 = vmatprep.subr.mxu0 0.0
    %8958 = vmatpush1.msra.mxu0 0.0
    %8959 = vmatprep.subr.mxu0 0.0
    %8960 = vmatpush1.msra.mxu0 0.0
    %8961 = vmatprep.subr.mxu0 0.0
    %8962 = vmatpush1.msra.mxu0 0.0
    %8963 = vmatprep.subr.mxu0 0.0
    %8964 = vmatpush1.msra.mxu0 0.0
    %8965 = vmatprep.subr.mxu0 0.0
    %8966 = vmatpush1.msra.mxu0 0.0
    %8967 = vmatprep.mubr.f32.mxu0 0.0
    %v8968 = vand.u32 %v6262, 4294901760
    %8969 = vmatmul.mubr.f32.gmra.mrb[0].mxu0 %v8968
    %v8970 = vpop.f32.mrb[0].mxu0
    %v8971 = vadd.f32 %v8859, %v8970
    %v8972 = vpop.f32.mrb[0].mxu0
    %v8973 = vadd.f32 %v8861, %v8972
    %8974 = vdwg.mxu0
    %v8975 = vand.u32 %v73, 4294901760
    %v8976 = vsub.f32 %v73, %v8975
    %8977 = vmatprep.subr.mxu0 %v8976
    %v8978 = vand.u32 %v72, 4294901760
    %v8979 = vsub.f32 %v72, %v8978
    %8980 = vmatpush1.msra.mxu0 %v8979
    %v8981 = vand.u32 %v76, 4294901760
    %v8982 = vsub.f32 %v76, %v8981
    %8983 = vmatprep.subr.mxu0 %v8982
    %v8984 = vand.u32 %v75, 4294901760
    %v8985 = vsub.f32 %v75, %v8984
    %8986 = vmatpush1.msra.mxu0 %v8985
    %v8987 = vand.u32 %v79, 4294901760
    %v8988 = vsub.f32 %v79, %v8987
    %8989 = vmatprep.subr.mxu0 %v8988
    %v8990 = vand.u32 %v78, 4294901760
    %v8991 = vsub.f32 %v78, %v8990
    %8992 = vmatpush1.msra.mxu0 %v8991
    %v8993 = vand.u32 %v82, 4294901760
    %v8994 = vsub.f32 %v82, %v8993
    %8995 = vmatprep.subr.mxu0 %v8994
    %v8996 = vand.u32 %v81, 4294901760
    %v8997 = vsub.f32 %v81, %v8996
    %8998 = vmatpush1.msra.mxu0 %v8997
    %8999 = vmatprep.subr.mxu0 0.0
    %9000 = vmatpush1.msra.mxu0 0.0
    %9001 = vmatprep.subr.mxu0 0.0
    %9002 = vmatpush1.msra.mxu0 0.0
    %9003 = vmatprep.subr.mxu0 0.0
    %9004 = vmatpush1.msra.mxu0 0.0
    %9005 = vmatprep.subr.mxu0 0.0
    %9006 = vmatpush1.msra.mxu0 0.0
    %9007 = vmatprep.subr.mxu0 0.0
    %9008 = vmatpush1.msra.mxu0 0.0
    %9009 = vmatprep.subr.mxu0 0.0
    %9010 = vmatpush1.msra.mxu0 0.0
    %9011 = vmatprep.subr.mxu0 0.0
    %9012 = vmatpush1.msra.mxu0 0.0
    %9013 = vmatprep.subr.mxu0 0.0
    %9014 = vmatpush1.msra.mxu0 0.0
    %9015 = vmatprep.subr.mxu0 0.0
    %9016 = vmatpush1.msra.mxu0 0.0
    %9017 = vmatprep.subr.mxu0 0.0
    %9018 = vmatpush1.msra.mxu0 0.0
    %9019 = vmatprep.subr.mxu0 0.0
    %9020 = vmatpush1.msra.mxu0 0.0
    %9021 = vmatprep.subr.mxu0 0.0
    %9022 = vmatpush1.msra.mxu0 0.0
    %9023 = vmatprep.subr.mxu0 0.0
    %9024 = vmatpush1.msra.mxu0 0.0
    %9025 = vmatprep.subr.mxu0 0.0
    %9026 = vmatpush1.msra.mxu0 0.0
    %9027 = vmatprep.subr.mxu0 0.0
    %9028 = vmatpush1.msra.mxu0 0.0
    %9029 = vmatprep.subr.mxu0 0.0
    %9030 = vmatpush1.msra.mxu0 0.0
    %9031 = vmatprep.subr.mxu0 0.0
    %9032 = vmatpush1.msra.mxu0 0.0
    %9033 = vmatprep.subr.mxu0 0.0
    %9034 = vmatpush1.msra.mxu0 0.0
    %9035 = vmatprep.subr.mxu0 0.0
    %9036 = vmatpush1.msra.mxu0 0.0
    %9037 = vmatprep.subr.mxu0 0.0
    %9038 = vmatpush1.msra.mxu0 0.0
    %9039 = vmatprep.subr.mxu0 0.0
    %9040 = vmatpush1.msra.mxu0 0.0
    %9041 = vmatprep.subr.mxu0 0.0
    %9042 = vmatpush1.msra.mxu0 0.0
    %9043 = vmatprep.subr.mxu0 0.0
    %9044 = vmatpush1.msra.mxu0 0.0
    %9045 = vmatprep.subr.mxu0 0.0
    %9046 = vmatpush1.msra.mxu0 0.0
    %9047 = vmatprep.subr.mxu0 0.0
    %9048 = vmatpush1.msra.mxu0 0.0
    %9049 = vmatprep.subr.mxu0 0.0
    %9050 = vmatpush1.msra.mxu0 0.0
    %9051 = vmatprep.subr.mxu0 0.0
    %9052 = vmatpush1.msra.mxu0 0.0
    %9053 = vmatprep.subr.mxu0 0.0
    %9054 = vmatpush1.msra.mxu0 0.0
    %9055 = vmatprep.mubr.f32.mxu0 0.0
    %v9056 = vand.u32 %v6262, 4294901760
    %v9057 = vsub.f32 %v6262, %v9056
    %9058 = vmatmul.mubr.f32.gmra.mrb[0].mxu0 %v9057
    %v9059 = vpop.f32.mrb[0].mxu0
    %v9060 = vadd.f32 %v8971, %v9059
    %v9061 = vpop.f32.mrb[0].mxu0
    %v9062 = vadd.f32 %v8973, %v9061
    %9063 = vdwg.mxu0
    %v9064 = vand.u32 %v73, 4294901760
    %9065 = vmatprep.subr.mxu0 %v9064
    %v9066 = vand.u32 %v72, 4294901760
    %9067 = vmatpush1.msra.mxu0 %v9066
    %v9068 = vand.u32 %v76, 4294901760
    %9069 = vmatprep.subr.mxu0 %v9068
    %v9070 = vand.u32 %v75, 4294901760
    %9071 = vmatpush1.msra.mxu0 %v9070
    %v9072 = vand.u32 %v79, 4294901760
    %9073 = vmatprep.subr.mxu0 %v9072
    %v9074 = vand.u32 %v78, 4294901760
    %9075 = vmatpush1.msra.mxu0 %v9074
    %v9076 = vand.u32 %v82, 4294901760
    %9077 = vmatprep.subr.mxu0 %v9076
    %v9078 = vand.u32 %v81, 4294901760
    %9079 = vmatpush1.msra.mxu0 %v9078
    %9080 = vmatprep.subr.mxu0 0.0
    %9081 = vmatpush1.msra.mxu0 0.0
    %9082 = vmatprep.subr.mxu0 0.0
    %9083 = vmatpush1.msra.mxu0 0.0
    %9084 = vmatprep.subr.mxu0 0.0
    %9085 = vmatpush1.msra.mxu0 0.0
    %9086 = vmatprep.subr.mxu0 0.0
    %9087 = vmatpush1.msra.mxu0 0.0
    %9088 = vmatprep.subr.mxu0 0.0
    %9089 = vmatpush1.msra.mxu0 0.0
    %9090 = vmatprep.subr.mxu0 0.0
    %9091 = vmatpush1.msra.mxu0 0.0
    %9092 = vmatprep.subr.mxu0 0.0
    %9093 = vmatpush1.msra.mxu0 0.0
    %9094 = vmatprep.subr.mxu0 0.0
    %9095 = vmatpush1.msra.mxu0 0.0
    %9096 = vmatprep.subr.mxu0 0.0
    %9097 = vmatpush1.msra.mxu0 0.0
    %9098 = vmatprep.subr.mxu0 0.0
    %9099 = vmatpush1.msra.mxu0 0.0
    %9100 = vmatprep.subr.mxu0 0.0
    %9101 = vmatpush1.msra.mxu0 0.0
    %9102 = vmatprep.subr.mxu0 0.0
    %9103 = vmatpush1.msra.mxu0 0.0
    %9104 = vmatprep.subr.mxu0 0.0
    %9105 = vmatpush1.msra.mxu0 0.0
    %9106 = vmatprep.subr.mxu0 0.0
    %9107 = vmatpush1.msra.mxu0 0.0
    %9108 = vmatprep.subr.mxu0 0.0
    %9109 = vmatpush1.msra.mxu0 0.0
    %9110 = vmatprep.subr.mxu0 0.0
    %9111 = vmatpush1.msra.mxu0 0.0
    %9112 = vmatprep.subr.mxu0 0.0
    %9113 = vmatpush1.msra.mxu0 0.0
    %9114 = vmatprep.subr.mxu0 0.0
    %9115 = vmatpush1.msra.mxu0 0.0
    %9116 = vmatprep.subr.mxu0 0.0
    %9117 = vmatpush1.msra.mxu0 0.0
    %9118 = vmatprep.subr.mxu0 0.0
    %9119 = vmatpush1.msra.mxu0 0.0
    %9120 = vmatprep.subr.mxu0 0.0
    %9121 = vmatpush1.msra.mxu0 0.0
    %9122 = vmatprep.subr.mxu0 0.0
    %9123 = vmatpush1.msra.mxu0 0.0
    %9124 = vmatprep.subr.mxu0 0.0
    %9125 = vmatpush1.msra.mxu0 0.0
    %9126 = vmatprep.subr.mxu0 0.0
    %9127 = vmatpush1.msra.mxu0 0.0
    %9128 = vmatprep.subr.mxu0 0.0
    %9129 = vmatpush1.msra.mxu0 0.0
    %9130 = vmatprep.subr.mxu0 0.0
    %9131 = vmatpush1.msra.mxu0 0.0
    %9132 = vmatprep.subr.mxu0 0.0
    %9133 = vmatpush1.msra.mxu0 0.0
    %9134 = vmatprep.subr.mxu0 0.0
    %9135 = vmatpush1.msra.mxu0 0.0
    %9136 = vmatprep.mubr.f32.mxu0 0.0
    %v9137 = vand.u32 %v6262, 4294901760
    %v9138 = vsub.f32 %v6262, %v9137
    %v9139 = vand.u32 %v9138, 4294901760
    %9140 = vmatmul.mubr.f32.gmra.mrb[0].mxu0 %v9139
    %v9141 = vpop.f32.mrb[0].mxu0
    %v9142 = vadd.f32 %v9060, %v9141
    %v9143 = vpop.f32.mrb[0].mxu0
    %v9144 = vadd.f32 %v9062, %v9143
    %9145 = vdwg.mxu0
    %v9146 = vand.u32 %v73, 4294901760
    %v9147 = vsub.f32 %v73, %v9146
    %v9148 = vand.u32 %v9147, 4294901760
    %9149 = vmatprep.subr.mxu0 %v9148
    %v9150 = vand.u32 %v72, 4294901760
    %v9151 = vsub.f32 %v72, %v9150
    %v9152 = vand.u32 %v9151, 4294901760
    %9153 = vmatpush1.msra.mxu0 %v9152
    %v9154 = vand.u32 %v76, 4294901760
    %v9155 = vsub.f32 %v76, %v9154
    %v9156 = vand.u32 %v9155, 4294901760
    %9157 = vmatprep.subr.mxu0 %v9156
    %v9158 = vand.u32 %v75, 4294901760
    %v9159 = vsub.f32 %v75, %v9158
    %v9160 = vand.u32 %v9159, 4294901760
    %9161 = vmatpush1.msra.mxu0 %v9160
    %v9162 = vand.u32 %v79, 4294901760
    %v9163 = vsub.f32 %v79, %v9162
    %v9164 = vand.u32 %v9163, 4294901760
    %9165 = vmatprep.subr.mxu0 %v9164
    %v9166 = vand.u32 %v78, 4294901760
    %v9167 = vsub.f32 %v78, %v9166
    %v9168 = vand.u32 %v9167, 4294901760
    %9169 = vmatpush1.msra.mxu0 %v9168
    %v9170 = vand.u32 %v82, 4294901760
    %v9171 = vsub.f32 %v82, %v9170
    %v9172 = vand.u32 %v9171, 4294901760
    %9173 = vmatprep.subr.mxu0 %v9172
    %v9174 = vand.u32 %v81, 4294901760
    %v9175 = vsub.f32 %v81, %v9174
    %v9176 = vand.u32 %v9175, 4294901760
    %9177 = vmatpush1.msra.mxu0 %v9176
    %9178 = vmatprep.subr.mxu0 0.0
    %9179 = vmatpush1.msra.mxu0 0.0
    %9180 = vmatprep.subr.mxu0 0.0
    %9181 = vmatpush1.msra.mxu0 0.0
    %9182 = vmatprep.subr.mxu0 0.0
    %9183 = vmatpush1.msra.mxu0 0.0
    %9184 = vmatprep.subr.mxu0 0.0
    %9185 = vmatpush1.msra.mxu0 0.0
    %9186 = vmatprep.subr.mxu0 0.0
    %9187 = vmatpush1.msra.mxu0 0.0
    %9188 = vmatprep.subr.mxu0 0.0
    %9189 = vmatpush1.msra.mxu0 0.0
    %9190 = vmatprep.subr.mxu0 0.0
    %9191 = vmatpush1.msra.mxu0 0.0
    %9192 = vmatprep.subr.mxu0 0.0
    %9193 = vmatpush1.msra.mxu0 0.0
    %9194 = vmatprep.subr.mxu0 0.0
    %9195 = vmatpush1.msra.mxu0 0.0
    %9196 = vmatprep.subr.mxu0 0.0
    %9197 = vmatpush1.msra.mxu0 0.0
    %9198 = vmatprep.subr.mxu0 0.0
    %9199 = vmatpush1.msra.mxu0 0.0
    %9200 = vmatprep.subr.mxu0 0.0
    %9201 = vmatpush1.msra.mxu0 0.0
    %9202 = vmatprep.subr.mxu0 0.0
    %9203 = vmatpush1.msra.mxu0 0.0
    %9204 = vmatprep.subr.mxu0 0.0
    %9205 = vmatpush1.msra.mxu0 0.0
    %9206 = vmatprep.subr.mxu0 0.0
    %9207 = vmatpush1.msra.mxu0 0.0
    %9208 = vmatprep.subr.mxu0 0.0
    %9209 = vmatpush1.msra.mxu0 0.0
    %9210 = vmatprep.subr.mxu0 0.0
    %9211 = vmatpush1.msra.mxu0 0.0
    %9212 = vmatprep.subr.mxu0 0.0
    %9213 = vmatpush1.msra.mxu0 0.0
    %9214 = vmatprep.subr.mxu0 0.0
    %9215 = vmatpush1.msra.mxu0 0.0
    %9216 = vmatprep.subr.mxu0 0.0
    %9217 = vmatpush1.msra.mxu0 0.0
    %9218 = vmatprep.subr.mxu0 0.0
    %9219 = vmatpush1.msra.mxu0 0.0
    %9220 = vmatprep.subr.mxu0 0.0
    %9221 = vmatpush1.msra.mxu0 0.0
    %9222 = vmatprep.subr.mxu0 0.0
    %9223 = vmatpush1.msra.mxu0 0.0
    %9224 = vmatprep.subr.mxu0 0.0
    %9225 = vmatpush1.msra.mxu0 0.0
    %9226 = vmatprep.subr.mxu0 0.0
    %9227 = vmatpush1.msra.mxu0 0.0
    %9228 = vmatprep.subr.mxu0 0.0
    %9229 = vmatpush1.msra.mxu0 0.0
    %9230 = vmatprep.subr.mxu0 0.0
    %9231 = vmatpush1.msra.mxu0 0.0
    %9232 = vmatprep.subr.mxu0 0.0
    %9233 = vmatpush1.msra.mxu0 0.0
    %9234 = vmatprep.mubr.f32.mxu0 0.0
    %v9235 = vand.u32 %v6262, 4294901760
    %9236 = vmatmul.mubr.f32.gmra.mrb[0].mxu0 %v9235
    %v9237 = vpop.f32.mrb[0].mxu0
    %v9238 = vadd.f32 %v9142, %v9237
    %v9239 = vpop.f32.mrb[0].mxu0
    %v9240 = vadd.f32 %v9144, %v9239
    %9241 = vdwg.mxu0
    %v9242 = vand.u32 %v73, 4294901760
    %9243 = vmatprep.subr.mxu0 %v9242
    %v9244 = vand.u32 %v72, 4294901760
    %9245 = vmatpush1.msra.mxu0 %v9244
    %v9246 = vand.u32 %v76, 4294901760
    %9247 = vmatprep.subr.mxu0 %v9246
    %v9248 = vand.u32 %v75, 4294901760
    %9249 = vmatpush1.msra.mxu0 %v9248
    %v9250 = vand.u32 %v79, 4294901760
    %9251 = vmatprep.subr.mxu0 %v9250
    %v9252 = vand.u32 %v78, 4294901760
    %9253 = vmatpush1.msra.mxu0 %v9252
    %v9254 = vand.u32 %v82, 4294901760
    %9255 = vmatprep.subr.mxu0 %v9254
    %v9256 = vand.u32 %v81, 4294901760
    %9257 = vmatpush1.msra.mxu0 %v9256
    %9258 = vmatprep.subr.mxu0 0.0
    %9259 = vmatpush1.msra.mxu0 0.0
    %9260 = vmatprep.subr.mxu0 0.0
    %9261 = vmatpush1.msra.mxu0 0.0
    %9262 = vmatprep.subr.mxu0 0.0
    %9263 = vmatpush1.msra.mxu0 0.0
    %9264 = vmatprep.subr.mxu0 0.0
    %9265 = vmatpush1.msra.mxu0 0.0
    %9266 = vmatprep.subr.mxu0 0.0
    %9267 = vmatpush1.msra.mxu0 0.0
    %9268 = vmatprep.subr.mxu0 0.0
    %9269 = vmatpush1.msra.mxu0 0.0
    %9270 = vmatprep.subr.mxu0 0.0
    %9271 = vmatpush1.msra.mxu0 0.0
    %9272 = vmatprep.subr.mxu0 0.0
    %9273 = vmatpush1.msra.mxu0 0.0
    %9274 = vmatprep.subr.mxu0 0.0
    %9275 = vmatpush1.msra.mxu0 0.0
    %9276 = vmatprep.subr.mxu0 0.0
    %9277 = vmatpush1.msra.mxu0 0.0
    %9278 = vmatprep.subr.mxu0 0.0
    %9279 = vmatpush1.msra.mxu0 0.0
    %9280 = vmatprep.subr.mxu0 0.0
    %9281 = vmatpush1.msra.mxu0 0.0
    %9282 = vmatprep.subr.mxu0 0.0
    %9283 = vmatpush1.msra.mxu0 0.0
    %9284 = vmatprep.subr.mxu0 0.0
    %9285 = vmatpush1.msra.mxu0 0.0
    %9286 = vmatprep.subr.mxu0 0.0
    %9287 = vmatpush1.msra.mxu0 0.0
    %9288 = vmatprep.subr.mxu0 0.0
    %9289 = vmatpush1.msra.mxu0 0.0
    %9290 = vmatprep.subr.mxu0 0.0
    %9291 = vmatpush1.msra.mxu0 0.0
    %9292 = vmatprep.subr.mxu0 0.0
    %9293 = vmatpush1.msra.mxu0 0.0
    %9294 = vmatprep.subr.mxu0 0.0
    %9295 = vmatpush1.msra.mxu0 0.0
    %9296 = vmatprep.subr.mxu0 0.0
    %9297 = vmatpush1.msra.mxu0 0.0
    %9298 = vmatprep.subr.mxu0 0.0
    %9299 = vmatpush1.msra.mxu0 0.0
    %9300 = vmatprep.subr.mxu0 0.0
    %9301 = vmatpush1.msra.mxu0 0.0
    %9302 = vmatprep.subr.mxu0 0.0
    %9303 = vmatpush1.msra.mxu0 0.0
    %9304 = vmatprep.subr.mxu0 0.0
    %9305 = vmatpush1.msra.mxu0 0.0
    %9306 = vmatprep.subr.mxu0 0.0
    %9307 = vmatpush1.msra.mxu0 0.0
    %9308 = vmatprep.subr.mxu0 0.0
    %9309 = vmatpush1.msra.mxu0 0.0
    %9310 = vmatprep.subr.mxu0 0.0
    %9311 = vmatpush1.msra.mxu0 0.0
    %9312 = vmatprep.subr.mxu0 0.0
    %9313 = vmatpush1.msra.mxu0 0.0
    %9314 = vmatprep.mubr.f32.mxu0 0.0
    %v9315 = vand.u32 %v6262, 4294901760
    %9316 = vmatmul.mubr.f32.gmra.mrb[0].mxu0 %v9315
    %v9317 = vpop.f32.mrb[0].mxu0
    %v9318 = vadd.f32 %v9238, %v9317
    %v9319 = vpop.f32.mrb[0].mxu0
    %v9320 = vadd.f32 %v9240, %v9319
    %9321 = vdwg.mxu0
    %9322 = vmatprep.subr.mxu0 0.0
    %v9323 = vand.u32 %v74, 4294901760
    %9324 = vmatpush1.msra.mxu0 %v9323
    %9325 = vmatprep.subr.mxu0 0.0
    %v9326 = vand.u32 %v77, 4294901760
    %9327 = vmatpush1.msra.mxu0 %v9326
    %9328 = vmatprep.subr.mxu0 0.0
    %v9329 = vand.u32 %v80, 4294901760
    %9330 = vmatpush1.msra.mxu0 %v9329
    %9331 = vmatprep.subr.mxu0 0.0
    %v9332 = vand.u32 %v83, 4294901760
    %9333 = vmatpush1.msra.mxu0 %v9332
    %9334 = vmatprep.subr.mxu0 0.0
    %9335 = vmatpush1.msra.mxu0 0.0
    %9336 = vmatprep.subr.mxu0 0.0
    %9337 = vmatpush1.msra.mxu0 0.0
    %9338 = vmatprep.subr.mxu0 0.0
    %9339 = vmatpush1.msra.mxu0 0.0
    %9340 = vmatprep.subr.mxu0 0.0
    %9341 = vmatpush1.msra.mxu0 0.0
    %9342 = vmatprep.subr.mxu0 0.0
    %9343 = vmatpush1.msra.mxu0 0.0
    %9344 = vmatprep.subr.mxu0 0.0
    %9345 = vmatpush1.msra.mxu0 0.0
    %9346 = vmatprep.subr.mxu0 0.0
    %9347 = vmatpush1.msra.mxu0 0.0
    %9348 = vmatprep.subr.mxu0 0.0
    %9349 = vmatpush1.msra.mxu0 0.0
    %9350 = vmatprep.subr.mxu0 0.0
    %9351 = vmatpush1.msra.mxu0 0.0
    %9352 = vmatprep.subr.mxu0 0.0
    %9353 = vmatpush1.msra.mxu0 0.0
    %9354 = vmatprep.subr.mxu0 0.0
    %9355 = vmatpush1.msra.mxu0 0.0
    %9356 = vmatprep.subr.mxu0 0.0
    %9357 = vmatpush1.msra.mxu0 0.0
    %9358 = vmatprep.subr.mxu0 0.0
    %9359 = vmatpush1.msra.mxu0 0.0
    %9360 = vmatprep.subr.mxu0 0.0
    %9361 = vmatpush1.msra.mxu0 0.0
    %9362 = vmatprep.subr.mxu0 0.0
    %9363 = vmatpush1.msra.mxu0 0.0
    %9364 = vmatprep.subr.mxu0 0.0
    %9365 = vmatpush1.msra.mxu0 0.0
    %9366 = vmatprep.subr.mxu0 0.0
    %9367 = vmatpush1.msra.mxu0 0.0
    %9368 = vmatprep.subr.mxu0 0.0
    %9369 = vmatpush1.msra.mxu0 0.0
    %9370 = vmatprep.subr.mxu0 0.0
    %9371 = vmatpush1.msra.mxu0 0.0
    %9372 = vmatprep.subr.mxu0 0.0
    %9373 = vmatpush1.msra.mxu0 0.0
    %9374 = vmatprep.subr.mxu0 0.0
    %9375 = vmatpush1.msra.mxu0 0.0
    %9376 = vmatprep.subr.mxu0 0.0
    %9377 = vmatpush1.msra.mxu0 0.0
    %9378 = vmatprep.subr.mxu0 0.0
    %9379 = vmatpush1.msra.mxu0 0.0
    %9380 = vmatprep.subr.mxu0 0.0
    %9381 = vmatpush1.msra.mxu0 0.0
    %9382 = vmatprep.subr.mxu0 0.0
    %9383 = vmatpush1.msra.mxu0 0.0
    %9384 = vmatprep.subr.mxu0 0.0
    %9385 = vmatpush1.msra.mxu0 0.0
    %9386 = vmatprep.subr.mxu0 0.0
    %9387 = vmatpush1.msra.mxu0 0.0
    %9388 = vmatprep.subr.mxu0 0.0
    %9389 = vmatpush1.msra.mxu0 0.0
    %9390 = vmatprep.mubr.f32.mxu0 0.0
    %v9391 = vand.u32 %v6262, 4294901760
    %v9392 = vsub.f32 %v6262, %v9391
    %v9393 = vand.u32 %v9392, 4294901760
    %v9394 = vsub.f32 %v9392, %v9393
    %v9395 = vand.u32 %v9394, 4294901760
    %9396 = vmatmul.mubr.f32.gmra.mrb[0].mxu0 %v9395
    %v9397 = vpop.f32.mrb[0].mxu0
    %v9398 = vadd.f32 %v1635, %v9397
    %v9399 = vpop.f32.mrb[0].mxu0
    %9400 = vdwg.mxu0
    %9401 = vmatprep.subr.mxu0 0.0
    %v9402 = vand.u32 %v74, 4294901760
    %v9403 = vsub.f32 %v74, %v9402
    %v9404 = vand.u32 %v9403, 4294901760
    %v9405 = vsub.f32 %v9403, %v9404
    %v9406 = vand.u32 %v9405, 4294901760
    %9407 = vmatpush1.msra.mxu0 %v9406
    %9408 = vmatprep.subr.mxu0 0.0
    %v9409 = vand.u32 %v77, 4294901760
    %v9410 = vsub.f32 %v77, %v9409
    %v9411 = vand.u32 %v9410, 4294901760
    %v9412 = vsub.f32 %v9410, %v9411
    %v9413 = vand.u32 %v9412, 4294901760
    %9414 = vmatpush1.msra.mxu0 %v9413
    %9415 = vmatprep.subr.mxu0 0.0
    %v9416 = vand.u32 %v80, 4294901760
    %v9417 = vsub.f32 %v80, %v9416
    %v9418 = vand.u32 %v9417, 4294901760
    %v9419 = vsub.f32 %v9417, %v9418
    %v9420 = vand.u32 %v9419, 4294901760
    %9421 = vmatpush1.msra.mxu0 %v9420
    %9422 = vmatprep.subr.mxu0 0.0
    %v9423 = vand.u32 %v83, 4294901760
    %v9424 = vsub.f32 %v83, %v9423
    %v9425 = vand.u32 %v9424, 4294901760
    %v9426 = vsub.f32 %v9424, %v9425
    %v9427 = vand.u32 %v9426, 4294901760
    %9428 = vmatpush1.msra.mxu0 %v9427
    %9429 = vmatprep.subr.mxu0 0.0
    %9430 = vmatpush1.msra.mxu0 0.0
    %9431 = vmatprep.subr.mxu0 0.0
    %9432 = vmatpush1.msra.mxu0 0.0
    %9433 = vmatprep.subr.mxu0 0.0
    %9434 = vmatpush1.msra.mxu0 0.0
    %9435 = vmatprep.subr.mxu0 0.0
    %9436 = vmatpush1.msra.mxu0 0.0
    %9437 = vmatprep.subr.mxu0 0.0
    %9438 = vmatpush1.msra.mxu0 0.0
    %9439 = vmatprep.subr.mxu0 0.0
    %9440 = vmatpush1.msra.mxu0 0.0
    %9441 = vmatprep.subr.mxu0 0.0
    %9442 = vmatpush1.msra.mxu0 0.0
    %9443 = vmatprep.subr.mxu0 0.0
    %9444 = vmatpush1.msra.mxu0 0.0
    %9445 = vmatprep.subr.mxu0 0.0
    %9446 = vmatpush1.msra.mxu0 0.0
    %9447 = vmatprep.subr.mxu0 0.0
    %9448 = vmatpush1.msra.mxu0 0.0
    %9449 = vmatprep.subr.mxu0 0.0
    %9450 = vmatpush1.msra.mxu0 0.0
    %9451 = vmatprep.subr.mxu0 0.0
    %9452 = vmatpush1.msra.mxu0 0.0
    %9453 = vmatprep.subr.mxu0 0.0
    %9454 = vmatpush1.msra.mxu0 0.0
    %9455 = vmatprep.subr.mxu0 0.0
    %9456 = vmatpush1.msra.mxu0 0.0
    %9457 = vmatprep.subr.mxu0 0.0
    %9458 = vmatpush1.msra.mxu0 0.0
    %9459 = vmatprep.subr.mxu0 0.0
    %9460 = vmatpush1.msra.mxu0 0.0
    %9461 = vmatprep.subr.mxu0 0.0
    %9462 = vmatpush1.msra.mxu0 0.0
    %9463 = vmatprep.subr.mxu0 0.0
    %9464 = vmatpush1.msra.mxu0 0.0
    %9465 = vmatprep.subr.mxu0 0.0
    %9466 = vmatpush1.msra.mxu0 0.0
    %9467 = vmatprep.subr.mxu0 0.0
    %9468 = vmatpush1.msra.mxu0 0.0
    %9469 = vmatprep.subr.mxu0 0.0
    %9470 = vmatpush1.msra.mxu0 0.0
    %9471 = vmatprep.subr.mxu0 0.0
    %9472 = vmatpush1.msra.mxu0 0.0
    %9473 = vmatprep.subr.mxu0 0.0
    %9474 = vmatpush1.msra.mxu0 0.0
    %9475 = vmatprep.subr.mxu0 0.0
    %9476 = vmatpush1.msra.mxu0 0.0
    %9477 = vmatprep.subr.mxu0 0.0
    %9478 = vmatpush1.msra.mxu0 0.0
    %9479 = vmatprep.subr.mxu0 0.0
    %9480 = vmatpush1.msra.mxu0 0.0
    %9481 = vmatprep.subr.mxu0 0.0
    %9482 = vmatpush1.msra.mxu0 0.0
    %9483 = vmatprep.subr.mxu0 0.0
    %9484 = vmatpush1.msra.mxu0 0.0
    %9485 = vmatprep.mubr.f32.mxu0 0.0
    %v9486 = vand.u32 %v6262, 4294901760
    %9487 = vmatmul.mubr.f32.gmra.mrb[0].mxu0 %v9486
    %v9488 = vpop.f32.mrb[0].mxu0
    %v9489 = vadd.f32 %v9398, %v9488
    %v9490 = vpop.f32.mrb[0].mxu0
    %9491 = vdwg.mxu0
    %9492 = vmatprep.subr.mxu0 0.0
    %v9493 = vand.u32 %v74, 4294901760
    %v9494 = vsub.f32 %v74, %v9493
    %9495 = vmatpush1.msra.mxu0 %v9494
    %9496 = vmatprep.subr.mxu0 0.0
    %v9497 = vand.u32 %v77, 4294901760
    %v9498 = vsub.f32 %v77, %v9497
    %9499 = vmatpush1.msra.mxu0 %v9498
    %9500 = vmatprep.subr.mxu0 0.0
    %v9501 = vand.u32 %v80, 4294901760
    %v9502 = vsub.f32 %v80, %v9501
    %9503 = vmatpush1.msra.mxu0 %v9502
    %9504 = vmatprep.subr.mxu0 0.0
    %v9505 = vand.u32 %v83, 4294901760
    %v9506 = vsub.f32 %v83, %v9505
    %9507 = vmatpush1.msra.mxu0 %v9506
    %9508 = vmatprep.subr.mxu0 0.0
    %9509 = vmatpush1.msra.mxu0 0.0
    %9510 = vmatprep.subr.mxu0 0.0
    %9511 = vmatpush1.msra.mxu0 0.0
    %9512 = vmatprep.subr.mxu0 0.0
    %9513 = vmatpush1.msra.mxu0 0.0
    %9514 = vmatprep.subr.mxu0 0.0
    %9515 = vmatpush1.msra.mxu0 0.0
    %9516 = vmatprep.subr.mxu0 0.0
    %9517 = vmatpush1.msra.mxu0 0.0
    %9518 = vmatprep.subr.mxu0 0.0
    %9519 = vmatpush1.msra.mxu0 0.0
    %9520 = vmatprep.subr.mxu0 0.0
    %9521 = vmatpush1.msra.mxu0 0.0
    %9522 = vmatprep.subr.mxu0 0.0
    %9523 = vmatpush1.msra.mxu0 0.0
    %9524 = vmatprep.subr.mxu0 0.0
    %9525 = vmatpush1.msra.mxu0 0.0
    %9526 = vmatprep.subr.mxu0 0.0
    %9527 = vmatpush1.msra.mxu0 0.0
    %9528 = vmatprep.subr.mxu0 0.0
    %9529 = vmatpush1.msra.mxu0 0.0
    %9530 = vmatprep.subr.mxu0 0.0
    %9531 = vmatpush1.msra.mxu0 0.0
    %9532 = vmatprep.subr.mxu0 0.0
    %9533 = vmatpush1.msra.mxu0 0.0
    %9534 = vmatprep.subr.mxu0 0.0
    %9535 = vmatpush1.msra.mxu0 0.0
    %9536 = vmatprep.subr.mxu0 0.0
    %9537 = vmatpush1.msra.mxu0 0.0
    %9538 = vmatprep.subr.mxu0 0.0
    %9539 = vmatpush1.msra.mxu0 0.0
    %9540 = vmatprep.subr.mxu0 0.0
    %9541 = vmatpush1.msra.mxu0 0.0
    %9542 = vmatprep.subr.mxu0 0.0
    %9543 = vmatpush1.msra.mxu0 0.0
    %9544 = vmatprep.subr.mxu0 0.0
    %9545 = vmatpush1.msra.mxu0 0.0
    %9546 = vmatprep.subr.mxu0 0.0
    %9547 = vmatpush1.msra.mxu0 0.0
    %9548 = vmatprep.subr.mxu0 0.0
    %9549 = vmatpush1.msra.mxu0 0.0
    %9550 = vmatprep.subr.mxu0 0.0
    %9551 = vmatpush1.msra.mxu0 0.0
    %9552 = vmatprep.subr.mxu0 0.0
    %9553 = vmatpush1.msra.mxu0 0.0
    %9554 = vmatprep.subr.mxu0 0.0
    %9555 = vmatpush1.msra.mxu0 0.0
    %9556 = vmatprep.subr.mxu0 0.0
    %9557 = vmatpush1.msra.mxu0 0.0
    %9558 = vmatprep.subr.mxu0 0.0
    %9559 = vmatpush1.msra.mxu0 0.0
    %9560 = vmatprep.subr.mxu0 0.0
    %9561 = vmatpush1.msra.mxu0 0.0
    %9562 = vmatprep.subr.mxu0 0.0
    %9563 = vmatpush1.msra.mxu0 0.0
    %9564 = vmatprep.mubr.f32.mxu0 0.0
    %v9565 = vand.u32 %v6262, 4294901760
    %v9566 = vsub.f32 %v6262, %v9565
    %9567 = vmatmul.mubr.f32.gmra.mrb[0].mxu0 %v9566
    %v9568 = vpop.f32.mrb[0].mxu0
    %v9569 = vadd.f32 %v9489, %v9568
    %v9570 = vpop.f32.mrb[0].mxu0
    %9571 = vdwg.mxu0
    %9572 = vmatprep.subr.mxu0 0.0
    %v9573 = vand.u32 %v74, 4294901760
    %9574 = vmatpush1.msra.mxu0 %v9573
    %9575 = vmatprep.subr.mxu0 0.0
    %v9576 = vand.u32 %v77, 4294901760
    %9577 = vmatpush1.msra.mxu0 %v9576
    %9578 = vmatprep.subr.mxu0 0.0
    %v9579 = vand.u32 %v80, 4294901760
    %9580 = vmatpush1.msra.mxu0 %v9579
    %9581 = vmatprep.subr.mxu0 0.0
    %v9582 = vand.u32 %v83, 4294901760
    %9583 = vmatpush1.msra.mxu0 %v9582
    %9584 = vmatprep.subr.mxu0 0.0
    %9585 = vmatpush1.msra.mxu0 0.0
    %9586 = vmatprep.subr.mxu0 0.0
    %9587 = vmatpush1.msra.mxu0 0.0
    %9588 = vmatprep.subr.mxu0 0.0
    %9589 = vmatpush1.msra.mxu0 0.0
    %9590 = vmatprep.subr.mxu0 0.0
    %9591 = vmatpush1.msra.mxu0 0.0
    %9592 = vmatprep.subr.mxu0 0.0
    %9593 = vmatpush1.msra.mxu0 0.0
    %9594 = vmatprep.subr.mxu0 0.0
    %9595 = vmatpush1.msra.mxu0 0.0
    %9596 = vmatprep.subr.mxu0 0.0
    %9597 = vmatpush1.msra.mxu0 0.0
    %9598 = vmatprep.subr.mxu0 0.0
    %9599 = vmatpush1.msra.mxu0 0.0
    %9600 = vmatprep.subr.mxu0 0.0
    %9601 = vmatpush1.msra.mxu0 0.0
    %9602 = vmatprep.subr.mxu0 0.0
    %9603 = vmatpush1.msra.mxu0 0.0
    %9604 = vmatprep.subr.mxu0 0.0
    %9605 = vmatpush1.msra.mxu0 0.0
    %9606 = vmatprep.subr.mxu0 0.0
    %9607 = vmatpush1.msra.mxu0 0.0
    %9608 = vmatprep.subr.mxu0 0.0
    %9609 = vmatpush1.msra.mxu0 0.0
    %9610 = vmatprep.subr.mxu0 0.0
    %9611 = vmatpush1.msra.mxu0 0.0
    %9612 = vmatprep.subr.mxu0 0.0
    %9613 = vmatpush1.msra.mxu0 0.0
    %9614 = vmatprep.subr.mxu0 0.0
    %9615 = vmatpush1.msra.mxu0 0.0
    %9616 = vmatprep.subr.mxu0 0.0
    %9617 = vmatpush1.msra.mxu0 0.0
    %9618 = vmatprep.subr.mxu0 0.0
    %9619 = vmatpush1.msra.mxu0 0.0
    %9620 = vmatprep.subr.mxu0 0.0
    %9621 = vmatpush1.msra.mxu0 0.0
    %9622 = vmatprep.subr.mxu0 0.0
    %9623 = vmatpush1.msra.mxu0 0.0
    %9624 = vmatprep.subr.mxu0 0.0
    %9625 = vmatpush1.msra.mxu0 0.0
    %9626 = vmatprep.subr.mxu0 0.0
    %9627 = vmatpush1.msra.mxu0 0.0
    %9628 = vmatprep.subr.mxu0 0.0
    %9629 = vmatpush1.msra.mxu0 0.0
    %9630 = vmatprep.subr.mxu0 0.0
    %9631 = vmatpush1.msra.mxu0 0.0
    %9632 = vmatprep.subr.mxu0 0.0
    %9633 = vmatpush1.msra.mxu0 0.0
    %9634 = vmatprep.subr.mxu0 0.0
    %9635 = vmatpush1.msra.mxu0 0.0
    %9636 = vmatprep.subr.mxu0 0.0
    %9637 = vmatpush1.msra.mxu0 0.0
    %9638 = vmatprep.subr.mxu0 0.0
    %9639 = vmatpush1.msra.mxu0 0.0
    %9640 = vmatprep.mubr.f32.mxu0 0.0
    %v9641 = vand.u32 %v6262, 4294901760
    %v9642 = vsub.f32 %v6262, %v9641
    %v9643 = vand.u32 %v9642, 4294901760
    %9644 = vmatmul.mubr.f32.gmra.mrb[0].mxu0 %v9643
    %v9645 = vpop.f32.mrb[0].mxu0
    %v9646 = vadd.f32 %v9569, %v9645
    %v9647 = vpop.f32.mrb[0].mxu0
    %9648 = vdwg.mxu0
    %9649 = vmatprep.subr.mxu0 0.0
    %v9650 = vand.u32 %v74, 4294901760
    %v9651 = vsub.f32 %v74, %v9650
    %v9652 = vand.u32 %v9651, 4294901760
    %9653 = vmatpush1.msra.mxu0 %v9652
    %9654 = vmatprep.subr.mxu0 0.0
    %v9655 = vand.u32 %v77, 4294901760
    %v9656 = vsub.f32 %v77, %v9655
    %v9657 = vand.u32 %v9656, 4294901760
    %9658 = vmatpush1.msra.mxu0 %v9657
    %9659 = vmatprep.subr.mxu0 0.0
    %v9660 = vand.u32 %v80, 4294901760
    %v9661 = vsub.f32 %v80, %v9660
    %v9662 = vand.u32 %v9661, 4294901760
    %9663 = vmatpush1.msra.mxu0 %v9662
    %9664 = vmatprep.subr.mxu0 0.0
    %v9665 = vand.u32 %v83, 4294901760
    %v9666 = vsub.f32 %v83, %v9665
    %v9667 = vand.u32 %v9666, 4294901760
    %9668 = vmatpush1.msra.mxu0 %v9667
    %9669 = vmatprep.subr.mxu0 0.0
    %9670 = vmatpush1.msra.mxu0 0.0
    %9671 = vmatprep.subr.mxu0 0.0
    %9672 = vmatpush1.msra.mxu0 0.0
    %9673 = vmatprep.subr.mxu0 0.0
    %9674 = vmatpush1.msra.mxu0 0.0
    %9675 = vmatprep.subr.mxu0 0.0
    %9676 = vmatpush1.msra.mxu0 0.0
    %9677 = vmatprep.subr.mxu0 0.0
    %9678 = vmatpush1.msra.mxu0 0.0
    %9679 = vmatprep.subr.mxu0 0.0
    %9680 = vmatpush1.msra.mxu0 0.0
    %9681 = vmatprep.subr.mxu0 0.0
    %9682 = vmatpush1.msra.mxu0 0.0
    %9683 = vmatprep.subr.mxu0 0.0
    %9684 = vmatpush1.msra.mxu0 0.0
    %9685 = vmatprep.subr.mxu0 0.0
    %9686 = vmatpush1.msra.mxu0 0.0
    %9687 = vmatprep.subr.mxu0 0.0
    %9688 = vmatpush1.msra.mxu0 0.0
    %9689 = vmatprep.subr.mxu0 0.0
    %9690 = vmatpush1.msra.mxu0 0.0
    %9691 = vmatprep.subr.mxu0 0.0
    %9692 = vmatpush1.msra.mxu0 0.0
    %9693 = vmatprep.subr.mxu0 0.0
    %9694 = vmatpush1.msra.mxu0 0.0
    %9695 = vmatprep.subr.mxu0 0.0
    %9696 = vmatpush1.msra.mxu0 0.0
    %9697 = vmatprep.subr.mxu0 0.0
    %9698 = vmatpush1.msra.mxu0 0.0
    %9699 = vmatprep.subr.mxu0 0.0
    %9700 = vmatpush1.msra.mxu0 0.0
    %9701 = vmatprep.subr.mxu0 0.0
    %9702 = vmatpush1.msra.mxu0 0.0
    %9703 = vmatprep.subr.mxu0 0.0
    %9704 = vmatpush1.msra.mxu0 0.0
    %9705 = vmatprep.subr.mxu0 0.0
    %9706 = vmatpush1.msra.mxu0 0.0
    %9707 = vmatprep.subr.mxu0 0.0
    %9708 = vmatpush1.msra.mxu0 0.0
    %9709 = vmatprep.subr.mxu0 0.0
    %9710 = vmatpush1.msra.mxu0 0.0
    %9711 = vmatprep.subr.mxu0 0.0
    %9712 = vmatpush1.msra.mxu0 0.0
    %9713 = vmatprep.subr.mxu0 0.0
    %9714 = vmatpush1.msra.mxu0 0.0
    %9715 = vmatprep.subr.mxu0 0.0
    %9716 = vmatpush1.msra.mxu0 0.0
    %9717 = vmatprep.subr.mxu0 0.0
    %9718 = vmatpush1.msra.mxu0 0.0
    %9719 = vmatprep.subr.mxu0 0.0
    %9720 = vmatpush1.msra.mxu0 0.0
    %9721 = vmatprep.subr.mxu0 0.0
    %9722 = vmatpush1.msra.mxu0 0.0
    %9723 = vmatprep.subr.mxu0 0.0
    %9724 = vmatpush1.msra.mxu0 0.0
    %9725 = vmatprep.mubr.f32.mxu0 0.0
    %v9726 = vand.u32 %v6262, 4294901760
    %9727 = vmatmul.mubr.f32.gmra.mrb[0].mxu0 %v9726
    %v9728 = vpop.f32.mrb[0].mxu0
    %v9729 = vadd.f32 %v9646, %v9728
    %v9730 = vpop.f32.mrb[0].mxu0
    %9731 = vdwg.mxu0
    %9732 = vmatprep.subr.mxu0 0.0
    %v9733 = vand.u32 %v74, 4294901760
    %9734 = vmatpush1.msra.mxu0 %v9733
    %9735 = vmatprep.subr.mxu0 0.0
    %v9736 = vand.u32 %v77, 4294901760
    %9737 = vmatpush1.msra.mxu0 %v9736
    %9738 = vmatprep.subr.mxu0 0.0
    %v9739 = vand.u32 %v80, 4294901760
    %9740 = vmatpush1.msra.mxu0 %v9739
    %9741 = vmatprep.subr.mxu0 0.0
    %v9742 = vand.u32 %v83, 4294901760
    %9743 = vmatpush1.msra.mxu0 %v9742
    %9744 = vmatprep.subr.mxu0 0.0
    %9745 = vmatpush1.msra.mxu0 0.0
    %9746 = vmatprep.subr.mxu0 0.0
    %9747 = vmatpush1.msra.mxu0 0.0
    %9748 = vmatprep.subr.mxu0 0.0
    %9749 = vmatpush1.msra.mxu0 0.0
    %9750 = vmatprep.subr.mxu0 0.0
    %9751 = vmatpush1.msra.mxu0 0.0
    %9752 = vmatprep.subr.mxu0 0.0
    %9753 = vmatpush1.msra.mxu0 0.0
    %9754 = vmatprep.subr.mxu0 0.0
    %9755 = vmatpush1.msra.mxu0 0.0
    %9756 = vmatprep.subr.mxu0 0.0
    %9757 = vmatpush1.msra.mxu0 0.0
    %9758 = vmatprep.subr.mxu0 0.0
    %9759 = vmatpush1.msra.mxu0 0.0
    %9760 = vmatprep.subr.mxu0 0.0
    %9761 = vmatpush1.msra.mxu0 0.0
    %9762 = vmatprep.subr.mxu0 0.0
    %9763 = vmatpush1.msra.mxu0 0.0
    %9764 = vmatprep.subr.mxu0 0.0
    %9765 = vmatpush1.msra.mxu0 0.0
    %9766 = vmatprep.subr.mxu0 0.0
    %9767 = vmatpush1.msra.mxu0 0.0
    %9768 = vmatprep.subr.mxu0 0.0
    %9769 = vmatpush1.msra.mxu0 0.0
    %9770 = vmatprep.subr.mxu0 0.0
    %9771 = vmatpush1.msra.mxu0 0.0
    %9772 = vmatprep.subr.mxu0 0.0
    %9773 = vmatpush1.msra.mxu0 0.0
    %9774 = vmatprep.subr.mxu0 0.0
    %9775 = vmatpush1.msra.mxu0 0.0
    %9776 = vmatprep.subr.mxu0 0.0
    %9777 = vmatpush1.msra.mxu0 0.0
    %9778 = vmatprep.subr.mxu0 0.0
    %9779 = vmatpush1.msra.mxu0 0.0
    %9780 = vmatprep.subr.mxu0 0.0
    %9781 = vmatpush1.msra.mxu0 0.0
    %9782 = vmatprep.subr.mxu0 0.0
    %9783 = vmatpush1.msra.mxu0 0.0
    %9784 = vmatprep.subr.mxu0 0.0
    %9785 = vmatpush1.msra.mxu0 0.0
    %9786 = vmatprep.subr.mxu0 0.0
    %9787 = vmatpush1.msra.mxu0 0.0
    %9788 = vmatprep.subr.mxu0 0.0
    %9789 = vmatpush1.msra.mxu0 0.0
    %9790 = vmatprep.subr.mxu0 0.0
    %9791 = vmatpush1.msra.mxu0 0.0
    %9792 = vmatprep.subr.mxu0 0.0
    %9793 = vmatpush1.msra.mxu0 0.0
    %9794 = vmatprep.subr.mxu0 0.0
    %9795 = vmatpush1.msra.mxu0 0.0
    %9796 = vmatprep.subr.mxu0 0.0
    %9797 = vmatpush1.msra.mxu0 0.0
    %9798 = vmatprep.subr.mxu0 0.0
    %9799 = vmatpush1.msra.mxu0 0.0
    %9800 = vmatprep.mubr.f32.mxu0 0.0
    %v9801 = vand.u32 %v6262, 4294901760
    %9802 = vmatmul.mubr.f32.gmra.mrb[0].mxu0 %v9801
    %v9803 = vpop.f32.mrb[0].mxu0
    %v9804 = vadd.f32 %v9729, %v9803
    %v9805 = vpop.f32.mrb[0].mxu0
    %9806 = vdwg.mxu0
    %v9807 = vadd.f32 %v8290, %v9318
    %v9808 = vxor.u32 %v9807, 2147483648
    %v9809 = vmul.f32 %v9808, 1.442695
    %v9810 = vpow.pop %v9809
    %v9811 = vadd.f32 %v9810, 1.0
    %v9812 = vrcp.pop %v9811
    %v9813 = vmul.f32 1.0, %v9812
    %v9814 = vadd.f32 %v8292, %v9320
    %v9815 = vxor.u32 %v9814, 2147483648
    %v9816 = vmul.f32 %v9815, 1.442695
    %v9817 = vpow.pop %v9816
    %v9818 = vadd.f32 %v9817, 1.0
    %v9819 = vrcp.pop %v9818
    %v9820 = vmul.f32 1.0, %v9819
    %v9821 = vmul.f32 %v9813, %v9804
    %v9822 = vadd.f32 %v8776, %v9821
    %v9823 = vtanh.pop %v9822
    %v9824 = vsub.f32 1.0, %v9820
    %v9825 = vmul.f32 %v9824, %v9823
    %v9826 = vmul.f32 %v9820, %v6260
    %v9827 = vadd.f32 %v9825, %v9826
    %v9829 = vsel %vm591, %v9827, 0
    %9831 = vmatprep.subr.mxu0 0.0
    %v9832 = vand.u32 %v7260, 4294901760
    %9833 = vmatpush1.msra.mxu0 %v9832
    %9834 = vmatprep.subr.mxu0 0.0
    %v9835 = vand.u32 %v7261, 4294901760
    %9836 = vmatpush1.msra.mxu0 %v9835
    %9837 = vmatprep.subr.mxu0 0.0
    %v9838 = vand.u32 %v7262, 4294901760
    %9839 = vmatpush1.msra.mxu0 %v9838
    %9840 = vmatprep.subr.mxu0 0.0
    %v9841 = vand.u32 %v7263, 4294901760
    %9842 = vmatpush1.msra.mxu0 %v9841
    %9843 = vmatprep.subr.mxu0 0.0
    %9844 = vmatpush1.msra.mxu0 0.0
    %9845 = vmatprep.subr.mxu0 0.0
    %9846 = vmatpush1.msra.mxu0 0.0
    %9847 = vmatprep.subr.mxu0 0.0
    %9848 = vmatpush1.msra.mxu0 0.0
    %9849 = vmatprep.subr.mxu0 0.0
    %9850 = vmatpush1.msra.mxu0 0.0
    %9851 = vmatprep.subr.mxu0 0.0
    %9852 = vmatpush1.msra.mxu0 0.0
    %9853 = vmatprep.subr.mxu0 0.0
    %9854 = vmatpush1.msra.mxu0 0.0
    %9855 = vmatprep.subr.mxu0 0.0
    %9856 = vmatpush1.msra.mxu0 0.0
    %9857 = vmatprep.subr.mxu0 0.0
    %9858 = vmatpush1.msra.mxu0 0.0
    %9859 = vmatprep.subr.mxu0 0.0
    %9860 = vmatpush1.msra.mxu0 0.0
    %9861 = vmatprep.subr.mxu0 0.0
    %9862 = vmatpush1.msra.mxu0 0.0
    %9863 = vmatprep.subr.mxu0 0.0
    %9864 = vmatpush1.msra.mxu0 0.0
    %9865 = vmatprep.subr.mxu0 0.0
    %9866 = vmatpush1.msra.mxu0 0.0
    %9867 = vmatprep.subr.mxu0 0.0
    %9868 = vmatpush1.msra.mxu0 0.0
    %9869 = vmatprep.subr.mxu0 0.0
    %9870 = vmatpush1.msra.mxu0 0.0
    %9871 = vmatprep.subr.mxu0 0.0
    %9872 = vmatpush1.msra.mxu0 0.0
    %9873 = vmatprep.subr.mxu0 0.0
    %9874 = vmatpush1.msra.mxu0 0.0
    %9875 = vmatprep.subr.mxu0 0.0
    %9876 = vmatpush1.msra.mxu0 0.0
    %9877 = vmatprep.subr.mxu0 0.0
    %9878 = vmatpush1.msra.mxu0 0.0
    %9879 = vmatprep.subr.mxu0 0.0
    %9880 = vmatpush1.msra.mxu0 0.0
    %9881 = vmatprep.subr.mxu0 0.0
    %9882 = vmatpush1.msra.mxu0 0.0
    %9883 = vmatprep.subr.mxu0 0.0
    %9884 = vmatpush1.msra.mxu0 0.0
    %9885 = vmatprep.subr.mxu0 0.0
    %9886 = vmatpush1.msra.mxu0 0.0
    %9887 = vmatprep.subr.mxu0 0.0
    %9888 = vmatpush1.msra.mxu0 0.0
    %9889 = vmatprep.subr.mxu0 0.0
    %9890 = vmatpush1.msra.mxu0 0.0
    %9891 = vmatprep.subr.mxu0 0.0
    %9892 = vmatpush1.msra.mxu0 0.0
    %9893 = vmatprep.subr.mxu0 0.0
    %9894 = vmatpush1.msra.mxu0 0.0
    %9895 = vmatprep.subr.mxu0 0.0
    %9896 = vmatpush1.msra.mxu0 0.0
    %9897 = vmatprep.subr.mxu0 0.0
    %9898 = vmatpush1.msra.mxu0 0.0
    %9899 = vmatprep.mubr.f32.mxu0 0.0
    %v9900 = vand.u32 %v9829, 4294901760
    %v9901 = vsub.f32 %v9829, %v9900
    %v9902 = vand.u32 %v9901, 4294901760
    %v9903 = vsub.f32 %v9901, %v9902
    %v9904 = vand.u32 %v9903, 4294901760
    %9905 = vmatmul.mubr.f32.gmra.mrb[0].mxu0 %v9904
    %v9906 = vpop.f32.mrb[0].mxu0
    %v9907 = vadd.f32 %v7264, %v9906
    %v9908 = vpop.f32.mrb[0].mxu0
    %9909 = vdwg.mxu0
    %9910 = vmatprep.subr.mxu0 0.0
    %v9911 = vand.u32 %v7260, 4294901760
    %v9912 = vsub.f32 %v7260, %v9911
    %v9913 = vand.u32 %v9912, 4294901760
    %v9914 = vsub.f32 %v9912, %v9913
    %v9915 = vand.u32 %v9914, 4294901760
    %9916 = vmatpush1.msra.mxu0 %v9915
    %9917 = vmatprep.subr.mxu0 0.0
    %v9918 = vand.u32 %v7261, 4294901760
    %v9919 = vsub.f32 %v7261, %v9918
    %v9920 = vand.u32 %v9919, 4294901760
    %v9921 = vsub.f32 %v9919, %v9920
    %v9922 = vand.u32 %v9921, 4294901760
    %9923 = vmatpush1.msra.mxu0 %v9922
    %9924 = vmatprep.subr.mxu0 0.0
    %v9925 = vand.u32 %v7262, 4294901760
    %v9926 = vsub.f32 %v7262, %v9925
    %v9927 = vand.u32 %v9926, 4294901760
    %v9928 = vsub.f32 %v9926, %v9927
    %v9929 = vand.u32 %v9928, 4294901760
    %9930 = vmatpush1.msra.mxu0 %v9929
    %9931 = vmatprep.subr.mxu0 0.0
    %v9932 = vand.u32 %v7263, 4294901760
    %v9933 = vsub.f32 %v7263, %v9932
    %v9934 = vand.u32 %v9933, 4294901760
    %v9935 = vsub.f32 %v9933, %v9934
    %v9936 = vand.u32 %v9935, 4294901760
    %9937 = vmatpush1.msra.mxu0 %v9936
    %9938 = vmatprep.subr.mxu0 0.0
    %9939 = vmatpush1.msra.mxu0 0.0
    %9940 = vmatprep.subr.mxu0 0.0
    %9941 = vmatpush1.msra.mxu0 0.0
    %9942 = vmatprep.subr.mxu0 0.0
    %9943 = vmatpush1.msra.mxu0 0.0
    %9944 = vmatprep.subr.mxu0 0.0
    %9945 = vmatpush1.msra.mxu0 0.0
    %9946 = vmatprep.subr.mxu0 0.0
    %9947 = vmatpush1.msra.mxu0 0.0
    %9948 = vmatprep.subr.mxu0 0.0
    %9949 = vmatpush1.msra.mxu0 0.0
    %9950 = vmatprep.subr.mxu0 0.0
    %9951 = vmatpush1.msra.mxu0 0.0
    %9952 = vmatprep.subr.mxu0 0.0
    %9953 = vmatpush1.msra.mxu0 0.0
    %9954 = vmatprep.subr.mxu0 0.0
    %9955 = vmatpush1.msra.mxu0 0.0
    %9956 = vmatprep.subr.mxu0 0.0
    %9957 = vmatpush1.msra.mxu0 0.0
    %9958 = vmatprep.subr.mxu0 0.0
    %9959 = vmatpush1.msra.mxu0 0.0
    %9960 = vmatprep.subr.mxu0 0.0
    %9961 = vmatpush1.msra.mxu0 0.0
    %9962 = vmatprep.subr.mxu0 0.0
    %9963 = vmatpush1.msra.mxu0 0.0
    %9964 = vmatprep.subr.mxu0 0.0
    %9965 = vmatpush1.msra.mxu0 0.0
    %9966 = vmatprep.subr.mxu0 0.0
    %9967 = vmatpush1.msra.mxu0 0.0
    %9968 = vmatprep.subr.mxu0 0.0
    %9969 = vmatpush1.msra.mxu0 0.0
    %9970 = vmatprep.subr.mxu0 0.0
    %9971 = vmatpush1.msra.mxu0 0.0
    %9972 = vmatprep.subr.mxu0 0.0
    %9973 = vmatpush1.msra.mxu0 0.0
    %9974 = vmatprep.subr.mxu0 0.0
    %9975 = vmatpush1.msra.mxu0 0.0
    %9976 = vmatprep.subr.mxu0 0.0
    %9977 = vmatpush1.msra.mxu0 0.0
    %9978 = vmatprep.subr.mxu0 0.0
    %9979 = vmatpush1.msra.mxu0 0.0
    %9980 = vmatprep.subr.mxu0 0.0
    %9981 = vmatpush1.msra.mxu0 0.0
    %9982 = vmatprep.subr.mxu0 0.0
    %9983 = vmatpush1.msra.mxu0 0.0
    %9984 = vmatprep.subr.mxu0 0.0
    %9985 = vmatpush1.msra.mxu0 0.0
    %9986 = vmatprep.subr.mxu0 0.0
    %9987 = vmatpush1.msra.mxu0 0.0
    %9988 = vmatprep.subr.mxu0 0.0
    %9989 = vmatpush1.msra.mxu0 0.0
    %9990 = vmatprep.subr.mxu0 0.0
    %9991 = vmatpush1.msra.mxu0 0.0
    %9992 = vmatprep.subr.mxu0 0.0
    %9993 = vmatpush1.msra.mxu0 0.0
    %9994 = vmatprep.mubr.f32.mxu0 0.0
    %v9995 = vand.u32 %v9829, 4294901760
    %9996 = vmatmul.mubr.f32.gmra.mrb[0].mxu0 %v9995
    %v9997 = vpop.f32.mrb[0].mxu0
    %v9998 = vadd.f32 %v9907, %v9997
    %v9999 = vpop.f32.mrb[0].mxu0
    %10000 = vdwg.mxu0
    %10001 = vmatprep.subr.mxu0 0.0
    %v10002 = vand.u32 %v7260, 4294901760
    %v10003 = vsub.f32 %v7260, %v10002
    %10004 = vmatpush1.msra.mxu0 %v10003
    %10005 = vmatprep.subr.mxu0 0.0
    %v10006 = vand.u32 %v7261, 4294901760
    %v10007 = vsub.f32 %v7261, %v10006
    %10008 = vmatpush1.msra.mxu0 %v10007
    %10009 = vmatprep.subr.mxu0 0.0
    %v10010 = vand.u32 %v7262, 4294901760
    %v10011 = vsub.f32 %v7262, %v10010
    %10012 = vmatpush1.msra.mxu0 %v10011
    %10013 = vmatprep.subr.mxu0 0.0
    %v10014 = vand.u32 %v7263, 4294901760
    %v10015 = vsub.f32 %v7263, %v10014
    %10016 = vmatpush1.msra.mxu0 %v10015
    %10017 = vmatprep.subr.mxu0 0.0
    %10018 = vmatpush1.msra.mxu0 0.0
    %10019 = vmatprep.subr.mxu0 0.0
    %10020 = vmatpush1.msra.mxu0 0.0
    %10021 = vmatprep.subr.mxu0 0.0
    %10022 = vmatpush1.msra.mxu0 0.0
    %10023 = vmatprep.subr.mxu0 0.0
    %10024 = vmatpush1.msra.mxu0 0.0
    %10025 = vmatprep.subr.mxu0 0.0
    %10026 = vmatpush1.msra.mxu0 0.0
    %10027 = vmatprep.subr.mxu0 0.0
    %10028 = vmatpush1.msra.mxu0 0.0
    %10029 = vmatprep.subr.mxu0 0.0
    %10030 = vmatpush1.msra.mxu0 0.0
    %10031 = vmatprep.subr.mxu0 0.0
    %10032 = vmatpush1.msra.mxu0 0.0
    %10033 = vmatprep.subr.mxu0 0.0
    %10034 = vmatpush1.msra.mxu0 0.0
    %10035 = vmatprep.subr.mxu0 0.0
    %10036 = vmatpush1.msra.mxu0 0.0
    %10037 = vmatprep.subr.mxu0 0.0
    %10038 = vmatpush1.msra.mxu0 0.0
    %10039 = vmatprep.subr.mxu0 0.0
    %10040 = vmatpush1.msra.mxu0 0.0
    %10041 = vmatprep.subr.mxu0 0.0
    %10042 = vmatpush1.msra.mxu0 0.0
    %10043 = vmatprep.subr.mxu0 0.0
    %10044 = vmatpush1.msra.mxu0 0.0
    %10045 = vmatprep.subr.mxu0 0.0
    %10046 = vmatpush1.msra.mxu0 0.0
    %10047 = vmatprep.subr.mxu0 0.0
    %10048 = vmatpush1.msra.mxu0 0.0
    %10049 = vmatprep.subr.mxu0 0.0
    %10050 = vmatpush1.msra.mxu0 0.0
    %10051 = vmatprep.subr.mxu0 0.0
    %10052 = vmatpush1.msra.mxu0 0.0
    %10053 = vmatprep.subr.mxu0 0.0
    %10054 = vmatpush1.msra.mxu0 0.0
    %10055 = vmatprep.subr.mxu0 0.0
    %10056 = vmatpush1.msra.mxu0 0.0
    %10057 = vmatprep.subr.mxu0 0.0
    %10058 = vmatpush1.msra.mxu0 0.0
    %10059 = vmatprep.subr.mxu0 0.0
    %10060 = vmatpush1.msra.mxu0 0.0
    %10061 = vmatprep.subr.mxu0 0.0
    %10062 = vmatpush1.msra.mxu0 0.0
    %10063 = vmatprep.subr.mxu0 0.0
    %10064 = vmatpush1.msra.mxu0 0.0
    %10065 = vmatprep.subr.mxu0 0.0
    %10066 = vmatpush1.msra.mxu0 0.0
    %10067 = vmatprep.subr.mxu0 0.0
    %10068 = vmatpush1.msra.mxu0 0.0
    %10069 = vmatprep.subr.mxu0 0.0
    %10070 = vmatpush1.msra.mxu0 0.0
    %10071 = vmatprep.subr.mxu0 0.0
    %10072 = vmatpush1.msra.mxu0 0.0
    %10073 = vmatprep.mubr.f32.mxu0 0.0
    %v10074 = vand.u32 %v9829, 4294901760
    %v10075 = vsub.f32 %v9829, %v10074
    %10076 = vmatmul.mubr.f32.gmra.mrb[0].mxu0 %v10075
    %v10077 = vpop.f32.mrb[0].mxu0
    %v10078 = vadd.f32 %v9998, %v10077
    %v10079 = vpop.f32.mrb[0].mxu0
    %10080 = vdwg.mxu0
    %10081 = vmatprep.subr.mxu0 0.0
    %v10082 = vand.u32 %v7260, 4294901760
    %10083 = vmatpush1.msra.mxu0 %v10082
    %10084 = vmatprep.subr.mxu0 0.0
    %v10085 = vand.u32 %v7261, 4294901760
    %10086 = vmatpush1.msra.mxu0 %v10085
    %10087 = vmatprep.subr.mxu0 0.0
    %v10088 = vand.u32 %v7262, 4294901760
    %10089 = vmatpush1.msra.mxu0 %v10088
    %10090 = vmatprep.subr.mxu0 0.0
    %v10091 = vand.u32 %v7263, 4294901760
    %10092 = vmatpush1.msra.mxu0 %v10091
    %10093 = vmatprep.subr.mxu0 0.0
    %10094 = vmatpush1.msra.mxu0 0.0
    %10095 = vmatprep.subr.mxu0 0.0
    %10096 = vmatpush1.msra.mxu0 0.0
    %10097 = vmatprep.subr.mxu0 0.0
    %10098 = vmatpush1.msra.mxu0 0.0
    %10099 = vmatprep.subr.mxu0 0.0
    %10100 = vmatpush1.msra.mxu0 0.0
    %10101 = vmatprep.subr.mxu0 0.0
    %10102 = vmatpush1.msra.mxu0 0.0
    %10103 = vmatprep.subr.mxu0 0.0
    %10104 = vmatpush1.msra.mxu0 0.0
    %10105 = vmatprep.subr.mxu0 0.0
    %10106 = vmatpush1.msra.mxu0 0.0
    %10107 = vmatprep.subr.mxu0 0.0
    %10108 = vmatpush1.msra.mxu0 0.0
    %10109 = vmatprep.subr.mxu0 0.0
    %10110 = vmatpush1.msra.mxu0 0.0
    %10111 = vmatprep.subr.mxu0 0.0
    %10112 = vmatpush1.msra.mxu0 0.0
    %10113 = vmatprep.subr.mxu0 0.0
    %10114 = vmatpush1.msra.mxu0 0.0
    %10115 = vmatprep.subr.mxu0 0.0
    %10116 = vmatpush1.msra.mxu0 0.0
    %10117 = vmatprep.subr.mxu0 0.0
    %10118 = vmatpush1.msra.mxu0 0.0
    %10119 = vmatprep.subr.mxu0 0.0
    %10120 = vmatpush1.msra.mxu0 0.0
    %10121 = vmatprep.subr.mxu0 0.0
    %10122 = vmatpush1.msra.mxu0 0.0
    %10123 = vmatprep.subr.mxu0 0.0
    %10124 = vmatpush1.msra.mxu0 0.0
    %10125 = vmatprep.subr.mxu0 0.0
    %10126 = vmatpush1.msra.mxu0 0.0
    %10127 = vmatprep.subr.mxu0 0.0
    %10128 = vmatpush1.msra.mxu0 0.0
    %10129 = vmatprep.subr.mxu0 0.0
    %10130 = vmatpush1.msra.mxu0 0.0
    %10131 = vmatprep.subr.mxu0 0.0
    %10132 = vmatpush1.msra.mxu0 0.0
    %10133 = vmatprep.subr.mxu0 0.0
    %10134 = vmatpush1.msra.mxu0 0.0
    %10135 = vmatprep.subr.mxu0 0.0
    %10136 = vmatpush1.msra.mxu0 0.0
    %10137 = vmatprep.subr.mxu0 0.0
    %10138 = vmatpush1.msra.mxu0 0.0
    %10139 = vmatprep.subr.mxu0 0.0
    %10140 = vmatpush1.msra.mxu0 0.0
    %10141 = vmatprep.subr.mxu0 0.0
    %10142 = vmatpush1.msra.mxu0 0.0
    %10143 = vmatprep.subr.mxu0 0.0
    %10144 = vmatpush1.msra.mxu0 0.0
    %10145 = vmatprep.subr.mxu0 0.0
    %10146 = vmatpush1.msra.mxu0 0.0
    %10147 = vmatprep.subr.mxu0 0.0
    %10148 = vmatpush1.msra.mxu0 0.0
    %10149 = vmatprep.mubr.f32.mxu0 0.0
    %v10150 = vand.u32 %v9829, 4294901760
    %v10151 = vsub.f32 %v9829, %v10150
    %v10152 = vand.u32 %v10151, 4294901760
    %10153 = vmatmul.mubr.f32.gmra.mrb[0].mxu0 %v10152
    %v10154 = vpop.f32.mrb[0].mxu0
    %v10155 = vadd.f32 %v10078, %v10154
    %v10156 = vpop.f32.mrb[0].mxu0
    %10157 = vdwg.mxu0
    %10158 = vmatprep.subr.mxu0 0.0
    %v10159 = vand.u32 %v7260, 4294901760
    %v10160 = vsub.f32 %v7260, %v10159
    %v10161 = vand.u32 %v10160, 4294901760
    %10162 = vmatpush1.msra.mxu0 %v10161
    %10163 = vmatprep.subr.mxu0 0.0
    %v10164 = vand.u32 %v7261, 4294901760
    %v10165 = vsub.f32 %v7261, %v10164
    %v10166 = vand.u32 %v10165, 4294901760
    %10167 = vmatpush1.msra.mxu0 %v10166
    %10168 = vmatprep.subr.mxu0 0.0
    %v10169 = vand.u32 %v7262, 4294901760
    %v10170 = vsub.f32 %v7262, %v10169
    %v10171 = vand.u32 %v10170, 4294901760
    %10172 = vmatpush1.msra.mxu0 %v10171
    %10173 = vmatprep.subr.mxu0 0.0
    %v10174 = vand.u32 %v7263, 4294901760
    %v10175 = vsub.f32 %v7263, %v10174
    %v10176 = vand.u32 %v10175, 4294901760
    %10177 = vmatpush1.msra.mxu0 %v10176
    %10178 = vmatprep.subr.mxu0 0.0
    %10179 = vmatpush1.msra.mxu0 0.0
    %10180 = vmatprep.subr.mxu0 0.0
    %10181 = vmatpush1.msra.mxu0 0.0
    %10182 = vmatprep.subr.mxu0 0.0
    %10183 = vmatpush1.msra.mxu0 0.0
    %10184 = vmatprep.subr.mxu0 0.0
    %10185 = vmatpush1.msra.mxu0 0.0
    %10186 = vmatprep.subr.mxu0 0.0
    %10187 = vmatpush1.msra.mxu0 0.0
    %10188 = vmatprep.subr.mxu0 0.0
    %10189 = vmatpush1.msra.mxu0 0.0
    %10190 = vmatprep.subr.mxu0 0.0
    %10191 = vmatpush1.msra.mxu0 0.0
    %10192 = vmatprep.subr.mxu0 0.0
    %10193 = vmatpush1.msra.mxu0 0.0
    %10194 = vmatprep.subr.mxu0 0.0
    %10195 = vmatpush1.msra.mxu0 0.0
    %10196 = vmatprep.subr.mxu0 0.0
    %10197 = vmatpush1.msra.mxu0 0.0
    %10198 = vmatprep.subr.mxu0 0.0
    %10199 = vmatpush1.msra.mxu0 0.0
    %10200 = vmatprep.subr.mxu0 0.0
    %10201 = vmatpush1.msra.mxu0 0.0
    %10202 = vmatprep.subr.mxu0 0.0
    %10203 = vmatpush1.msra.mxu0 0.0
    %10204 = vmatprep.subr.mxu0 0.0
    %10205 = vmatpush1.msra.mxu0 0.0
    %10206 = vmatprep.subr.mxu0 0.0
    %10207 = vmatpush1.msra.mxu0 0.0
    %10208 = vmatprep.subr.mxu0 0.0
    %10209 = vmatpush1.msra.mxu0 0.0
    %10210 = vmatprep.subr.mxu0 0.0
    %10211 = vmatpush1.msra.mxu0 0.0
    %10212 = vmatprep.subr.mxu0 0.0
    %10213 = vmatpush1.msra.mxu0 0.0
    %10214 = vmatprep.subr.mxu0 0.0
    %10215 = vmatpush1.msra.mxu0 0.0
    %10216 = vmatprep.subr.mxu0 0.0
    %10217 = vmatpush1.msra.mxu0 0.0
    %10218 = vmatprep.subr.mxu0 0.0
    %10219 = vmatpush1.msra.mxu0 0.0
    %10220 = vmatprep.subr.mxu0 0.0
    %10221 = vmatpush1.msra.mxu0 0.0
    %10222 = vmatprep.subr.mxu0 0.0
    %10223 = vmatpush1.msra.mxu0 0.0
    %10224 = vmatprep.subr.mxu0 0.0
    %10225 = vmatpush1.msra.mxu0 0.0
    %10226 = vmatprep.subr.mxu0 0.0
    %10227 = vmatpush1.msra.mxu0 0.0
    %10228 = vmatprep.subr.mxu0 0.0
    %10229 = vmatpush1.msra.mxu0 0.0
    %10230 = vmatprep.subr.mxu0 0.0
    %10231 = vmatpush1.msra.mxu0 0.0
    %10232 = vmatprep.subr.mxu0 0.0
    %10233 = vmatpush1.msra.mxu0 0.0
    %10234 = vmatprep.mubr.f32.mxu0 0.0
    %v10235 = vand.u32 %v9829, 4294901760
    %10236 = vmatmul.mubr.f32.gmra.mrb[0].mxu0 %v10235
    %v10237 = vpop.f32.mrb[0].mxu0
    %v10238 = vadd.f32 %v10155, %v10237
    %v10239 = vpop.f32.mrb[0].mxu0
    %10240 = vdwg.mxu0
    %10241 = vmatprep.subr.mxu0 0.0
    %v10242 = vand.u32 %v7260, 4294901760
    %10243 = vmatpush1.msra.mxu0 %v10242
    %10244 = vmatprep.subr.mxu0 0.0
    %v10245 = vand.u32 %v7261, 4294901760
    %10246 = vmatpush1.msra.mxu0 %v10245
    %10247 = vmatprep.subr.mxu0 0.0
    %v10248 = vand.u32 %v7262, 4294901760
    %10249 = vmatpush1.msra.mxu0 %v10248
    %10250 = vmatprep.subr.mxu0 0.0
    %v10251 = vand.u32 %v7263, 4294901760
    %10252 = vmatpush1.msra.mxu0 %v10251
    %10253 = vmatprep.subr.mxu0 0.0
    %10254 = vmatpush1.msra.mxu0 0.0
    %10255 = vmatprep.subr.mxu0 0.0
    %10256 = vmatpush1.msra.mxu0 0.0
    %10257 = vmatprep.subr.mxu0 0.0
    %10258 = vmatpush1.msra.mxu0 0.0
    %10259 = vmatprep.subr.mxu0 0.0
    %10260 = vmatpush1.msra.mxu0 0.0
    %10261 = vmatprep.subr.mxu0 0.0
    %10262 = vmatpush1.msra.mxu0 0.0
    %10263 = vmatprep.subr.mxu0 0.0
    %10264 = vmatpush1.msra.mxu0 0.0
    %10265 = vmatprep.subr.mxu0 0.0
    %10266 = vmatpush1.msra.mxu0 0.0
    %10267 = vmatprep.subr.mxu0 0.0
    %10268 = vmatpush1.msra.mxu0 0.0
    %10269 = vmatprep.subr.mxu0 0.0
    %10270 = vmatpush1.msra.mxu0 0.0
    %10271 = vmatprep.subr.mxu0 0.0
    %10272 = vmatpush1.msra.mxu0 0.0
    %10273 = vmatprep.subr.mxu0 0.0
    %10274 = vmatpush1.msra.mxu0 0.0
    %10275 = vmatprep.subr.mxu0 0.0
    %10276 = vmatpush1.msra.mxu0 0.0
    %10277 = vmatprep.subr.mxu0 0.0
    %10278 = vmatpush1.msra.mxu0 0.0
    %10279 = vmatprep.subr.mxu0 0.0
    %10280 = vmatpush1.msra.mxu0 0.0
    %10281 = vmatprep.subr.mxu0 0.0
    %10282 = vmatpush1.msra.mxu0 0.0
    %10283 = vmatprep.subr.mxu0 0.0
    %10284 = vmatpush1.msra.mxu0 0.0
    %10285 = vmatprep.subr.mxu0 0.0
    %10286 = vmatpush1.msra.mxu0 0.0
    %10287 = vmatprep.subr.mxu0 0.0
    %10288 = vmatpush1.msra.mxu0 0.0
    %10289 = vmatprep.subr.mxu0 0.0
    %10290 = vmatpush1.msra.mxu0 0.0
    %10291 = vmatprep.subr.mxu0 0.0
    %10292 = vmatpush1.msra.mxu0 0.0
    %10293 = vmatprep.subr.mxu0 0.0
    %10294 = vmatpush1.msra.mxu0 0.0
    %10295 = vmatprep.subr.mxu0 0.0
    %10296 = vmatpush1.msra.mxu0 0.0
    %10297 = vmatprep.subr.mxu0 0.0
    %10298 = vmatpush1.msra.mxu0 0.0
    %10299 = vmatprep.subr.mxu0 0.0
    %10300 = vmatpush1.msra.mxu0 0.0
    %10301 = vmatprep.subr.mxu0 0.0
    %10302 = vmatpush1.msra.mxu0 0.0
    %10303 = vmatprep.subr.mxu0 0.0
    %10304 = vmatpush1.msra.mxu0 0.0
    %10305 = vmatprep.subr.mxu0 0.0
    %10306 = vmatpush1.msra.mxu0 0.0
    %10307 = vmatprep.subr.mxu0 0.0
    %10308 = vmatpush1.msra.mxu0 0.0
    %10309 = vmatprep.mubr.f32.mxu0 0.0
    %v10310 = vand.u32 %v9829, 4294901760
    %10311 = vmatmul.mubr.f32.gmra.mrb[0].mxu0 %v10310
    %v10312 = vpop.f32.mrb[0].mxu0
    %v10313 = vadd.f32 %v10238, %v10312
    %v10314 = vpop.f32.mrb[0].mxu0
    %10315 = vdwg.mxu0
    %v10316 = vmax.f32 %v10313, 0.0
    %v10317 = vlaneseq
    %v10318 = vshrl.u32 %v10317, 7
    %v10319 = vsub.s32 0, %v10318
    %v10320 = vrot.slane %v7268, %v10319
    %v10322 = vsel %vm3184, %v10316, 0
    %v10325 = vsel %vm3188, %v7267, 0
    %10327 = vmatprep.subr.mxu0 0.0
    %v10328 = vand.u32 %v7266, 4294901760
    %10329 = vmatpush1.msra.mxu0 %v10328
    %10330 = vmatprep.subr.mxu0 0.0
    %v10331 = vand.u32 %v10325, 4294901760
    %10332 = vmatpush1.msra.mxu0 %v10331
    %10333 = vmatprep.subr.mxu0 0.0
    %10334 = vmatpush1.msra.mxu0 0.0
    %10335 = vmatprep.subr.mxu0 0.0
    %10336 = vmatpush1.msra.mxu0 0.0
    %10337 = vmatprep.subr.mxu0 0.0
    %10338 = vmatpush1.msra.mxu0 0.0
    %10339 = vmatprep.subr.mxu0 0.0
    %10340 = vmatpush1.msra.mxu0 0.0
    %10341 = vmatprep.subr.mxu0 0.0
    %10342 = vmatpush1.msra.mxu0 0.0
    %10343 = vmatprep.subr.mxu0 0.0
    %10344 = vmatpush1.msra.mxu0 0.0
    %10345 = vmatprep.subr.mxu0 0.0
    %10346 = vmatpush1.msra.mxu0 0.0
    %10347 = vmatprep.subr.mxu0 0.0
    %10348 = vmatpush1.msra.mxu0 0.0
    %10349 = vmatprep.subr.mxu0 0.0
    %10350 = vmatpush1.msra.mxu0 0.0
    %10351 = vmatprep.subr.mxu0 0.0
    %10352 = vmatpush1.msra.mxu0 0.0
    %10353 = vmatprep.subr.mxu0 0.0
    %10354 = vmatpush1.msra.mxu0 0.0
    %10355 = vmatprep.subr.mxu0 0.0
    %10356 = vmatpush1.msra.mxu0 0.0
    %10357 = vmatprep.subr.mxu0 0.0
    %10358 = vmatpush1.msra.mxu0 0.0
    %10359 = vmatprep.subr.mxu0 0.0
    %10360 = vmatpush1.msra.mxu0 0.0
    %10361 = vmatprep.subr.mxu0 0.0
    %10362 = vmatpush1.msra.mxu0 0.0
    %10363 = vmatprep.subr.mxu0 0.0
    %10364 = vmatpush1.msra.mxu0 0.0
    %10365 = vmatprep.subr.mxu0 0.0
    %10366 = vmatpush1.msra.mxu0 0.0
    %10367 = vmatprep.subr.mxu0 0.0
    %10368 = vmatpush1.msra.mxu0 0.0
    %10369 = vmatprep.subr.mxu0 0.0
    %10370 = vmatpush1.msra.mxu0 0.0
    %10371 = vmatprep.subr.mxu0 0.0
    %10372 = vmatpush1.msra.mxu0 0.0
    %10373 = vmatprep.subr.mxu0 0.0
    %10374 = vmatpush1.msra.mxu0 0.0
    %10375 = vmatprep.subr.mxu0 0.0
    %10376 = vmatpush1.msra.mxu0 0.0
    %10377 = vmatprep.subr.mxu0 0.0
    %10378 = vmatpush1.msra.mxu0 0.0
    %10379 = vmatprep.subr.mxu0 0.0
    %10380 = vmatpush1.msra.mxu0 0.0
    %10381 = vmatprep.subr.mxu0 0.0
    %10382 = vmatpush1.msra.mxu0 0.0
    %10383 = vmatprep.subr.mxu0 0.0
    %10384 = vmatpush1.msra.mxu0 0.0
    %10385 = vmatprep.subr.mxu0 0.0
    %10386 = vmatpush1.msra.mxu0 0.0
    %10387 = vmatprep.subr.mxu0 0.0
    %10388 = vmatpush1.msra.mxu0 0.0
    %10389 = vmatprep.subr.mxu0 0.0
    %10390 = vmatpush1.msra.mxu0 0.0
    %10391 = vmatprep.subr.mxu0 0.0
    %10392 = vmatpush1.msra.mxu0 0.0
    %10393 = vmatprep.mubr.f32.mxu0 0.0
    %v10394 = vand.u32 %v10322, 4294901760
    %v10395 = vsub.f32 %v10322, %v10394
    %v10396 = vand.u32 %v10395, 4294901760
    %v10397 = vsub.f32 %v10395, %v10396
    %v10398 = vand.u32 %v10397, 4294901760
    %10399 = vmatmul.mubr.f32.gmra.mrb[0].mxu0 %v10398
    %v10400 = vpop.f32.mrb[0].mxu0
    %v10401 = vadd.f32 %v10320, %v10400
    %v10402 = vpop.f32.mrb[0].mxu0
    %10403 = vdwg.mxu0
    %10404 = vmatprep.subr.mxu0 0.0
    %v10405 = vand.u32 %v7266, 4294901760
    %v10406 = vsub.f32 %v7266, %v10405
    %v10407 = vand.u32 %v10406, 4294901760
    %v10408 = vsub.f32 %v10406, %v10407
    %v10409 = vand.u32 %v10408, 4294901760
    %10410 = vmatpush1.msra.mxu0 %v10409
    %10411 = vmatprep.subr.mxu0 0.0
    %v10412 = vand.u32 %v10325, 4294901760
    %v10413 = vsub.f32 %v10325, %v10412
    %v10414 = vand.u32 %v10413, 4294901760
    %v10415 = vsub.f32 %v10413, %v10414
    %v10416 = vand.u32 %v10415, 4294901760
    %10417 = vmatpush1.msra.mxu0 %v10416
    %10418 = vmatprep.subr.mxu0 0.0
    %10419 = vmatpush1.msra.mxu0 0.0
    %10420 = vmatprep.subr.mxu0 0.0
    %10421 = vmatpush1.msra.mxu0 0.0
    %10422 = vmatprep.subr.mxu0 0.0
    %10423 = vmatpush1.msra.mxu0 0.0
    %10424 = vmatprep.subr.mxu0 0.0
    %10425 = vmatpush1.msra.mxu0 0.0
    %10426 = vmatprep.subr.mxu0 0.0
    %10427 = vmatpush1.msra.mxu0 0.0
    %10428 = vmatprep.subr.mxu0 0.0
    %10429 = vmatpush1.msra.mxu0 0.0
    %10430 = vmatprep.subr.mxu0 0.0
    %10431 = vmatpush1.msra.mxu0 0.0
    %10432 = vmatprep.subr.mxu0 0.0
    %10433 = vmatpush1.msra.mxu0 0.0
    %10434 = vmatprep.subr.mxu0 0.0
    %10435 = vmatpush1.msra.mxu0 0.0
    %10436 = vmatprep.subr.mxu0 0.0
    %10437 = vmatpush1.msra.mxu0 0.0
    %10438 = vmatprep.subr.mxu0 0.0
    %10439 = vmatpush1.msra.mxu0 0.0
    %10440 = vmatprep.subr.mxu0 0.0
    %10441 = vmatpush1.msra.mxu0 0.0
    %10442 = vmatprep.subr.mxu0 0.0
    %10443 = vmatpush1.msra.mxu0 0.0
    %10444 = vmatprep.subr.mxu0 0.0
    %10445 = vmatpush1.msra.mxu0 0.0
    %10446 = vmatprep.subr.mxu0 0.0
    %10447 = vmatpush1.msra.mxu0 0.0
    %10448 = vmatprep.subr.mxu0 0.0
    %10449 = vmatpush1.msra.mxu0 0.0
    %10450 = vmatprep.subr.mxu0 0.0
    %10451 = vmatpush1.msra.mxu0 0.0
    %10452 = vmatprep.subr.mxu0 0.0
    %10453 = vmatpush1.msra.mxu0 0.0
    %10454 = vmatprep.subr.mxu0 0.0
    %10455 = vmatpush1.msra.mxu0 0.0
    %10456 = vmatprep.subr.mxu0 0.0
    %10457 = vmatpush1.msra.mxu0 0.0
    %10458 = vmatprep.subr.mxu0 0.0
    %10459 = vmatpush1.msra.mxu0 0.0
    %10460 = vmatprep.subr.mxu0 0.0
    %10461 = vmatpush1.msra.mxu0 0.0
    %10462 = vmatprep.subr.mxu0 0.0
    %10463 = vmatpush1.msra.mxu0 0.0
    %10464 = vmatprep.subr.mxu0 0.0
    %10465 = vmatpush1.msra.mxu0 0.0
    %10466 = vmatprep.subr.mxu0 0.0
    %10467 = vmatpush1.msra.mxu0 0.0
    %10468 = vmatprep.subr.mxu0 0.0
    %10469 = vmatpush1.msra.mxu0 0.0
    %10470 = vmatprep.subr.mxu0 0.0
    %10471 = vmatpush1.msra.mxu0 0.0
    %10472 = vmatprep.subr.mxu0 0.0
    %10473 = vmatpush1.msra.mxu0 0.0
    %10474 = vmatprep.subr.mxu0 0.0
    %10475 = vmatpush1.msra.mxu0 0.0
    %10476 = vmatprep.subr.mxu0 0.0
    %10477 = vmatpush1.msra.mxu0 0.0
    %10478 = vmatprep.mubr.f32.mxu0 0.0
    %v10479 = vand.u32 %v10322, 4294901760
    %10480 = vmatmul.mubr.f32.gmra.mrb[0].mxu0 %v10479
    %v10481 = vpop.f32.mrb[0].mxu0
    %v10482 = vadd.f32 %v10401, %v10481
    %v10483 = vpop.f32.mrb[0].mxu0
    %10484 = vdwg.mxu0
    %10485 = vmatprep.subr.mxu0 0.0
    %v10486 = vand.u32 %v7266, 4294901760
    %v10487 = vsub.f32 %v7266, %v10486
    %10488 = vmatpush1.msra.mxu0 %v10487
    %10489 = vmatprep.subr.mxu0 0.0
    %v10490 = vand.u32 %v10325, 4294901760
    %v10491 = vsub.f32 %v10325, %v10490
    %10492 = vmatpush1.msra.mxu0 %v10491
    %10493 = vmatprep.subr.mxu0 0.0
    %10494 = vmatpush1.msra.mxu0 0.0
    %10495 = vmatprep.subr.mxu0 0.0
    %10496 = vmatpush1.msra.mxu0 0.0
    %10497 = vmatprep.subr.mxu0 0.0
    %10498 = vmatpush1.msra.mxu0 0.0
    %10499 = vmatprep.subr.mxu0 0.0
    %10500 = vmatpush1.msra.mxu0 0.0
    %10501 = vmatprep.subr.mxu0 0.0
    %10502 = vmatpush1.msra.mxu0 0.0
    %10503 = vmatprep.subr.mxu0 0.0
    %10504 = vmatpush1.msra.mxu0 0.0
    %10505 = vmatprep.subr.mxu0 0.0
    %10506 = vmatpush1.msra.mxu0 0.0
    %10507 = vmatprep.subr.mxu0 0.0
    %10508 = vmatpush1.msra.mxu0 0.0
    %10509 = vmatprep.subr.mxu0 0.0
    %10510 = vmatpush1.msra.mxu0 0.0
    %10511 = vmatprep.subr.mxu0 0.0
    %10512 = vmatpush1.msra.mxu0 0.0
    %10513 = vmatprep.subr.mxu0 0.0
    %10514 = vmatpush1.msra.mxu0 0.0
    %10515 = vmatprep.subr.mxu0 0.0
    %10516 = vmatpush1.msra.mxu0 0.0
    %10517 = vmatprep.subr.mxu0 0.0
    %10518 = vmatpush1.msra.mxu0 0.0
    %10519 = vmatprep.subr.mxu0 0.0
    %10520 = vmatpush1.msra.mxu0 0.0
    %10521 = vmatprep.subr.mxu0 0.0
    %10522 = vmatpush1.msra.mxu0 0.0
    %10523 = vmatprep.subr.mxu0 0.0
    %10524 = vmatpush1.msra.mxu0 0.0
    %10525 = vmatprep.subr.mxu0 0.0
    %10526 = vmatpush1.msra.mxu0 0.0
    %10527 = vmatprep.subr.mxu0 0.0
    %10528 = vmatpush1.msra.mxu0 0.0
    %10529 = vmatprep.subr.mxu0 0.0
    %10530 = vmatpush1.msra.mxu0 0.0
    %10531 = vmatprep.subr.mxu0 0.0
    %10532 = vmatpush1.msra.mxu0 0.0
    %10533 = vmatprep.subr.mxu0 0.0
    %10534 = vmatpush1.msra.mxu0 0.0
    %10535 = vmatprep.subr.mxu0 0.0
    %10536 = vmatpush1.msra.mxu0 0.0
    %10537 = vmatprep.subr.mxu0 0.0
    %10538 = vmatpush1.msra.mxu0 0.0
    %10539 = vmatprep.subr.mxu0 0.0
    %10540 = vmatpush1.msra.mxu0 0.0
    %10541 = vmatprep.subr.mxu0 0.0
    %10542 = vmatpush1.msra.mxu0 0.0
    %10543 = vmatprep.subr.mxu0 0.0
    %10544 = vmatpush1.msra.mxu0 0.0
    %10545 = vmatprep.subr.mxu0 0.0
    %10546 = vmatpush1.msra.mxu0 0.0
    %10547 = vmatprep.subr.mxu0 0.0
    %10548 = vmatpush1.msra.mxu0 0.0
    %10549 = vmatprep.subr.mxu0 0.0
    %10550 = vmatpush1.msra.mxu0 0.0
    %10551 = vmatprep.subr.mxu0 0.0
    %10552 = vmatpush1.msra.mxu0 0.0
    %10553 = vmatprep.mubr.f32.mxu0 0.0
    %v10554 = vand.u32 %v10322, 4294901760
    %v10555 = vsub.f32 %v10322, %v10554
    %10556 = vmatmul.mubr.f32.gmra.mrb[0].mxu0 %v10555
    %v10557 = vpop.f32.mrb[0].mxu0
    %v10558 = vadd.f32 %v10482, %v10557
    %v10559 = vpop.f32.mrb[0].mxu0
    %10560 = vdwg.mxu0
    %10561 = vmatprep.subr.mxu0 0.0
    %v10562 = vand.u32 %v7266, 4294901760
    %10563 = vmatpush1.msra.mxu0 %v10562
    %10564 = vmatprep.subr.mxu0 0.0
    %v10565 = vand.u32 %v10325, 4294901760
    %10566 = vmatpush1.msra.mxu0 %v10565
    %10567 = vmatprep.subr.mxu0 0.0
    %10568 = vmatpush1.msra.mxu0 0.0
    %10569 = vmatprep.subr.mxu0 0.0
    %10570 = vmatpush1.msra.mxu0 0.0
    %10571 = vmatprep.subr.mxu0 0.0
    %10572 = vmatpush1.msra.mxu0 0.0
    %10573 = vmatprep.subr.mxu0 0.0
    %10574 = vmatpush1.msra.mxu0 0.0
    %10575 = vmatprep.subr.mxu0 0.0
    %10576 = vmatpush1.msra.mxu0 0.0
    %10577 = vmatprep.subr.mxu0 0.0
    %10578 = vmatpush1.msra.mxu0 0.0
    %10579 = vmatprep.subr.mxu0 0.0
    %10580 = vmatpush1.msra.mxu0 0.0
    %10581 = vmatprep.subr.mxu0 0.0
    %10582 = vmatpush1.msra.mxu0 0.0
    %10583 = vmatprep.subr.mxu0 0.0
    %10584 = vmatpush1.msra.mxu0 0.0
    %10585 = vmatprep.subr.mxu0 0.0
    %10586 = vmatpush1.msra.mxu0 0.0
    %10587 = vmatprep.subr.mxu0 0.0
    %10588 = vmatpush1.msra.mxu0 0.0
    %10589 = vmatprep.subr.mxu0 0.0
    %10590 = vmatpush1.msra.mxu0 0.0
    %10591 = vmatprep.subr.mxu0 0.0
    %10592 = vmatpush1.msra.mxu0 0.0
    %10593 = vmatprep.subr.mxu0 0.0
    %10594 = vmatpush1.msra.mxu0 0.0
    %10595 = vmatprep.subr.mxu0 0.0
    %10596 = vmatpush1.msra.mxu0 0.0
    %10597 = vmatprep.subr.mxu0 0.0
    %10598 = vmatpush1.msra.mxu0 0.0
    %10599 = vmatprep.subr.mxu0 0.0
    %10600 = vmatpush1.msra.mxu0 0.0
    %10601 = vmatprep.subr.mxu0 0.0
    %10602 = vmatpush1.msra.mxu0 0.0
    %10603 = vmatprep.subr.mxu0 0.0
    %10604 = vmatpush1.msra.mxu0 0.0
    %10605 = vmatprep.subr.mxu0 0.0
    %10606 = vmatpush1.msra.mxu0 0.0
    %10607 = vmatprep.subr.mxu0 0.0
    %10608 = vmatpush1.msra.mxu0 0.0
    %10609 = vmatprep.subr.mxu0 0.0
    %10610 = vmatpush1.msra.mxu0 0.0
    %10611 = vmatprep.subr.mxu0 0.0
    %10612 = vmatpush1.msra.mxu0 0.0
    %10613 = vmatprep.subr.mxu0 0.0
    %10614 = vmatpush1.msra.mxu0 0.0
    %10615 = vmatprep.subr.mxu0 0.0
    %10616 = vmatpush1.msra.mxu0 0.0
    %10617 = vmatprep.subr.mxu0 0.0
    %10618 = vmatpush1.msra.mxu0 0.0
    %10619 = vmatprep.subr.mxu0 0.0
    %10620 = vmatpush1.msra.mxu0 0.0
    %10621 = vmatprep.subr.mxu0 0.0
    %10622 = vmatpush1.msra.mxu0 0.0
    %10623 = vmatprep.subr.mxu0 0.0
    %10624 = vmatpush1.msra.mxu0 0.0
    %10625 = vmatprep.subr.mxu0 0.0
    %10626 = vmatpush1.msra.mxu0 0.0
    %10627 = vmatprep.mubr.f32.mxu0 0.0
    %v10628 = vand.u32 %v10322, 4294901760
    %v10629 = vsub.f32 %v10322, %v10628
    %v10630 = vand.u32 %v10629, 4294901760
    %10631 = vmatmul.mubr.f32.gmra.mrb[0].mxu0 %v10630
    %v10632 = vpop.f32.mrb[0].mxu0
    %v10633 = vadd.f32 %v10558, %v10632
    %v10634 = vpop.f32.mrb[0].mxu0
    %10635 = vdwg.mxu0
    %10636 = vmatprep.subr.mxu0 0.0
    %v10637 = vand.u32 %v7266, 4294901760
    %v10638 = vsub.f32 %v7266, %v10637
    %v10639 = vand.u32 %v10638, 4294901760
    %10640 = vmatpush1.msra.mxu0 %v10639
    %10641 = vmatprep.subr.mxu0 0.0
    %v10642 = vand.u32 %v10325, 4294901760
    %v10643 = vsub.f32 %v10325, %v10642
    %v10644 = vand.u32 %v10643, 4294901760
    %10645 = vmatpush1.msra.mxu0 %v10644
    %10646 = vmatprep.subr.mxu0 0.0
    %10647 = vmatpush1.msra.mxu0 0.0
    %10648 = vmatprep.subr.mxu0 0.0
    %10649 = vmatpush1.msra.mxu0 0.0
    %10650 = vmatprep.subr.mxu0 0.0
    %10651 = vmatpush1.msra.mxu0 0.0
    %10652 = vmatprep.subr.mxu0 0.0
    %10653 = vmatpush1.msra.mxu0 0.0
    %10654 = vmatprep.subr.mxu0 0.0
    %10655 = vmatpush1.msra.mxu0 0.0
    %10656 = vmatprep.subr.mxu0 0.0
    %10657 = vmatpush1.msra.mxu0 0.0
    %10658 = vmatprep.subr.mxu0 0.0
    %10659 = vmatpush1.msra.mxu0 0.0
    %10660 = vmatprep.subr.mxu0 0.0
    %10661 = vmatpush1.msra.mxu0 0.0
    %10662 = vmatprep.subr.mxu0 0.0
    %10663 = vmatpush1.msra.mxu0 0.0
    %10664 = vmatprep.subr.mxu0 0.0
    %10665 = vmatpush1.msra.mxu0 0.0
    %10666 = vmatprep.subr.mxu0 0.0
    %10667 = vmatpush1.msra.mxu0 0.0
    %10668 = vmatprep.subr.mxu0 0.0
    %10669 = vmatpush1.msra.mxu0 0.0
    %10670 = vmatprep.subr.mxu0 0.0
    %10671 = vmatpush1.msra.mxu0 0.0
    %10672 = vmatprep.subr.mxu0 0.0
    %10673 = vmatpush1.msra.mxu0 0.0
    %10674 = vmatprep.subr.mxu0 0.0
    %10675 = vmatpush1.msra.mxu0 0.0
    %10676 = vmatprep.subr.mxu0 0.0
    %10677 = vmatpush1.msra.mxu0 0.0
    %10678 = vmatprep.subr.mxu0 0.0
    %10679 = vmatpush1.msra.mxu0 0.0
    %10680 = vmatprep.subr.mxu0 0.0
    %10681 = vmatpush1.msra.mxu0 0.0
    %10682 = vmatprep.subr.mxu0 0.0
    %10683 = vmatpush1.msra.mxu0 0.0
    %10684 = vmatprep.subr.mxu0 0.0
    %10685 = vmatpush1.msra.mxu0 0.0
    %10686 = vmatprep.subr.mxu0 0.0
    %10687 = vmatpush1.msra.mxu0 0.0
    %10688 = vmatprep.subr.mxu0 0.0
    %10689 = vmatpush1.msra.mxu0 0.0
    %10690 = vmatprep.subr.mxu0 0.0
    %10691 = vmatpush1.msra.mxu0 0.0
    %10692 = vmatprep.subr.mxu0 0.0
    %10693 = vmatpush1.msra.mxu0 0.0
    %10694 = vmatprep.subr.mxu0 0.0
    %10695 = vmatpush1.msra.mxu0 0.0
    %10696 = vmatprep.subr.mxu0 0.0
    %10697 = vmatpush1.msra.mxu0 0.0
    %10698 = vmatprep.subr.mxu0 0.0
    %10699 = vmatpush1.msra.mxu0 0.0
    %10700 = vmatprep.subr.mxu0 0.0
    %10701 = vmatpush1.msra.mxu0 0.0
    %10702 = vmatprep.subr.mxu0 0.0
    %10703 = vmatpush1.msra.mxu0 0.0
    %10704 = vmatprep.subr.mxu0 0.0
    %10705 = vmatpush1.msra.mxu0 0.0
    %10706 = vmatprep.mubr.f32.mxu0 0.0
    %v10707 = vand.u32 %v10322, 4294901760
    %10708 = vmatmul.mubr.f32.gmra.mrb[0].mxu0 %v10707
    %v10709 = vpop.f32.mrb[0].mxu0
    %v10710 = vadd.f32 %v10633, %v10709
    %v10711 = vpop.f32.mrb[0].mxu0
    %10712 = vdwg.mxu0
    %10713 = vmatprep.subr.mxu0 0.0
    %v10714 = vand.u32 %v7266, 4294901760
    %10715 = vmatpush1.msra.mxu0 %v10714
    %10716 = vmatprep.subr.mxu0 0.0
    %v10717 = vand.u32 %v10325, 4294901760
    %10718 = vmatpush1.msra.mxu0 %v10717
    %10719 = vmatprep.subr.mxu0 0.0
    %10720 = vmatpush1.msra.mxu0 0.0
    %10721 = vmatprep.subr.mxu0 0.0
    %10722 = vmatpush1.msra.mxu0 0.0
    %10723 = vmatprep.subr.mxu0 0.0
    %10724 = vmatpush1.msra.mxu0 0.0
    %10725 = vmatprep.subr.mxu0 0.0
    %10726 = vmatpush1.msra.mxu0 0.0
    %10727 = vmatprep.subr.mxu0 0.0
    %10728 = vmatpush1.msra.mxu0 0.0
    %10729 = vmatprep.subr.mxu0 0.0
    %10730 = vmatpush1.msra.mxu0 0.0
    %10731 = vmatprep.subr.mxu0 0.0
    %10732 = vmatpush1.msra.mxu0 0.0
    %10733 = vmatprep.subr.mxu0 0.0
    %10734 = vmatpush1.msra.mxu0 0.0
    %10735 = vmatprep.subr.mxu0 0.0
    %10736 = vmatpush1.msra.mxu0 0.0
    %10737 = vmatprep.subr.mxu0 0.0
    %10738 = vmatpush1.msra.mxu0 0.0
    %10739 = vmatprep.subr.mxu0 0.0
    %10740 = vmatpush1.msra.mxu0 0.0
    %10741 = vmatprep.subr.mxu0 0.0
    %10742 = vmatpush1.msra.mxu0 0.0
    %10743 = vmatprep.subr.mxu0 0.0
    %10744 = vmatpush1.msra.mxu0 0.0
    %10745 = vmatprep.subr.mxu0 0.0
    %10746 = vmatpush1.msra.mxu0 0.0
    %10747 = vmatprep.subr.mxu0 0.0
    %10748 = vmatpush1.msra.mxu0 0.0
    %10749 = vmatprep.subr.mxu0 0.0
    %10750 = vmatpush1.msra.mxu0 0.0
    %10751 = vmatprep.subr.mxu0 0.0
    %10752 = vmatpush1.msra.mxu0 0.0
    %10753 = vmatprep.subr.mxu0 0.0
    %10754 = vmatpush1.msra.mxu0 0.0
    %10755 = vmatprep.subr.mxu0 0.0
    %10756 = vmatpush1.msra.mxu0 0.0
    %10757 = vmatprep.subr.mxu0 0.0
    %10758 = vmatpush1.msra.mxu0 0.0
    %10759 = vmatprep.subr.mxu0 0.0
    %10760 = vmatpush1.msra.mxu0 0.0
    %10761 = vmatprep.subr.mxu0 0.0
    %10762 = vmatpush1.msra.mxu0 0.0
    %10763 = vmatprep.subr.mxu0 0.0
    %10764 = vmatpush1.msra.mxu0 0.0
    %10765 = vmatprep.subr.mxu0 0.0
    %10766 = vmatpush1.msra.mxu0 0.0
    %10767 = vmatprep.subr.mxu0 0.0
    %10768 = vmatpush1.msra.mxu0 0.0
    %10769 = vmatprep.subr.mxu0 0.0
    %10770 = vmatpush1.msra.mxu0 0.0
    %10771 = vmatprep.subr.mxu0 0.0
    %10772 = vmatpush1.msra.mxu0 0.0
    %10773 = vmatprep.subr.mxu0 0.0
    %10774 = vmatpush1.msra.mxu0 0.0
    %10775 = vmatprep.subr.mxu0 0.0
    %10776 = vmatpush1.msra.mxu0 0.0
    %10777 = vmatprep.subr.mxu0 0.0
    %10778 = vmatpush1.msra.mxu0 0.0
    %10779 = vmatprep.mubr.f32.mxu0 0.0
    %v10780 = vand.u32 %v10322, 4294901760
    %10781 = vmatmul.mubr.f32.gmra.mrb[0].mxu0 %v10780
    %v10782 = vpop.f32.mrb[0].mxu0
    %v10783 = vadd.f32 %v10710, %v10782
    %v10784 = vpop.f32.mrb[0].mxu0
    %10785 = vdwg.mxu0
    %s10786 = scalar_lea.vmem [#allocation10], 16
    %10787 = vst [vmem:[%s10786] sm:$0xff] %v10783
    // Predicated region
    $region34: #{tpu_custom_call.1} parent=1 // pred_check
      _
    $region35: #{tpu_custom_call.1} parent=1 // pred_check_branch
      %10789 = sbr.rel (0) target = $region37
    $region36: #{tpu_custom_call.1} parent=1 // pred_region
      %s10791 = ssub.s32 384, 384
      %10792 = vsyncadd [#allocation4], %s10791
      %s10793 = sshll.u32 [#allocation10], 4
      %s10794 = int_to_ptr.vmem [resolvable:$true] %s10793
      %10799 = dma.vmem_to_hbm [thread:$0]  %s10794, 384, %s4, [#allocation4], 128, 128, 8
    $region37: #{tpu_custom_call.1} parent=1 // pred_fallthru
      _
    // Predicated region
    $region38: #{tpu_custom_call.1} parent=1 // pred_check
      _
    $region39: #{tpu_custom_call.1} parent=1 // pred_check_branch
      %10801 = sbr.rel (0) target = $region41
    $region40: #{tpu_custom_call.1} parent=1 // pred_region
      %10802 = dma.done [#allocation4], 384
    $region41: #{tpu_custom_call.1} parent=1 // pred_fallthru
      _
    %10803 = vsyncpa [#allocation3], 1
    %10804 = vsyncpa [#allocation6], 1
    %10805 = vsyncpa [#allocation9], 1
    %10806 = vsyncpa [#allocation4], 1

</llo_original>
